<compile_context>
chip_gen: v7x
topology: tpu7x:2x2x1
jax: 0.10.0
libtpu: 0.0.40
codegen_flags: <defaults>
</compile_context>

<pallas_src>
import jax
import jax.numpy as jnp
from jax.experimental import pallas as pl
from jax.experimental.pallas import tpu as pltpu

_BN_EPS = 1e-5

_K1, _K = 7, 3                      # conv1 kernel, conv2..5 kernel
_C1, _C2, _C3, _C4, _C5 = 32, 64, 128, 256, 512
_NSEG = 4                           # AdaptiveMaxPool1d(4)
_HID, _OUT = 256, 2
_LANE = 128                         # channel / logit lane padding


def _leaky02(v):
    return jnp.where(v > 0, v, 0.2 * v)


def _relu(v):
    return jnp.maximum(v, 0.0)


def _round_up(a, b):
    return -(-a // b) * b


def _make_fused_kernel(bt, s_stride, l5):
    """Forward pass for one tile of `bt` batch rows; everything stays in VMEM.

    Activations are a flat (bt * s_stride, C) slab: row b*s_stride + j holds
    position j of batch row b.  Rows with j beyond a layer's valid length are
    garbage but are never read by any valid downstream row.
    """
    m0 = bt * s_stride

    def kernel(xp_ref,
               w1e_ref, w1o_ref, s1_ref, t1_ref,
               w2_ref, s2_ref, t2_ref,
               w3_ref, s3_ref, t3_ref,
               w4_ref, s4_ref, t4_ref,
               w5_ref, s5_ref, t5_ref,
               fw1_ref, fb1_ref, fw2_ref, fb2_ref,
               o_ref):
        # ---- conv1 + BN + LeakyReLU(0.2), MaxPool1d(2,2) folded in --------
        # xp rows enumerate (batch row, pooled position j); the 8 lanes hold
        # taps x[2j .. 2j+7].  Even/odd conv1 outputs = two M=m0 matmuls; the
        # pool is an elementwise max (applied after BN+act, which is exact).
        xp = xp_ref[...].astype(jnp.bfloat16)                          # (m0, 8)
        ye = jnp.dot(xp, w1e_ref[...], preferred_element_type=jnp.float32)
        yo = jnp.dot(xp, w1o_ref[...], preferred_element_type=jnp.float32)
        s1 = s1_ref[...]
        t1 = t1_ref[...]
        y = jnp.maximum(_leaky02(ye * s1 + t1),
                        _leaky02(yo * s1 + t1))                        # (m0, 128)

        # 8 trailing scratch rows so all four K=3 convs can take equal-length
        # shifted tap slices; conv5's output lands back on exactly m0 rows.
        y = jnp.concatenate([y, jnp.zeros((8, _LANE), jnp.float32)], axis=0)

        def conv(y, w_ref, s_ref, t_ref, act):
            # K=3 accumulating dots: z[r] = sum_k y[r+k] @ w[k]  (f32 acc).
            m = y.shape[0] - (_K - 1)
            yb = y.astype(jnp.bfloat16)
            z = jnp.dot(yb[0:m], w_ref[0], preferred_element_type=jnp.float32)
            z = z + jnp.dot(yb[1:m + 1], w_ref[1],
                            preferred_element_type=jnp.float32)
            z = z + jnp.dot(yb[2:m + 2], w_ref[2],
                            preferred_element_type=jnp.float32)
            return act(z * s_ref[...] + t_ref[...])

        y = conv(y, w2_ref, s2_ref, t2_ref, _leaky02)   # (m0 + 6, 128)
        y = conv(y, w3_ref, s3_ref, t3_ref, _relu)      # (m0 + 4, 128)
        y = conv(y, w4_ref, s4_ref, t4_ref, _relu)      # (m0 + 2, 256)
        y = conv(y, w5_ref, s5_ref, t5_ref, _relu)      # (m0,     512)

        # ---- AdaptiveMaxPool1d(4) + flatten (segment-major lane concat) ----
        # s_stride % 8 == 0, so this reshape only regroups whole sublane tiles.
        y3 = y.reshape(bt, s_stride, _C5)
        segs = []
        for i in range(_NSEG):
            lo = (i * l5) // _NSEG
            hi = -(-((i + 1) * l5) // _NSEG)
            segs.append(jnp.max(y3[:, lo:hi, :], axis=1))              # (bt, 512)
        flat = jnp.concatenate(segs, axis=1).astype(jnp.bfloat16)      # (bt, 2048)

        # ---- fc head (Dropout p=0.2 is eval-mode identity) ----------------
        h = jnp.dot(flat, fw1_ref[...], preferred_element_type=jnp.float32)
        h = _leaky02(h + fb1_ref[...])                                 # (bt, 256)
        logits = jnp.dot(h.astype(jnp.bfloat16), fw2_ref[...],
                         preferred_element_type=jnp.float32) + fb2_ref[...]
        o_ref[...] = logits.astype(o_ref.dtype)                        # (bt, 128)

    return kernel


def init_params(key):
    """Deterministic synthetic parameters matching the PyTorch module.

    Conv weights are generated as (K, Cin, Cout) (w[k,ci,co] == w_pt[co,ci,k]),
    zero-padded to lane-dense channel counts, stored per-tap in bf16.
    Eval-mode BatchNorm (running mean=0 / var=1) + conv bias are folded into
    per-channel f32 scale/shift (padded channels get 0/0 so they stay exactly
    zero through every layer).  conv1 additionally gets even/odd stride-2 tap
    matrices (MaxPool folded in).  fc1's weight is permuted from PyTorch's
    channel-major flatten (f = c*4 + seg) to the kernel's segment-major order
    (r = seg*512 + c), and the fc head is zero-padded to 128 output lanes.
    """
    ks = jax.random.split(key, 9)

    def conv_block(k, cin, cout, ksz, cin_pad, cout_pad):
        k1, k2, k3, k4 = jax.random.split(k, 4)
        w = 0.1 * jax.random.normal(k1, (ksz, cin, cout), jnp.float32)
        bias = 0.1 * jax.random.normal(k2, (cout,), jnp.float32)
        gamma = 1.0 + 0.1 * jax.random.normal(k3, (cout,), jnp.float32)
        beta = 0.1 * jax.random.normal(k4, (cout,), jnp.float32)
        rmean = jnp.zeros((cout,), jnp.float32)
        rvar = jnp.ones((cout,), jnp.float32)
        scale = gamma / jnp.sqrt(rvar + _BN_EPS)
        shift = (bias - rmean) * scale + beta
        w_pad = jnp.zeros((ksz, cin_pad, cout_pad), jnp.float32)
        w_pad = w_pad.at[:, :cin, :cout].set(w)
        return {"w": w_pad.astype(jnp.bfloat16),
                "scale": jnp.zeros((1, cout_pad), jnp.float32).at[0, :cout].set(scale),
                "shift": jnp.zeros((1, cout_pad), jnp.float32).at[0, :cout].set(shift)}

    c1 = conv_block(ks[0], 1, _C1, _K1, 1, _LANE)
    w1 = c1["w"].astype(jnp.float32)[:, 0, :]                          # (7, 128)
    # xp[b,j,k] = x[b, 2j+k]:  even output (l=2j) uses taps 0..6,
    #                          odd output (l=2j+1) uses taps 1..7.
    w1e = jnp.zeros((8, _LANE), jnp.float32).at[0:_K1, :].set(w1)
    w1o = jnp.zeros((8, _LANE), jnp.float32).at[1:_K1 + 1, :].set(w1)

    fc1_w = 0.02 * jax.random.normal(ks[5], (_C5 * _NSEG, _HID), jnp.float32)
    fc1_w = (fc1_w.reshape(_C5, _NSEG, _HID)     # rows f = c*4 + seg
             .transpose(1, 0, 2)                 # -> (seg, c, hid)
             .reshape(_NSEG * _C5, _HID))        # rows r = seg*512 + c

    fc_w = 0.02 * jax.random.normal(ks[7], (_HID, _OUT), jnp.float32)
    fc_b = 0.02 * jax.random.normal(ks[8], (_OUT,), jnp.float32)

    return {
        "w1e": w1e.astype(jnp.bfloat16), "w1o": w1o.astype(jnp.bfloat16),
        "s1": c1["scale"], "t1": c1["shift"],
        "conv2": conv_block(ks[1], _C1, _C2, _K, _LANE, _LANE),
        "conv3": conv_block(ks[2], _C2, _C3, _K, _LANE, _C3),
        "conv4": conv_block(ks[3], _C3, _C4, _K, _C3, _C4),
        "conv5": conv_block(ks[4], _C4, _C5, _K, _C4, _C5),
        "fc1_w": fc1_w.astype(jnp.bfloat16),
        "fc1_b": 0.02 * jax.random.normal(ks[6], (1, _HID), jnp.float32),
        "fc_w": (jnp.zeros((_HID, _LANE), jnp.float32).at[:, :_OUT].set(fc_w)
                 ).astype(jnp.bfloat16),
        "fc_b": jnp.zeros((1, _LANE), jnp.float32).at[0, :_OUT].set(fc_b),
    }


def cnn_1d_forward(params, x_ncl, b_tile=32):
    """x_ncl: (B, 1, L) float32 (PyTorch NCL layout). Returns (B, 2) logits.

    `b_tile` batch rows are stacked along the matmul M dimension per grid
    step (conv matmuls get M = b_tile * S).  b_tile >= 8 gives M >= 256;
    keep b_tile <= B/2 if you want the "parallel" tile axis to split across
    v7x's two TensorCores.
    """
    B, cin, L = x_ncl.shape
    assert cin == 1
    L1c = L - _K1 + 1
    P1 = L1c // 2                          # MaxPool1d(2,2), floor semantics
    L5 = P1 - 4 * (_K - 1)                 # length after conv2..conv5
    assert L5 >= _NSEG, "input too short for AdaptiveMaxPool1d(4)"
    S = _round_up(P1, 8)                   # per-batch-row stride of the slab

    b_tile = max(8, _round_up(min(b_tile, _round_up(B, 8)), 8))
    B_pad = _round_up(B, b_tile)
    n_tiles = B_pad // b_tile

    # conv1 strided im2col patches (MaxPool folded in): xp[b, j, k] = x[b, 2j+k].
    x = x_ncl[:, 0, :]
    idx = 2 * jnp.arange(S)[:, None] + jnp.arange(8)[None, :]          # (S, 8)
    valid = (jnp.arange(S)[:, None] < P1) & (idx < L)
    xp = jnp.where(valid[None, :, :], x[:, jnp.clip(idx, 0, L - 1)], 0.0)
    xp = jnp.pad(xp, ((0, B_pad - B), (0, 0), (0, 0)))                 # (B_pad,S,8)
    xp_flat = xp.reshape(B_pad * S, 8)

    wargs = [params["w1e"], params["w1o"], params["s1"], params["t1"]]
    for name in ("conv2", "conv3", "conv4", "conv5"):
        c = params[name]
        wargs += [c["w"], c["scale"], c["shift"]]
    wargs += [params["fc1_w"], params["fc1_b"], params["fc_w"], params["fc_b"]]

    def wspec(a):   # whole-array block, constant index map -> fetched once
        return pl.BlockSpec(a.shape, lambda t: (0,) * a.ndim)

    kernel = _make_fused_kernel(b_tile, S, L5)
    out = pl.pallas_call(
        kernel,
        out_shape=jax.ShapeDtypeStruct((B_pad, _LANE), jnp.float32),
        grid=(n_tiles,),
        in_specs=[pl.BlockSpec((b_tile * S, 8), lambda t: (t, 0))]
                 + [wspec(a) for a in wargs],
        out_specs=pl.BlockSpec((b_tile, _LANE), lambda t: (t, 0)),
        compiler_params=pltpu.CompilerParams(
            dimension_semantics=("parallel",),
            vmem_limit_bytes=32 * 1024 * 1024),
    )(xp_flat, *wargs)
    return out[:B, :_OUT]


def _reference_forward(params, x_ncl):
    """Pure-JAX f32 reference using the same folded-BN / bf16-rounded weights."""
    x = x_ncl[:, 0, :].astype(jnp.float32)
    L = x.shape[-1]
    L1c = L - _K1 + 1
    w1 = params["w1e"].astype(jnp.float32)[:_K1, :]
    patches = jnp.stack([x[:, k:k + L1c] for k in range(_K1)], axis=-1)
    y = jnp.einsum("blk,kc->blc", patches, w1)
    y = _leaky02(y * params["s1"][0] + params["t1"][0])
    P1 = L1c // 2
    y = jnp.maximum(y[:, 0:2 * P1:2, :], y[:, 1:2 * P1:2, :])

    def conv(y, c, act):
        w = c["w"].astype(jnp.float32)
        lo = y.shape[1] - _K + 1
        z = sum(jnp.einsum("blc,cd->bld", y[:, k:k + lo, :], w[k])
                for k in range(_K))
        return act(z * c["scale"][0] + c["shift"][0])

    y = conv(y, params["conv2"], _leaky02)
    y = conv(y, params["conv3"], _relu)
    y = conv(y, params["conv4"], _relu)
    y = conv(y, params["conv5"], _relu)

    L5 = y.shape[1]
    segs = []
    for i in range(_NSEG):
        lo = (i * L5) // _NSEG
        hi = -(-((i + 1) * L5) // _NSEG)
        segs.append(jnp.max(y[:, lo:hi, :], axis=1))
    flat = jnp.concatenate(segs, axis=1)
    h = _leaky02(flat @ params["fc1_w"].astype(jnp.float32) + params["fc1_b"][0])
    return (h @ params["fc_w"].astype(jnp.float32) + params["fc_b"][0])[:, :_OUT]


if __name__ == "__main__":
    key = jax.random.PRNGKey(0)
    pkey, xkey = jax.random.split(key)
    params = init_params(pkey)

    # L=70: conv1 -> 64, pool -> 32, convs -> 30/28/26/24, AdaptiveMaxPool -> 4
    B, L = 16, 70
    x = jax.random.normal(xkey, (B, 1, L), jnp.float32)

    fwd = jax.jit(lambda p, v: cnn_1d_forward(p, v, b_tile=8))  # 2 grid steps
    out = jax.block_until_ready(fwd(params, x))
    assert out.shape == (B, _OUT) and out.dtype == jnp.float32

    ref = _reference_forward(params, x)
    err = float(jnp.max(jnp.abs(out - ref)))
    assert err < 5e-2, f"kernel/reference mismatch: max abs err = {err}"
    print("KERNEL_OK")
</pallas_src>

<mosaic_0001>
module attributes {stable_mosaic.version = 11 : i64} {
  func.func @kernel(%arg0: i32, %arg1: memref<256x8xf32, #tpu.memory_space<vmem>>, %arg2: memref<8x128xbf16, #tpu.memory_space<vmem>>, %arg3: memref<8x128xbf16, #tpu.memory_space<vmem>>, %arg4: memref<1x128xf32, #tpu.memory_space<vmem>>, %arg5: memref<1x128xf32, #tpu.memory_space<vmem>>, %arg6: memref<3x128x128xbf16, #tpu.memory_space<vmem>>, %arg7: memref<1x128xf32, #tpu.memory_space<vmem>>, %arg8: memref<1x128xf32, #tpu.memory_space<vmem>>, %arg9: memref<3x128x128xbf16, #tpu.memory_space<vmem>>, %arg10: memref<1x128xf32, #tpu.memory_space<vmem>>, %arg11: memref<1x128xf32, #tpu.memory_space<vmem>>, %arg12: memref<3x128x256xbf16, #tpu.memory_space<vmem>>, %arg13: memref<1x256xf32, #tpu.memory_space<vmem>>, %arg14: memref<1x256xf32, #tpu.memory_space<vmem>>, %arg15: memref<3x256x512xbf16, #tpu.memory_space<vmem>>, %arg16: memref<1x512xf32, #tpu.memory_space<vmem>>, %arg17: memref<1x512xf32, #tpu.memory_space<vmem>>, %arg18: memref<2048x256xbf16, #tpu.memory_space<vmem>>, %arg19: memref<1x256xf32, #tpu.memory_space<vmem>>, %arg20: memref<256x128xbf16, #tpu.memory_space<vmem>>, %arg21: memref<1x128xf32, #tpu.memory_space<vmem>>, %arg22: memref<8x128xf32, #tpu.memory_space<vmem>>) attributes {dimension_semantics = [#tpu.dimension_semantics<parallel>], iteration_bounds = array<i64: 2>, scalar_prefetch = 0 : i64, scratch_operands = 0 : i64, tpu.core_type = #tpu.core_type<tc>, window_params = [{transform_indices = @transform_0, window_bounds = array<i64: 256, 8>}, {pipeline_mode = #tpu.pipeline_mode<synchronous>, transform_indices = @transform_1, window_bounds = array<i64: 8, 128>}, {pipeline_mode = #tpu.pipeline_mode<synchronous>, transform_indices = @transform_2, window_bounds = array<i64: 8, 128>}, {pipeline_mode = #tpu.pipeline_mode<synchronous>, transform_indices = @transform_3, window_bounds = array<i64: 1, 128>}, {pipeline_mode = #tpu.pipeline_mode<synchronous>, transform_indices = @transform_4, window_bounds = array<i64: 1, 128>}, {pipeline_mode = #tpu.pipeline_mode<synchronous>, transform_indices = @transform_5, window_bounds = array<i64: 3, 128, 128>}, {pipeline_mode = #tpu.pipeline_mode<synchronous>, transform_indices = @transform_6, window_bounds = array<i64: 1, 128>}, {pipeline_mode = #tpu.pipeline_mode<synchronous>, transform_indices = @transform_7, window_bounds = array<i64: 1, 128>}, {pipeline_mode = #tpu.pipeline_mode<synchronous>, transform_indices = @transform_8, window_bounds = array<i64: 3, 128, 128>}, {pipeline_mode = #tpu.pipeline_mode<synchronous>, transform_indices = @transform_9, window_bounds = array<i64: 1, 128>}, {pipeline_mode = #tpu.pipeline_mode<synchronous>, transform_indices = @transform_10, window_bounds = array<i64: 1, 128>}, {pipeline_mode = #tpu.pipeline_mode<synchronous>, transform_indices = @transform_11, window_bounds = array<i64: 3, 128, 256>}, {pipeline_mode = #tpu.pipeline_mode<synchronous>, transform_indices = @transform_12, window_bounds = array<i64: 1, 256>}, {pipeline_mode = #tpu.pipeline_mode<synchronous>, transform_indices = @transform_13, window_bounds = array<i64: 1, 256>}, {pipeline_mode = #tpu.pipeline_mode<synchronous>, transform_indices = @transform_14, window_bounds = array<i64: 3, 256, 512>}, {pipeline_mode = #tpu.pipeline_mode<synchronous>, transform_indices = @transform_15, window_bounds = array<i64: 1, 512>}, {pipeline_mode = #tpu.pipeline_mode<synchronous>, transform_indices = @transform_16, window_bounds = array<i64: 1, 512>}, {pipeline_mode = #tpu.pipeline_mode<synchronous>, transform_indices = @transform_17, window_bounds = array<i64: 2048, 256>}, {pipeline_mode = #tpu.pipeline_mode<synchronous>, transform_indices = @transform_18, window_bounds = array<i64: 1, 256>}, {pipeline_mode = #tpu.pipeline_mode<synchronous>, transform_indices = @transform_19, window_bounds = array<i64: 256, 128>}, {pipeline_mode = #tpu.pipeline_mode<synchronous>, transform_indices = @transform_20, window_bounds = array<i64: 1, 128>}, {transform_indices = @transform_21, window_bounds = array<i64: 8, 128>}]} {
    %c0 = arith.constant 0 : index
    %c0_0 = arith.constant 0 : index
    %0 = vector.load %arg1[%c0, %c0_0] : memref<256x8xf32, #tpu.memory_space<vmem>>, vector<256x8xf32>
    %1 = arith.truncf %0 : vector<256x8xf32> to vector<256x8xbf16>
    %c0_1 = arith.constant 0 : index
    %c0_2 = arith.constant 0 : index
    %2 = vector.load %arg2[%c0_1, %c0_2] : memref<8x128xbf16, #tpu.memory_space<vmem>>, vector<8x128xbf16>
    %cst = arith.constant dense<0.000000e+00> : vector<256x128xf32>
    %3 = tpu.matmul %1, %2, %cst {dimension_numbers = #tpu.dot_dimension_numbers<[1], [0], [0], [1], [0, 0, 1, 1], [], []>} : vector<256x8xbf16>, vector<8x128xbf16>, vector<256x128xf32> -> vector<256x128xf32>
    %c0_3 = arith.constant 0 : index
    %c0_4 = arith.constant 0 : index
    %4 = vector.load %arg3[%c0_3, %c0_4] : memref<8x128xbf16, #tpu.memory_space<vmem>>, vector<8x128xbf16>
    %cst_5 = arith.constant dense<0.000000e+00> : vector<256x128xf32>
    %5 = tpu.matmul %1, %4, %cst_5 {dimension_numbers = #tpu.dot_dimension_numbers<[1], [0], [0], [1], [0, 0, 1, 1], [], []>} : vector<256x8xbf16>, vector<8x128xbf16>, vector<256x128xf32> -> vector<256x128xf32>
    %c0_6 = arith.constant 0 : index
    %c0_7 = arith.constant 0 : index
    %6 = vector.load %arg4[%c0_6, %c0_7] : memref<1x128xf32, #tpu.memory_space<vmem>>, vector<1x128xf32>
    %c0_8 = arith.constant 0 : index
    %c0_9 = arith.constant 0 : index
    %7 = vector.load %arg5[%c0_8, %c0_9] : memref<1x128xf32, #tpu.memory_space<vmem>>, vector<1x128xf32>
    %8 = vector.broadcast %6 : vector<1x128xf32> to vector<256x128xf32>
    %9 = arith.mulf %3, %8 : vector<256x128xf32>
    %10 = vector.broadcast %7 : vector<1x128xf32> to vector<256x128xf32>
    %11 = arith.addf %9, %10 : vector<256x128xf32>
    %cst_10 = arith.constant 0.000000e+00 : f32
    %12 = vector.broadcast %cst_10 : f32 to vector<256x128xf32>
    %13 = arith.cmpf ogt, %11, %12 : vector<256x128xf32>
    %cst_11 = arith.constant 2.000000e-01 : f32
    %14 = vector.broadcast %cst_11 : f32 to vector<256x128xf32>
    %15 = arith.mulf %14, %11 : vector<256x128xf32>
    %16 = arith.select %13, %11, %15 : vector<256x128xi1>, vector<256x128xf32>
    %17 = vector.broadcast %6 : vector<1x128xf32> to vector<256x128xf32>
    %18 = arith.mulf %5, %17 : vector<256x128xf32>
    %19 = vector.broadcast %7 : vector<1x128xf32> to vector<256x128xf32>
    %20 = arith.addf %18, %19 : vector<256x128xf32>
    %cst_12 = arith.constant 0.000000e+00 : f32
    %21 = vector.broadcast %cst_12 : f32 to vector<256x128xf32>
    %22 = arith.cmpf ogt, %20, %21 : vector<256x128xf32>
    %cst_13 = arith.constant 2.000000e-01 : f32
    %23 = vector.broadcast %cst_13 : f32 to vector<256x128xf32>
    %24 = arith.mulf %23, %20 : vector<256x128xf32>
    %25 = arith.select %22, %20, %24 : vector<256x128xi1>, vector<256x128xf32>
    %26 = arith.maximumf %16, %25 : vector<256x128xf32>
    %cst_14 = arith.constant 0.000000e+00 : f32
    %27 = vector.broadcast %cst_14 : f32 to vector<8x128xf32>
    %28 = tpu.concatenate %26, %27 in 0 : vector<256x128xf32>, vector<8x128xf32> -> vector<264x128xf32>
    %29 = arith.truncf %28 : vector<264x128xf32> to vector<264x128xbf16>
    %30 = vector.extract_strided_slice %29 {offsets = [0, 0], sizes = [262, 128], strides = [1, 1]} : vector<264x128xbf16> to vector<262x128xbf16>
    %c0_15 = arith.constant 0 : index
    %c0_16 = arith.constant 0 : index
    %c0_17 = arith.constant 0 : index
    %31 = vector.load %arg6[%c0_15, %c0_16, %c0_17] : memref<3x128x128xbf16, #tpu.memory_space<vmem>>, vector<1x128x128xbf16>
    %32 = vector.shape_cast %31 : vector<1x128x128xbf16> to vector<128x128xbf16>
    %cst_18 = arith.constant dense<0.000000e+00> : vector<262x128xf32>
    %33 = tpu.matmul %30, %32, %cst_18 {dimension_numbers = #tpu.dot_dimension_numbers<[1], [0], [0], [1], [0, 0, 1, 1], [], []>} : vector<262x128xbf16>, vector<128x128xbf16>, vector<262x128xf32> -> vector<262x128xf32>
    %34 = vector.extract_strided_slice %29 {offsets = [1, 0], sizes = [262, 128], strides = [1, 1]} : vector<264x128xbf16> to vector<262x128xbf16>
    %c1 = arith.constant 1 : index
    %c0_19 = arith.constant 0 : index
    %c0_20 = arith.constant 0 : index
    %35 = vector.load %arg6[%c1, %c0_19, %c0_20] : memref<3x128x128xbf16, #tpu.memory_space<vmem>>, vector<1x128x128xbf16>
    %36 = vector.shape_cast %35 : vector<1x128x128xbf16> to vector<128x128xbf16>
    %cst_21 = arith.constant dense<0.000000e+00> : vector<262x128xf32>
    %37 = tpu.matmul %34, %36, %cst_21 {dimension_numbers = #tpu.dot_dimension_numbers<[1], [0], [0], [1], [0, 0, 1, 1], [], []>} : vector<262x128xbf16>, vector<128x128xbf16>, vector<262x128xf32> -> vector<262x128xf32>
    %38 = arith.addf %33, %37 : vector<262x128xf32>
    %39 = vector.extract_strided_slice %29 {offsets = [2, 0], sizes = [262, 128], strides = [1, 1]} : vector<264x128xbf16> to vector<262x128xbf16>
    %c2 = arith.constant 2 : index
    %c0_22 = arith.constant 0 : index
    %c0_23 = arith.constant 0 : index
    %40 = vector.load %arg6[%c2, %c0_22, %c0_23] : memref<3x128x128xbf16, #tpu.memory_space<vmem>>, vector<1x128x128xbf16>
    %41 = vector.shape_cast %40 : vector<1x128x128xbf16> to vector<128x128xbf16>
    %cst_24 = arith.constant dense<0.000000e+00> : vector<262x128xf32>
    %42 = tpu.matmul %39, %41, %cst_24 {dimension_numbers = #tpu.dot_dimension_numbers<[1], [0], [0], [1], [0, 0, 1, 1], [], []>} : vector<262x128xbf16>, vector<128x128xbf16>, vector<262x128xf32> -> vector<262x128xf32>
    %43 = arith.addf %38, %42 : vector<262x128xf32>
    %c0_25 = arith.constant 0 : index
    %c0_26 = arith.constant 0 : index
    %44 = vector.load %arg7[%c0_25, %c0_26] : memref<1x128xf32, #tpu.memory_space<vmem>>, vector<1x128xf32>
    %45 = vector.broadcast %44 : vector<1x128xf32> to vector<262x128xf32>
    %46 = arith.mulf %43, %45 : vector<262x128xf32>
    %c0_27 = arith.constant 0 : index
    %c0_28 = arith.constant 0 : index
    %47 = vector.load %arg8[%c0_27, %c0_28] : memref<1x128xf32, #tpu.memory_space<vmem>>, vector<1x128xf32>
    %48 = vector.broadcast %47 : vector<1x128xf32> to vector<262x128xf32>
    %49 = arith.addf %46, %48 : vector<262x128xf32>
    %cst_29 = arith.constant 0.000000e+00 : f32
    %50 = vector.broadcast %cst_29 : f32 to vector<262x128xf32>
    %51 = arith.cmpf ogt, %49, %50 : vector<262x128xf32>
    %cst_30 = arith.constant 2.000000e-01 : f32
    %52 = vector.broadcast %cst_30 : f32 to vector<262x128xf32>
    %53 = arith.mulf %52, %49 : vector<262x128xf32>
    %54 = arith.select %51, %49, %53 : vector<262x128xi1>, vector<262x128xf32>
    %55 = arith.truncf %54 : vector<262x128xf32> to vector<262x128xbf16>
    %56 = vector.extract_strided_slice %55 {offsets = [0, 0], sizes = [260, 128], strides = [1, 1]} : vector<262x128xbf16> to vector<260x128xbf16>
    %c0_31 = arith.constant 0 : index
    %c0_32 = arith.constant 0 : index
    %c0_33 = arith.constant 0 : index
    %57 = vector.load %arg9[%c0_31, %c0_32, %c0_33] : memref<3x128x128xbf16, #tpu.memory_space<vmem>>, vector<1x128x128xbf16>
    %58 = vector.shape_cast %57 : vector<1x128x128xbf16> to vector<128x128xbf16>
    %cst_34 = arith.constant dense<0.000000e+00> : vector<260x128xf32>
    %59 = tpu.matmul %56, %58, %cst_34 {dimension_numbers = #tpu.dot_dimension_numbers<[1], [0], [0], [1], [0, 0, 1, 1], [], []>} : vector<260x128xbf16>, vector<128x128xbf16>, vector<260x128xf32> -> vector<260x128xf32>
    %60 = vector.extract_strided_slice %55 {offsets = [1, 0], sizes = [260, 128], strides = [1, 1]} : vector<262x128xbf16> to vector<260x128xbf16>
    %c1_35 = arith.constant 1 : index
    %c0_36 = arith.constant 0 : index
    %c0_37 = arith.constant 0 : index
    %61 = vector.load %arg9[%c1_35, %c0_36, %c0_37] : memref<3x128x128xbf16, #tpu.memory_space<vmem>>, vector<1x128x128xbf16>
    %62 = vector.shape_cast %61 : vector<1x128x128xbf16> to vector<128x128xbf16>
    %cst_38 = arith.constant dense<0.000000e+00> : vector<260x128xf32>
    %63 = tpu.matmul %60, %62, %cst_38 {dimension_numbers = #tpu.dot_dimension_numbers<[1], [0], [0], [1], [0, 0, 1, 1], [], []>} : vector<260x128xbf16>, vector<128x128xbf16>, vector<260x128xf32> -> vector<260x128xf32>
    %64 = arith.addf %59, %63 : vector<260x128xf32>
    %65 = vector.extract_strided_slice %55 {offsets = [2, 0], sizes = [260, 128], strides = [1, 1]} : vector<262x128xbf16> to vector<260x128xbf16>
    %c2_39 = arith.constant 2 : index
    %c0_40 = arith.constant 0 : index
    %c0_41 = arith.constant 0 : index
    %66 = vector.load %arg9[%c2_39, %c0_40, %c0_41] : memref<3x128x128xbf16, #tpu.memory_space<vmem>>, vector<1x128x128xbf16>
    %67 = vector.shape_cast %66 : vector<1x128x128xbf16> to vector<128x128xbf16>
    %cst_42 = arith.constant dense<0.000000e+00> : vector<260x128xf32>
    %68 = tpu.matmul %65, %67, %cst_42 {dimension_numbers = #tpu.dot_dimension_numbers<[1], [0], [0], [1], [0, 0, 1, 1], [], []>} : vector<260x128xbf16>, vector<128x128xbf16>, vector<260x128xf32> -> vector<260x128xf32>
    %69 = arith.addf %64, %68 : vector<260x128xf32>
    %c0_43 = arith.constant 0 : index
    %c0_44 = arith.constant 0 : index
    %70 = vector.load %arg10[%c0_43, %c0_44] : memref<1x128xf32, #tpu.memory_space<vmem>>, vector<1x128xf32>
    %71 = vector.broadcast %70 : vector<1x128xf32> to vector<260x128xf32>
    %72 = arith.mulf %69, %71 : vector<260x128xf32>
    %c0_45 = arith.constant 0 : index
    %c0_46 = arith.constant 0 : index
    %73 = vector.load %arg11[%c0_45, %c0_46] : memref<1x128xf32, #tpu.memory_space<vmem>>, vector<1x128xf32>
    %74 = vector.broadcast %73 : vector<1x128xf32> to vector<260x128xf32>
    %75 = arith.addf %72, %74 : vector<260x128xf32>
    %cst_47 = arith.constant 0.000000e+00 : f32
    %76 = vector.broadcast %cst_47 : f32 to vector<260x128xf32>
    %77 = arith.maximumf %75, %76 : vector<260x128xf32>
    %78 = arith.truncf %77 : vector<260x128xf32> to vector<260x128xbf16>
    %79 = vector.extract_strided_slice %78 {offsets = [0, 0], sizes = [258, 128], strides = [1, 1]} : vector<260x128xbf16> to vector<258x128xbf16>
    %c0_48 = arith.constant 0 : index
    %c0_49 = arith.constant 0 : index
    %c0_50 = arith.constant 0 : index
    %80 = vector.load %arg12[%c0_48, %c0_49, %c0_50] : memref<3x128x256xbf16, #tpu.memory_space<vmem>>, vector<1x128x256xbf16>
    %81 = vector.shape_cast %80 : vector<1x128x256xbf16> to vector<128x256xbf16>
    %cst_51 = arith.constant dense<0.000000e+00> : vector<258x256xf32>
    %82 = tpu.matmul %79, %81, %cst_51 {dimension_numbers = #tpu.dot_dimension_numbers<[1], [0], [0], [1], [0, 0, 1, 1], [], []>} : vector<258x128xbf16>, vector<128x256xbf16>, vector<258x256xf32> -> vector<258x256xf32>
    %83 = vector.extract_strided_slice %78 {offsets = [1, 0], sizes = [258, 128], strides = [1, 1]} : vector<260x128xbf16> to vector<258x128xbf16>
    %c1_52 = arith.constant 1 : index
    %c0_53 = arith.constant 0 : index
    %c0_54 = arith.constant 0 : index
    %84 = vector.load %arg12[%c1_52, %c0_53, %c0_54] : memref<3x128x256xbf16, #tpu.memory_space<vmem>>, vector<1x128x256xbf16>
    %85 = vector.shape_cast %84 : vector<1x128x256xbf16> to vector<128x256xbf16>
    %cst_55 = arith.constant dense<0.000000e+00> : vector<258x256xf32>
    %86 = tpu.matmul %83, %85, %cst_55 {dimension_numbers = #tpu.dot_dimension_numbers<[1], [0], [0], [1], [0, 0, 1, 1], [], []>} : vector<258x128xbf16>, vector<128x256xbf16>, vector<258x256xf32> -> vector<258x256xf32>
    %87 = arith.addf %82, %86 : vector<258x256xf32>
    %88 = vector.extract_strided_slice %78 {offsets = [2, 0], sizes = [258, 128], strides = [1, 1]} : vector<260x128xbf16> to vector<258x128xbf16>
    %c2_56 = arith.constant 2 : index
    %c0_57 = arith.constant 0 : index
    %c0_58 = arith.constant 0 : index
    %89 = vector.load %arg12[%c2_56, %c0_57, %c0_58] : memref<3x128x256xbf16, #tpu.memory_space<vmem>>, vector<1x128x256xbf16>
    %90 = vector.shape_cast %89 : vector<1x128x256xbf16> to vector<128x256xbf16>
    %cst_59 = arith.constant dense<0.000000e+00> : vector<258x256xf32>
    %91 = tpu.matmul %88, %90, %cst_59 {dimension_numbers = #tpu.dot_dimension_numbers<[1], [0], [0], [1], [0, 0, 1, 1], [], []>} : vector<258x128xbf16>, vector<128x256xbf16>, vector<258x256xf32> -> vector<258x256xf32>
    %92 = arith.addf %87, %91 : vector<258x256xf32>
    %c0_60 = arith.constant 0 : index
    %c0_61 = arith.constant 0 : index
    %93 = vector.load %arg13[%c0_60, %c0_61] : memref<1x256xf32, #tpu.memory_space<vmem>>, vector<1x256xf32>
    %94 = vector.broadcast %93 : vector<1x256xf32> to vector<258x256xf32>
    %95 = arith.mulf %92, %94 : vector<258x256xf32>
    %c0_62 = arith.constant 0 : index
    %c0_63 = arith.constant 0 : index
    %96 = vector.load %arg14[%c0_62, %c0_63] : memref<1x256xf32, #tpu.memory_space<vmem>>, vector<1x256xf32>
    %97 = vector.broadcast %96 : vector<1x256xf32> to vector<258x256xf32>
    %98 = arith.addf %95, %97 : vector<258x256xf32>
    %cst_64 = arith.constant 0.000000e+00 : f32
    %99 = vector.broadcast %cst_64 : f32 to vector<258x256xf32>
    %100 = arith.maximumf %98, %99 : vector<258x256xf32>
    %101 = arith.truncf %100 : vector<258x256xf32> to vector<258x256xbf16>
    %102 = vector.extract_strided_slice %101 {offsets = [0, 0], sizes = [256, 256], strides = [1, 1]} : vector<258x256xbf16> to vector<256x256xbf16>
    %c0_65 = arith.constant 0 : index
    %c0_66 = arith.constant 0 : index
    %c0_67 = arith.constant 0 : index
    %103 = vector.load %arg15[%c0_65, %c0_66, %c0_67] : memref<3x256x512xbf16, #tpu.memory_space<vmem>>, vector<1x256x512xbf16>
    %104 = vector.shape_cast %103 : vector<1x256x512xbf16> to vector<256x512xbf16>
    %cst_68 = arith.constant dense<0.000000e+00> : vector<256x512xf32>
    %105 = tpu.matmul %102, %104, %cst_68 {dimension_numbers = #tpu.dot_dimension_numbers<[1], [0], [0], [1], [0, 0, 1, 1], [], []>} : vector<256x256xbf16>, vector<256x512xbf16>, vector<256x512xf32> -> vector<256x512xf32>
    %106 = vector.extract_strided_slice %101 {offsets = [1, 0], sizes = [256, 256], strides = [1, 1]} : vector<258x256xbf16> to vector<256x256xbf16>
    %c1_69 = arith.constant 1 : index
    %c0_70 = arith.constant 0 : index
    %c0_71 = arith.constant 0 : index
    %107 = vector.load %arg15[%c1_69, %c0_70, %c0_71] : memref<3x256x512xbf16, #tpu.memory_space<vmem>>, vector<1x256x512xbf16>
    %108 = vector.shape_cast %107 : vector<1x256x512xbf16> to vector<256x512xbf16>
    %cst_72 = arith.constant dense<0.000000e+00> : vector<256x512xf32>
    %109 = tpu.matmul %106, %108, %cst_72 {dimension_numbers = #tpu.dot_dimension_numbers<[1], [0], [0], [1], [0, 0, 1, 1], [], []>} : vector<256x256xbf16>, vector<256x512xbf16>, vector<256x512xf32> -> vector<256x512xf32>
    %110 = arith.addf %105, %109 : vector<256x512xf32>
    %111 = vector.extract_strided_slice %101 {offsets = [2, 0], sizes = [256, 256], strides = [1, 1]} : vector<258x256xbf16> to vector<256x256xbf16>
    %c2_73 = arith.constant 2 : index
    %c0_74 = arith.constant 0 : index
    %c0_75 = arith.constant 0 : index
    %112 = vector.load %arg15[%c2_73, %c0_74, %c0_75] : memref<3x256x512xbf16, #tpu.memory_space<vmem>>, vector<1x256x512xbf16>
    %113 = vector.shape_cast %112 : vector<1x256x512xbf16> to vector<256x512xbf16>
    %cst_76 = arith.constant dense<0.000000e+00> : vector<256x512xf32>
    %114 = tpu.matmul %111, %113, %cst_76 {dimension_numbers = #tpu.dot_dimension_numbers<[1], [0], [0], [1], [0, 0, 1, 1], [], []>} : vector<256x256xbf16>, vector<256x512xbf16>, vector<256x512xf32> -> vector<256x512xf32>
    %115 = arith.addf %110, %114 : vector<256x512xf32>
    %c0_77 = arith.constant 0 : index
    %c0_78 = arith.constant 0 : index
    %116 = vector.load %arg16[%c0_77, %c0_78] : memref<1x512xf32, #tpu.memory_space<vmem>>, vector<1x512xf32>
    %117 = vector.broadcast %116 : vector<1x512xf32> to vector<256x512xf32>
    %118 = arith.mulf %115, %117 : vector<256x512xf32>
    %c0_79 = arith.constant 0 : index
    %c0_80 = arith.constant 0 : index
    %119 = vector.load %arg17[%c0_79, %c0_80] : memref<1x512xf32, #tpu.memory_space<vmem>>, vector<1x512xf32>
    %120 = vector.broadcast %119 : vector<1x512xf32> to vector<256x512xf32>
    %121 = arith.addf %118, %120 : vector<256x512xf32>
    %cst_81 = arith.constant 0.000000e+00 : f32
    %122 = vector.broadcast %cst_81 : f32 to vector<256x512xf32>
    %123 = arith.maximumf %121, %122 : vector<256x512xf32>
    %124 = vector.shape_cast %123 : vector<256x512xf32> to vector<8x32x512xf32>
    %125 = vector.extract_strided_slice %124 {offsets = [0, 0, 0], sizes = [8, 6, 512], strides = [1, 1, 1]} : vector<8x32x512xf32> to vector<8x6x512xf32>
    %cst_82 = arith.constant dense<0xFF800000> : vector<8x512xf32>
    %126 = vector.multi_reduction <maximumf>, %125, %cst_82 [1] : vector<8x6x512xf32> to vector<8x512xf32>
    %127 = vector.extract_strided_slice %124 {offsets = [0, 6, 0], sizes = [8, 6, 512], strides = [1, 1, 1]} : vector<8x32x512xf32> to vector<8x6x512xf32>
    %cst_83 = arith.constant dense<0xFF800000> : vector<8x512xf32>
    %128 = vector.multi_reduction <maximumf>, %127, %cst_83 [1] : vector<8x6x512xf32> to vector<8x512xf32>
    %129 = vector.extract_strided_slice %124 {offsets = [0, 12, 0], sizes = [8, 6, 512], strides = [1, 1, 1]} : vector<8x32x512xf32> to vector<8x6x512xf32>
    %cst_84 = arith.constant dense<0xFF800000> : vector<8x512xf32>
    %130 = vector.multi_reduction <maximumf>, %129, %cst_84 [1] : vector<8x6x512xf32> to vector<8x512xf32>
    %131 = vector.extract_strided_slice %124 {offsets = [0, 18, 0], sizes = [8, 6, 512], strides = [1, 1, 1]} : vector<8x32x512xf32> to vector<8x6x512xf32>
    %cst_85 = arith.constant dense<0xFF800000> : vector<8x512xf32>
    %132 = vector.multi_reduction <maximumf>, %131, %cst_85 [1] : vector<8x6x512xf32> to vector<8x512xf32>
    %133 = tpu.concatenate %126, %128, %130, %132 in 1 : vector<8x512xf32>, vector<8x512xf32>, vector<8x512xf32>, vector<8x512xf32> -> vector<8x2048xf32>
    %134 = arith.truncf %133 : vector<8x2048xf32> to vector<8x2048xbf16>
    %c0_86 = arith.constant 0 : index
    %c0_87 = arith.constant 0 : index
    %135 = vector.load %arg18[%c0_86, %c0_87] : memref<2048x256xbf16, #tpu.memory_space<vmem>>, vector<2048x256xbf16>
    %cst_88 = arith.constant dense<0.000000e+00> : vector<8x256xf32>
    %136 = tpu.matmul %134, %135, %cst_88 {dimension_numbers = #tpu.dot_dimension_numbers<[1], [0], [0], [1], [0, 0, 1, 1], [], []>} : vector<8x2048xbf16>, vector<2048x256xbf16>, vector<8x256xf32> -> vector<8x256xf32>
    %c0_89 = arith.constant 0 : index
    %c0_90 = arith.constant 0 : index
    %137 = vector.load %arg19[%c0_89, %c0_90] : memref<1x256xf32, #tpu.memory_space<vmem>>, vector<1x256xf32>
    %138 = vector.broadcast %137 : vector<1x256xf32> to vector<8x256xf32>
    %139 = arith.addf %136, %138 : vector<8x256xf32>
    %cst_91 = arith.constant 0.000000e+00 : f32
    %140 = vector.broadcast %cst_91 : f32 to vector<8x256xf32>
    %141 = arith.cmpf ogt, %139, %140 : vector<8x256xf32>
    %cst_92 = arith.constant 2.000000e-01 : f32
    %142 = vector.broadcast %cst_92 : f32 to vector<8x256xf32>
    %143 = arith.mulf %142, %139 : vector<8x256xf32>
    %144 = arith.select %141, %139, %143 : vector<8x256xi1>, vector<8x256xf32>
    %145 = arith.truncf %144 : vector<8x256xf32> to vector<8x256xbf16>
    %c0_93 = arith.constant 0 : index
    %c0_94 = arith.constant 0 : index
    %146 = vector.load %arg20[%c0_93, %c0_94] : memref<256x128xbf16, #tpu.memory_space<vmem>>, vector<256x128xbf16>
    %cst_95 = arith.constant dense<0.000000e+00> : vector<8x128xf32>
    %147 = tpu.matmul %145, %146, %cst_95 {dimension_numbers = #tpu.dot_dimension_numbers<[1], [0], [0], [1], [0, 0, 1, 1], [], []>} : vector<8x256xbf16>, vector<256x128xbf16>, vector<8x128xf32> -> vector<8x128xf32>
    %c0_96 = arith.constant 0 : index
    %c0_97 = arith.constant 0 : index
    %148 = vector.load %arg21[%c0_96, %c0_97] : memref<1x128xf32, #tpu.memory_space<vmem>>, vector<1x128xf32>
    %149 = vector.broadcast %148 : vector<1x128xf32> to vector<8x128xf32>
    %150 = arith.addf %147, %149 : vector<8x128xf32>
    %c0_98 = arith.constant 0 : index
    %c0_99 = arith.constant 0 : index
    %151 = vector.load %arg22[%c0_98, %c0_99] : memref<8x128xf32, #tpu.memory_space<vmem>>, vector<8x128xf32>
    tpu.vector_store %arg22[%c0_98, %c0_99], %150 {strides = array<i32>} : memref<8x128xf32, #tpu.memory_space<vmem>>, vector<8x128xf32>,
    return
  }
  func.func @transform_0(%arg0: i32) -> (i32, i32) {
    %c0_i32 = arith.constant 0 : i32
    %c0_i32_0 = arith.constant 0 : i32
    return %arg0, %c0_i32 : i32, i32
  }
  func.func @transform_1(%arg0: i32) -> (i32, i32) {
    %c0_i32 = arith.constant 0 : i32
    %c0_i32_0 = arith.constant 0 : i32
    %c0_i32_1 = arith.constant 0 : i32
    return %c0_i32, %c0_i32_0 : i32, i32
  }
  func.func @transform_2(%arg0: i32) -> (i32, i32) {
    %c0_i32 = arith.constant 0 : i32
    %c0_i32_0 = arith.constant 0 : i32
    %c0_i32_1 = arith.constant 0 : i32
    return %c0_i32, %c0_i32_0 : i32, i32
  }
  func.func @transform_3(%arg0: i32) -> (i32, i32) {
    %c0_i32 = arith.constant 0 : i32
    %c0_i32_0 = arith.constant 0 : i32
    %c0_i32_1 = arith.constant 0 : i32
    return %c0_i32, %c0_i32_0 : i32, i32
  }
  func.func @transform_4(%arg0: i32) -> (i32, i32) {
    %c0_i32 = arith.constant 0 : i32
    %c0_i32_0 = arith.constant 0 : i32
    %c0_i32_1 = arith.constant 0 : i32
    return %c0_i32, %c0_i32_0 : i32, i32
  }
  func.func @transform_5(%arg0: i32) -> (i32, i32, i32) {
    %c0_i32 = arith.constant 0 : i32
    %c0_i32_0 = arith.constant 0 : i32
    %c0_i32_1 = arith.constant 0 : i32
    %c0_i32_2 = arith.constant 0 : i32
    return %c0_i32, %c0_i32_0, %c0_i32_1 : i32, i32, i32
  }
  func.func @transform_6(%arg0: i32) -> (i32, i32) {
    %c0_i32 = arith.constant 0 : i32
    %c0_i32_0 = arith.constant 0 : i32
    %c0_i32_1 = arith.constant 0 : i32
    return %c0_i32, %c0_i32_0 : i32, i32
  }
  func.func @transform_7(%arg0: i32) -> (i32, i32) {
    %c0_i32 = arith.constant 0 : i32
    %c0_i32_0 = arith.constant 0 : i32
    %c0_i32_1 = arith.constant 0 : i32
    return %c0_i32, %c0_i32_0 : i32, i32
  }
  func.func @transform_8(%arg0: i32) -> (i32, i32, i32) {
    %c0_i32 = arith.constant 0 : i32
    %c0_i32_0 = arith.constant 0 : i32
    %c0_i32_1 = arith.constant 0 : i32
    %c0_i32_2 = arith.constant 0 : i32
    return %c0_i32, %c0_i32_0, %c0_i32_1 : i32, i32, i32
  }
  func.func @transform_9(%arg0: i32) -> (i32, i32) {
    %c0_i32 = arith.constant 0 : i32
    %c0_i32_0 = arith.constant 0 : i32
    %c0_i32_1 = arith.constant 0 : i32
    return %c0_i32, %c0_i32_0 : i32, i32
  }
  func.func @transform_10(%arg0: i32) -> (i32, i32) {
    %c0_i32 = arith.constant 0 : i32
    %c0_i32_0 = arith.constant 0 : i32
    %c0_i32_1 = arith.constant 0 : i32
    return %c0_i32, %c0_i32_0 : i32, i32
  }
  func.func @transform_11(%arg0: i32) -> (i32, i32, i32) {
    %c0_i32 = arith.constant 0 : i32
    %c0_i32_0 = arith.constant 0 : i32
    %c0_i32_1 = arith.constant 0 : i32
    %c0_i32_2 = arith.constant 0 : i32
    return %c0_i32, %c0_i32_0, %c0_i32_1 : i32, i32, i32
  }
  func.func @transform_12(%arg0: i32) -> (i32, i32) {
    %c0_i32 = arith.constant 0 : i32
    %c0_i32_0 = arith.constant 0 : i32
    %c0_i32_1 = arith.constant 0 : i32
    return %c0_i32, %c0_i32_0 : i32, i32
  }
  func.func @transform_13(%arg0: i32) -> (i32, i32) {
    %c0_i32 = arith.constant 0 : i32
    %c0_i32_0 = arith.constant 0 : i32
    %c0_i32_1 = arith.constant 0 : i32
    return %c0_i32, %c0_i32_0 : i32, i32
  }
  func.func @transform_14(%arg0: i32) -> (i32, i32, i32) {
    %c0_i32 = arith.constant 0 : i32
    %c0_i32_0 = arith.constant 0 : i32
    %c0_i32_1 = arith.constant 0 : i32
    %c0_i32_2 = arith.constant 0 : i32
    return %c0_i32, %c0_i32_0, %c0_i32_1 : i32, i32, i32
  }
  func.func @transform_15(%arg0: i32) -> (i32, i32) {
    %c0_i32 = arith.constant 0 : i32
    %c0_i32_0 = arith.constant 0 : i32
    %c0_i32_1 = arith.constant 0 : i32
    return %c0_i32, %c0_i32_0 : i32, i32
  }
  func.func @transform_16(%arg0: i32) -> (i32, i32) {
    %c0_i32 = arith.constant 0 : i32
    %c0_i32_0 = arith.constant 0 : i32
    %c0_i32_1 = arith.constant 0 : i32
    return %c0_i32, %c0_i32_0 : i32, i32
  }
  func.func @transform_17(%arg0: i32) -> (i32, i32) {
    %c0_i32 = arith.constant 0 : i32
    %c0_i32_0 = arith.constant 0 : i32
    %c0_i32_1 = arith.constant 0 : i32
    return %c0_i32, %c0_i32_0 : i32, i32
  }
  func.func @transform_18(%arg0: i32) -> (i32, i32) {
    %c0_i32 = arith.constant 0 : i32
    %c0_i32_0 = arith.constant 0 : i32
    %c0_i32_1 = arith.constant 0 : i32
    return %c0_i32, %c0_i32_0 : i32, i32
  }
  func.func @transform_19(%arg0: i32) -> (i32, i32) {
    %c0_i32 = arith.constant 0 : i32
    %c0_i32_0 = arith.constant 0 : i32
    %c0_i32_1 = arith.constant 0 : i32
    return %c0_i32, %c0_i32_0 : i32, i32
  }
  func.func @transform_20(%arg0: i32) -> (i32, i32) {
    %c0_i32 = arith.constant 0 : i32
    %c0_i32_0 = arith.constant 0 : i32
    %c0_i32_1 = arith.constant 0 : i32
    return %c0_i32, %c0_i32_0 : i32, i32
  }
  func.func @transform_21(%arg0: i32) -> (i32, i32) {
    %c0_i32 = arith.constant 0 : i32
    %c0_i32_0 = arith.constant 0 : i32
    return %arg0, %c0_i32 : i32, i32
  }
}

</mosaic_0001>

<llo_original>
// kernel: _lambda_.1
$region0: #{_lambda_.1}
  #allocation0 [shape = 'u32[]', space=smem, size = 0x4, offset = 0x4, fixed_abs, tag = 'smem constant byte address 0x4 - core index']
  #allocation1 [shape = 'u32[144,128]{1,0:T(1,128)}', space=vmem, size = 0x12000, scoped, tag = 'internal scratch']
  %s0 = inlined_call_operand.vmem [shape: f32[512,8], index: 0, kind: input, shape index: {}]
  %s1 = inlined_call_operand.vmem [shape: bf16[8,128], index: 1, kind: input, shape index: {}]
  %s2 = inlined_call_operand.vmem [shape: bf16[8,128], index: 2, kind: input, shape index: {}]
  %s3 = inlined_call_operand.vmem [shape: f32[1,128], index: 3, kind: input, shape index: {}]
  %s4 = inlined_call_operand.vmem [shape: f32[1,128], index: 4, kind: input, shape index: {}]
  %s5 = inlined_call_operand.vmem [shape: bf16[3,128,128], index: 5, kind: input, shape index: {}]
  %s6 = inlined_call_operand.vmem [shape: f32[1,128], index: 6, kind: input, shape index: {}]
  %s7 = inlined_call_operand.vmem [shape: f32[1,128], index: 7, kind: input, shape index: {}]
  %s8 = inlined_call_operand.vmem [shape: bf16[3,128,128], index: 8, kind: input, shape index: {}]
  %s9 = inlined_call_operand.vmem [shape: f32[1,128], index: 9, kind: input, shape index: {}]
  %s10 = inlined_call_operand.vmem [shape: f32[1,128], index: 10, kind: input, shape index: {}]
  %s11 = inlined_call_operand.vmem [shape: bf16[3,128,256], index: 11, kind: input, shape index: {}]
  %s12 = inlined_call_operand.vmem [shape: f32[1,256], index: 12, kind: input, shape index: {}]
  %s13 = inlined_call_operand.vmem [shape: f32[1,256], index: 13, kind: input, shape index: {}]
  %s14 = inlined_call_operand.vmem [shape: bf16[3,256,512], index: 14, kind: input, shape index: {}]
  %s15 = inlined_call_operand.vmem [shape: f32[1,512], index: 15, kind: input, shape index: {}]
  %s16 = inlined_call_operand.vmem [shape: f32[1,512], index: 16, kind: input, shape index: {}]
  %s17 = inlined_call_operand.vmem [shape: bf16[2048,256], index: 17, kind: input, shape index: {}]
  %s18 = inlined_call_operand.vmem [shape: f32[1,256], index: 18, kind: input, shape index: {}]
  %s19 = inlined_call_operand.vmem [shape: bf16[256,128], index: 19, kind: input, shape index: {}]
  %s20 = inlined_call_operand.vmem [shape: f32[1,128], index: 20, kind: input, shape index: {}]
  %s21 = inlined_call_operand.vmem [shape: f32[16,128], index: 21, kind: output, shape index: {}]
  %s22 = sld [smem:[#allocation0]]
  $region117: #{_lambda_.1} parent=0
    _
  %s24 = ssub.s32 1, %s22
  %s25 = scalar_select 0, %s24, %s22
  loop: start=0, step=1, limit=4
  $region2: #{_lambda_.1} parent=0 // loop_pre_header
    _
  $region3: #{_lambda_.1} parent=0 // loop_header
    %s27 = sphi 0, %s31
    %p28 = scmp.ge.s32.totalorder %s27, 4
    %s37 = sphi 0, %s39
    %s40 = sphi 0, %s37
    %s41 = sphi 0, %s40
    %s57 = sphi 0, %s41
    %s61 = sphi 0, %s61
    %s63 = sphi 0, %s61
    %s64 = sphi 0, %s63
    %s78 = sphi 0, %s64
    %s82 = sphi 0, %s82
    %s84 = sphi 0, %s82
    %s85 = sphi 0, %s84
    %s99 = sphi 0, %s85
    %s103 = sphi 0, %s103
    %s105 = sphi 0, %s103
    %s106 = sphi 0, %s105
    %s120 = sphi 0, %s106
    %s124 = sphi 0, %s124
    %s126 = sphi 0, %s124
    %s127 = sphi 0, %s126
    %s141 = sphi 0, %s127
    %s145 = sphi 0, %s145
    %s147 = sphi 0, %s145
    %s148 = sphi 0, %s147
    %s162 = sphi 0, %s148
    %s166 = sphi 0, %s166
    %s168 = sphi 0, %s166
    %s169 = sphi 0, %s168
    %s183 = sphi 0, %s169
    %s187 = sphi 0, %s187
    %s189 = sphi 0, %s187
    %s190 = sphi 0, %s189
    %s204 = sphi 0, %s190
    %s208 = sphi 0, %s208
    %s210 = sphi 0, %s208
    %s211 = sphi 0, %s210
    %s225 = sphi 0, %s211
    %s229 = sphi 0, %s229
    %s231 = sphi 0, %s229
    %s232 = sphi 0, %s231
    %s246 = sphi 0, %s232
    %s250 = sphi 0, %s250
    %s252 = sphi 0, %s250
    %s253 = sphi 0, %s252
    %s267 = sphi 0, %s253
    %s271 = sphi 0, %s271
    %s273 = sphi 0, %s271
    %s274 = sphi 0, %s273
    %s288 = sphi 0, %s274
    %s292 = sphi 0, %s292
    %s294 = sphi 0, %s292
    %s295 = sphi 0, %s294
    %s309 = sphi 0, %s295
    %s313 = sphi 0, %s313
    %s315 = sphi 0, %s313
    %s316 = sphi 0, %s315
    %s330 = sphi 0, %s316
    %s334 = sphi 0, %s334
    %s336 = sphi 0, %s334
    %s337 = sphi 0, %s336
    %s351 = sphi 0, %s337
    %s355 = sphi 0, %s355
    %s357 = sphi 0, %s355
    %s358 = sphi 0, %s357
    %s372 = sphi 0, %s358
    %s376 = sphi 0, %s376
    %s378 = sphi 0, %s376
    %s379 = sphi 0, %s378
    %s393 = sphi 0, %s379
    %s397 = sphi 0, %s397
    %s399 = sphi 0, %s397
    %s400 = sphi 0, %s399
    %s414 = sphi 0, %s400
    %s418 = sphi 0, %s418
    %s420 = sphi 0, %s418
    %s421 = sphi 0, %s420
    %s435 = sphi 0, %s421
    %s439 = sphi 0, %s439
    %s441 = sphi 0, %s439
    %s442 = sphi 0, %s441
    %s456 = sphi 0, %s442
    %s460 = sphi 0, %s460
    %s462 = sphi 0, %s460
    %s463 = sphi 0, %s462
    %s477 = sphi 0, %s463
    %s483 = sphi 0, %s485
    %s486 = sphi 0, %s483
    %s487 = sphi 0, %s486
    %s503 = sphi 0, %s487
  $region4: #{_lambda_.1} parent=0 // loop_header_branch
    %30 = sbr.rel (%p28) target = $region8
  $region5: #{_lambda_.1} parent=0 // loop_body
    %s32 = ssub.s32 %s27, 1
    %s33 = ssub.s32 %s27, 2
    %s34 = sadd.s32 %s27, 1
    %s35 = ssub.s32 %s27, %s34
    %p36 = scmp.eq.s32.totalorder %s35, 0
    %s38 = sadd.s32 %s37, 1
    %s39 = scalar_select %p36, %s37, %s38
    %p42 = pneg %p36
    %p43 = scmp.eq.s32.totalorder %s27, 1
    %p44 = por %p42, %p43
    %p45 = scmp.ne.s32.totalorder %s37, %s40
    %p46 = scmp.eq.s32.totalorder %s27, 0
    %p47 = por %p45, %p46
    %p48 = scmp.ne.s32.totalorder %s37, %s40
    %p49 = scmp.eq.s32.totalorder %s32, 1
    %p50 = por %p48, %p49
    %p51 = scmp.ne.s32.totalorder %s40, %s41
    %p52 = scmp.eq.s32.totalorder %s32, 0
    %p53 = por %p51, %p52
    %p54 = scmp.ne.s32.totalorder %s40, %s41
    %p55 = scmp.eq.s32.totalorder %s33, 1
    %p56 = por %p54, %p55
    %p58 = scmp.ne.s32.totalorder %s41, %s57
    %p59 = scmp.eq.s32.totalorder %s33, 0
    %p60 = por %p58, %p59
    %s62 = sadd.s32 %s61, 1
    %p65 = scmp.eq.s32.totalorder %s27, 1
    %p66 = scmp.ne.s32.totalorder %s61, %s63
    %p67 = scmp.eq.s32.totalorder %s27, 0
    %p68 = por %p66, %p67
    %p69 = scmp.ne.s32.totalorder %s61, %s63
    %p70 = scmp.eq.s32.totalorder %s32, 1
    %p71 = por %p69, %p70
    %p72 = scmp.ne.s32.totalorder %s63, %s64
    %p73 = scmp.eq.s32.totalorder %s32, 0
    %p74 = por %p72, %p73
    %p75 = scmp.ne.s32.totalorder %s63, %s64
    %p76 = scmp.eq.s32.totalorder %s33, 1
    %p77 = por %p75, %p76
    %p79 = scmp.ne.s32.totalorder %s64, %s78
    %p80 = scmp.eq.s32.totalorder %s33, 0
    %p81 = por %p79, %p80
    %s83 = sadd.s32 %s82, 1
    %p86 = scmp.eq.s32.totalorder %s27, 1
    %p87 = scmp.ne.s32.totalorder %s82, %s84
    %p88 = scmp.eq.s32.totalorder %s27, 0
    %p89 = por %p87, %p88
    %p90 = scmp.ne.s32.totalorder %s82, %s84
    %p91 = scmp.eq.s32.totalorder %s32, 1
    %p92 = por %p90, %p91
    %p93 = scmp.ne.s32.totalorder %s84, %s85
    %p94 = scmp.eq.s32.totalorder %s32, 0
    %p95 = por %p93, %p94
    %p96 = scmp.ne.s32.totalorder %s84, %s85
    %p97 = scmp.eq.s32.totalorder %s33, 1
    %p98 = por %p96, %p97
    %p100 = scmp.ne.s32.totalorder %s85, %s99
    %p101 = scmp.eq.s32.totalorder %s33, 0
    %p102 = por %p100, %p101
    %s104 = sadd.s32 %s103, 1
    %p107 = scmp.eq.s32.totalorder %s27, 1
    %p108 = scmp.ne.s32.totalorder %s103, %s105
    %p109 = scmp.eq.s32.totalorder %s27, 0
    %p110 = por %p108, %p109
    %p111 = scmp.ne.s32.totalorder %s103, %s105
    %p112 = scmp.eq.s32.totalorder %s32, 1
    %p113 = por %p111, %p112
    %p114 = scmp.ne.s32.totalorder %s105, %s106
    %p115 = scmp.eq.s32.totalorder %s32, 0
    %p116 = por %p114, %p115
    %p117 = scmp.ne.s32.totalorder %s105, %s106
    %p118 = scmp.eq.s32.totalorder %s33, 1
    %p119 = por %p117, %p118
    %p121 = scmp.ne.s32.totalorder %s106, %s120
    %p122 = scmp.eq.s32.totalorder %s33, 0
    %p123 = por %p121, %p122
    %s125 = sadd.s32 %s124, 1
    %p128 = scmp.eq.s32.totalorder %s27, 1
    %p129 = scmp.ne.s32.totalorder %s124, %s126
    %p130 = scmp.eq.s32.totalorder %s27, 0
    %p131 = por %p129, %p130
    %p132 = scmp.ne.s32.totalorder %s124, %s126
    %p133 = scmp.eq.s32.totalorder %s32, 1
    %p134 = por %p132, %p133
    %p135 = scmp.ne.s32.totalorder %s126, %s127
    %p136 = scmp.eq.s32.totalorder %s32, 0
    %p137 = por %p135, %p136
    %p138 = scmp.ne.s32.totalorder %s126, %s127
    %p139 = scmp.eq.s32.totalorder %s33, 1
    %p140 = por %p138, %p139
    %p142 = scmp.ne.s32.totalorder %s127, %s141
    %p143 = scmp.eq.s32.totalorder %s33, 0
    %p144 = por %p142, %p143
    %s146 = sadd.s32 %s145, 1
    %p149 = scmp.eq.s32.totalorder %s27, 1
    %p150 = scmp.ne.s32.totalorder %s145, %s147
    %p151 = scmp.eq.s32.totalorder %s27, 0
    %p152 = por %p150, %p151
    %p153 = scmp.ne.s32.totalorder %s145, %s147
    %p154 = scmp.eq.s32.totalorder %s32, 1
    %p155 = por %p153, %p154
    %p156 = scmp.ne.s32.totalorder %s147, %s148
    %p157 = scmp.eq.s32.totalorder %s32, 0
    %p158 = por %p156, %p157
    %p159 = scmp.ne.s32.totalorder %s147, %s148
    %p160 = scmp.eq.s32.totalorder %s33, 1
    %p161 = por %p159, %p160
    %p163 = scmp.ne.s32.totalorder %s148, %s162
    %p164 = scmp.eq.s32.totalorder %s33, 0
    %p165 = por %p163, %p164
    %s167 = sadd.s32 %s166, 1
    %p170 = scmp.eq.s32.totalorder %s27, 1
    %p171 = scmp.ne.s32.totalorder %s166, %s168
    %p172 = scmp.eq.s32.totalorder %s27, 0
    %p173 = por %p171, %p172
    %p174 = scmp.ne.s32.totalorder %s166, %s168
    %p175 = scmp.eq.s32.totalorder %s32, 1
    %p176 = por %p174, %p175
    %p177 = scmp.ne.s32.totalorder %s168, %s169
    %p178 = scmp.eq.s32.totalorder %s32, 0
    %p179 = por %p177, %p178
    %p180 = scmp.ne.s32.totalorder %s168, %s169
    %p181 = scmp.eq.s32.totalorder %s33, 1
    %p182 = por %p180, %p181
    %p184 = scmp.ne.s32.totalorder %s169, %s183
    %p185 = scmp.eq.s32.totalorder %s33, 0
    %p186 = por %p184, %p185
    %s188 = sadd.s32 %s187, 1
    %p191 = scmp.eq.s32.totalorder %s27, 1
    %p192 = scmp.ne.s32.totalorder %s187, %s189
    %p193 = scmp.eq.s32.totalorder %s27, 0
    %p194 = por %p192, %p193
    %p195 = scmp.ne.s32.totalorder %s187, %s189
    %p196 = scmp.eq.s32.totalorder %s32, 1
    %p197 = por %p195, %p196
    %p198 = scmp.ne.s32.totalorder %s189, %s190
    %p199 = scmp.eq.s32.totalorder %s32, 0
    %p200 = por %p198, %p199
    %p201 = scmp.ne.s32.totalorder %s189, %s190
    %p202 = scmp.eq.s32.totalorder %s33, 1
    %p203 = por %p201, %p202
    %p205 = scmp.ne.s32.totalorder %s190, %s204
    %p206 = scmp.eq.s32.totalorder %s33, 0
    %p207 = por %p205, %p206
    %s209 = sadd.s32 %s208, 1
    %p212 = scmp.eq.s32.totalorder %s27, 1
    %p213 = scmp.ne.s32.totalorder %s208, %s210
    %p214 = scmp.eq.s32.totalorder %s27, 0
    %p215 = por %p213, %p214
    %p216 = scmp.ne.s32.totalorder %s208, %s210
    %p217 = scmp.eq.s32.totalorder %s32, 1
    %p218 = por %p216, %p217
    %p219 = scmp.ne.s32.totalorder %s210, %s211
    %p220 = scmp.eq.s32.totalorder %s32, 0
    %p221 = por %p219, %p220
    %p222 = scmp.ne.s32.totalorder %s210, %s211
    %p223 = scmp.eq.s32.totalorder %s33, 1
    %p224 = por %p222, %p223
    %p226 = scmp.ne.s32.totalorder %s211, %s225
    %p227 = scmp.eq.s32.totalorder %s33, 0
    %p228 = por %p226, %p227
    %s230 = sadd.s32 %s229, 1
    %p233 = scmp.eq.s32.totalorder %s27, 1
    %p234 = scmp.ne.s32.totalorder %s229, %s231
    %p235 = scmp.eq.s32.totalorder %s27, 0
    %p236 = por %p234, %p235
    %p237 = scmp.ne.s32.totalorder %s229, %s231
    %p238 = scmp.eq.s32.totalorder %s32, 1
    %p239 = por %p237, %p238
    %p240 = scmp.ne.s32.totalorder %s231, %s232
    %p241 = scmp.eq.s32.totalorder %s32, 0
    %p242 = por %p240, %p241
    %p243 = scmp.ne.s32.totalorder %s231, %s232
    %p244 = scmp.eq.s32.totalorder %s33, 1
    %p245 = por %p243, %p244
    %p247 = scmp.ne.s32.totalorder %s232, %s246
    %p248 = scmp.eq.s32.totalorder %s33, 0
    %p249 = por %p247, %p248
    %s251 = sadd.s32 %s250, 1
    %p254 = scmp.eq.s32.totalorder %s27, 1
    %p255 = scmp.ne.s32.totalorder %s250, %s252
    %p256 = scmp.eq.s32.totalorder %s27, 0
    %p257 = por %p255, %p256
    %p258 = scmp.ne.s32.totalorder %s250, %s252
    %p259 = scmp.eq.s32.totalorder %s32, 1
    %p260 = por %p258, %p259
    %p261 = scmp.ne.s32.totalorder %s252, %s253
    %p262 = scmp.eq.s32.totalorder %s32, 0
    %p263 = por %p261, %p262
    %p264 = scmp.ne.s32.totalorder %s252, %s253
    %p265 = scmp.eq.s32.totalorder %s33, 1
    %p266 = por %p264, %p265
    %p268 = scmp.ne.s32.totalorder %s253, %s267
    %p269 = scmp.eq.s32.totalorder %s33, 0
    %p270 = por %p268, %p269
    %s272 = sadd.s32 %s271, 1
    %p275 = scmp.eq.s32.totalorder %s27, 1
    %p276 = scmp.ne.s32.totalorder %s271, %s273
    %p277 = scmp.eq.s32.totalorder %s27, 0
    %p278 = por %p276, %p277
    %p279 = scmp.ne.s32.totalorder %s271, %s273
    %p280 = scmp.eq.s32.totalorder %s32, 1
    %p281 = por %p279, %p280
    %p282 = scmp.ne.s32.totalorder %s273, %s274
    %p283 = scmp.eq.s32.totalorder %s32, 0
    %p284 = por %p282, %p283
    %p285 = scmp.ne.s32.totalorder %s273, %s274
    %p286 = scmp.eq.s32.totalorder %s33, 1
    %p287 = por %p285, %p286
    %p289 = scmp.ne.s32.totalorder %s274, %s288
    %p290 = scmp.eq.s32.totalorder %s33, 0
    %p291 = por %p289, %p290
    %s293 = sadd.s32 %s292, 1
    %p296 = scmp.eq.s32.totalorder %s27, 1
    %p297 = scmp.ne.s32.totalorder %s292, %s294
    %p298 = scmp.eq.s32.totalorder %s27, 0
    %p299 = por %p297, %p298
    %p300 = scmp.ne.s32.totalorder %s292, %s294
    %p301 = scmp.eq.s32.totalorder %s32, 1
    %p302 = por %p300, %p301
    %p303 = scmp.ne.s32.totalorder %s294, %s295
    %p304 = scmp.eq.s32.totalorder %s32, 0
    %p305 = por %p303, %p304
    %p306 = scmp.ne.s32.totalorder %s294, %s295
    %p307 = scmp.eq.s32.totalorder %s33, 1
    %p308 = por %p306, %p307
    %p310 = scmp.ne.s32.totalorder %s295, %s309
    %p311 = scmp.eq.s32.totalorder %s33, 0
    %p312 = por %p310, %p311
    %s314 = sadd.s32 %s313, 1
    %p317 = scmp.eq.s32.totalorder %s27, 1
    %p318 = scmp.ne.s32.totalorder %s313, %s315
    %p319 = scmp.eq.s32.totalorder %s27, 0
    %p320 = por %p318, %p319
    %p321 = scmp.ne.s32.totalorder %s313, %s315
    %p322 = scmp.eq.s32.totalorder %s32, 1
    %p323 = por %p321, %p322
    %p324 = scmp.ne.s32.totalorder %s315, %s316
    %p325 = scmp.eq.s32.totalorder %s32, 0
    %p326 = por %p324, %p325
    %p327 = scmp.ne.s32.totalorder %s315, %s316
    %p328 = scmp.eq.s32.totalorder %s33, 1
    %p329 = por %p327, %p328
    %p331 = scmp.ne.s32.totalorder %s316, %s330
    %p332 = scmp.eq.s32.totalorder %s33, 0
    %p333 = por %p331, %p332
    %s335 = sadd.s32 %s334, 1
    %p338 = scmp.eq.s32.totalorder %s27, 1
    %p339 = scmp.ne.s32.totalorder %s334, %s336
    %p340 = scmp.eq.s32.totalorder %s27, 0
    %p341 = por %p339, %p340
    %p342 = scmp.ne.s32.totalorder %s334, %s336
    %p343 = scmp.eq.s32.totalorder %s32, 1
    %p344 = por %p342, %p343
    %p345 = scmp.ne.s32.totalorder %s336, %s337
    %p346 = scmp.eq.s32.totalorder %s32, 0
    %p347 = por %p345, %p346
    %p348 = scmp.ne.s32.totalorder %s336, %s337
    %p349 = scmp.eq.s32.totalorder %s33, 1
    %p350 = por %p348, %p349
    %p352 = scmp.ne.s32.totalorder %s337, %s351
    %p353 = scmp.eq.s32.totalorder %s33, 0
    %p354 = por %p352, %p353
    %s356 = sadd.s32 %s355, 1
    %p359 = scmp.eq.s32.totalorder %s27, 1
    %p360 = scmp.ne.s32.totalorder %s355, %s357
    %p361 = scmp.eq.s32.totalorder %s27, 0
    %p362 = por %p360, %p361
    %p363 = scmp.ne.s32.totalorder %s355, %s357
    %p364 = scmp.eq.s32.totalorder %s32, 1
    %p365 = por %p363, %p364
    %p366 = scmp.ne.s32.totalorder %s357, %s358
    %p367 = scmp.eq.s32.totalorder %s32, 0
    %p368 = por %p366, %p367
    %p369 = scmp.ne.s32.totalorder %s357, %s358
    %p370 = scmp.eq.s32.totalorder %s33, 1
    %p371 = por %p369, %p370
    %p373 = scmp.ne.s32.totalorder %s358, %s372
    %p374 = scmp.eq.s32.totalorder %s33, 0
    %p375 = por %p373, %p374
    %s377 = sadd.s32 %s376, 1
    %p380 = scmp.eq.s32.totalorder %s27, 1
    %p381 = scmp.ne.s32.totalorder %s376, %s378
    %p382 = scmp.eq.s32.totalorder %s27, 0
    %p383 = por %p381, %p382
    %p384 = scmp.ne.s32.totalorder %s376, %s378
    %p385 = scmp.eq.s32.totalorder %s32, 1
    %p386 = por %p384, %p385
    %p387 = scmp.ne.s32.totalorder %s378, %s379
    %p388 = scmp.eq.s32.totalorder %s32, 0
    %p389 = por %p387, %p388
    %p390 = scmp.ne.s32.totalorder %s378, %s379
    %p391 = scmp.eq.s32.totalorder %s33, 1
    %p392 = por %p390, %p391
    %p394 = scmp.ne.s32.totalorder %s379, %s393
    %p395 = scmp.eq.s32.totalorder %s33, 0
    %p396 = por %p394, %p395
    %s398 = sadd.s32 %s397, 1
    %p401 = scmp.eq.s32.totalorder %s27, 1
    %p402 = scmp.ne.s32.totalorder %s397, %s399
    %p403 = scmp.eq.s32.totalorder %s27, 0
    %p404 = por %p402, %p403
    %p405 = scmp.ne.s32.totalorder %s397, %s399
    %p406 = scmp.eq.s32.totalorder %s32, 1
    %p407 = por %p405, %p406
    %p408 = scmp.ne.s32.totalorder %s399, %s400
    %p409 = scmp.eq.s32.totalorder %s32, 0
    %p410 = por %p408, %p409
    %p411 = scmp.ne.s32.totalorder %s399, %s400
    %p412 = scmp.eq.s32.totalorder %s33, 1
    %p413 = por %p411, %p412
    %p415 = scmp.ne.s32.totalorder %s400, %s414
    %p416 = scmp.eq.s32.totalorder %s33, 0
    %p417 = por %p415, %p416
    %s419 = sadd.s32 %s418, 1
    %p422 = scmp.eq.s32.totalorder %s27, 1
    %p423 = scmp.ne.s32.totalorder %s418, %s420
    %p424 = scmp.eq.s32.totalorder %s27, 0
    %p425 = por %p423, %p424
    %p426 = scmp.ne.s32.totalorder %s418, %s420
    %p427 = scmp.eq.s32.totalorder %s32, 1
    %p428 = por %p426, %p427
    %p429 = scmp.ne.s32.totalorder %s420, %s421
    %p430 = scmp.eq.s32.totalorder %s32, 0
    %p431 = por %p429, %p430
    %p432 = scmp.ne.s32.totalorder %s420, %s421
    %p433 = scmp.eq.s32.totalorder %s33, 1
    %p434 = por %p432, %p433
    %p436 = scmp.ne.s32.totalorder %s421, %s435
    %p437 = scmp.eq.s32.totalorder %s33, 0
    %p438 = por %p436, %p437
    %s440 = sadd.s32 %s439, 1
    %p443 = scmp.eq.s32.totalorder %s27, 1
    %p444 = scmp.ne.s32.totalorder %s439, %s441
    %p445 = scmp.eq.s32.totalorder %s27, 0
    %p446 = por %p444, %p445
    %p447 = scmp.ne.s32.totalorder %s439, %s441
    %p448 = scmp.eq.s32.totalorder %s32, 1
    %p449 = por %p447, %p448
    %p450 = scmp.ne.s32.totalorder %s441, %s442
    %p451 = scmp.eq.s32.totalorder %s32, 0
    %p452 = por %p450, %p451
    %p453 = scmp.ne.s32.totalorder %s441, %s442
    %p454 = scmp.eq.s32.totalorder %s33, 1
    %p455 = por %p453, %p454
    %p457 = scmp.ne.s32.totalorder %s442, %s456
    %p458 = scmp.eq.s32.totalorder %s33, 0
    %p459 = por %p457, %p458
    %s461 = sadd.s32 %s460, 1
    %p464 = scmp.eq.s32.totalorder %s27, 1
    %p465 = scmp.ne.s32.totalorder %s460, %s462
    %p466 = scmp.eq.s32.totalorder %s27, 0
    %p467 = por %p465, %p466
    %p468 = scmp.ne.s32.totalorder %s460, %s462
    %p469 = scmp.eq.s32.totalorder %s32, 1
    %p470 = por %p468, %p469
    %p471 = scmp.ne.s32.totalorder %s462, %s463
    %p472 = scmp.eq.s32.totalorder %s32, 0
    %p473 = por %p471, %p472
    %p474 = scmp.ne.s32.totalorder %s462, %s463
    %p475 = scmp.eq.s32.totalorder %s33, 1
    %p476 = por %p474, %p475
    %p478 = scmp.ne.s32.totalorder %s463, %s477
    %p479 = scmp.eq.s32.totalorder %s33, 0
    %p480 = por %p478, %p479
    %s481 = ssub.s32 %s27, %s34
    %p482 = scmp.eq.s32.totalorder %s481, 0
    %s484 = sadd.s32 %s483, 1
    %s485 = scalar_select %p482, %s483, %s484
    %p488 = pneg %p482
    %p489 = scmp.eq.s32.totalorder %s27, 1
    %p490 = por %p488, %p489
    %p491 = scmp.ne.s32.totalorder %s483, %s486
    %p492 = scmp.eq.s32.totalorder %s27, 0
    %p493 = por %p491, %p492
    %p494 = scmp.ne.s32.totalorder %s483, %s486
    %p495 = scmp.eq.s32.totalorder %s32, 1
    %p496 = por %p494, %p495
    %p497 = scmp.ne.s32.totalorder %s486, %s487
    %p498 = scmp.eq.s32.totalorder %s32, 0
    %p499 = por %p497, %p498
    %p500 = scmp.ne.s32.totalorder %s486, %s487
    %p501 = scmp.eq.s32.totalorder %s33, 1
    %p502 = por %p500, %p501
    %p504 = scmp.ne.s32.totalorder %s487, %s503
    %p505 = scmp.eq.s32.totalorder %s33, 0
    %p506 = por %p504, %p505
    %p507 = scmp.le.s32.totalorder 1, %s27
    %p508 = scmp.lt.s32.totalorder %s27, 3
    %p509 = pnand %p507, %p508
    %p510 = pneg %p509
    // Predicated region
    $region9: #{_lambda_.1} parent=5 // pred_check
      _
    $region10: #{_lambda_.1} parent=5 // pred_check_branch
      %512 = sbr.rel (%p509) target = $region12
    $region11: #{_lambda_.1} parent=5 // pred_region
      %s513 = ssub.s32 %s27, 1
      // Predicated region
      $region13: #{_lambda_.1} parent=11 // pred_check
        %p514 = pneg %p74
      $region14: #{_lambda_.1} parent=11 // pred_check_branch
        %516 = sbr.rel (%p514) target = $region16
      $region15: #{_lambda_.1} parent=11 // pred_region
        _
      $region16: #{_lambda_.1} parent=11 // pred_fallthru
        _
      // Predicated region
      $region17: #{_lambda_.1} parent=11 // pred_check
        %p517 = pneg %p95
      $region18: #{_lambda_.1} parent=11 // pred_check_branch
        %519 = sbr.rel (%p517) target = $region20
      $region19: #{_lambda_.1} parent=11 // pred_region
        _
      $region20: #{_lambda_.1} parent=11 // pred_fallthru
        _
      // Predicated region
      $region21: #{_lambda_.1} parent=11 // pred_check
        %p520 = pneg %p116
      $region22: #{_lambda_.1} parent=11 // pred_check_branch
        %522 = sbr.rel (%p520) target = $region24
      $region23: #{_lambda_.1} parent=11 // pred_region
        _
      $region24: #{_lambda_.1} parent=11 // pred_fallthru
        _
      // Predicated region
      $region25: #{_lambda_.1} parent=11 // pred_check
        %p523 = pneg %p137
      $region26: #{_lambda_.1} parent=11 // pred_check_branch
        %525 = sbr.rel (%p523) target = $region28
      $region27: #{_lambda_.1} parent=11 // pred_region
        _
      $region28: #{_lambda_.1} parent=11 // pred_fallthru
        _
      // Predicated region
      $region29: #{_lambda_.1} parent=11 // pred_check
        %p526 = pneg %p158
      $region30: #{_lambda_.1} parent=11 // pred_check_branch
        %528 = sbr.rel (%p526) target = $region32
      $region31: #{_lambda_.1} parent=11 // pred_region
        _
      $region32: #{_lambda_.1} parent=11 // pred_fallthru
        _
      // Predicated region
      $region33: #{_lambda_.1} parent=11 // pred_check
        %p529 = pneg %p179
      $region34: #{_lambda_.1} parent=11 // pred_check_branch
        %531 = sbr.rel (%p529) target = $region36
      $region35: #{_lambda_.1} parent=11 // pred_region
        _
      $region36: #{_lambda_.1} parent=11 // pred_fallthru
        _
      // Predicated region
      $region37: #{_lambda_.1} parent=11 // pred_check
        %p532 = pneg %p200
      $region38: #{_lambda_.1} parent=11 // pred_check_branch
        %534 = sbr.rel (%p532) target = $region40
      $region39: #{_lambda_.1} parent=11 // pred_region
        _
      $region40: #{_lambda_.1} parent=11 // pred_fallthru
        _
      // Predicated region
      $region41: #{_lambda_.1} parent=11 // pred_check
        %p535 = pneg %p221
      $region42: #{_lambda_.1} parent=11 // pred_check_branch
        %537 = sbr.rel (%p535) target = $region44
      $region43: #{_lambda_.1} parent=11 // pred_region
        _
      $region44: #{_lambda_.1} parent=11 // pred_fallthru
        _
      // Predicated region
      $region45: #{_lambda_.1} parent=11 // pred_check
        %p538 = pneg %p242
      $region46: #{_lambda_.1} parent=11 // pred_check_branch
        %540 = sbr.rel (%p538) target = $region48
      $region47: #{_lambda_.1} parent=11 // pred_region
        _
      $region48: #{_lambda_.1} parent=11 // pred_fallthru
        _
      // Predicated region
      $region49: #{_lambda_.1} parent=11 // pred_check
        %p541 = pneg %p263
      $region50: #{_lambda_.1} parent=11 // pred_check_branch
        %543 = sbr.rel (%p541) target = $region52
      $region51: #{_lambda_.1} parent=11 // pred_region
        _
      $region52: #{_lambda_.1} parent=11 // pred_fallthru
        _
      // Predicated region
      $region53: #{_lambda_.1} parent=11 // pred_check
        %p544 = pneg %p284
      $region54: #{_lambda_.1} parent=11 // pred_check_branch
        %546 = sbr.rel (%p544) target = $region56
      $region55: #{_lambda_.1} parent=11 // pred_region
        _
      $region56: #{_lambda_.1} parent=11 // pred_fallthru
        _
      // Predicated region
      $region57: #{_lambda_.1} parent=11 // pred_check
        %p547 = pneg %p305
      $region58: #{_lambda_.1} parent=11 // pred_check_branch
        %549 = sbr.rel (%p547) target = $region60
      $region59: #{_lambda_.1} parent=11 // pred_region
        _
      $region60: #{_lambda_.1} parent=11 // pred_fallthru
        _
      // Predicated region
      $region61: #{_lambda_.1} parent=11 // pred_check
        %p550 = pneg %p326
      $region62: #{_lambda_.1} parent=11 // pred_check_branch
        %552 = sbr.rel (%p550) target = $region64
      $region63: #{_lambda_.1} parent=11 // pred_region
        _
      $region64: #{_lambda_.1} parent=11 // pred_fallthru
        _
      // Predicated region
      $region65: #{_lambda_.1} parent=11 // pred_check
        %p553 = pneg %p347
      $region66: #{_lambda_.1} parent=11 // pred_check_branch
        %555 = sbr.rel (%p553) target = $region68
      $region67: #{_lambda_.1} parent=11 // pred_region
        _
      $region68: #{_lambda_.1} parent=11 // pred_fallthru
        _
      // Predicated region
      $region69: #{_lambda_.1} parent=11 // pred_check
        %p556 = pneg %p368
      $region70: #{_lambda_.1} parent=11 // pred_check_branch
        %558 = sbr.rel (%p556) target = $region72
      $region71: #{_lambda_.1} parent=11 // pred_region
        _
      $region72: #{_lambda_.1} parent=11 // pred_fallthru
        _
      // Predicated region
      $region73: #{_lambda_.1} parent=11 // pred_check
        %p559 = pneg %p389
      $region74: #{_lambda_.1} parent=11 // pred_check_branch
        %561 = sbr.rel (%p559) target = $region76
      $region75: #{_lambda_.1} parent=11 // pred_region
        _
      $region76: #{_lambda_.1} parent=11 // pred_fallthru
        _
      // Predicated region
      $region77: #{_lambda_.1} parent=11 // pred_check
        %p562 = pneg %p410
      $region78: #{_lambda_.1} parent=11 // pred_check_branch
        %564 = sbr.rel (%p562) target = $region80
      $region79: #{_lambda_.1} parent=11 // pred_region
        _
      $region80: #{_lambda_.1} parent=11 // pred_fallthru
        _
      // Predicated region
      $region81: #{_lambda_.1} parent=11 // pred_check
        %p565 = pneg %p431
      $region82: #{_lambda_.1} parent=11 // pred_check_branch
        %567 = sbr.rel (%p565) target = $region84
      $region83: #{_lambda_.1} parent=11 // pred_region
        _
      $region84: #{_lambda_.1} parent=11 // pred_fallthru
        _
      // Predicated region
      $region85: #{_lambda_.1} parent=11 // pred_check
        %p568 = pneg %p452
      $region86: #{_lambda_.1} parent=11 // pred_check_branch
        %570 = sbr.rel (%p568) target = $region88
      $region87: #{_lambda_.1} parent=11 // pred_region
        _
      $region88: #{_lambda_.1} parent=11 // pred_fallthru
        _
      // Predicated region
      $region89: #{_lambda_.1} parent=11 // pred_check
        %p571 = pneg %p473
      $region90: #{_lambda_.1} parent=11 // pred_check_branch
        %573 = sbr.rel (%p571) target = $region92
      $region91: #{_lambda_.1} parent=11 // pred_region
        _
      $region92: #{_lambda_.1} parent=11 // pred_fallthru
        _
    $region12: #{_lambda_.1} parent=5 // pred_fallthru
      _
    %p574 = scmp.lt.s32.totalorder %s27, 2
    // Predicated region
    $region93: #{_lambda_.1} parent=5 // pred_check
      %p575 = pneg %p574
    $region94: #{_lambda_.1} parent=5 // pred_check_branch
      %577 = sbr.rel (%p575) target = $region96
    $region95: #{_lambda_.1} parent=5 // pred_region
      // Predicated region
      $region97: #{_lambda_.1} parent=95 // pred_check
        %p578 = pneg %p47
      $region98: #{_lambda_.1} parent=95 // pred_check_branch
        %580 = sbr.rel (%p578) target = $region100
      $region99: #{_lambda_.1} parent=95 // pred_region
        %s581 = smul.u32 32, %s27
        %p582 = scmp.lt.s32.totalorder %s581, 63
        %s583 = scalar_select %p582, %s581, 63
        %s584 = smul.addr %s583, 8
        %s585 = scalar_lea.vmem %s0, %s584
        %s586 = smul.u32 32, %s27
      $region100: #{_lambda_.1} parent=95 // pred_fallthru
        _
    $region96: #{_lambda_.1} parent=5 // pred_fallthru
      _
    %p587 = scmp.le.s32.totalorder 1, %s27
    %p588 = scmp.lt.s32.totalorder %s27, 3
    %p589 = pnand %p587, %p588
    %p590 = pneg %p589
    // Predicated region
    $region101: #{_lambda_.1} parent=5 // pred_check
      _
    $region102: #{_lambda_.1} parent=5 // pred_check_branch
      %592 = sbr.rel (%p589) target = $region104
    $region103: #{_lambda_.1} parent=5 // pred_region
      %s593 = ssub.s32 %s27, 1
      %s594 = smul.u32 32, %s32
      %p595 = scmp.lt.s32.totalorder %s594, 63
      %s596 = scalar_select %p595, %s594, 63
      %s597 = smul.addr %s596, 8
      %s598 = scalar_lea.vmem %s0, %s597
      %p599 = pneg %p53
      %p600 = pneg %p50
      %p601 = pneg %p74
      %p602 = pneg %p71
      %p603 = pneg %p95
      %p604 = pneg %p92
      %p605 = pneg %p116
      %p606 = pneg %p113
      %p607 = pneg %p137
      %p608 = pneg %p134
      %p609 = pneg %p158
      %p610 = pneg %p155
      %p611 = pneg %p179
      %p612 = pneg %p176
      %p613 = pneg %p200
      %p614 = pneg %p197
      %p615 = pneg %p221
      %p616 = pneg %p218
      %p617 = pneg %p242
      %p618 = pneg %p239
      %p619 = pneg %p263
      %p620 = pneg %p260
      %p621 = pneg %p284
      %p622 = pneg %p281
      %p623 = pneg %p305
      %p624 = pneg %p302
      %p625 = pneg %p326
      %p626 = pneg %p323
      %p627 = pneg %p347
      %p628 = pneg %p344
      %p629 = pneg %p368
      %p630 = pneg %p365
      %p631 = pneg %p389
      %p632 = pneg %p386
      %p633 = pneg %p410
      %p634 = pneg %p407
      %p635 = pneg %p431
      %p636 = pneg %p428
      %p637 = pneg %p452
      %p638 = pneg %p449
      %p639 = pneg %p473
      %p640 = pneg %p470
      %p641 = pneg %p499
      %p642 = pneg %p496
      %p643 = scmp.lt.s32.totalorder %s32, 1
      %s644 = scalar_select %p643, %s32, 1
      %s645 = smul.addr %s644, 8
      %s646 = scalar_lea.vmem %s21, %s645
      %s647 = smul.u32 32, %s32
      %p648 = scmp.lt.s32.totalorder %s647, 63
      %s649 = scalar_select %p648, %s647, 63
      %s650 = smul.addr %s649, 8
      %s651 = scalar_lea.vmem %s0, %s650
      %s652 = smul.u32 32, %s32
      %p653 = scmp.lt.s32.totalorder %s32, 1
      %s654 = scalar_select %p653, %s32, 1
      %s655 = smul.addr %s654, 8
      %s656 = scalar_lea.vmem %s21, %s655
      %v658 = vld [vmem:[%s651] sm:$0xff]
      %v659 = vld [vmem:[%s651 + $0x8] sm:$0xff]
      %v660 = vld [vmem:[%s651 + $0x10] sm:$0xff]
      %v661 = vld [vmem:[%s651 + $0x18] sm:$0xff]
      %v662 = vld [vmem:[%s651 + $0x20] sm:$0xff]
      %v663 = vld [vmem:[%s651 + $0x28] sm:$0xff]
      %v664 = vld [vmem:[%s651 + $0x30] sm:$0xff]
      %v665 = vld [vmem:[%s651 + $0x38] sm:$0xff]
      %v666 = vld [vmem:[%s651 + $0x40] sm:$0xff]
      %v667 = vld [vmem:[%s651 + $0x48] sm:$0xff]
      %v668 = vld [vmem:[%s651 + $0x50] sm:$0xff]
      %v669 = vld [vmem:[%s651 + $0x58] sm:$0xff]
      %v670 = vld [vmem:[%s651 + $0x60] sm:$0xff]
      %v671 = vld [vmem:[%s651 + $0x68] sm:$0xff]
      %v672 = vld [vmem:[%s651 + $0x70] sm:$0xff]
      %v673 = vld [vmem:[%s651 + $0x78] sm:$0xff]
      %v674 = vld [vmem:[%s651 + $0x80] sm:$0xff]
      %v675 = vld [vmem:[%s651 + $0x88] sm:$0xff]
      %v676 = vld [vmem:[%s651 + $0x90] sm:$0xff]
      %v677 = vld [vmem:[%s651 + $0x98] sm:$0xff]
      %v678 = vld [vmem:[%s651 + $0xa0] sm:$0xff]
      %v679 = vld [vmem:[%s651 + $0xa8] sm:$0xff]
      %v680 = vld [vmem:[%s651 + $0xb0] sm:$0xff]
      %v681 = vld [vmem:[%s651 + $0xb8] sm:$0xff]
      %v682 = vld [vmem:[%s651 + $0xc0] sm:$0xff]
      %v683 = vld [vmem:[%s651 + $0xc8] sm:$0xff]
      %v684 = vld [vmem:[%s651 + $0xd0] sm:$0xff]
      %v685 = vld [vmem:[%s651 + $0xd8] sm:$0xff]
      %v686 = vld [vmem:[%s651 + $0xe0] sm:$0xff]
      %v687 = vld [vmem:[%s651 + $0xe8] sm:$0xff]
      %v688 = vld [vmem:[%s651 + $0xf0] sm:$0xff]
      %v689 = vld [vmem:[%s651 + $0xf8] sm:$0xff]
      %v690 = vpack.c.bf16 %v659, %v658
      %v691 = vpack.c.bf16 %v661, %v660
      %v692 = vpack.c.bf16 %v663, %v662
      %v693 = vpack.c.bf16 %v665, %v664
      %v694 = vpack.c.bf16 %v667, %v666
      %v695 = vpack.c.bf16 %v669, %v668
      %v696 = vpack.c.bf16 %v671, %v670
      %v697 = vpack.c.bf16 %v673, %v672
      %v698 = vpack.c.bf16 %v675, %v674
      %v699 = vpack.c.bf16 %v677, %v676
      %v700 = vpack.c.bf16 %v679, %v678
      %v701 = vpack.c.bf16 %v681, %v680
      %v702 = vpack.c.bf16 %v683, %v682
      %v703 = vpack.c.bf16 %v685, %v684
      %v704 = vpack.c.bf16 %v687, %v686
      %v705 = vpack.c.bf16 %v689, %v688
      %v706 = vld [vmem:[%s1] sm:$0xf]
      %vm707 = vcmask 64512
      %v709 = vsel %vm707, %v690, 0
      %v712 = vsel %vm707, %v691, 0
      %v715 = vsel %vm707, %v692, 0
      %v718 = vsel %vm707, %v693, 0
      %v721 = vsel %vm707, %v694, 0
      %v724 = vsel %vm707, %v695, 0
      %v727 = vsel %vm707, %v696, 0
      %v730 = vsel %vm707, %v697, 0
      %v733 = vsel %vm707, %v698, 0
      %v736 = vsel %vm707, %v699, 0
      %v739 = vsel %vm707, %v700, 0
      %v742 = vsel %vm707, %v701, 0
      %v745 = vsel %vm707, %v702, 0
      %v748 = vsel %vm707, %v703, 0
      %v751 = vsel %vm707, %v704, 0
      %v754 = vsel %vm707, %v705, 0
      %vm756 = vcmask 1043456
      %v758 = vsel %vm756, %v706, 0
      %760 = vmatprep.subr.bf16.mxu0 0
      %761 = vmatpush1.bf16.msra.mxu0 %v758
      %762 = vmatprep.subr.bf16.mxu0 0
      %763 = vmatpush1.bf16.msra.mxu0 0
      %764 = vmatprep.subr.bf16.mxu0 0
      %765 = vmatpush1.bf16.msra.mxu0 0
      %766 = vmatprep.subr.bf16.mxu0 0
      %767 = vmatpush1.bf16.msra.mxu0 0
      %768 = vmatprep.subr.bf16.mxu0 0
      %769 = vmatpush1.bf16.msra.mxu0 0
      %770 = vmatprep.subr.bf16.mxu0 0
      %771 = vmatpush1.bf16.msra.mxu0 0
      %772 = vmatprep.subr.bf16.mxu0 0
      %773 = vmatpush1.bf16.msra.mxu0 0
      %774 = vmatprep.subr.bf16.mxu0 0
      %775 = vmatpush1.bf16.msra.mxu0 0
      %776 = vmatprep.subr.bf16.mxu0 0
      %777 = vmatpush1.bf16.msra.mxu0 0
      %778 = vmatprep.subr.bf16.mxu0 0
      %779 = vmatpush1.bf16.msra.mxu0 0
      %780 = vmatprep.subr.bf16.mxu0 0
      %781 = vmatpush1.bf16.msra.mxu0 0
      %782 = vmatprep.subr.bf16.mxu0 0
      %783 = vmatpush1.bf16.msra.mxu0 0
      %784 = vmatprep.subr.bf16.mxu0 0
      %785 = vmatpush1.bf16.msra.mxu0 0
      %786 = vmatprep.subr.bf16.mxu0 0
      %787 = vmatpush1.bf16.msra.mxu0 0
      %788 = vmatprep.subr.bf16.mxu0 0
      %789 = vmatpush1.bf16.msra.mxu0 0
      %790 = vmatprep.subr.bf16.mxu0 0
      %791 = vmatpush1.bf16.msra.mxu0 0
      %792 = vmatprep.mubr.bf16.mxu0 0
      %793 = vmatmul.mubr.bf16.gmra.mrb[0].mxu0 %v709
      %v794 = vpop.f32.mrb[0].mxu0
      %v795 = vadd.f32 0.0, %v794
      %v796 = vpop.f32.mrb[0].mxu0
      %v797 = vpop.f32.mrb[0].mxu0
      %v798 = vadd.f32 0.0, %v797
      %v799 = vpop.f32.mrb[0].mxu0
      %800 = vmatprep.mubr.bf16.mxu0 0
      %801 = vmatmul.mubr.bf16.gmra.mrb[0].mxu0 %v712
      %v802 = vpop.f32.mrb[0].mxu0
      %v803 = vadd.f32 0.0, %v802
      %v804 = vpop.f32.mrb[0].mxu0
      %v805 = vpop.f32.mrb[0].mxu0
      %v806 = vadd.f32 0.0, %v805
      %v807 = vpop.f32.mrb[0].mxu0
      %808 = vmatprep.mubr.bf16.mxu0 0
      %809 = vmatmul.mubr.bf16.gmra.mrb[0].mxu0 %v715
      %v810 = vpop.f32.mrb[0].mxu0
      %v811 = vadd.f32 0.0, %v810
      %v812 = vpop.f32.mrb[0].mxu0
      %v813 = vpop.f32.mrb[0].mxu0
      %v814 = vadd.f32 0.0, %v813
      %v815 = vpop.f32.mrb[0].mxu0
      %816 = vmatprep.mubr.bf16.mxu0 0
      %817 = vmatmul.mubr.bf16.gmra.mrb[0].mxu0 %v718
      %v818 = vpop.f32.mrb[0].mxu0
      %v819 = vadd.f32 0.0, %v818
      %v820 = vpop.f32.mrb[0].mxu0
      %v821 = vpop.f32.mrb[0].mxu0
      %v822 = vadd.f32 0.0, %v821
      %v823 = vpop.f32.mrb[0].mxu0
      %824 = vmatprep.mubr.bf16.mxu0 0
      %825 = vmatmul.mubr.bf16.gmra.mrb[0].mxu0 %v721
      %v826 = vpop.f32.mrb[0].mxu0
      %v827 = vadd.f32 0.0, %v826
      %v828 = vpop.f32.mrb[0].mxu0
      %v829 = vpop.f32.mrb[0].mxu0
      %v830 = vadd.f32 0.0, %v829
      %v831 = vpop.f32.mrb[0].mxu0
      %832 = vmatprep.mubr.bf16.mxu0 0
      %833 = vmatmul.mubr.bf16.gmra.mrb[0].mxu0 %v724
      %v834 = vpop.f32.mrb[0].mxu0
      %v835 = vadd.f32 0.0, %v834
      %v836 = vpop.f32.mrb[0].mxu0
      %v837 = vpop.f32.mrb[0].mxu0
      %v838 = vadd.f32 0.0, %v837
      %v839 = vpop.f32.mrb[0].mxu0
      %840 = vmatprep.mubr.bf16.mxu0 0
      %841 = vmatmul.mubr.bf16.gmra.mrb[0].mxu0 %v727
      %v842 = vpop.f32.mrb[0].mxu0
      %v843 = vadd.f32 0.0, %v842
      %v844 = vpop.f32.mrb[0].mxu0
      %v845 = vpop.f32.mrb[0].mxu0
      %v846 = vadd.f32 0.0, %v845
      %v847 = vpop.f32.mrb[0].mxu0
      %848 = vmatprep.mubr.bf16.mxu0 0
      %849 = vmatmul.mubr.bf16.gmra.mrb[0].mxu0 %v730
      %v850 = vpop.f32.mrb[0].mxu0
      %v851 = vadd.f32 0.0, %v850
      %v852 = vpop.f32.mrb[0].mxu0
      %v853 = vpop.f32.mrb[0].mxu0
      %v854 = vadd.f32 0.0, %v853
      %v855 = vpop.f32.mrb[0].mxu0
      %856 = vmatprep.mubr.bf16.mxu0 0
      %857 = vmatmul.mubr.bf16.gmra.mrb[0].mxu0 %v733
      %v858 = vpop.f32.mrb[0].mxu0
      %v859 = vadd.f32 0.0, %v858
      %v860 = vpop.f32.mrb[0].mxu0
      %v861 = vpop.f32.mrb[0].mxu0
      %v862 = vadd.f32 0.0, %v861
      %v863 = vpop.f32.mrb[0].mxu0
      %864 = vmatprep.mubr.bf16.mxu0 0
      %865 = vmatmul.mubr.bf16.gmra.mrb[0].mxu0 %v736
      %v866 = vpop.f32.mrb[0].mxu0
      %v867 = vadd.f32 0.0, %v866
      %v868 = vpop.f32.mrb[0].mxu0
      %v869 = vpop.f32.mrb[0].mxu0
      %v870 = vadd.f32 0.0, %v869
      %v871 = vpop.f32.mrb[0].mxu0
      %872 = vmatprep.mubr.bf16.mxu0 0
      %873 = vmatmul.mubr.bf16.gmra.mrb[0].mxu0 %v739
      %v874 = vpop.f32.mrb[0].mxu0
      %v875 = vadd.f32 0.0, %v874
      %v876 = vpop.f32.mrb[0].mxu0
      %v877 = vpop.f32.mrb[0].mxu0
      %v878 = vadd.f32 0.0, %v877
      %v879 = vpop.f32.mrb[0].mxu0
      %880 = vmatprep.mubr.bf16.mxu0 0
      %881 = vmatmul.mubr.bf16.gmra.mrb[0].mxu0 %v742
      %v882 = vpop.f32.mrb[0].mxu0
      %v883 = vadd.f32 0.0, %v882
      %v884 = vpop.f32.mrb[0].mxu0
      %v885 = vpop.f32.mrb[0].mxu0
      %v886 = vadd.f32 0.0, %v885
      %v887 = vpop.f32.mrb[0].mxu0
      %888 = vmatprep.mubr.bf16.mxu0 0
      %889 = vmatmul.mubr.bf16.gmra.mrb[0].mxu0 %v745
      %v890 = vpop.f32.mrb[0].mxu0
      %v891 = vadd.f32 0.0, %v890
      %v892 = vpop.f32.mrb[0].mxu0
      %v893 = vpop.f32.mrb[0].mxu0
      %v894 = vadd.f32 0.0, %v893
      %v895 = vpop.f32.mrb[0].mxu0
      %896 = vmatprep.mubr.bf16.mxu0 0
      %897 = vmatmul.mubr.bf16.gmra.mrb[0].mxu0 %v748
      %v898 = vpop.f32.mrb[0].mxu0
      %v899 = vadd.f32 0.0, %v898
      %v900 = vpop.f32.mrb[0].mxu0
      %v901 = vpop.f32.mrb[0].mxu0
      %v902 = vadd.f32 0.0, %v901
      %v903 = vpop.f32.mrb[0].mxu0
      %904 = vmatprep.mubr.bf16.mxu0 0
      %905 = vmatmul.mubr.bf16.gmra.mrb[0].mxu0 %v751
      %v906 = vpop.f32.mrb[0].mxu0
      %v907 = vadd.f32 0.0, %v906
      %v908 = vpop.f32.mrb[0].mxu0
      %v909 = vpop.f32.mrb[0].mxu0
      %v910 = vadd.f32 0.0, %v909
      %v911 = vpop.f32.mrb[0].mxu0
      %912 = vmatprep.mubr.bf16.mxu0 0
      %913 = vmatmul.mubr.bf16.gmra.mrb[0].mxu0 %v754
      %v914 = vpop.f32.mrb[0].mxu0
      %v915 = vadd.f32 0.0, %v914
      %v916 = vpop.f32.mrb[0].mxu0
      %v917 = vpop.f32.mrb[0].mxu0
      %v918 = vadd.f32 0.0, %v917
      %v919 = vpop.f32.mrb[0].mxu0
      %920 = vdwg.mxu0
      %v921 = vld [vmem:[%s2] sm:$0xf]
      %v923 = vsel %vm756, %v921, 0
      %925 = vmatprep.subr.bf16.mxu0 0
      %926 = vmatpush1.bf16.msra.mxu0 %v923
      %927 = vmatprep.subr.bf16.mxu0 0
      %928 = vmatpush1.bf16.msra.mxu0 0
      %929 = vmatprep.subr.bf16.mxu0 0
      %930 = vmatpush1.bf16.msra.mxu0 0
      %931 = vmatprep.subr.bf16.mxu0 0
      %932 = vmatpush1.bf16.msra.mxu0 0
      %933 = vmatprep.subr.bf16.mxu0 0
      %934 = vmatpush1.bf16.msra.mxu0 0
      %935 = vmatprep.subr.bf16.mxu0 0
      %936 = vmatpush1.bf16.msra.mxu0 0
      %937 = vmatprep.subr.bf16.mxu0 0
      %938 = vmatpush1.bf16.msra.mxu0 0
      %939 = vmatprep.subr.bf16.mxu0 0
      %940 = vmatpush1.bf16.msra.mxu0 0
      %941 = vmatprep.subr.bf16.mxu0 0
      %942 = vmatpush1.bf16.msra.mxu0 0
      %943 = vmatprep.subr.bf16.mxu0 0
      %944 = vmatpush1.bf16.msra.mxu0 0
      %945 = vmatprep.subr.bf16.mxu0 0
      %946 = vmatpush1.bf16.msra.mxu0 0
      %947 = vmatprep.subr.bf16.mxu0 0
      %948 = vmatpush1.bf16.msra.mxu0 0
      %949 = vmatprep.subr.bf16.mxu0 0
      %950 = vmatpush1.bf16.msra.mxu0 0
      %951 = vmatprep.subr.bf16.mxu0 0
      %952 = vmatpush1.bf16.msra.mxu0 0
      %953 = vmatprep.subr.bf16.mxu0 0
      %954 = vmatpush1.bf16.msra.mxu0 0
      %955 = vmatprep.subr.bf16.mxu0 0
      %956 = vmatpush1.bf16.msra.mxu0 0
      %957 = vmatprep.mubr.bf16.mxu0 0
      %958 = vmatmul.mubr.bf16.gmra.mrb[0].mxu0 %v709
      %v959 = vpop.f32.mrb[0].mxu0
      %v960 = vadd.f32 0.0, %v959
      %v961 = vpop.f32.mrb[0].mxu0
      %v962 = vpop.f32.mrb[0].mxu0
      %v963 = vadd.f32 0.0, %v962
      %v964 = vpop.f32.mrb[0].mxu0
      %965 = vmatprep.mubr.bf16.mxu0 0
      %966 = vmatmul.mubr.bf16.gmra.mrb[0].mxu0 %v712
      %v967 = vpop.f32.mrb[0].mxu0
      %v968 = vadd.f32 0.0, %v967
      %v969 = vpop.f32.mrb[0].mxu0
      %v970 = vpop.f32.mrb[0].mxu0
      %v971 = vadd.f32 0.0, %v970
      %v972 = vpop.f32.mrb[0].mxu0
      %973 = vmatprep.mubr.bf16.mxu0 0
      %974 = vmatmul.mubr.bf16.gmra.mrb[0].mxu0 %v715
      %v975 = vpop.f32.mrb[0].mxu0
      %v976 = vadd.f32 0.0, %v975
      %v977 = vpop.f32.mrb[0].mxu0
      %v978 = vpop.f32.mrb[0].mxu0
      %v979 = vadd.f32 0.0, %v978
      %v980 = vpop.f32.mrb[0].mxu0
      %981 = vmatprep.mubr.bf16.mxu0 0
      %982 = vmatmul.mubr.bf16.gmra.mrb[0].mxu0 %v718
      %v983 = vpop.f32.mrb[0].mxu0
      %v984 = vadd.f32 0.0, %v983
      %v985 = vpop.f32.mrb[0].mxu0
      %v986 = vpop.f32.mrb[0].mxu0
      %v987 = vadd.f32 0.0, %v986
      %v988 = vpop.f32.mrb[0].mxu0
      %989 = vmatprep.mubr.bf16.mxu0 0
      %990 = vmatmul.mubr.bf16.gmra.mrb[0].mxu0 %v721
      %v991 = vpop.f32.mrb[0].mxu0
      %v992 = vadd.f32 0.0, %v991
      %v993 = vpop.f32.mrb[0].mxu0
      %v994 = vpop.f32.mrb[0].mxu0
      %v995 = vadd.f32 0.0, %v994
      %v996 = vpop.f32.mrb[0].mxu0
      %997 = vmatprep.mubr.bf16.mxu0 0
      %998 = vmatmul.mubr.bf16.gmra.mrb[0].mxu0 %v724
      %v999 = vpop.f32.mrb[0].mxu0
      %v1000 = vadd.f32 0.0, %v999
      %v1001 = vpop.f32.mrb[0].mxu0
      %v1002 = vpop.f32.mrb[0].mxu0
      %v1003 = vadd.f32 0.0, %v1002
      %v1004 = vpop.f32.mrb[0].mxu0
      %1005 = vmatprep.mubr.bf16.mxu0 0
      %1006 = vmatmul.mubr.bf16.gmra.mrb[0].mxu0 %v727
      %v1007 = vpop.f32.mrb[0].mxu0
      %v1008 = vadd.f32 0.0, %v1007
      %v1009 = vpop.f32.mrb[0].mxu0
      %v1010 = vpop.f32.mrb[0].mxu0
      %v1011 = vadd.f32 0.0, %v1010
      %v1012 = vpop.f32.mrb[0].mxu0
      %1013 = vmatprep.mubr.bf16.mxu0 0
      %1014 = vmatmul.mubr.bf16.gmra.mrb[0].mxu0 %v730
      %v1015 = vpop.f32.mrb[0].mxu0
      %v1016 = vadd.f32 0.0, %v1015
      %v1017 = vpop.f32.mrb[0].mxu0
      %v1018 = vpop.f32.mrb[0].mxu0
      %v1019 = vadd.f32 0.0, %v1018
      %v1020 = vpop.f32.mrb[0].mxu0
      %1021 = vmatprep.mubr.bf16.mxu0 0
      %1022 = vmatmul.mubr.bf16.gmra.mrb[0].mxu0 %v733
      %v1023 = vpop.f32.mrb[0].mxu0
      %v1024 = vadd.f32 0.0, %v1023
      %v1025 = vpop.f32.mrb[0].mxu0
      %v1026 = vpop.f32.mrb[0].mxu0
      %v1027 = vadd.f32 0.0, %v1026
      %v1028 = vpop.f32.mrb[0].mxu0
      %1029 = vmatprep.mubr.bf16.mxu0 0
      %1030 = vmatmul.mubr.bf16.gmra.mrb[0].mxu0 %v736
      %v1031 = vpop.f32.mrb[0].mxu0
      %v1032 = vadd.f32 0.0, %v1031
      %v1033 = vpop.f32.mrb[0].mxu0
      %v1034 = vpop.f32.mrb[0].mxu0
      %v1035 = vadd.f32 0.0, %v1034
      %v1036 = vpop.f32.mrb[0].mxu0
      %1037 = vmatprep.mubr.bf16.mxu0 0
      %1038 = vmatmul.mubr.bf16.gmra.mrb[0].mxu0 %v739
      %v1039 = vpop.f32.mrb[0].mxu0
      %v1040 = vadd.f32 0.0, %v1039
      %v1041 = vpop.f32.mrb[0].mxu0
      %v1042 = vpop.f32.mrb[0].mxu0
      %v1043 = vadd.f32 0.0, %v1042
      %v1044 = vpop.f32.mrb[0].mxu0
      %1045 = vmatprep.mubr.bf16.mxu0 0
      %1046 = vmatmul.mubr.bf16.gmra.mrb[0].mxu0 %v742
      %v1047 = vpop.f32.mrb[0].mxu0
      %v1048 = vadd.f32 0.0, %v1047
      %v1049 = vpop.f32.mrb[0].mxu0
      %v1050 = vpop.f32.mrb[0].mxu0
      %v1051 = vadd.f32 0.0, %v1050
      %v1052 = vpop.f32.mrb[0].mxu0
      %1053 = vmatprep.mubr.bf16.mxu0 0
      %1054 = vmatmul.mubr.bf16.gmra.mrb[0].mxu0 %v745
      %v1055 = vpop.f32.mrb[0].mxu0
      %v1056 = vadd.f32 0.0, %v1055
      %v1057 = vpop.f32.mrb[0].mxu0
      %v1058 = vpop.f32.mrb[0].mxu0
      %v1059 = vadd.f32 0.0, %v1058
      %v1060 = vpop.f32.mrb[0].mxu0
      %1061 = vmatprep.mubr.bf16.mxu0 0
      %1062 = vmatmul.mubr.bf16.gmra.mrb[0].mxu0 %v748
      %v1063 = vpop.f32.mrb[0].mxu0
      %v1064 = vadd.f32 0.0, %v1063
      %v1065 = vpop.f32.mrb[0].mxu0
      %v1066 = vpop.f32.mrb[0].mxu0
      %v1067 = vadd.f32 0.0, %v1066
      %v1068 = vpop.f32.mrb[0].mxu0
      %1069 = vmatprep.mubr.bf16.mxu0 0
      %1070 = vmatmul.mubr.bf16.gmra.mrb[0].mxu0 %v751
      %v1071 = vpop.f32.mrb[0].mxu0
      %v1072 = vadd.f32 0.0, %v1071
      %v1073 = vpop.f32.mrb[0].mxu0
      %v1074 = vpop.f32.mrb[0].mxu0
      %v1075 = vadd.f32 0.0, %v1074
      %v1076 = vpop.f32.mrb[0].mxu0
      %1077 = vmatprep.mubr.bf16.mxu0 0
      %1078 = vmatmul.mubr.bf16.gmra.mrb[0].mxu0 %v754
      %v1079 = vpop.f32.mrb[0].mxu0
      %v1080 = vadd.f32 0.0, %v1079
      %v1081 = vpop.f32.mrb[0].mxu0
      %v1082 = vpop.f32.mrb[0].mxu0
      %v1083 = vadd.f32 0.0, %v1082
      %v1084 = vpop.f32.mrb[0].mxu0
      %1085 = vdwg.mxu0
      %v1086 = vld [vmem:[%s3] sm:$0x1]
      %v1087 = vld [vmem:[%s4] sm:$0x1]
      %v1089 = vlaneseq
      %v1090 = vshrl.u32 %v1089, 7
      %v1091 = vsub.s32 0, %v1090
      %v1092 = vrot.slane %v1086, %v1091
      %v1094 = vmul.f32 %v795, %v1092
      %v1095 = vmul.f32 %v798, %v1092
      %v1096 = vmul.f32 %v803, %v1092
      %v1097 = vmul.f32 %v806, %v1092
      %v1098 = vmul.f32 %v811, %v1092
      %v1099 = vmul.f32 %v814, %v1092
      %v1100 = vmul.f32 %v819, %v1092
      %v1101 = vmul.f32 %v822, %v1092
      %v1102 = vmul.f32 %v827, %v1092
      %v1103 = vmul.f32 %v830, %v1092
      %v1104 = vmul.f32 %v835, %v1092
      %v1105 = vmul.f32 %v838, %v1092
      %v1106 = vmul.f32 %v843, %v1092
      %v1107 = vmul.f32 %v846, %v1092
      %v1108 = vmul.f32 %v851, %v1092
      %v1109 = vmul.f32 %v854, %v1092
      %v1110 = vmul.f32 %v859, %v1092
      %v1111 = vmul.f32 %v862, %v1092
      %v1112 = vmul.f32 %v867, %v1092
      %v1113 = vmul.f32 %v870, %v1092
      %v1114 = vmul.f32 %v875, %v1092
      %v1115 = vmul.f32 %v878, %v1092
      %v1116 = vmul.f32 %v883, %v1092
      %v1117 = vmul.f32 %v886, %v1092
      %v1118 = vmul.f32 %v891, %v1092
      %v1119 = vmul.f32 %v894, %v1092
      %v1120 = vmul.f32 %v899, %v1092
      %v1121 = vmul.f32 %v902, %v1092
      %v1122 = vmul.f32 %v907, %v1092
      %v1123 = vmul.f32 %v910, %v1092
      %v1124 = vmul.f32 %v915, %v1092
      %v1125 = vmul.f32 %v918, %v1092
      %v1127 = vlaneseq
      %v1128 = vshrl.u32 %v1127, 7
      %v1129 = vsub.s32 0, %v1128
      %v1130 = vrot.slane %v1087, %v1129
      %v1132 = vadd.f32 %v1094, %v1130
      %v1133 = vadd.f32 %v1095, %v1130
      %v1134 = vadd.f32 %v1096, %v1130
      %v1135 = vadd.f32 %v1097, %v1130
      %v1136 = vadd.f32 %v1098, %v1130
      %v1137 = vadd.f32 %v1099, %v1130
      %v1138 = vadd.f32 %v1100, %v1130
      %v1139 = vadd.f32 %v1101, %v1130
      %v1140 = vadd.f32 %v1102, %v1130
      %v1141 = vadd.f32 %v1103, %v1130
      %v1142 = vadd.f32 %v1104, %v1130
      %v1143 = vadd.f32 %v1105, %v1130
      %v1144 = vadd.f32 %v1106, %v1130
      %v1145 = vadd.f32 %v1107, %v1130
      %v1146 = vadd.f32 %v1108, %v1130
      %v1147 = vadd.f32 %v1109, %v1130
      %v1148 = vadd.f32 %v1110, %v1130
      %v1149 = vadd.f32 %v1111, %v1130
      %v1150 = vadd.f32 %v1112, %v1130
      %v1151 = vadd.f32 %v1113, %v1130
      %v1152 = vadd.f32 %v1114, %v1130
      %v1153 = vadd.f32 %v1115, %v1130
      %v1154 = vadd.f32 %v1116, %v1130
      %v1155 = vadd.f32 %v1117, %v1130
      %v1156 = vadd.f32 %v1118, %v1130
      %v1157 = vadd.f32 %v1119, %v1130
      %v1158 = vadd.f32 %v1120, %v1130
      %v1159 = vadd.f32 %v1121, %v1130
      %v1160 = vadd.f32 %v1122, %v1130
      %v1161 = vadd.f32 %v1123, %v1130
      %v1162 = vadd.f32 %v1124, %v1130
      %v1163 = vadd.f32 %v1125, %v1130
      %vm1164 = vcmp.gt.f32.partialorder %v1132, 0.0
      %vm1165 = vcmp.gt.f32.partialorder %v1133, 0.0
      %vm1166 = vcmp.gt.f32.partialorder %v1134, 0.0
      %vm1167 = vcmp.gt.f32.partialorder %v1135, 0.0
      %vm1168 = vcmp.gt.f32.partialorder %v1136, 0.0
      %vm1169 = vcmp.gt.f32.partialorder %v1137, 0.0
      %vm1170 = vcmp.gt.f32.partialorder %v1138, 0.0
      %vm1171 = vcmp.gt.f32.partialorder %v1139, 0.0
      %vm1172 = vcmp.gt.f32.partialorder %v1140, 0.0
      %vm1173 = vcmp.gt.f32.partialorder %v1141, 0.0
      %vm1174 = vcmp.gt.f32.partialorder %v1142, 0.0
      %vm1175 = vcmp.gt.f32.partialorder %v1143, 0.0
      %vm1176 = vcmp.gt.f32.partialorder %v1144, 0.0
      %vm1177 = vcmp.gt.f32.partialorder %v1145, 0.0
      %vm1178 = vcmp.gt.f32.partialorder %v1146, 0.0
      %vm1179 = vcmp.gt.f32.partialorder %v1147, 0.0
      %vm1180 = vcmp.gt.f32.partialorder %v1148, 0.0
      %vm1181 = vcmp.gt.f32.partialorder %v1149, 0.0
      %vm1182 = vcmp.gt.f32.partialorder %v1150, 0.0
      %vm1183 = vcmp.gt.f32.partialorder %v1151, 0.0
      %vm1184 = vcmp.gt.f32.partialorder %v1152, 0.0
      %vm1185 = vcmp.gt.f32.partialorder %v1153, 0.0
      %vm1186 = vcmp.gt.f32.partialorder %v1154, 0.0
      %vm1187 = vcmp.gt.f32.partialorder %v1155, 0.0
      %vm1188 = vcmp.gt.f32.partialorder %v1156, 0.0
      %vm1189 = vcmp.gt.f32.partialorder %v1157, 0.0
      %vm1190 = vcmp.gt.f32.partialorder %v1158, 0.0
      %vm1191 = vcmp.gt.f32.partialorder %v1159, 0.0
      %vm1192 = vcmp.gt.f32.partialorder %v1160, 0.0
      %vm1193 = vcmp.gt.f32.partialorder %v1161, 0.0
      %vm1194 = vcmp.gt.f32.partialorder %v1162, 0.0
      %vm1195 = vcmp.gt.f32.partialorder %v1163, 0.0
      %v1196 = vmul.f32 %v1132, 0.2
      %v1197 = vmul.f32 %v1133, 0.2
      %v1198 = vmul.f32 %v1134, 0.2
      %v1199 = vmul.f32 %v1135, 0.2
      %v1200 = vmul.f32 %v1136, 0.2
      %v1201 = vmul.f32 %v1137, 0.2
      %v1202 = vmul.f32 %v1138, 0.2
      %v1203 = vmul.f32 %v1139, 0.2
      %v1204 = vmul.f32 %v1140, 0.2
      %v1205 = vmul.f32 %v1141, 0.2
      %v1206 = vmul.f32 %v1142, 0.2
      %v1207 = vmul.f32 %v1143, 0.2
      %v1208 = vmul.f32 %v1144, 0.2
      %v1209 = vmul.f32 %v1145, 0.2
      %v1210 = vmul.f32 %v1146, 0.2
      %v1211 = vmul.f32 %v1147, 0.2
      %v1212 = vmul.f32 %v1148, 0.2
      %v1213 = vmul.f32 %v1149, 0.2
      %v1214 = vmul.f32 %v1150, 0.2
      %v1215 = vmul.f32 %v1151, 0.2
      %v1216 = vmul.f32 %v1152, 0.2
      %v1217 = vmul.f32 %v1153, 0.2
      %v1218 = vmul.f32 %v1154, 0.2
      %v1219 = vmul.f32 %v1155, 0.2
      %v1220 = vmul.f32 %v1156, 0.2
      %v1221 = vmul.f32 %v1157, 0.2
      %v1222 = vmul.f32 %v1158, 0.2
      %v1223 = vmul.f32 %v1159, 0.2
      %v1224 = vmul.f32 %v1160, 0.2
      %v1225 = vmul.f32 %v1161, 0.2
      %v1226 = vmul.f32 %v1162, 0.2
      %v1227 = vmul.f32 %v1163, 0.2
      %v1228 = vsel %vm1164, %v1132, %v1196
      %v1229 = vsel %vm1165, %v1133, %v1197
      %v1230 = vsel %vm1166, %v1134, %v1198
      %v1231 = vsel %vm1167, %v1135, %v1199
      %v1232 = vsel %vm1168, %v1136, %v1200
      %v1233 = vsel %vm1169, %v1137, %v1201
      %v1234 = vsel %vm1170, %v1138, %v1202
      %v1235 = vsel %vm1171, %v1139, %v1203
      %v1236 = vsel %vm1172, %v1140, %v1204
      %v1237 = vsel %vm1173, %v1141, %v1205
      %v1238 = vsel %vm1174, %v1142, %v1206
      %v1239 = vsel %vm1175, %v1143, %v1207
      %v1240 = vsel %vm1176, %v1144, %v1208
      %v1241 = vsel %vm1177, %v1145, %v1209
      %v1242 = vsel %vm1178, %v1146, %v1210
      %v1243 = vsel %vm1179, %v1147, %v1211
      %v1244 = vsel %vm1180, %v1148, %v1212
      %v1245 = vsel %vm1181, %v1149, %v1213
      %v1246 = vsel %vm1182, %v1150, %v1214
      %v1247 = vsel %vm1183, %v1151, %v1215
      %v1248 = vsel %vm1184, %v1152, %v1216
      %v1249 = vsel %vm1185, %v1153, %v1217
      %v1250 = vsel %vm1186, %v1154, %v1218
      %v1251 = vsel %vm1187, %v1155, %v1219
      %v1252 = vsel %vm1188, %v1156, %v1220
      %v1253 = vsel %vm1189, %v1157, %v1221
      %v1254 = vsel %vm1190, %v1158, %v1222
      %v1255 = vsel %vm1191, %v1159, %v1223
      %v1256 = vsel %vm1192, %v1160, %v1224
      %v1257 = vsel %vm1193, %v1161, %v1225
      %v1258 = vsel %vm1194, %v1162, %v1226
      %v1259 = vsel %vm1195, %v1163, %v1227
      %v1260 = vmul.f32 %v960, %v1092
      %v1261 = vmul.f32 %v963, %v1092
      %v1262 = vmul.f32 %v968, %v1092
      %v1263 = vmul.f32 %v971, %v1092
      %v1264 = vmul.f32 %v976, %v1092
      %v1265 = vmul.f32 %v979, %v1092
      %v1266 = vmul.f32 %v984, %v1092
      %v1267 = vmul.f32 %v987, %v1092
      %v1268 = vmul.f32 %v992, %v1092
      %v1269 = vmul.f32 %v995, %v1092
      %v1270 = vmul.f32 %v1000, %v1092
      %v1271 = vmul.f32 %v1003, %v1092
      %v1272 = vmul.f32 %v1008, %v1092
      %v1273 = vmul.f32 %v1011, %v1092
      %v1274 = vmul.f32 %v1016, %v1092
      %v1275 = vmul.f32 %v1019, %v1092
      %v1276 = vmul.f32 %v1024, %v1092
      %v1277 = vmul.f32 %v1027, %v1092
      %v1278 = vmul.f32 %v1032, %v1092
      %v1279 = vmul.f32 %v1035, %v1092
      %v1280 = vmul.f32 %v1040, %v1092
      %v1281 = vmul.f32 %v1043, %v1092
      %v1282 = vmul.f32 %v1048, %v1092
      %v1283 = vmul.f32 %v1051, %v1092
      %v1284 = vmul.f32 %v1056, %v1092
      %v1285 = vmul.f32 %v1059, %v1092
      %v1286 = vmul.f32 %v1064, %v1092
      %v1287 = vmul.f32 %v1067, %v1092
      %v1288 = vmul.f32 %v1072, %v1092
      %v1289 = vmul.f32 %v1075, %v1092
      %v1290 = vmul.f32 %v1080, %v1092
      %v1291 = vmul.f32 %v1083, %v1092
      %v1292 = vadd.f32 %v1260, %v1130
      %v1293 = vadd.f32 %v1261, %v1130
      %v1294 = vadd.f32 %v1262, %v1130
      %v1295 = vadd.f32 %v1263, %v1130
      %v1296 = vadd.f32 %v1264, %v1130
      %v1297 = vadd.f32 %v1265, %v1130
      %v1298 = vadd.f32 %v1266, %v1130
      %v1299 = vadd.f32 %v1267, %v1130
      %v1300 = vadd.f32 %v1268, %v1130
      %v1301 = vadd.f32 %v1269, %v1130
      %v1302 = vadd.f32 %v1270, %v1130
      %v1303 = vadd.f32 %v1271, %v1130
      %v1304 = vadd.f32 %v1272, %v1130
      %v1305 = vadd.f32 %v1273, %v1130
      %v1306 = vadd.f32 %v1274, %v1130
      %v1307 = vadd.f32 %v1275, %v1130
      %v1308 = vadd.f32 %v1276, %v1130
      %v1309 = vadd.f32 %v1277, %v1130
      %v1310 = vadd.f32 %v1278, %v1130
      %v1311 = vadd.f32 %v1279, %v1130
      %v1312 = vadd.f32 %v1280, %v1130
      %v1313 = vadd.f32 %v1281, %v1130
      %v1314 = vadd.f32 %v1282, %v1130
      %v1315 = vadd.f32 %v1283, %v1130
      %v1316 = vadd.f32 %v1284, %v1130
      %v1317 = vadd.f32 %v1285, %v1130
      %v1318 = vadd.f32 %v1286, %v1130
      %v1319 = vadd.f32 %v1287, %v1130
      %v1320 = vadd.f32 %v1288, %v1130
      %v1321 = vadd.f32 %v1289, %v1130
      %v1322 = vadd.f32 %v1290, %v1130
      %v1323 = vadd.f32 %v1291, %v1130
      %vm1324 = vcmp.gt.f32.partialorder %v1292, 0.0
      %vm1325 = vcmp.gt.f32.partialorder %v1293, 0.0
      %vm1326 = vcmp.gt.f32.partialorder %v1294, 0.0
      %vm1327 = vcmp.gt.f32.partialorder %v1295, 0.0
      %vm1328 = vcmp.gt.f32.partialorder %v1296, 0.0
      %vm1329 = vcmp.gt.f32.partialorder %v1297, 0.0
      %vm1330 = vcmp.gt.f32.partialorder %v1298, 0.0
      %vm1331 = vcmp.gt.f32.partialorder %v1299, 0.0
      %vm1332 = vcmp.gt.f32.partialorder %v1300, 0.0
      %vm1333 = vcmp.gt.f32.partialorder %v1301, 0.0
      %vm1334 = vcmp.gt.f32.partialorder %v1302, 0.0
      %vm1335 = vcmp.gt.f32.partialorder %v1303, 0.0
      %vm1336 = vcmp.gt.f32.partialorder %v1304, 0.0
      %vm1337 = vcmp.gt.f32.partialorder %v1305, 0.0
      %vm1338 = vcmp.gt.f32.partialorder %v1306, 0.0
      %vm1339 = vcmp.gt.f32.partialorder %v1307, 0.0
      %vm1340 = vcmp.gt.f32.partialorder %v1308, 0.0
      %vm1341 = vcmp.gt.f32.partialorder %v1309, 0.0
      %vm1342 = vcmp.gt.f32.partialorder %v1310, 0.0
      %vm1343 = vcmp.gt.f32.partialorder %v1311, 0.0
      %vm1344 = vcmp.gt.f32.partialorder %v1312, 0.0
      %vm1345 = vcmp.gt.f32.partialorder %v1313, 0.0
      %vm1346 = vcmp.gt.f32.partialorder %v1314, 0.0
      %vm1347 = vcmp.gt.f32.partialorder %v1315, 0.0
      %vm1348 = vcmp.gt.f32.partialorder %v1316, 0.0
      %vm1349 = vcmp.gt.f32.partialorder %v1317, 0.0
      %vm1350 = vcmp.gt.f32.partialorder %v1318, 0.0
      %vm1351 = vcmp.gt.f32.partialorder %v1319, 0.0
      %vm1352 = vcmp.gt.f32.partialorder %v1320, 0.0
      %vm1353 = vcmp.gt.f32.partialorder %v1321, 0.0
      %vm1354 = vcmp.gt.f32.partialorder %v1322, 0.0
      %vm1355 = vcmp.gt.f32.partialorder %v1323, 0.0
      %v1356 = vmul.f32 %v1292, 0.2
      %v1357 = vmul.f32 %v1293, 0.2
      %v1358 = vmul.f32 %v1294, 0.2
      %v1359 = vmul.f32 %v1295, 0.2
      %v1360 = vmul.f32 %v1296, 0.2
      %v1361 = vmul.f32 %v1297, 0.2
      %v1362 = vmul.f32 %v1298, 0.2
      %v1363 = vmul.f32 %v1299, 0.2
      %v1364 = vmul.f32 %v1300, 0.2
      %v1365 = vmul.f32 %v1301, 0.2
      %v1366 = vmul.f32 %v1302, 0.2
      %v1367 = vmul.f32 %v1303, 0.2
      %v1368 = vmul.f32 %v1304, 0.2
      %v1369 = vmul.f32 %v1305, 0.2
      %v1370 = vmul.f32 %v1306, 0.2
      %v1371 = vmul.f32 %v1307, 0.2
      %v1372 = vmul.f32 %v1308, 0.2
      %v1373 = vmul.f32 %v1309, 0.2
      %v1374 = vmul.f32 %v1310, 0.2
      %v1375 = vmul.f32 %v1311, 0.2
      %v1376 = vmul.f32 %v1312, 0.2
      %v1377 = vmul.f32 %v1313, 0.2
      %v1378 = vmul.f32 %v1314, 0.2
      %v1379 = vmul.f32 %v1315, 0.2
      %v1380 = vmul.f32 %v1316, 0.2
      %v1381 = vmul.f32 %v1317, 0.2
      %v1382 = vmul.f32 %v1318, 0.2
      %v1383 = vmul.f32 %v1319, 0.2
      %v1384 = vmul.f32 %v1320, 0.2
      %v1385 = vmul.f32 %v1321, 0.2
      %v1386 = vmul.f32 %v1322, 0.2
      %v1387 = vmul.f32 %v1323, 0.2
      %v1388 = vsel %vm1324, %v1292, %v1356
      %v1389 = vsel %vm1325, %v1293, %v1357
      %v1390 = vsel %vm1326, %v1294, %v1358
      %v1391 = vsel %vm1327, %v1295, %v1359
      %v1392 = vsel %vm1328, %v1296, %v1360
      %v1393 = vsel %vm1329, %v1297, %v1361
      %v1394 = vsel %vm1330, %v1298, %v1362
      %v1395 = vsel %vm1331, %v1299, %v1363
      %v1396 = vsel %vm1332, %v1300, %v1364
      %v1397 = vsel %vm1333, %v1301, %v1365
      %v1398 = vsel %vm1334, %v1302, %v1366
      %v1399 = vsel %vm1335, %v1303, %v1367
      %v1400 = vsel %vm1336, %v1304, %v1368
      %v1401 = vsel %vm1337, %v1305, %v1369
      %v1402 = vsel %vm1338, %v1306, %v1370
      %v1403 = vsel %vm1339, %v1307, %v1371
      %v1404 = vsel %vm1340, %v1308, %v1372
      %v1405 = vsel %vm1341, %v1309, %v1373
      %v1406 = vsel %vm1342, %v1310, %v1374
      %v1407 = vsel %vm1343, %v1311, %v1375
      %v1408 = vsel %vm1344, %v1312, %v1376
      %v1409 = vsel %vm1345, %v1313, %v1377
      %v1410 = vsel %vm1346, %v1314, %v1378
      %v1411 = vsel %vm1347, %v1315, %v1379
      %v1412 = vsel %vm1348, %v1316, %v1380
      %v1413 = vsel %vm1349, %v1317, %v1381
      %v1414 = vsel %vm1350, %v1318, %v1382
      %v1415 = vsel %vm1351, %v1319, %v1383
      %v1416 = vsel %vm1352, %v1320, %v1384
      %v1417 = vsel %vm1353, %v1321, %v1385
      %v1418 = vsel %vm1354, %v1322, %v1386
      %v1419 = vsel %vm1355, %v1323, %v1387
      %v1420 = vmax.f32 %v1228, %v1388
      %v1421 = vmax.f32 %v1229, %v1389
      %v1422 = vmax.f32 %v1230, %v1390
      %v1423 = vmax.f32 %v1231, %v1391
      %v1424 = vmax.f32 %v1232, %v1392
      %v1425 = vmax.f32 %v1233, %v1393
      %v1426 = vmax.f32 %v1234, %v1394
      %v1427 = vmax.f32 %v1235, %v1395
      %v1428 = vmax.f32 %v1236, %v1396
      %v1429 = vmax.f32 %v1237, %v1397
      %v1430 = vmax.f32 %v1238, %v1398
      %v1431 = vmax.f32 %v1239, %v1399
      %v1432 = vmax.f32 %v1240, %v1400
      %v1433 = vmax.f32 %v1241, %v1401
      %v1434 = vmax.f32 %v1242, %v1402
      %v1435 = vmax.f32 %v1243, %v1403
      %v1436 = vmax.f32 %v1244, %v1404
      %v1437 = vmax.f32 %v1245, %v1405
      %v1438 = vmax.f32 %v1246, %v1406
      %v1439 = vmax.f32 %v1247, %v1407
      %v1440 = vmax.f32 %v1248, %v1408
      %v1441 = vmax.f32 %v1249, %v1409
      %v1442 = vmax.f32 %v1250, %v1410
      %v1443 = vmax.f32 %v1251, %v1411
      %v1444 = vmax.f32 %v1252, %v1412
      %v1445 = vmax.f32 %v1253, %v1413
      %v1446 = vmax.f32 %v1254, %v1414
      %v1447 = vmax.f32 %v1255, %v1415
      %v1448 = vmax.f32 %v1256, %v1416
      %v1449 = vmax.f32 %v1257, %v1417
      %v1450 = vmax.f32 %v1258, %v1418
      %v1451 = vmax.f32 %v1259, %v1419
      %v1452 = vpack.c.bf16 %v1421, %v1420
      %v1453 = vpack.c.bf16 %v1423, %v1422
      %v1454 = vpack.c.bf16 %v1425, %v1424
      %v1455 = vpack.c.bf16 %v1427, %v1426
      %v1456 = vpack.c.bf16 %v1429, %v1428
      %v1457 = vpack.c.bf16 %v1431, %v1430
      %v1458 = vpack.c.bf16 %v1433, %v1432
      %v1459 = vpack.c.bf16 %v1435, %v1434
      %v1460 = vpack.c.bf16 %v1437, %v1436
      %v1461 = vpack.c.bf16 %v1439, %v1438
      %v1462 = vpack.c.bf16 %v1441, %v1440
      %v1463 = vpack.c.bf16 %v1443, %v1442
      %v1464 = vpack.c.bf16 %v1445, %v1444
      %v1465 = vpack.c.bf16 %v1447, %v1446
      %v1466 = vpack.c.bf16 %v1449, %v1448
      %v1467 = vpack.c.bf16 %v1451, %v1450
      %v1468 = vpack.c.bf16 0.0, 0.0
      %v1469 = vld [vmem:[%s5] sm:$0xf]
      %v1470 = vld [vmem:[%s5 + $0x4] sm:$0xf]
      %v1471 = vld [vmem:[%s5 + $0x8] sm:$0xf]
      %v1472 = vld [vmem:[%s5 + $0xc] sm:$0xf]
      %v1473 = vld [vmem:[%s5 + $0x10] sm:$0xf]
      %v1474 = vld [vmem:[%s5 + $0x14] sm:$0xf]
      %v1475 = vld [vmem:[%s5 + $0x18] sm:$0xf]
      %v1476 = vld [vmem:[%s5 + $0x1c] sm:$0xf]
      %v1477 = vld [vmem:[%s5 + $0x20] sm:$0xf]
      %v1478 = vld [vmem:[%s5 + $0x24] sm:$0xf]
      %v1479 = vld [vmem:[%s5 + $0x28] sm:$0xf]
      %v1480 = vld [vmem:[%s5 + $0x2c] sm:$0xf]
      %v1481 = vld [vmem:[%s5 + $0x30] sm:$0xf]
      %v1482 = vld [vmem:[%s5 + $0x34] sm:$0xf]
      %v1483 = vld [vmem:[%s5 + $0x38] sm:$0xf]
      %v1484 = vld [vmem:[%s5 + $0x3c] sm:$0xf]
      %s1485 = scalar_lea.vmem %s5, 64
      %v1486 = vld [vmem:[%s1485] sm:$0xf]
      %v1487 = vld [vmem:[%s1485 + $0x4] sm:$0xf]
      %v1488 = vld [vmem:[%s1485 + $0x8] sm:$0xf]
      %v1489 = vld [vmem:[%s1485 + $0xc] sm:$0xf]
      %v1490 = vld [vmem:[%s1485 + $0x10] sm:$0xf]
      %v1491 = vld [vmem:[%s1485 + $0x14] sm:$0xf]
      %v1492 = vld [vmem:[%s1485 + $0x18] sm:$0xf]
      %v1493 = vld [vmem:[%s1485 + $0x1c] sm:$0xf]
      %v1494 = vld [vmem:[%s1485 + $0x20] sm:$0xf]
      %v1495 = vld [vmem:[%s1485 + $0x24] sm:$0xf]
      %v1496 = vld [vmem:[%s1485 + $0x28] sm:$0xf]
      %v1497 = vld [vmem:[%s1485 + $0x2c] sm:$0xf]
      %v1498 = vld [vmem:[%s1485 + $0x30] sm:$0xf]
      %v1499 = vld [vmem:[%s1485 + $0x34] sm:$0xf]
      %v1500 = vld [vmem:[%s1485 + $0x38] sm:$0xf]
      %v1501 = vld [vmem:[%s1485 + $0x3c] sm:$0xf]
      %vm1502 = vsmask.f32 7424
      %v1504 = vshrl.u32 %v1452, 16
      %v1506 = vshll.u32 %v1452, 16
      %v1508 = vrot.slane %v1506, 1
      %v1509 = vor.u32 %v1504, %v1508
      %v1511 = vshll.u32 %v1453, 16
      %v1513 = vrot.slane %v1511, 1
      %v1514 = vsel %vm1502, %v1509, %v1513
      %v1515 = vshrl.u32 %v1453, 16
      %v1517 = vor.u32 %v1515, %v1513
      %v1519 = vshll.u32 %v1454, 16
      %v1521 = vrot.slane %v1519, 1
      %v1522 = vsel %vm1502, %v1517, %v1521
      %v1523 = vshrl.u32 %v1454, 16
      %v1525 = vor.u32 %v1523, %v1521
      %v1527 = vshll.u32 %v1455, 16
      %v1529 = vrot.slane %v1527, 1
      %v1530 = vsel %vm1502, %v1525, %v1529
      %v1531 = vshrl.u32 %v1455, 16
      %v1533 = vor.u32 %v1531, %v1529
      %v1535 = vshll.u32 %v1456, 16
      %v1537 = vrot.slane %v1535, 1
      %v1538 = vsel %vm1502, %v1533, %v1537
      %v1539 = vshrl.u32 %v1456, 16
      %v1541 = vor.u32 %v1539, %v1537
      %v1543 = vshll.u32 %v1457, 16
      %v1545 = vrot.slane %v1543, 1
      %v1546 = vsel %vm1502, %v1541, %v1545
      %v1547 = vshrl.u32 %v1457, 16
      %v1549 = vor.u32 %v1547, %v1545
      %v1551 = vshll.u32 %v1458, 16
      %v1553 = vrot.slane %v1551, 1
      %v1554 = vsel %vm1502, %v1549, %v1553
      %v1555 = vshrl.u32 %v1458, 16
      %v1557 = vor.u32 %v1555, %v1553
      %v1559 = vshll.u32 %v1459, 16
      %v1561 = vrot.slane %v1559, 1
      %v1562 = vsel %vm1502, %v1557, %v1561
      %v1563 = vshrl.u32 %v1459, 16
      %v1565 = vor.u32 %v1563, %v1561
      %v1567 = vshll.u32 %v1460, 16
      %v1569 = vrot.slane %v1567, 1
      %v1570 = vsel %vm1502, %v1565, %v1569
      %v1571 = vshrl.u32 %v1460, 16
      %v1573 = vor.u32 %v1571, %v1569
      %v1575 = vshll.u32 %v1461, 16
      %v1577 = vrot.slane %v1575, 1
      %v1578 = vsel %vm1502, %v1573, %v1577
      %v1579 = vshrl.u32 %v1461, 16
      %v1581 = vor.u32 %v1579, %v1577
      %v1583 = vshll.u32 %v1462, 16
      %v1585 = vrot.slane %v1583, 1
      %v1586 = vsel %vm1502, %v1581, %v1585
      %v1587 = vshrl.u32 %v1462, 16
      %v1589 = vor.u32 %v1587, %v1585
      %v1591 = vshll.u32 %v1463, 16
      %v1593 = vrot.slane %v1591, 1
      %v1594 = vsel %vm1502, %v1589, %v1593
      %v1595 = vshrl.u32 %v1463, 16
      %v1597 = vor.u32 %v1595, %v1593
      %v1599 = vshll.u32 %v1464, 16
      %v1601 = vrot.slane %v1599, 1
      %v1602 = vsel %vm1502, %v1597, %v1601
      %v1603 = vshrl.u32 %v1464, 16
      %v1605 = vor.u32 %v1603, %v1601
      %v1607 = vshll.u32 %v1465, 16
      %v1609 = vrot.slane %v1607, 1
      %v1610 = vsel %vm1502, %v1605, %v1609
      %v1611 = vshrl.u32 %v1465, 16
      %v1613 = vor.u32 %v1611, %v1609
      %v1615 = vshll.u32 %v1466, 16
      %v1617 = vrot.slane %v1615, 1
      %v1618 = vsel %vm1502, %v1613, %v1617
      %v1619 = vshrl.u32 %v1466, 16
      %v1621 = vor.u32 %v1619, %v1617
      %v1623 = vshll.u32 %v1467, 16
      %v1625 = vrot.slane %v1623, 1
      %v1626 = vsel %vm1502, %v1621, %v1625
      %v1627 = vshrl.u32 %v1467, 16
      %v1629 = vor.u32 %v1627, %v1625
      %v1631 = vshll.u32 %v1468, 16
      %v1633 = vrot.slane %v1631, 1
      %v1634 = vsel %vm1502, %v1629, %v1633
      %v1635 = vshrl.u32 %v1468, 16
      %v1637 = vor.u32 %v1635, %v1633
      %v1671 = vunpack.c.l.b16 %v1486
      %v1672 = vunpack.c.l.b16 %v1487
      %v1673 = vunpack.c.l.b16 %v1488
      %v1674 = vunpack.c.l.b16 %v1489
      %v1675 = vunpack.c.l.b16 %v1490
      %v1676 = vunpack.c.l.b16 %v1491
      %v1677 = vunpack.c.l.b16 %v1492
      %v1678 = vunpack.c.l.b16 %v1493
      %v1679 = vunpack.c.l.b16 %v1494
      %v1680 = vunpack.c.l.b16 %v1495
      %v1681 = vunpack.c.l.b16 %v1496
      %v1682 = vunpack.c.l.b16 %v1497
      %v1683 = vunpack.c.l.b16 %v1498
      %v1684 = vunpack.c.l.b16 %v1499
      %v1685 = vunpack.c.l.b16 %v1500
      %v1686 = vunpack.c.l.b16 %v1501
      %v1687 = vpack.c.b16 %v1672, %v1671
      %v1688 = vpack.c.b16 %v1674, %v1673
      %v1689 = vpack.c.b16 %v1676, %v1675
      %v1690 = vpack.c.b16 %v1678, %v1677
      %v1691 = vpack.c.b16 %v1680, %v1679
      %v1692 = vpack.c.b16 %v1682, %v1681
      %v1693 = vpack.c.b16 %v1684, %v1683
      %v1694 = vpack.c.b16 %v1686, %v1685
      %1703 = vmatprep.subr.bf16.mxu0 0
      %1704 = vmatpush1.bf16.msra.mxu0 %v1687
      %1705 = vmatprep.subr.bf16.mxu0 0
      %1706 = vmatpush1.bf16.msra.mxu0 %v1688
      %1707 = vmatprep.subr.bf16.mxu0 0
      %1708 = vmatpush1.bf16.msra.mxu0 %v1689
      %1709 = vmatprep.subr.bf16.mxu0 0
      %1710 = vmatpush1.bf16.msra.mxu0 %v1690
      %1711 = vmatprep.subr.bf16.mxu0 0
      %1712 = vmatpush1.bf16.msra.mxu0 %v1691
      %1713 = vmatprep.subr.bf16.mxu0 0
      %1714 = vmatpush1.bf16.msra.mxu0 %v1692
      %1715 = vmatprep.subr.bf16.mxu0 0
      %1716 = vmatpush1.bf16.msra.mxu0 %v1693
      %1717 = vmatprep.subr.bf16.mxu0 0
      %1718 = vmatpush1.bf16.msra.mxu0 %v1694
      %1719 = vmatprep.subr.bf16.mxu0 0
      %1720 = vmatpush1.bf16.msra.mxu0 0
      %1721 = vmatprep.subr.bf16.mxu0 0
      %1722 = vmatpush1.bf16.msra.mxu0 0
      %1723 = vmatprep.subr.bf16.mxu0 0
      %1724 = vmatpush1.bf16.msra.mxu0 0
      %1725 = vmatprep.subr.bf16.mxu0 0
      %1726 = vmatpush1.bf16.msra.mxu0 0
      %1727 = vmatprep.subr.bf16.mxu0 0
      %1728 = vmatpush1.bf16.msra.mxu0 0
      %1729 = vmatprep.subr.bf16.mxu0 0
      %1730 = vmatpush1.bf16.msra.mxu0 0
      %1731 = vmatprep.subr.bf16.mxu0 0
      %1732 = vmatpush1.bf16.msra.mxu0 0
      %1733 = vmatprep.subr.bf16.mxu0 0
      %1734 = vmatpush1.bf16.msra.mxu0 0
      %1735 = vmatprep.mubr.bf16.mxu0 0
      %1736 = vmatmul.mubr.bf16.gmra.mrb[0].mxu0 %v1514
      %v1737 = vpop.f32.mrb[0].mxu0
      %v1738 = vadd.f32 0.0, %v1737
      %v1739 = vpop.f32.mrb[0].mxu0
      %v1740 = vpop.f32.mrb[0].mxu0
      %v1741 = vadd.f32 0.0, %v1740
      %v1742 = vpop.f32.mrb[0].mxu0
      %1743 = vmatprep.mubr.bf16.mxu0 0
      %1744 = vmatmul.mubr.bf16.gmra.mrb[0].mxu0 %v1522
      %v1745 = vpop.f32.mrb[0].mxu0
      %v1746 = vadd.f32 0.0, %v1745
      %v1747 = vpop.f32.mrb[0].mxu0
      %v1748 = vpop.f32.mrb[0].mxu0
      %v1749 = vadd.f32 0.0, %v1748
      %v1750 = vpop.f32.mrb[0].mxu0
      %1751 = vmatprep.mubr.bf16.mxu0 0
      %1752 = vmatmul.mubr.bf16.gmra.mrb[0].mxu0 %v1530
      %v1753 = vpop.f32.mrb[0].mxu0
      %v1754 = vadd.f32 0.0, %v1753
      %v1755 = vpop.f32.mrb[0].mxu0
      %v1756 = vpop.f32.mrb[0].mxu0
      %v1757 = vadd.f32 0.0, %v1756
      %v1758 = vpop.f32.mrb[0].mxu0
      %1759 = vmatprep.mubr.bf16.mxu0 0
      %1760 = vmatmul.mubr.bf16.gmra.mrb[0].mxu0 %v1538
      %v1761 = vpop.f32.mrb[0].mxu0
      %v1762 = vadd.f32 0.0, %v1761
      %v1763 = vpop.f32.mrb[0].mxu0
      %v1764 = vpop.f32.mrb[0].mxu0
      %v1765 = vadd.f32 0.0, %v1764
      %v1766 = vpop.f32.mrb[0].mxu0
      %1767 = vmatprep.mubr.bf16.mxu0 0
      %1768 = vmatmul.mubr.bf16.gmra.mrb[0].mxu0 %v1546
      %v1769 = vpop.f32.mrb[0].mxu0
      %v1770 = vadd.f32 0.0, %v1769
      %v1771 = vpop.f32.mrb[0].mxu0
      %v1772 = vpop.f32.mrb[0].mxu0
      %v1773 = vadd.f32 0.0, %v1772
      %v1774 = vpop.f32.mrb[0].mxu0
      %1775 = vmatprep.mubr.bf16.mxu0 0
      %1776 = vmatmul.mubr.bf16.gmra.mrb[0].mxu0 %v1554
      %v1777 = vpop.f32.mrb[0].mxu0
      %v1778 = vadd.f32 0.0, %v1777
      %v1779 = vpop.f32.mrb[0].mxu0
      %v1780 = vpop.f32.mrb[0].mxu0
      %v1781 = vadd.f32 0.0, %v1780
      %v1782 = vpop.f32.mrb[0].mxu0
      %1783 = vmatprep.mubr.bf16.mxu0 0
      %1784 = vmatmul.mubr.bf16.gmra.mrb[0].mxu0 %v1562
      %v1785 = vpop.f32.mrb[0].mxu0
      %v1786 = vadd.f32 0.0, %v1785
      %v1787 = vpop.f32.mrb[0].mxu0
      %v1788 = vpop.f32.mrb[0].mxu0
      %v1789 = vadd.f32 0.0, %v1788
      %v1790 = vpop.f32.mrb[0].mxu0
      %1791 = vmatprep.mubr.bf16.mxu0 0
      %1792 = vmatmul.mubr.bf16.gmra.mrb[0].mxu0 %v1570
      %v1793 = vpop.f32.mrb[0].mxu0
      %v1794 = vadd.f32 0.0, %v1793
      %v1795 = vpop.f32.mrb[0].mxu0
      %v1796 = vpop.f32.mrb[0].mxu0
      %v1797 = vadd.f32 0.0, %v1796
      %v1798 = vpop.f32.mrb[0].mxu0
      %1799 = vmatprep.mubr.bf16.mxu0 0
      %1800 = vmatmul.mubr.bf16.gmra.mrb[0].mxu0 %v1578
      %v1801 = vpop.f32.mrb[0].mxu0
      %v1802 = vadd.f32 0.0, %v1801
      %v1803 = vpop.f32.mrb[0].mxu0
      %v1804 = vpop.f32.mrb[0].mxu0
      %v1805 = vadd.f32 0.0, %v1804
      %v1806 = vpop.f32.mrb[0].mxu0
      %1807 = vmatprep.mubr.bf16.mxu0 0
      %1808 = vmatmul.mubr.bf16.gmra.mrb[0].mxu0 %v1586
      %v1809 = vpop.f32.mrb[0].mxu0
      %v1810 = vadd.f32 0.0, %v1809
      %v1811 = vpop.f32.mrb[0].mxu0
      %v1812 = vpop.f32.mrb[0].mxu0
      %v1813 = vadd.f32 0.0, %v1812
      %v1814 = vpop.f32.mrb[0].mxu0
      %1815 = vmatprep.mubr.bf16.mxu0 0
      %1816 = vmatmul.mubr.bf16.gmra.mrb[0].mxu0 %v1594
      %v1817 = vpop.f32.mrb[0].mxu0
      %v1818 = vadd.f32 0.0, %v1817
      %v1819 = vpop.f32.mrb[0].mxu0
      %v1820 = vpop.f32.mrb[0].mxu0
      %v1821 = vadd.f32 0.0, %v1820
      %v1822 = vpop.f32.mrb[0].mxu0
      %1823 = vmatprep.mubr.bf16.mxu0 0
      %1824 = vmatmul.mubr.bf16.gmra.mrb[0].mxu0 %v1602
      %v1825 = vpop.f32.mrb[0].mxu0
      %v1826 = vadd.f32 0.0, %v1825
      %v1827 = vpop.f32.mrb[0].mxu0
      %v1828 = vpop.f32.mrb[0].mxu0
      %v1829 = vadd.f32 0.0, %v1828
      %v1830 = vpop.f32.mrb[0].mxu0
      %1831 = vmatprep.mubr.bf16.mxu0 0
      %1832 = vmatmul.mubr.bf16.gmra.mrb[0].mxu0 %v1610
      %v1833 = vpop.f32.mrb[0].mxu0
      %v1834 = vadd.f32 0.0, %v1833
      %v1835 = vpop.f32.mrb[0].mxu0
      %v1836 = vpop.f32.mrb[0].mxu0
      %v1837 = vadd.f32 0.0, %v1836
      %v1838 = vpop.f32.mrb[0].mxu0
      %1839 = vmatprep.mubr.bf16.mxu0 0
      %1840 = vmatmul.mubr.bf16.gmra.mrb[0].mxu0 %v1618
      %v1841 = vpop.f32.mrb[0].mxu0
      %v1842 = vadd.f32 0.0, %v1841
      %v1843 = vpop.f32.mrb[0].mxu0
      %v1844 = vpop.f32.mrb[0].mxu0
      %v1845 = vadd.f32 0.0, %v1844
      %v1846 = vpop.f32.mrb[0].mxu0
      %1847 = vmatprep.mubr.bf16.mxu0 0
      %1848 = vmatmul.mubr.bf16.gmra.mrb[0].mxu0 %v1626
      %v1849 = vpop.f32.mrb[0].mxu0
      %v1850 = vadd.f32 0.0, %v1849
      %v1851 = vpop.f32.mrb[0].mxu0
      %v1852 = vpop.f32.mrb[0].mxu0
      %v1853 = vadd.f32 0.0, %v1852
      %v1854 = vpop.f32.mrb[0].mxu0
      %1855 = vmatprep.mubr.bf16.mxu0 0
      %1856 = vmatmul.mubr.bf16.gmra.mrb[0].mxu0 %v1634
      %v1857 = vpop.f32.mrb[0].mxu0
      %v1858 = vadd.f32 0.0, %v1857
      %v1859 = vpop.f32.mrb[0].mxu0
      %v1860 = vpop.f32.mrb[0].mxu0
      %v1861 = vadd.f32 0.0, %v1860
      %v1862 = vpop.f32.mrb[0].mxu0
      %1863 = vmatprep.mubr.bf16.mxu0 0
      %1864 = vmatmul.mubr.bf16.gmra.mrb[0].mxu0 %v1637
      %v1865 = vpop.f32.mrb[0].mxu0
      %v1866 = vadd.f32 0.0, %v1865
      %v1867 = vpop.f32.mrb[0].mxu0
      %v1868 = vpop.f32.mrb[0].mxu0
      %v1869 = vpop.f32.mrb[0].mxu0
      %1870 = vdwg.mxu0
      %v1887 = vunpack.c.l.b16 %v1469
      %v1888 = vunpack.c.l.b16 %v1470
      %v1889 = vunpack.c.l.b16 %v1471
      %v1890 = vunpack.c.l.b16 %v1472
      %v1891 = vunpack.c.l.b16 %v1473
      %v1892 = vunpack.c.l.b16 %v1474
      %v1893 = vunpack.c.l.b16 %v1475
      %v1894 = vunpack.c.l.b16 %v1476
      %v1895 = vunpack.c.l.b16 %v1477
      %v1896 = vunpack.c.l.b16 %v1478
      %v1897 = vunpack.c.l.b16 %v1479
      %v1898 = vunpack.c.l.b16 %v1480
      %v1899 = vunpack.c.l.b16 %v1481
      %v1900 = vunpack.c.l.b16 %v1482
      %v1901 = vunpack.c.l.b16 %v1483
      %v1902 = vunpack.c.l.b16 %v1484
      %v1903 = vpack.c.b16 %v1888, %v1887
      %v1904 = vpack.c.b16 %v1890, %v1889
      %v1905 = vpack.c.b16 %v1892, %v1891
      %v1906 = vpack.c.b16 %v1894, %v1893
      %v1907 = vpack.c.b16 %v1896, %v1895
      %v1908 = vpack.c.b16 %v1898, %v1897
      %v1909 = vpack.c.b16 %v1900, %v1899
      %v1910 = vpack.c.b16 %v1902, %v1901
      %1919 = vmatprep.subr.bf16.mxu0 0
      %1920 = vmatpush1.bf16.msra.mxu0 %v1903
      %1921 = vmatprep.subr.bf16.mxu0 0
      %1922 = vmatpush1.bf16.msra.mxu0 %v1904
      %1923 = vmatprep.subr.bf16.mxu0 0
      %1924 = vmatpush1.bf16.msra.mxu0 %v1905
      %1925 = vmatprep.subr.bf16.mxu0 0
      %1926 = vmatpush1.bf16.msra.mxu0 %v1906
      %1927 = vmatprep.subr.bf16.mxu0 0
      %1928 = vmatpush1.bf16.msra.mxu0 %v1907
      %1929 = vmatprep.subr.bf16.mxu0 0
      %1930 = vmatpush1.bf16.msra.mxu0 %v1908
      %1931 = vmatprep.subr.bf16.mxu0 0
      %1932 = vmatpush1.bf16.msra.mxu0 %v1909
      %1933 = vmatprep.subr.bf16.mxu0 0
      %1934 = vmatpush1.bf16.msra.mxu0 %v1910
      %1935 = vmatprep.subr.bf16.mxu0 0
      %1936 = vmatpush1.bf16.msra.mxu0 0
      %1937 = vmatprep.subr.bf16.mxu0 0
      %1938 = vmatpush1.bf16.msra.mxu0 0
      %1939 = vmatprep.subr.bf16.mxu0 0
      %1940 = vmatpush1.bf16.msra.mxu0 0
      %1941 = vmatprep.subr.bf16.mxu0 0
      %1942 = vmatpush1.bf16.msra.mxu0 0
      %1943 = vmatprep.subr.bf16.mxu0 0
      %1944 = vmatpush1.bf16.msra.mxu0 0
      %1945 = vmatprep.subr.bf16.mxu0 0
      %1946 = vmatpush1.bf16.msra.mxu0 0
      %1947 = vmatprep.subr.bf16.mxu0 0
      %1948 = vmatpush1.bf16.msra.mxu0 0
      %1949 = vmatprep.subr.bf16.mxu0 0
      %1950 = vmatpush1.bf16.msra.mxu0 0
      %1951 = vmatprep.mubr.bf16.mxu0 0
      %1952 = vmatmul.mubr.bf16.gmra.mrb[0].mxu0 %v1452
      %v1953 = vpop.f32.mrb[0].mxu0
      %v1954 = vadd.f32 %v1738, %v1953
      %v1955 = vpop.f32.mrb[0].mxu0
      %v1956 = vpop.f32.mrb[0].mxu0
      %v1957 = vadd.f32 %v1741, %v1956
      %v1958 = vpop.f32.mrb[0].mxu0
      %1959 = vmatprep.mubr.bf16.mxu0 0
      %1960 = vmatmul.mubr.bf16.gmra.mrb[0].mxu0 %v1453
      %v1961 = vpop.f32.mrb[0].mxu0
      %v1962 = vadd.f32 %v1746, %v1961
      %v1963 = vpop.f32.mrb[0].mxu0
      %v1964 = vpop.f32.mrb[0].mxu0
      %v1965 = vadd.f32 %v1749, %v1964
      %v1966 = vpop.f32.mrb[0].mxu0
      %1967 = vmatprep.mubr.bf16.mxu0 0
      %1968 = vmatmul.mubr.bf16.gmra.mrb[0].mxu0 %v1454
      %v1969 = vpop.f32.mrb[0].mxu0
      %v1970 = vadd.f32 %v1754, %v1969
      %v1971 = vpop.f32.mrb[0].mxu0
      %v1972 = vpop.f32.mrb[0].mxu0
      %v1973 = vadd.f32 %v1757, %v1972
      %v1974 = vpop.f32.mrb[0].mxu0
      %1975 = vmatprep.mubr.bf16.mxu0 0
      %1976 = vmatmul.mubr.bf16.gmra.mrb[0].mxu0 %v1455
      %v1977 = vpop.f32.mrb[0].mxu0
      %v1978 = vadd.f32 %v1762, %v1977
      %v1979 = vpop.f32.mrb[0].mxu0
      %v1980 = vpop.f32.mrb[0].mxu0
      %v1981 = vadd.f32 %v1765, %v1980
      %v1982 = vpop.f32.mrb[0].mxu0
      %1983 = vmatprep.mubr.bf16.mxu0 0
      %1984 = vmatmul.mubr.bf16.gmra.mrb[0].mxu0 %v1456
      %v1985 = vpop.f32.mrb[0].mxu0
      %v1986 = vadd.f32 %v1770, %v1985
      %v1987 = vpop.f32.mrb[0].mxu0
      %v1988 = vpop.f32.mrb[0].mxu0
      %v1989 = vadd.f32 %v1773, %v1988
      %v1990 = vpop.f32.mrb[0].mxu0
      %1991 = vmatprep.mubr.bf16.mxu0 0
      %1992 = vmatmul.mubr.bf16.gmra.mrb[0].mxu0 %v1457
      %v1993 = vpop.f32.mrb[0].mxu0
      %v1994 = vadd.f32 %v1778, %v1993
      %v1995 = vpop.f32.mrb[0].mxu0
      %v1996 = vpop.f32.mrb[0].mxu0
      %v1997 = vadd.f32 %v1781, %v1996
      %v1998 = vpop.f32.mrb[0].mxu0
      %1999 = vmatprep.mubr.bf16.mxu0 0
      %2000 = vmatmul.mubr.bf16.gmra.mrb[0].mxu0 %v1458
      %v2001 = vpop.f32.mrb[0].mxu0
      %v2002 = vadd.f32 %v1786, %v2001
      %v2003 = vpop.f32.mrb[0].mxu0
      %v2004 = vpop.f32.mrb[0].mxu0
      %v2005 = vadd.f32 %v1789, %v2004
      %v2006 = vpop.f32.mrb[0].mxu0
      %2007 = vmatprep.mubr.bf16.mxu0 0
      %2008 = vmatmul.mubr.bf16.gmra.mrb[0].mxu0 %v1459
      %v2009 = vpop.f32.mrb[0].mxu0
      %v2010 = vadd.f32 %v1794, %v2009
      %v2011 = vpop.f32.mrb[0].mxu0
      %v2012 = vpop.f32.mrb[0].mxu0
      %v2013 = vadd.f32 %v1797, %v2012
      %v2014 = vpop.f32.mrb[0].mxu0
      %2015 = vmatprep.mubr.bf16.mxu0 0
      %2016 = vmatmul.mubr.bf16.gmra.mrb[0].mxu0 %v1460
      %v2017 = vpop.f32.mrb[0].mxu0
      %v2018 = vadd.f32 %v1802, %v2017
      %v2019 = vpop.f32.mrb[0].mxu0
      %v2020 = vpop.f32.mrb[0].mxu0
      %v2021 = vadd.f32 %v1805, %v2020
      %v2022 = vpop.f32.mrb[0].mxu0
      %2023 = vmatprep.mubr.bf16.mxu0 0
      %2024 = vmatmul.mubr.bf16.gmra.mrb[0].mxu0 %v1461
      %v2025 = vpop.f32.mrb[0].mxu0
      %v2026 = vadd.f32 %v1810, %v2025
      %v2027 = vpop.f32.mrb[0].mxu0
      %v2028 = vpop.f32.mrb[0].mxu0
      %v2029 = vadd.f32 %v1813, %v2028
      %v2030 = vpop.f32.mrb[0].mxu0
      %2031 = vmatprep.mubr.bf16.mxu0 0
      %2032 = vmatmul.mubr.bf16.gmra.mrb[0].mxu0 %v1462
      %v2033 = vpop.f32.mrb[0].mxu0
      %v2034 = vadd.f32 %v1818, %v2033
      %v2035 = vpop.f32.mrb[0].mxu0
      %v2036 = vpop.f32.mrb[0].mxu0
      %v2037 = vadd.f32 %v1821, %v2036
      %v2038 = vpop.f32.mrb[0].mxu0
      %2039 = vmatprep.mubr.bf16.mxu0 0
      %2040 = vmatmul.mubr.bf16.gmra.mrb[0].mxu0 %v1463
      %v2041 = vpop.f32.mrb[0].mxu0
      %v2042 = vadd.f32 %v1826, %v2041
      %v2043 = vpop.f32.mrb[0].mxu0
      %v2044 = vpop.f32.mrb[0].mxu0
      %v2045 = vadd.f32 %v1829, %v2044
      %v2046 = vpop.f32.mrb[0].mxu0
      %2047 = vmatprep.mubr.bf16.mxu0 0
      %2048 = vmatmul.mubr.bf16.gmra.mrb[0].mxu0 %v1464
      %v2049 = vpop.f32.mrb[0].mxu0
      %v2050 = vadd.f32 %v1834, %v2049
      %v2051 = vpop.f32.mrb[0].mxu0
      %v2052 = vpop.f32.mrb[0].mxu0
      %v2053 = vadd.f32 %v1837, %v2052
      %v2054 = vpop.f32.mrb[0].mxu0
      %2055 = vmatprep.mubr.bf16.mxu0 0
      %2056 = vmatmul.mubr.bf16.gmra.mrb[0].mxu0 %v1465
      %v2057 = vpop.f32.mrb[0].mxu0
      %v2058 = vadd.f32 %v1842, %v2057
      %v2059 = vpop.f32.mrb[0].mxu0
      %v2060 = vpop.f32.mrb[0].mxu0
      %v2061 = vadd.f32 %v1845, %v2060
      %v2062 = vpop.f32.mrb[0].mxu0
      %2063 = vmatprep.mubr.bf16.mxu0 0
      %2064 = vmatmul.mubr.bf16.gmra.mrb[0].mxu0 %v1466
      %v2065 = vpop.f32.mrb[0].mxu0
      %v2066 = vadd.f32 %v1850, %v2065
      %v2067 = vpop.f32.mrb[0].mxu0
      %v2068 = vpop.f32.mrb[0].mxu0
      %v2069 = vadd.f32 %v1853, %v2068
      %v2070 = vpop.f32.mrb[0].mxu0
      %2071 = vmatprep.mubr.bf16.mxu0 0
      %2072 = vmatmul.mubr.bf16.gmra.mrb[0].mxu0 %v1467
      %v2073 = vpop.f32.mrb[0].mxu0
      %v2074 = vadd.f32 %v1858, %v2073
      %v2075 = vpop.f32.mrb[0].mxu0
      %v2076 = vpop.f32.mrb[0].mxu0
      %v2077 = vadd.f32 %v1861, %v2076
      %v2078 = vpop.f32.mrb[0].mxu0
      %2079 = vmatprep.mubr.bf16.mxu0 0
      %2080 = vmatmul.mubr.bf16.gmra.mrb[0].mxu0 %v1468
      %v2081 = vpop.f32.mrb[0].mxu0
      %v2082 = vadd.f32 %v1866, %v2081
      %v2083 = vpop.f32.mrb[0].mxu0
      %v2084 = vpop.f32.mrb[0].mxu0
      %v2085 = vpop.f32.mrb[0].mxu0
      %2086 = vdwg.mxu0
      %s2087 = scalar_lea.vmem %s5, 128
      %v2088 = vld [vmem:[%s2087] sm:$0xf]
      %v2089 = vld [vmem:[%s2087 + $0x4] sm:$0xf]
      %v2090 = vld [vmem:[%s2087 + $0x8] sm:$0xf]
      %v2091 = vld [vmem:[%s2087 + $0xc] sm:$0xf]
      %v2092 = vld [vmem:[%s2087 + $0x10] sm:$0xf]
      %v2093 = vld [vmem:[%s2087 + $0x14] sm:$0xf]
      %v2094 = vld [vmem:[%s2087 + $0x18] sm:$0xf]
      %v2095 = vld [vmem:[%s2087 + $0x1c] sm:$0xf]
      %v2096 = vld [vmem:[%s2087 + $0x20] sm:$0xf]
      %v2097 = vld [vmem:[%s2087 + $0x24] sm:$0xf]
      %v2098 = vld [vmem:[%s2087 + $0x28] sm:$0xf]
      %v2099 = vld [vmem:[%s2087 + $0x2c] sm:$0xf]
      %v2100 = vld [vmem:[%s2087 + $0x30] sm:$0xf]
      %v2101 = vld [vmem:[%s2087 + $0x34] sm:$0xf]
      %v2102 = vld [vmem:[%s2087 + $0x38] sm:$0xf]
      %v2103 = vld [vmem:[%s2087 + $0x3c] sm:$0xf]
      %vm2121 = vcmask 1046528
      %v2122 = vrot.slane %v1452, 1
      %v2123 = vrot.slane %v1453, 1
      %v2124 = vsel %vm2121, %v2122, %v2123
      %v2125 = vrot.slane %v1454, 1
      %v2126 = vsel %vm2121, %v2123, %v2125
      %v2127 = vrot.slane %v1455, 1
      %v2128 = vsel %vm2121, %v2125, %v2127
      %v2129 = vrot.slane %v1456, 1
      %v2130 = vsel %vm2121, %v2127, %v2129
      %v2131 = vrot.slane %v1457, 1
      %v2132 = vsel %vm2121, %v2129, %v2131
      %v2133 = vrot.slane %v1458, 1
      %v2134 = vsel %vm2121, %v2131, %v2133
      %v2135 = vrot.slane %v1459, 1
      %v2136 = vsel %vm2121, %v2133, %v2135
      %v2137 = vrot.slane %v1460, 1
      %v2138 = vsel %vm2121, %v2135, %v2137
      %v2139 = vrot.slane %v1461, 1
      %v2140 = vsel %vm2121, %v2137, %v2139
      %v2141 = vrot.slane %v1462, 1
      %v2142 = vsel %vm2121, %v2139, %v2141
      %v2143 = vrot.slane %v1463, 1
      %v2144 = vsel %vm2121, %v2141, %v2143
      %v2145 = vrot.slane %v1464, 1
      %v2146 = vsel %vm2121, %v2143, %v2145
      %v2147 = vrot.slane %v1465, 1
      %v2148 = vsel %vm2121, %v2145, %v2147
      %v2149 = vrot.slane %v1466, 1
      %v2150 = vsel %vm2121, %v2147, %v2149
      %v2151 = vrot.slane %v1467, 1
      %v2152 = vsel %vm2121, %v2149, %v2151
      %v2153 = vrot.slane %v1468, 1
      %v2154 = vsel %vm2121, %v2151, %v2153
      %v2188 = vunpack.c.l.b16 %v2088
      %v2189 = vunpack.c.l.b16 %v2089
      %v2190 = vunpack.c.l.b16 %v2090
      %v2191 = vunpack.c.l.b16 %v2091
      %v2192 = vunpack.c.l.b16 %v2092
      %v2193 = vunpack.c.l.b16 %v2093
      %v2194 = vunpack.c.l.b16 %v2094
      %v2195 = vunpack.c.l.b16 %v2095
      %v2196 = vunpack.c.l.b16 %v2096
      %v2197 = vunpack.c.l.b16 %v2097
      %v2198 = vunpack.c.l.b16 %v2098
      %v2199 = vunpack.c.l.b16 %v2099
      %v2200 = vunpack.c.l.b16 %v2100
      %v2201 = vunpack.c.l.b16 %v2101
      %v2202 = vunpack.c.l.b16 %v2102
      %v2203 = vunpack.c.l.b16 %v2103
      %v2204 = vpack.c.b16 %v2189, %v2188
      %v2205 = vpack.c.b16 %v2191, %v2190
      %v2206 = vpack.c.b16 %v2193, %v2192
      %v2207 = vpack.c.b16 %v2195, %v2194
      %v2208 = vpack.c.b16 %v2197, %v2196
      %v2209 = vpack.c.b16 %v2199, %v2198
      %v2210 = vpack.c.b16 %v2201, %v2200
      %v2211 = vpack.c.b16 %v2203, %v2202
      %2220 = vmatprep.subr.bf16.mxu0 0
      %2221 = vmatpush1.bf16.msra.mxu0 %v2204
      %2222 = vmatprep.subr.bf16.mxu0 0
      %2223 = vmatpush1.bf16.msra.mxu0 %v2205
      %2224 = vmatprep.subr.bf16.mxu0 0
      %2225 = vmatpush1.bf16.msra.mxu0 %v2206
      %2226 = vmatprep.subr.bf16.mxu0 0
      %2227 = vmatpush1.bf16.msra.mxu0 %v2207
      %2228 = vmatprep.subr.bf16.mxu0 0
      %2229 = vmatpush1.bf16.msra.mxu0 %v2208
      %2230 = vmatprep.subr.bf16.mxu0 0
      %2231 = vmatpush1.bf16.msra.mxu0 %v2209
      %2232 = vmatprep.subr.bf16.mxu0 0
      %2233 = vmatpush1.bf16.msra.mxu0 %v2210
      %2234 = vmatprep.subr.bf16.mxu0 0
      %2235 = vmatpush1.bf16.msra.mxu0 %v2211
      %2236 = vmatprep.subr.bf16.mxu0 0
      %2237 = vmatpush1.bf16.msra.mxu0 0
      %2238 = vmatprep.subr.bf16.mxu0 0
      %2239 = vmatpush1.bf16.msra.mxu0 0
      %2240 = vmatprep.subr.bf16.mxu0 0
      %2241 = vmatpush1.bf16.msra.mxu0 0
      %2242 = vmatprep.subr.bf16.mxu0 0
      %2243 = vmatpush1.bf16.msra.mxu0 0
      %2244 = vmatprep.subr.bf16.mxu0 0
      %2245 = vmatpush1.bf16.msra.mxu0 0
      %2246 = vmatprep.subr.bf16.mxu0 0
      %2247 = vmatpush1.bf16.msra.mxu0 0
      %2248 = vmatprep.subr.bf16.mxu0 0
      %2249 = vmatpush1.bf16.msra.mxu0 0
      %2250 = vmatprep.subr.bf16.mxu0 0
      %2251 = vmatpush1.bf16.msra.mxu0 0
      %2252 = vmatprep.mubr.bf16.mxu0 0
      %2253 = vmatmul.mubr.bf16.gmra.mrb[0].mxu0 %v2124
      %v2254 = vpop.f32.mrb[0].mxu0
      %v2255 = vadd.f32 0.0, %v2254
      %v2256 = vpop.f32.mrb[0].mxu0
      %v2257 = vpop.f32.mrb[0].mxu0
      %v2258 = vadd.f32 0.0, %v2257
      %v2259 = vpop.f32.mrb[0].mxu0
      %2260 = vmatprep.mubr.bf16.mxu0 0
      %2261 = vmatmul.mubr.bf16.gmra.mrb[0].mxu0 %v2126
      %v2262 = vpop.f32.mrb[0].mxu0
      %v2263 = vadd.f32 0.0, %v2262
      %v2264 = vpop.f32.mrb[0].mxu0
      %v2265 = vpop.f32.mrb[0].mxu0
      %v2266 = vadd.f32 0.0, %v2265
      %v2267 = vpop.f32.mrb[0].mxu0
      %2268 = vmatprep.mubr.bf16.mxu0 0
      %2269 = vmatmul.mubr.bf16.gmra.mrb[0].mxu0 %v2128
      %v2270 = vpop.f32.mrb[0].mxu0
      %v2271 = vadd.f32 0.0, %v2270
      %v2272 = vpop.f32.mrb[0].mxu0
      %v2273 = vpop.f32.mrb[0].mxu0
      %v2274 = vadd.f32 0.0, %v2273
      %v2275 = vpop.f32.mrb[0].mxu0
      %2276 = vmatprep.mubr.bf16.mxu0 0
      %2277 = vmatmul.mubr.bf16.gmra.mrb[0].mxu0 %v2130
      %v2278 = vpop.f32.mrb[0].mxu0
      %v2279 = vadd.f32 0.0, %v2278
      %v2280 = vpop.f32.mrb[0].mxu0
      %v2281 = vpop.f32.mrb[0].mxu0
      %v2282 = vadd.f32 0.0, %v2281
      %v2283 = vpop.f32.mrb[0].mxu0
      %2284 = vmatprep.mubr.bf16.mxu0 0
      %2285 = vmatmul.mubr.bf16.gmra.mrb[0].mxu0 %v2132
      %v2286 = vpop.f32.mrb[0].mxu0
      %v2287 = vadd.f32 0.0, %v2286
      %v2288 = vpop.f32.mrb[0].mxu0
      %v2289 = vpop.f32.mrb[0].mxu0
      %v2290 = vadd.f32 0.0, %v2289
      %v2291 = vpop.f32.mrb[0].mxu0
      %2292 = vmatprep.mubr.bf16.mxu0 0
      %2293 = vmatmul.mubr.bf16.gmra.mrb[0].mxu0 %v2134
      %v2294 = vpop.f32.mrb[0].mxu0
      %v2295 = vadd.f32 0.0, %v2294
      %v2296 = vpop.f32.mrb[0].mxu0
      %v2297 = vpop.f32.mrb[0].mxu0
      %v2298 = vadd.f32 0.0, %v2297
      %v2299 = vpop.f32.mrb[0].mxu0
      %2300 = vmatprep.mubr.bf16.mxu0 0
      %2301 = vmatmul.mubr.bf16.gmra.mrb[0].mxu0 %v2136
      %v2302 = vpop.f32.mrb[0].mxu0
      %v2303 = vadd.f32 0.0, %v2302
      %v2304 = vpop.f32.mrb[0].mxu0
      %v2305 = vpop.f32.mrb[0].mxu0
      %v2306 = vadd.f32 0.0, %v2305
      %v2307 = vpop.f32.mrb[0].mxu0
      %2308 = vmatprep.mubr.bf16.mxu0 0
      %2309 = vmatmul.mubr.bf16.gmra.mrb[0].mxu0 %v2138
      %v2310 = vpop.f32.mrb[0].mxu0
      %v2311 = vadd.f32 0.0, %v2310
      %v2312 = vpop.f32.mrb[0].mxu0
      %v2313 = vpop.f32.mrb[0].mxu0
      %v2314 = vadd.f32 0.0, %v2313
      %v2315 = vpop.f32.mrb[0].mxu0
      %2316 = vmatprep.mubr.bf16.mxu0 0
      %2317 = vmatmul.mubr.bf16.gmra.mrb[0].mxu0 %v2140
      %v2318 = vpop.f32.mrb[0].mxu0
      %v2319 = vadd.f32 0.0, %v2318
      %v2320 = vpop.f32.mrb[0].mxu0
      %v2321 = vpop.f32.mrb[0].mxu0
      %v2322 = vadd.f32 0.0, %v2321
      %v2323 = vpop.f32.mrb[0].mxu0
      %2324 = vmatprep.mubr.bf16.mxu0 0
      %2325 = vmatmul.mubr.bf16.gmra.mrb[0].mxu0 %v2142
      %v2326 = vpop.f32.mrb[0].mxu0
      %v2327 = vadd.f32 0.0, %v2326
      %v2328 = vpop.f32.mrb[0].mxu0
      %v2329 = vpop.f32.mrb[0].mxu0
      %v2330 = vadd.f32 0.0, %v2329
      %v2331 = vpop.f32.mrb[0].mxu0
      %2332 = vmatprep.mubr.bf16.mxu0 0
      %2333 = vmatmul.mubr.bf16.gmra.mrb[0].mxu0 %v2144
      %v2334 = vpop.f32.mrb[0].mxu0
      %v2335 = vadd.f32 0.0, %v2334
      %v2336 = vpop.f32.mrb[0].mxu0
      %v2337 = vpop.f32.mrb[0].mxu0
      %v2338 = vadd.f32 0.0, %v2337
      %v2339 = vpop.f32.mrb[0].mxu0
      %2340 = vmatprep.mubr.bf16.mxu0 0
      %2341 = vmatmul.mubr.bf16.gmra.mrb[0].mxu0 %v2146
      %v2342 = vpop.f32.mrb[0].mxu0
      %v2343 = vadd.f32 0.0, %v2342
      %v2344 = vpop.f32.mrb[0].mxu0
      %v2345 = vpop.f32.mrb[0].mxu0
      %v2346 = vadd.f32 0.0, %v2345
      %v2347 = vpop.f32.mrb[0].mxu0
      %2348 = vmatprep.mubr.bf16.mxu0 0
      %2349 = vmatmul.mubr.bf16.gmra.mrb[0].mxu0 %v2148
      %v2350 = vpop.f32.mrb[0].mxu0
      %v2351 = vadd.f32 0.0, %v2350
      %v2352 = vpop.f32.mrb[0].mxu0
      %v2353 = vpop.f32.mrb[0].mxu0
      %v2354 = vadd.f32 0.0, %v2353
      %v2355 = vpop.f32.mrb[0].mxu0
      %2356 = vmatprep.mubr.bf16.mxu0 0
      %2357 = vmatmul.mubr.bf16.gmra.mrb[0].mxu0 %v2150
      %v2358 = vpop.f32.mrb[0].mxu0
      %v2359 = vadd.f32 0.0, %v2358
      %v2360 = vpop.f32.mrb[0].mxu0
      %v2361 = vpop.f32.mrb[0].mxu0
      %v2362 = vadd.f32 0.0, %v2361
      %v2363 = vpop.f32.mrb[0].mxu0
      %2364 = vmatprep.mubr.bf16.mxu0 0
      %2365 = vmatmul.mubr.bf16.gmra.mrb[0].mxu0 %v2152
      %v2366 = vpop.f32.mrb[0].mxu0
      %v2367 = vadd.f32 0.0, %v2366
      %v2368 = vpop.f32.mrb[0].mxu0
      %v2369 = vpop.f32.mrb[0].mxu0
      %v2370 = vadd.f32 0.0, %v2369
      %v2371 = vpop.f32.mrb[0].mxu0
      %2372 = vmatprep.mubr.bf16.mxu0 0
      %2373 = vmatmul.mubr.bf16.gmra.mrb[0].mxu0 %v2154
      %v2374 = vpop.f32.mrb[0].mxu0
      %v2375 = vadd.f32 0.0, %v2374
      %v2376 = vpop.f32.mrb[0].mxu0
      %v2377 = vpop.f32.mrb[0].mxu0
      %v2378 = vadd.f32 0.0, %v2377
      %v2379 = vpop.f32.mrb[0].mxu0
      %2380 = vmatprep.mubr.bf16.mxu0 0
      %2381 = vmatmul.mubr.bf16.gmra.mrb[0].mxu0 %v2153
      %v2382 = vpop.f32.mrb[0].mxu0
      %v2383 = vadd.f32 0.0, %v2382
      %v2384 = vpop.f32.mrb[0].mxu0
      %v2385 = vpop.f32.mrb[0].mxu0
      %v2386 = vpop.f32.mrb[0].mxu0
      %2387 = vdwg.mxu0
      %v2388 = vadd.f32 %v1954, %v2255
      %v2389 = vadd.f32 %v1957, %v2258
      %v2390 = vadd.f32 %v1962, %v2263
      %v2391 = vadd.f32 %v1965, %v2266
      %v2392 = vadd.f32 %v1970, %v2271
      %v2393 = vadd.f32 %v1973, %v2274
      %v2394 = vadd.f32 %v1978, %v2279
      %v2395 = vadd.f32 %v1981, %v2282
      %v2396 = vadd.f32 %v1986, %v2287
      %v2397 = vadd.f32 %v1989, %v2290
      %v2398 = vadd.f32 %v1994, %v2295
      %v2399 = vadd.f32 %v1997, %v2298
      %v2400 = vadd.f32 %v2002, %v2303
      %v2401 = vadd.f32 %v2005, %v2306
      %v2402 = vadd.f32 %v2010, %v2311
      %v2403 = vadd.f32 %v2013, %v2314
      %v2404 = vadd.f32 %v2018, %v2319
      %v2405 = vadd.f32 %v2021, %v2322
      %v2406 = vadd.f32 %v2026, %v2327
      %v2407 = vadd.f32 %v2029, %v2330
      %v2408 = vadd.f32 %v2034, %v2335
      %v2409 = vadd.f32 %v2037, %v2338
      %v2410 = vadd.f32 %v2042, %v2343
      %v2411 = vadd.f32 %v2045, %v2346
      %v2412 = vadd.f32 %v2050, %v2351
      %v2413 = vadd.f32 %v2053, %v2354
      %v2414 = vadd.f32 %v2058, %v2359
      %v2415 = vadd.f32 %v2061, %v2362
      %v2416 = vadd.f32 %v2066, %v2367
      %v2417 = vadd.f32 %v2069, %v2370
      %v2418 = vadd.f32 %v2074, %v2375
      %v2419 = vadd.f32 %v2077, %v2378
      %v2420 = vadd.f32 %v2082, %v2383
      %v2421 = vld [vmem:[%s6] sm:$0x1]
      %v2423 = vlaneseq
      %v2424 = vshrl.u32 %v2423, 7
      %v2425 = vsub.s32 0, %v2424
      %v2426 = vrot.slane %v2421, %v2425
      %v2428 = vmul.f32 %v2388, %v2426
      %v2429 = vmul.f32 %v2389, %v2426
      %v2430 = vmul.f32 %v2390, %v2426
      %v2431 = vmul.f32 %v2391, %v2426
      %v2432 = vmul.f32 %v2392, %v2426
      %v2433 = vmul.f32 %v2393, %v2426
      %v2434 = vmul.f32 %v2394, %v2426
      %v2435 = vmul.f32 %v2395, %v2426
      %v2436 = vmul.f32 %v2396, %v2426
      %v2437 = vmul.f32 %v2397, %v2426
      %v2438 = vmul.f32 %v2398, %v2426
      %v2439 = vmul.f32 %v2399, %v2426
      %v2440 = vmul.f32 %v2400, %v2426
      %v2441 = vmul.f32 %v2401, %v2426
      %v2442 = vmul.f32 %v2402, %v2426
      %v2443 = vmul.f32 %v2403, %v2426
      %v2444 = vmul.f32 %v2404, %v2426
      %v2445 = vmul.f32 %v2405, %v2426
      %v2446 = vmul.f32 %v2406, %v2426
      %v2447 = vmul.f32 %v2407, %v2426
      %v2448 = vmul.f32 %v2408, %v2426
      %v2449 = vmul.f32 %v2409, %v2426
      %v2450 = vmul.f32 %v2410, %v2426
      %v2451 = vmul.f32 %v2411, %v2426
      %v2452 = vmul.f32 %v2412, %v2426
      %v2453 = vmul.f32 %v2413, %v2426
      %v2454 = vmul.f32 %v2414, %v2426
      %v2455 = vmul.f32 %v2415, %v2426
      %v2456 = vmul.f32 %v2416, %v2426
      %v2457 = vmul.f32 %v2417, %v2426
      %v2458 = vmul.f32 %v2418, %v2426
      %v2459 = vmul.f32 %v2419, %v2426
      %v2460 = vmul.f32 %v2420, %v2426
      %v2461 = vld [vmem:[%s7] sm:$0x1]
      %v2463 = vlaneseq
      %v2464 = vshrl.u32 %v2463, 7
      %v2465 = vsub.s32 0, %v2464
      %v2466 = vrot.slane %v2461, %v2465
      %v2468 = vadd.f32 %v2428, %v2466
      %v2469 = vadd.f32 %v2429, %v2466
      %v2470 = vadd.f32 %v2430, %v2466
      %v2471 = vadd.f32 %v2431, %v2466
      %v2472 = vadd.f32 %v2432, %v2466
      %v2473 = vadd.f32 %v2433, %v2466
      %v2474 = vadd.f32 %v2434, %v2466
      %v2475 = vadd.f32 %v2435, %v2466
      %v2476 = vadd.f32 %v2436, %v2466
      %v2477 = vadd.f32 %v2437, %v2466
      %v2478 = vadd.f32 %v2438, %v2466
      %v2479 = vadd.f32 %v2439, %v2466
      %v2480 = vadd.f32 %v2440, %v2466
      %v2481 = vadd.f32 %v2441, %v2466
      %v2482 = vadd.f32 %v2442, %v2466
      %v2483 = vadd.f32 %v2443, %v2466
      %v2484 = vadd.f32 %v2444, %v2466
      %v2485 = vadd.f32 %v2445, %v2466
      %v2486 = vadd.f32 %v2446, %v2466
      %v2487 = vadd.f32 %v2447, %v2466
      %v2488 = vadd.f32 %v2448, %v2466
      %v2489 = vadd.f32 %v2449, %v2466
      %v2490 = vadd.f32 %v2450, %v2466
      %v2491 = vadd.f32 %v2451, %v2466
      %v2492 = vadd.f32 %v2452, %v2466
      %v2493 = vadd.f32 %v2453, %v2466
      %v2494 = vadd.f32 %v2454, %v2466
      %v2495 = vadd.f32 %v2455, %v2466
      %v2496 = vadd.f32 %v2456, %v2466
      %v2497 = vadd.f32 %v2457, %v2466
      %v2498 = vadd.f32 %v2458, %v2466
      %v2499 = vadd.f32 %v2459, %v2466
      %v2500 = vadd.f32 %v2460, %v2466
      %vm2501 = vcmp.gt.f32.partialorder %v2468, 0.0
      %vm2502 = vcmp.gt.f32.partialorder %v2469, 0.0
      %vm2503 = vcmp.gt.f32.partialorder %v2470, 0.0
      %vm2504 = vcmp.gt.f32.partialorder %v2471, 0.0
      %vm2505 = vcmp.gt.f32.partialorder %v2472, 0.0
      %vm2506 = vcmp.gt.f32.partialorder %v2473, 0.0
      %vm2507 = vcmp.gt.f32.partialorder %v2474, 0.0
      %vm2508 = vcmp.gt.f32.partialorder %v2475, 0.0
      %vm2509 = vcmp.gt.f32.partialorder %v2476, 0.0
      %vm2510 = vcmp.gt.f32.partialorder %v2477, 0.0
      %vm2511 = vcmp.gt.f32.partialorder %v2478, 0.0
      %vm2512 = vcmp.gt.f32.partialorder %v2479, 0.0
      %vm2513 = vcmp.gt.f32.partialorder %v2480, 0.0
      %vm2514 = vcmp.gt.f32.partialorder %v2481, 0.0
      %vm2515 = vcmp.gt.f32.partialorder %v2482, 0.0
      %vm2516 = vcmp.gt.f32.partialorder %v2483, 0.0
      %vm2517 = vcmp.gt.f32.partialorder %v2484, 0.0
      %vm2518 = vcmp.gt.f32.partialorder %v2485, 0.0
      %vm2519 = vcmp.gt.f32.partialorder %v2486, 0.0
      %vm2520 = vcmp.gt.f32.partialorder %v2487, 0.0
      %vm2521 = vcmp.gt.f32.partialorder %v2488, 0.0
      %vm2522 = vcmp.gt.f32.partialorder %v2489, 0.0
      %vm2523 = vcmp.gt.f32.partialorder %v2490, 0.0
      %vm2524 = vcmp.gt.f32.partialorder %v2491, 0.0
      %vm2525 = vcmp.gt.f32.partialorder %v2492, 0.0
      %vm2526 = vcmp.gt.f32.partialorder %v2493, 0.0
      %vm2527 = vcmp.gt.f32.partialorder %v2494, 0.0
      %vm2528 = vcmp.gt.f32.partialorder %v2495, 0.0
      %vm2529 = vcmp.gt.f32.partialorder %v2496, 0.0
      %vm2530 = vcmp.gt.f32.partialorder %v2497, 0.0
      %vm2531 = vcmp.gt.f32.partialorder %v2498, 0.0
      %vm2532 = vcmp.gt.f32.partialorder %v2499, 0.0
      %vm2533 = vcmp.gt.f32.partialorder %v2500, 0.0
      %v2534 = vmul.f32 %v2468, 0.2
      %v2535 = vmul.f32 %v2469, 0.2
      %v2536 = vmul.f32 %v2470, 0.2
      %v2537 = vmul.f32 %v2471, 0.2
      %v2538 = vmul.f32 %v2472, 0.2
      %v2539 = vmul.f32 %v2473, 0.2
      %v2540 = vmul.f32 %v2474, 0.2
      %v2541 = vmul.f32 %v2475, 0.2
      %v2542 = vmul.f32 %v2476, 0.2
      %v2543 = vmul.f32 %v2477, 0.2
      %v2544 = vmul.f32 %v2478, 0.2
      %v2545 = vmul.f32 %v2479, 0.2
      %v2546 = vmul.f32 %v2480, 0.2
      %v2547 = vmul.f32 %v2481, 0.2
      %v2548 = vmul.f32 %v2482, 0.2
      %v2549 = vmul.f32 %v2483, 0.2
      %v2550 = vmul.f32 %v2484, 0.2
      %v2551 = vmul.f32 %v2485, 0.2
      %v2552 = vmul.f32 %v2486, 0.2
      %v2553 = vmul.f32 %v2487, 0.2
      %v2554 = vmul.f32 %v2488, 0.2
      %v2555 = vmul.f32 %v2489, 0.2
      %v2556 = vmul.f32 %v2490, 0.2
      %v2557 = vmul.f32 %v2491, 0.2
      %v2558 = vmul.f32 %v2492, 0.2
      %v2559 = vmul.f32 %v2493, 0.2
      %v2560 = vmul.f32 %v2494, 0.2
      %v2561 = vmul.f32 %v2495, 0.2
      %v2562 = vmul.f32 %v2496, 0.2
      %v2563 = vmul.f32 %v2497, 0.2
      %v2564 = vmul.f32 %v2498, 0.2
      %v2565 = vmul.f32 %v2499, 0.2
      %v2566 = vmul.f32 %v2500, 0.2
      %v2567 = vsel %vm2501, %v2468, %v2534
      %v2568 = vsel %vm2502, %v2469, %v2535
      %v2569 = vsel %vm2503, %v2470, %v2536
      %v2570 = vsel %vm2504, %v2471, %v2537
      %v2571 = vsel %vm2505, %v2472, %v2538
      %v2572 = vsel %vm2506, %v2473, %v2539
      %v2573 = vsel %vm2507, %v2474, %v2540
      %v2574 = vsel %vm2508, %v2475, %v2541
      %v2575 = vsel %vm2509, %v2476, %v2542
      %v2576 = vsel %vm2510, %v2477, %v2543
      %v2577 = vsel %vm2511, %v2478, %v2544
      %v2578 = vsel %vm2512, %v2479, %v2545
      %v2579 = vsel %vm2513, %v2480, %v2546
      %v2580 = vsel %vm2514, %v2481, %v2547
      %v2581 = vsel %vm2515, %v2482, %v2548
      %v2582 = vsel %vm2516, %v2483, %v2549
      %v2583 = vsel %vm2517, %v2484, %v2550
      %v2584 = vsel %vm2518, %v2485, %v2551
      %v2585 = vsel %vm2519, %v2486, %v2552
      %v2586 = vsel %vm2520, %v2487, %v2553
      %v2587 = vsel %vm2521, %v2488, %v2554
      %v2588 = vsel %vm2522, %v2489, %v2555
      %v2589 = vsel %vm2523, %v2490, %v2556
      %v2590 = vsel %vm2524, %v2491, %v2557
      %v2591 = vsel %vm2525, %v2492, %v2558
      %v2592 = vsel %vm2526, %v2493, %v2559
      %v2593 = vsel %vm2527, %v2494, %v2560
      %v2594 = vsel %vm2528, %v2495, %v2561
      %v2595 = vsel %vm2529, %v2496, %v2562
      %v2596 = vsel %vm2530, %v2497, %v2563
      %v2597 = vsel %vm2531, %v2498, %v2564
      %v2598 = vsel %vm2532, %v2499, %v2565
      %v2599 = vsel %vm2533, %v2500, %v2566
      %v2600 = vpack.c.bf16 %v2568, %v2567
      %v2601 = vpack.c.bf16 %v2570, %v2569
      %v2602 = vpack.c.bf16 %v2572, %v2571
      %v2603 = vpack.c.bf16 %v2574, %v2573
      %v2604 = vpack.c.bf16 %v2576, %v2575
      %v2605 = vpack.c.bf16 %v2578, %v2577
      %v2606 = vpack.c.bf16 %v2580, %v2579
      %v2607 = vpack.c.bf16 %v2582, %v2581
      %v2608 = vpack.c.bf16 %v2584, %v2583
      %v2609 = vpack.c.bf16 %v2586, %v2585
      %v2610 = vpack.c.bf16 %v2588, %v2587
      %v2611 = vpack.c.bf16 %v2590, %v2589
      %v2612 = vpack.c.bf16 %v2592, %v2591
      %v2613 = vpack.c.bf16 %v2594, %v2593
      %v2614 = vpack.c.bf16 %v2596, %v2595
      %v2615 = vpack.c.bf16 %v2598, %v2597
      %v2616 = vpack.c.bf16 %v2599, %v2599
      %v2617 = vld [vmem:[%s8] sm:$0xf]
      %v2618 = vld [vmem:[%s8 + $0x4] sm:$0xf]
      %v2619 = vld [vmem:[%s8 + $0x8] sm:$0xf]
      %v2620 = vld [vmem:[%s8 + $0xc] sm:$0xf]
      %v2621 = vld [vmem:[%s8 + $0x10] sm:$0xf]
      %v2622 = vld [vmem:[%s8 + $0x14] sm:$0xf]
      %v2623 = vld [vmem:[%s8 + $0x18] sm:$0xf]
      %v2624 = vld [vmem:[%s8 + $0x1c] sm:$0xf]
      %v2625 = vld [vmem:[%s8 + $0x20] sm:$0xf]
      %v2626 = vld [vmem:[%s8 + $0x24] sm:$0xf]
      %v2627 = vld [vmem:[%s8 + $0x28] sm:$0xf]
      %v2628 = vld [vmem:[%s8 + $0x2c] sm:$0xf]
      %v2629 = vld [vmem:[%s8 + $0x30] sm:$0xf]
      %v2630 = vld [vmem:[%s8 + $0x34] sm:$0xf]
      %v2631 = vld [vmem:[%s8 + $0x38] sm:$0xf]
      %v2632 = vld [vmem:[%s8 + $0x3c] sm:$0xf]
      %s2633 = scalar_lea.vmem %s8, 64
      %v2634 = vld [vmem:[%s2633] sm:$0xf]
      %v2635 = vld [vmem:[%s2633 + $0x4] sm:$0xf]
      %v2636 = vld [vmem:[%s2633 + $0x8] sm:$0xf]
      %v2637 = vld [vmem:[%s2633 + $0xc] sm:$0xf]
      %v2638 = vld [vmem:[%s2633 + $0x10] sm:$0xf]
      %v2639 = vld [vmem:[%s2633 + $0x14] sm:$0xf]
      %v2640 = vld [vmem:[%s2633 + $0x18] sm:$0xf]
      %v2641 = vld [vmem:[%s2633 + $0x1c] sm:$0xf]
      %v2642 = vld [vmem:[%s2633 + $0x20] sm:$0xf]
      %v2643 = vld [vmem:[%s2633 + $0x24] sm:$0xf]
      %v2644 = vld [vmem:[%s2633 + $0x28] sm:$0xf]
      %v2645 = vld [vmem:[%s2633 + $0x2c] sm:$0xf]
      %v2646 = vld [vmem:[%s2633 + $0x30] sm:$0xf]
      %v2647 = vld [vmem:[%s2633 + $0x34] sm:$0xf]
      %v2648 = vld [vmem:[%s2633 + $0x38] sm:$0xf]
      %v2649 = vld [vmem:[%s2633 + $0x3c] sm:$0xf]
      %v2651 = vshrl.u32 %v2600, 16
      %v2653 = vshll.u32 %v2600, 16
      %v2655 = vrot.slane %v2653, 1
      %v2656 = vor.u32 %v2651, %v2655
      %v2658 = vshll.u32 %v2601, 16
      %v2660 = vrot.slane %v2658, 1
      %v2661 = vsel %vm1502, %v2656, %v2660
      %v2662 = vshrl.u32 %v2601, 16
      %v2664 = vor.u32 %v2662, %v2660
      %v2666 = vshll.u32 %v2602, 16
      %v2668 = vrot.slane %v2666, 1
      %v2669 = vsel %vm1502, %v2664, %v2668
      %v2670 = vshrl.u32 %v2602, 16
      %v2672 = vor.u32 %v2670, %v2668
      %v2674 = vshll.u32 %v2603, 16
      %v2676 = vrot.slane %v2674, 1
      %v2677 = vsel %vm1502, %v2672, %v2676
      %v2678 = vshrl.u32 %v2603, 16
      %v2680 = vor.u32 %v2678, %v2676
      %v2682 = vshll.u32 %v2604, 16
      %v2684 = vrot.slane %v2682, 1
      %v2685 = vsel %vm1502, %v2680, %v2684
      %v2686 = vshrl.u32 %v2604, 16
      %v2688 = vor.u32 %v2686, %v2684
      %v2690 = vshll.u32 %v2605, 16
      %v2692 = vrot.slane %v2690, 1
      %v2693 = vsel %vm1502, %v2688, %v2692
      %v2694 = vshrl.u32 %v2605, 16
      %v2696 = vor.u32 %v2694, %v2692
      %v2698 = vshll.u32 %v2606, 16
      %v2700 = vrot.slane %v2698, 1
      %v2701 = vsel %vm1502, %v2696, %v2700
      %v2702 = vshrl.u32 %v2606, 16
      %v2704 = vor.u32 %v2702, %v2700
      %v2706 = vshll.u32 %v2607, 16
      %v2708 = vrot.slane %v2706, 1
      %v2709 = vsel %vm1502, %v2704, %v2708
      %v2710 = vshrl.u32 %v2607, 16
      %v2712 = vor.u32 %v2710, %v2708
      %v2714 = vshll.u32 %v2608, 16
      %v2716 = vrot.slane %v2714, 1
      %v2717 = vsel %vm1502, %v2712, %v2716
      %v2718 = vshrl.u32 %v2608, 16
      %v2720 = vor.u32 %v2718, %v2716
      %v2722 = vshll.u32 %v2609, 16
      %v2724 = vrot.slane %v2722, 1
      %v2725 = vsel %vm1502, %v2720, %v2724
      %v2726 = vshrl.u32 %v2609, 16
      %v2728 = vor.u32 %v2726, %v2724
      %v2730 = vshll.u32 %v2610, 16
      %v2732 = vrot.slane %v2730, 1
      %v2733 = vsel %vm1502, %v2728, %v2732
      %v2734 = vshrl.u32 %v2610, 16
      %v2736 = vor.u32 %v2734, %v2732
      %v2738 = vshll.u32 %v2611, 16
      %v2740 = vrot.slane %v2738, 1
      %v2741 = vsel %vm1502, %v2736, %v2740
      %v2742 = vshrl.u32 %v2611, 16
      %v2744 = vor.u32 %v2742, %v2740
      %v2746 = vshll.u32 %v2612, 16
      %v2748 = vrot.slane %v2746, 1
      %v2749 = vsel %vm1502, %v2744, %v2748
      %v2750 = vshrl.u32 %v2612, 16
      %v2752 = vor.u32 %v2750, %v2748
      %v2754 = vshll.u32 %v2613, 16
      %v2756 = vrot.slane %v2754, 1
      %v2757 = vsel %vm1502, %v2752, %v2756
      %v2758 = vshrl.u32 %v2613, 16
      %v2760 = vor.u32 %v2758, %v2756
      %v2762 = vshll.u32 %v2614, 16
      %v2764 = vrot.slane %v2762, 1
      %v2765 = vsel %vm1502, %v2760, %v2764
      %v2766 = vshrl.u32 %v2614, 16
      %v2768 = vor.u32 %v2766, %v2764
      %v2770 = vshll.u32 %v2615, 16
      %v2772 = vrot.slane %v2770, 1
      %v2773 = vsel %vm1502, %v2768, %v2772
      %v2774 = vshrl.u32 %v2615, 16
      %v2776 = vor.u32 %v2774, %v2772
      %v2778 = vshll.u32 %v2616, 16
      %v2780 = vrot.slane %v2778, 1
      %v2781 = vsel %vm1502, %v2776, %v2780
      %v2782 = vshrl.u32 %v2616, 16
      %v2784 = vor.u32 %v2782, %v2780
      %v2818 = vunpack.c.l.b16 %v2634
      %v2819 = vunpack.c.l.b16 %v2635
      %v2820 = vunpack.c.l.b16 %v2636
      %v2821 = vunpack.c.l.b16 %v2637
      %v2822 = vunpack.c.l.b16 %v2638
      %v2823 = vunpack.c.l.b16 %v2639
      %v2824 = vunpack.c.l.b16 %v2640
      %v2825 = vunpack.c.l.b16 %v2641
      %v2826 = vunpack.c.l.b16 %v2642
      %v2827 = vunpack.c.l.b16 %v2643
      %v2828 = vunpack.c.l.b16 %v2644
      %v2829 = vunpack.c.l.b16 %v2645
      %v2830 = vunpack.c.l.b16 %v2646
      %v2831 = vunpack.c.l.b16 %v2647
      %v2832 = vunpack.c.l.b16 %v2648
      %v2833 = vunpack.c.l.b16 %v2649
      %v2834 = vpack.c.b16 %v2819, %v2818
      %v2835 = vpack.c.b16 %v2821, %v2820
      %v2836 = vpack.c.b16 %v2823, %v2822
      %v2837 = vpack.c.b16 %v2825, %v2824
      %v2838 = vpack.c.b16 %v2827, %v2826
      %v2839 = vpack.c.b16 %v2829, %v2828
      %v2840 = vpack.c.b16 %v2831, %v2830
      %v2841 = vpack.c.b16 %v2833, %v2832
      %2850 = vmatprep.subr.bf16.mxu0 0
      %2851 = vmatpush1.bf16.msra.mxu0 %v2834
      %2852 = vmatprep.subr.bf16.mxu0 0
      %2853 = vmatpush1.bf16.msra.mxu0 %v2835
      %2854 = vmatprep.subr.bf16.mxu0 0
      %2855 = vmatpush1.bf16.msra.mxu0 %v2836
      %2856 = vmatprep.subr.bf16.mxu0 0
      %2857 = vmatpush1.bf16.msra.mxu0 %v2837
      %2858 = vmatprep.subr.bf16.mxu0 0
      %2859 = vmatpush1.bf16.msra.mxu0 %v2838
      %2860 = vmatprep.subr.bf16.mxu0 0
      %2861 = vmatpush1.bf16.msra.mxu0 %v2839
      %2862 = vmatprep.subr.bf16.mxu0 0
      %2863 = vmatpush1.bf16.msra.mxu0 %v2840
      %2864 = vmatprep.subr.bf16.mxu0 0
      %2865 = vmatpush1.bf16.msra.mxu0 %v2841
      %2866 = vmatprep.subr.bf16.mxu0 0
      %2867 = vmatpush1.bf16.msra.mxu0 0
      %2868 = vmatprep.subr.bf16.mxu0 0
      %2869 = vmatpush1.bf16.msra.mxu0 0
      %2870 = vmatprep.subr.bf16.mxu0 0
      %2871 = vmatpush1.bf16.msra.mxu0 0
      %2872 = vmatprep.subr.bf16.mxu0 0
      %2873 = vmatpush1.bf16.msra.mxu0 0
      %2874 = vmatprep.subr.bf16.mxu0 0
      %2875 = vmatpush1.bf16.msra.mxu0 0
      %2876 = vmatprep.subr.bf16.mxu0 0
      %2877 = vmatpush1.bf16.msra.mxu0 0
      %2878 = vmatprep.subr.bf16.mxu0 0
      %2879 = vmatpush1.bf16.msra.mxu0 0
      %2880 = vmatprep.subr.bf16.mxu0 0
      %2881 = vmatpush1.bf16.msra.mxu0 0
      %2882 = vmatprep.mubr.bf16.mxu0 0
      %2883 = vmatmul.mubr.bf16.gmra.mrb[0].mxu0 %v2661
      %v2884 = vpop.f32.mrb[0].mxu0
      %v2885 = vadd.f32 0.0, %v2884
      %v2886 = vpop.f32.mrb[0].mxu0
      %v2887 = vpop.f32.mrb[0].mxu0
      %v2888 = vadd.f32 0.0, %v2887
      %v2889 = vpop.f32.mrb[0].mxu0
      %2890 = vmatprep.mubr.bf16.mxu0 0
      %2891 = vmatmul.mubr.bf16.gmra.mrb[0].mxu0 %v2669
      %v2892 = vpop.f32.mrb[0].mxu0
      %v2893 = vadd.f32 0.0, %v2892
      %v2894 = vpop.f32.mrb[0].mxu0
      %v2895 = vpop.f32.mrb[0].mxu0
      %v2896 = vadd.f32 0.0, %v2895
      %v2897 = vpop.f32.mrb[0].mxu0
      %2898 = vmatprep.mubr.bf16.mxu0 0
      %2899 = vmatmul.mubr.bf16.gmra.mrb[0].mxu0 %v2677
      %v2900 = vpop.f32.mrb[0].mxu0
      %v2901 = vadd.f32 0.0, %v2900
      %v2902 = vpop.f32.mrb[0].mxu0
      %v2903 = vpop.f32.mrb[0].mxu0
      %v2904 = vadd.f32 0.0, %v2903
      %v2905 = vpop.f32.mrb[0].mxu0
      %2906 = vmatprep.mubr.bf16.mxu0 0
      %2907 = vmatmul.mubr.bf16.gmra.mrb[0].mxu0 %v2685
      %v2908 = vpop.f32.mrb[0].mxu0
      %v2909 = vadd.f32 0.0, %v2908
      %v2910 = vpop.f32.mrb[0].mxu0
      %v2911 = vpop.f32.mrb[0].mxu0
      %v2912 = vadd.f32 0.0, %v2911
      %v2913 = vpop.f32.mrb[0].mxu0
      %2914 = vmatprep.mubr.bf16.mxu0 0
      %2915 = vmatmul.mubr.bf16.gmra.mrb[0].mxu0 %v2693
      %v2916 = vpop.f32.mrb[0].mxu0
      %v2917 = vadd.f32 0.0, %v2916
      %v2918 = vpop.f32.mrb[0].mxu0
      %v2919 = vpop.f32.mrb[0].mxu0
      %v2920 = vadd.f32 0.0, %v2919
      %v2921 = vpop.f32.mrb[0].mxu0
      %2922 = vmatprep.mubr.bf16.mxu0 0
      %2923 = vmatmul.mubr.bf16.gmra.mrb[0].mxu0 %v2701
      %v2924 = vpop.f32.mrb[0].mxu0
      %v2925 = vadd.f32 0.0, %v2924
      %v2926 = vpop.f32.mrb[0].mxu0
      %v2927 = vpop.f32.mrb[0].mxu0
      %v2928 = vadd.f32 0.0, %v2927
      %v2929 = vpop.f32.mrb[0].mxu0
      %2930 = vmatprep.mubr.bf16.mxu0 0
      %2931 = vmatmul.mubr.bf16.gmra.mrb[0].mxu0 %v2709
      %v2932 = vpop.f32.mrb[0].mxu0
      %v2933 = vadd.f32 0.0, %v2932
      %v2934 = vpop.f32.mrb[0].mxu0
      %v2935 = vpop.f32.mrb[0].mxu0
      %v2936 = vadd.f32 0.0, %v2935
      %v2937 = vpop.f32.mrb[0].mxu0
      %2938 = vmatprep.mubr.bf16.mxu0 0
      %2939 = vmatmul.mubr.bf16.gmra.mrb[0].mxu0 %v2717
      %v2940 = vpop.f32.mrb[0].mxu0
      %v2941 = vadd.f32 0.0, %v2940
      %v2942 = vpop.f32.mrb[0].mxu0
      %v2943 = vpop.f32.mrb[0].mxu0
      %v2944 = vadd.f32 0.0, %v2943
      %v2945 = vpop.f32.mrb[0].mxu0
      %2946 = vmatprep.mubr.bf16.mxu0 0
      %2947 = vmatmul.mubr.bf16.gmra.mrb[0].mxu0 %v2725
      %v2948 = vpop.f32.mrb[0].mxu0
      %v2949 = vadd.f32 0.0, %v2948
      %v2950 = vpop.f32.mrb[0].mxu0
      %v2951 = vpop.f32.mrb[0].mxu0
      %v2952 = vadd.f32 0.0, %v2951
      %v2953 = vpop.f32.mrb[0].mxu0
      %2954 = vmatprep.mubr.bf16.mxu0 0
      %2955 = vmatmul.mubr.bf16.gmra.mrb[0].mxu0 %v2733
      %v2956 = vpop.f32.mrb[0].mxu0
      %v2957 = vadd.f32 0.0, %v2956
      %v2958 = vpop.f32.mrb[0].mxu0
      %v2959 = vpop.f32.mrb[0].mxu0
      %v2960 = vadd.f32 0.0, %v2959
      %v2961 = vpop.f32.mrb[0].mxu0
      %2962 = vmatprep.mubr.bf16.mxu0 0
      %2963 = vmatmul.mubr.bf16.gmra.mrb[0].mxu0 %v2741
      %v2964 = vpop.f32.mrb[0].mxu0
      %v2965 = vadd.f32 0.0, %v2964
      %v2966 = vpop.f32.mrb[0].mxu0
      %v2967 = vpop.f32.mrb[0].mxu0
      %v2968 = vadd.f32 0.0, %v2967
      %v2969 = vpop.f32.mrb[0].mxu0
      %2970 = vmatprep.mubr.bf16.mxu0 0
      %2971 = vmatmul.mubr.bf16.gmra.mrb[0].mxu0 %v2749
      %v2972 = vpop.f32.mrb[0].mxu0
      %v2973 = vadd.f32 0.0, %v2972
      %v2974 = vpop.f32.mrb[0].mxu0
      %v2975 = vpop.f32.mrb[0].mxu0
      %v2976 = vadd.f32 0.0, %v2975
      %v2977 = vpop.f32.mrb[0].mxu0
      %2978 = vmatprep.mubr.bf16.mxu0 0
      %2979 = vmatmul.mubr.bf16.gmra.mrb[0].mxu0 %v2757
      %v2980 = vpop.f32.mrb[0].mxu0
      %v2981 = vadd.f32 0.0, %v2980
      %v2982 = vpop.f32.mrb[0].mxu0
      %v2983 = vpop.f32.mrb[0].mxu0
      %v2984 = vadd.f32 0.0, %v2983
      %v2985 = vpop.f32.mrb[0].mxu0
      %2986 = vmatprep.mubr.bf16.mxu0 0
      %2987 = vmatmul.mubr.bf16.gmra.mrb[0].mxu0 %v2765
      %v2988 = vpop.f32.mrb[0].mxu0
      %v2989 = vadd.f32 0.0, %v2988
      %v2990 = vpop.f32.mrb[0].mxu0
      %v2991 = vpop.f32.mrb[0].mxu0
      %v2992 = vadd.f32 0.0, %v2991
      %v2993 = vpop.f32.mrb[0].mxu0
      %2994 = vmatprep.mubr.bf16.mxu0 0
      %2995 = vmatmul.mubr.bf16.gmra.mrb[0].mxu0 %v2773
      %v2996 = vpop.f32.mrb[0].mxu0
      %v2997 = vadd.f32 0.0, %v2996
      %v2998 = vpop.f32.mrb[0].mxu0
      %v2999 = vpop.f32.mrb[0].mxu0
      %v3000 = vadd.f32 0.0, %v2999
      %v3001 = vpop.f32.mrb[0].mxu0
      %3002 = vmatprep.mubr.bf16.mxu0 0
      %3003 = vmatmul.mubr.bf16.gmra.mrb[0].mxu0 %v2781
      %v3004 = vpop.f32.mrb[0].mxu0
      %v3005 = vadd.f32 0.0, %v3004
      %v3006 = vpop.f32.mrb[0].mxu0
      %v3007 = vpop.f32.mrb[0].mxu0
      %v3008 = vadd.f32 0.0, %v3007
      %v3009 = vpop.f32.mrb[0].mxu0
      %3010 = vmatprep.mubr.bf16.mxu0 0
      %3011 = vmatmul.mubr.bf16.gmra.mrb[0].mxu0 %v2784
      %v3012 = vpop.f32.mrb[0].mxu0
      %v3013 = vadd.f32 0.0, %v3012
      %v3014 = vpop.f32.mrb[0].mxu0
      %v3015 = vpop.f32.mrb[0].mxu0
      %v3016 = vpop.f32.mrb[0].mxu0
      %3017 = vdwg.mxu0
      %v3034 = vunpack.c.l.b16 %v2617
      %v3035 = vunpack.c.l.b16 %v2618
      %v3036 = vunpack.c.l.b16 %v2619
      %v3037 = vunpack.c.l.b16 %v2620
      %v3038 = vunpack.c.l.b16 %v2621
      %v3039 = vunpack.c.l.b16 %v2622
      %v3040 = vunpack.c.l.b16 %v2623
      %v3041 = vunpack.c.l.b16 %v2624
      %v3042 = vunpack.c.l.b16 %v2625
      %v3043 = vunpack.c.l.b16 %v2626
      %v3044 = vunpack.c.l.b16 %v2627
      %v3045 = vunpack.c.l.b16 %v2628
      %v3046 = vunpack.c.l.b16 %v2629
      %v3047 = vunpack.c.l.b16 %v2630
      %v3048 = vunpack.c.l.b16 %v2631
      %v3049 = vunpack.c.l.b16 %v2632
      %v3050 = vpack.c.b16 %v3035, %v3034
      %v3051 = vpack.c.b16 %v3037, %v3036
      %v3052 = vpack.c.b16 %v3039, %v3038
      %v3053 = vpack.c.b16 %v3041, %v3040
      %v3054 = vpack.c.b16 %v3043, %v3042
      %v3055 = vpack.c.b16 %v3045, %v3044
      %v3056 = vpack.c.b16 %v3047, %v3046
      %v3057 = vpack.c.b16 %v3049, %v3048
      %3066 = vmatprep.subr.bf16.mxu0 0
      %3067 = vmatpush1.bf16.msra.mxu0 %v3050
      %3068 = vmatprep.subr.bf16.mxu0 0
      %3069 = vmatpush1.bf16.msra.mxu0 %v3051
      %3070 = vmatprep.subr.bf16.mxu0 0
      %3071 = vmatpush1.bf16.msra.mxu0 %v3052
      %3072 = vmatprep.subr.bf16.mxu0 0
      %3073 = vmatpush1.bf16.msra.mxu0 %v3053
      %3074 = vmatprep.subr.bf16.mxu0 0
      %3075 = vmatpush1.bf16.msra.mxu0 %v3054
      %3076 = vmatprep.subr.bf16.mxu0 0
      %3077 = vmatpush1.bf16.msra.mxu0 %v3055
      %3078 = vmatprep.subr.bf16.mxu0 0
      %3079 = vmatpush1.bf16.msra.mxu0 %v3056
      %3080 = vmatprep.subr.bf16.mxu0 0
      %3081 = vmatpush1.bf16.msra.mxu0 %v3057
      %3082 = vmatprep.subr.bf16.mxu0 0
      %3083 = vmatpush1.bf16.msra.mxu0 0
      %3084 = vmatprep.subr.bf16.mxu0 0
      %3085 = vmatpush1.bf16.msra.mxu0 0
      %3086 = vmatprep.subr.bf16.mxu0 0
      %3087 = vmatpush1.bf16.msra.mxu0 0
      %3088 = vmatprep.subr.bf16.mxu0 0
      %3089 = vmatpush1.bf16.msra.mxu0 0
      %3090 = vmatprep.subr.bf16.mxu0 0
      %3091 = vmatpush1.bf16.msra.mxu0 0
      %3092 = vmatprep.subr.bf16.mxu0 0
      %3093 = vmatpush1.bf16.msra.mxu0 0
      %3094 = vmatprep.subr.bf16.mxu0 0
      %3095 = vmatpush1.bf16.msra.mxu0 0
      %3096 = vmatprep.subr.bf16.mxu0 0
      %3097 = vmatpush1.bf16.msra.mxu0 0
      %3098 = vmatprep.mubr.bf16.mxu0 0
      %3099 = vmatmul.mubr.bf16.gmra.mrb[0].mxu0 %v2600
      %v3100 = vpop.f32.mrb[0].mxu0
      %v3101 = vadd.f32 %v2885, %v3100
      %v3102 = vpop.f32.mrb[0].mxu0
      %v3103 = vpop.f32.mrb[0].mxu0
      %v3104 = vadd.f32 %v2888, %v3103
      %v3105 = vpop.f32.mrb[0].mxu0
      %3106 = vmatprep.mubr.bf16.mxu0 0
      %3107 = vmatmul.mubr.bf16.gmra.mrb[0].mxu0 %v2601
      %v3108 = vpop.f32.mrb[0].mxu0
      %v3109 = vadd.f32 %v2893, %v3108
      %v3110 = vpop.f32.mrb[0].mxu0
      %v3111 = vpop.f32.mrb[0].mxu0
      %v3112 = vadd.f32 %v2896, %v3111
      %v3113 = vpop.f32.mrb[0].mxu0
      %3114 = vmatprep.mubr.bf16.mxu0 0
      %3115 = vmatmul.mubr.bf16.gmra.mrb[0].mxu0 %v2602
      %v3116 = vpop.f32.mrb[0].mxu0
      %v3117 = vadd.f32 %v2901, %v3116
      %v3118 = vpop.f32.mrb[0].mxu0
      %v3119 = vpop.f32.mrb[0].mxu0
      %v3120 = vadd.f32 %v2904, %v3119
      %v3121 = vpop.f32.mrb[0].mxu0
      %3122 = vmatprep.mubr.bf16.mxu0 0
      %3123 = vmatmul.mubr.bf16.gmra.mrb[0].mxu0 %v2603
      %v3124 = vpop.f32.mrb[0].mxu0
      %v3125 = vadd.f32 %v2909, %v3124
      %v3126 = vpop.f32.mrb[0].mxu0
      %v3127 = vpop.f32.mrb[0].mxu0
      %v3128 = vadd.f32 %v2912, %v3127
      %v3129 = vpop.f32.mrb[0].mxu0
      %3130 = vmatprep.mubr.bf16.mxu0 0
      %3131 = vmatmul.mubr.bf16.gmra.mrb[0].mxu0 %v2604
      %v3132 = vpop.f32.mrb[0].mxu0
      %v3133 = vadd.f32 %v2917, %v3132
      %v3134 = vpop.f32.mrb[0].mxu0
      %v3135 = vpop.f32.mrb[0].mxu0
      %v3136 = vadd.f32 %v2920, %v3135
      %v3137 = vpop.f32.mrb[0].mxu0
      %3138 = vmatprep.mubr.bf16.mxu0 0
      %3139 = vmatmul.mubr.bf16.gmra.mrb[0].mxu0 %v2605
      %v3140 = vpop.f32.mrb[0].mxu0
      %v3141 = vadd.f32 %v2925, %v3140
      %v3142 = vpop.f32.mrb[0].mxu0
      %v3143 = vpop.f32.mrb[0].mxu0
      %v3144 = vadd.f32 %v2928, %v3143
      %v3145 = vpop.f32.mrb[0].mxu0
      %3146 = vmatprep.mubr.bf16.mxu0 0
      %3147 = vmatmul.mubr.bf16.gmra.mrb[0].mxu0 %v2606
      %v3148 = vpop.f32.mrb[0].mxu0
      %v3149 = vadd.f32 %v2933, %v3148
      %v3150 = vpop.f32.mrb[0].mxu0
      %v3151 = vpop.f32.mrb[0].mxu0
      %v3152 = vadd.f32 %v2936, %v3151
      %v3153 = vpop.f32.mrb[0].mxu0
      %3154 = vmatprep.mubr.bf16.mxu0 0
      %3155 = vmatmul.mubr.bf16.gmra.mrb[0].mxu0 %v2607
      %v3156 = vpop.f32.mrb[0].mxu0
      %v3157 = vadd.f32 %v2941, %v3156
      %v3158 = vpop.f32.mrb[0].mxu0
      %v3159 = vpop.f32.mrb[0].mxu0
      %v3160 = vadd.f32 %v2944, %v3159
      %v3161 = vpop.f32.mrb[0].mxu0
      %3162 = vmatprep.mubr.bf16.mxu0 0
      %3163 = vmatmul.mubr.bf16.gmra.mrb[0].mxu0 %v2608
      %v3164 = vpop.f32.mrb[0].mxu0
      %v3165 = vadd.f32 %v2949, %v3164
      %v3166 = vpop.f32.mrb[0].mxu0
      %v3167 = vpop.f32.mrb[0].mxu0
      %v3168 = vadd.f32 %v2952, %v3167
      %v3169 = vpop.f32.mrb[0].mxu0
      %3170 = vmatprep.mubr.bf16.mxu0 0
      %3171 = vmatmul.mubr.bf16.gmra.mrb[0].mxu0 %v2609
      %v3172 = vpop.f32.mrb[0].mxu0
      %v3173 = vadd.f32 %v2957, %v3172
      %v3174 = vpop.f32.mrb[0].mxu0
      %v3175 = vpop.f32.mrb[0].mxu0
      %v3176 = vadd.f32 %v2960, %v3175
      %v3177 = vpop.f32.mrb[0].mxu0
      %3178 = vmatprep.mubr.bf16.mxu0 0
      %3179 = vmatmul.mubr.bf16.gmra.mrb[0].mxu0 %v2610
      %v3180 = vpop.f32.mrb[0].mxu0
      %v3181 = vadd.f32 %v2965, %v3180
      %v3182 = vpop.f32.mrb[0].mxu0
      %v3183 = vpop.f32.mrb[0].mxu0
      %v3184 = vadd.f32 %v2968, %v3183
      %v3185 = vpop.f32.mrb[0].mxu0
      %3186 = vmatprep.mubr.bf16.mxu0 0
      %3187 = vmatmul.mubr.bf16.gmra.mrb[0].mxu0 %v2611
      %v3188 = vpop.f32.mrb[0].mxu0
      %v3189 = vadd.f32 %v2973, %v3188
      %v3190 = vpop.f32.mrb[0].mxu0
      %v3191 = vpop.f32.mrb[0].mxu0
      %v3192 = vadd.f32 %v2976, %v3191
      %v3193 = vpop.f32.mrb[0].mxu0
      %3194 = vmatprep.mubr.bf16.mxu0 0
      %3195 = vmatmul.mubr.bf16.gmra.mrb[0].mxu0 %v2612
      %v3196 = vpop.f32.mrb[0].mxu0
      %v3197 = vadd.f32 %v2981, %v3196
      %v3198 = vpop.f32.mrb[0].mxu0
      %v3199 = vpop.f32.mrb[0].mxu0
      %v3200 = vadd.f32 %v2984, %v3199
      %v3201 = vpop.f32.mrb[0].mxu0
      %3202 = vmatprep.mubr.bf16.mxu0 0
      %3203 = vmatmul.mubr.bf16.gmra.mrb[0].mxu0 %v2613
      %v3204 = vpop.f32.mrb[0].mxu0
      %v3205 = vadd.f32 %v2989, %v3204
      %v3206 = vpop.f32.mrb[0].mxu0
      %v3207 = vpop.f32.mrb[0].mxu0
      %v3208 = vadd.f32 %v2992, %v3207
      %v3209 = vpop.f32.mrb[0].mxu0
      %3210 = vmatprep.mubr.bf16.mxu0 0
      %3211 = vmatmul.mubr.bf16.gmra.mrb[0].mxu0 %v2614
      %v3212 = vpop.f32.mrb[0].mxu0
      %v3213 = vadd.f32 %v2997, %v3212
      %v3214 = vpop.f32.mrb[0].mxu0
      %v3215 = vpop.f32.mrb[0].mxu0
      %v3216 = vadd.f32 %v3000, %v3215
      %v3217 = vpop.f32.mrb[0].mxu0
      %3218 = vmatprep.mubr.bf16.mxu0 0
      %3219 = vmatmul.mubr.bf16.gmra.mrb[0].mxu0 %v2615
      %v3220 = vpop.f32.mrb[0].mxu0
      %v3221 = vadd.f32 %v3005, %v3220
      %v3222 = vpop.f32.mrb[0].mxu0
      %v3223 = vpop.f32.mrb[0].mxu0
      %v3224 = vadd.f32 %v3008, %v3223
      %v3225 = vpop.f32.mrb[0].mxu0
      %3226 = vmatprep.mubr.bf16.mxu0 0
      %3227 = vmatmul.mubr.bf16.gmra.mrb[0].mxu0 %v2616
      %v3228 = vpop.f32.mrb[0].mxu0
      %v3229 = vadd.f32 %v3013, %v3228
      %v3230 = vpop.f32.mrb[0].mxu0
      %v3231 = vpop.f32.mrb[0].mxu0
      %v3232 = vpop.f32.mrb[0].mxu0
      %3233 = vdwg.mxu0
      %s3234 = scalar_lea.vmem %s8, 128
      %v3235 = vld [vmem:[%s3234] sm:$0xf]
      %v3236 = vld [vmem:[%s3234 + $0x4] sm:$0xf]
      %v3237 = vld [vmem:[%s3234 + $0x8] sm:$0xf]
      %v3238 = vld [vmem:[%s3234 + $0xc] sm:$0xf]
      %v3239 = vld [vmem:[%s3234 + $0x10] sm:$0xf]
      %v3240 = vld [vmem:[%s3234 + $0x14] sm:$0xf]
      %v3241 = vld [vmem:[%s3234 + $0x18] sm:$0xf]
      %v3242 = vld [vmem:[%s3234 + $0x1c] sm:$0xf]
      %v3243 = vld [vmem:[%s3234 + $0x20] sm:$0xf]
      %v3244 = vld [vmem:[%s3234 + $0x24] sm:$0xf]
      %v3245 = vld [vmem:[%s3234 + $0x28] sm:$0xf]
      %v3246 = vld [vmem:[%s3234 + $0x2c] sm:$0xf]
      %v3247 = vld [vmem:[%s3234 + $0x30] sm:$0xf]
      %v3248 = vld [vmem:[%s3234 + $0x34] sm:$0xf]
      %v3249 = vld [vmem:[%s3234 + $0x38] sm:$0xf]
      %v3250 = vld [vmem:[%s3234 + $0x3c] sm:$0xf]
      %v3268 = vrot.slane %v2600, 1
      %v3269 = vrot.slane %v2601, 1
      %v3270 = vsel %vm2121, %v3268, %v3269
      %v3271 = vrot.slane %v2602, 1
      %v3272 = vsel %vm2121, %v3269, %v3271
      %v3273 = vrot.slane %v2603, 1
      %v3274 = vsel %vm2121, %v3271, %v3273
      %v3275 = vrot.slane %v2604, 1
      %v3276 = vsel %vm2121, %v3273, %v3275
      %v3277 = vrot.slane %v2605, 1
      %v3278 = vsel %vm2121, %v3275, %v3277
      %v3279 = vrot.slane %v2606, 1
      %v3280 = vsel %vm2121, %v3277, %v3279
      %v3281 = vrot.slane %v2607, 1
      %v3282 = vsel %vm2121, %v3279, %v3281
      %v3283 = vrot.slane %v2608, 1
      %v3284 = vsel %vm2121, %v3281, %v3283
      %v3285 = vrot.slane %v2609, 1
      %v3286 = vsel %vm2121, %v3283, %v3285
      %v3287 = vrot.slane %v2610, 1
      %v3288 = vsel %vm2121, %v3285, %v3287
      %v3289 = vrot.slane %v2611, 1
      %v3290 = vsel %vm2121, %v3287, %v3289
      %v3291 = vrot.slane %v2612, 1
      %v3292 = vsel %vm2121, %v3289, %v3291
      %v3293 = vrot.slane %v2613, 1
      %v3294 = vsel %vm2121, %v3291, %v3293
      %v3295 = vrot.slane %v2614, 1
      %v3296 = vsel %vm2121, %v3293, %v3295
      %v3297 = vrot.slane %v2615, 1
      %v3298 = vsel %vm2121, %v3295, %v3297
      %v3299 = vrot.slane %v2616, 1
      %v3300 = vsel %vm2121, %v3297, %v3299
      %v3334 = vunpack.c.l.b16 %v3235
      %v3335 = vunpack.c.l.b16 %v3236
      %v3336 = vunpack.c.l.b16 %v3237
      %v3337 = vunpack.c.l.b16 %v3238
      %v3338 = vunpack.c.l.b16 %v3239
      %v3339 = vunpack.c.l.b16 %v3240
      %v3340 = vunpack.c.l.b16 %v3241
      %v3341 = vunpack.c.l.b16 %v3242
      %v3342 = vunpack.c.l.b16 %v3243
      %v3343 = vunpack.c.l.b16 %v3244
      %v3344 = vunpack.c.l.b16 %v3245
      %v3345 = vunpack.c.l.b16 %v3246
      %v3346 = vunpack.c.l.b16 %v3247
      %v3347 = vunpack.c.l.b16 %v3248
      %v3348 = vunpack.c.l.b16 %v3249
      %v3349 = vunpack.c.l.b16 %v3250
      %v3350 = vpack.c.b16 %v3335, %v3334
      %v3351 = vpack.c.b16 %v3337, %v3336
      %v3352 = vpack.c.b16 %v3339, %v3338
      %v3353 = vpack.c.b16 %v3341, %v3340
      %v3354 = vpack.c.b16 %v3343, %v3342
      %v3355 = vpack.c.b16 %v3345, %v3344
      %v3356 = vpack.c.b16 %v3347, %v3346
      %v3357 = vpack.c.b16 %v3349, %v3348
      %3366 = vmatprep.subr.bf16.mxu0 0
      %3367 = vmatpush1.bf16.msra.mxu0 %v3350
      %3368 = vmatprep.subr.bf16.mxu0 0
      %3369 = vmatpush1.bf16.msra.mxu0 %v3351
      %3370 = vmatprep.subr.bf16.mxu0 0
      %3371 = vmatpush1.bf16.msra.mxu0 %v3352
      %3372 = vmatprep.subr.bf16.mxu0 0
      %3373 = vmatpush1.bf16.msra.mxu0 %v3353
      %3374 = vmatprep.subr.bf16.mxu0 0
      %3375 = vmatpush1.bf16.msra.mxu0 %v3354
      %3376 = vmatprep.subr.bf16.mxu0 0
      %3377 = vmatpush1.bf16.msra.mxu0 %v3355
      %3378 = vmatprep.subr.bf16.mxu0 0
      %3379 = vmatpush1.bf16.msra.mxu0 %v3356
      %3380 = vmatprep.subr.bf16.mxu0 0
      %3381 = vmatpush1.bf16.msra.mxu0 %v3357
      %3382 = vmatprep.subr.bf16.mxu0 0
      %3383 = vmatpush1.bf16.msra.mxu0 0
      %3384 = vmatprep.subr.bf16.mxu0 0
      %3385 = vmatpush1.bf16.msra.mxu0 0
      %3386 = vmatprep.subr.bf16.mxu0 0
      %3387 = vmatpush1.bf16.msra.mxu0 0
      %3388 = vmatprep.subr.bf16.mxu0 0
      %3389 = vmatpush1.bf16.msra.mxu0 0
      %3390 = vmatprep.subr.bf16.mxu0 0
      %3391 = vmatpush1.bf16.msra.mxu0 0
      %3392 = vmatprep.subr.bf16.mxu0 0
      %3393 = vmatpush1.bf16.msra.mxu0 0
      %3394 = vmatprep.subr.bf16.mxu0 0
      %3395 = vmatpush1.bf16.msra.mxu0 0
      %3396 = vmatprep.subr.bf16.mxu0 0
      %3397 = vmatpush1.bf16.msra.mxu0 0
      %3398 = vmatprep.mubr.bf16.mxu0 0
      %3399 = vmatmul.mubr.bf16.gmra.mrb[0].mxu0 %v3270
      %v3400 = vpop.f32.mrb[0].mxu0
      %v3401 = vadd.f32 0.0, %v3400
      %v3402 = vpop.f32.mrb[0].mxu0
      %v3403 = vpop.f32.mrb[0].mxu0
      %v3404 = vadd.f32 0.0, %v3403
      %v3405 = vpop.f32.mrb[0].mxu0
      %3406 = vmatprep.mubr.bf16.mxu0 0
      %3407 = vmatmul.mubr.bf16.gmra.mrb[0].mxu0 %v3272
      %v3408 = vpop.f32.mrb[0].mxu0
      %v3409 = vadd.f32 0.0, %v3408
      %v3410 = vpop.f32.mrb[0].mxu0
      %v3411 = vpop.f32.mrb[0].mxu0
      %v3412 = vadd.f32 0.0, %v3411
      %v3413 = vpop.f32.mrb[0].mxu0
      %3414 = vmatprep.mubr.bf16.mxu0 0
      %3415 = vmatmul.mubr.bf16.gmra.mrb[0].mxu0 %v3274
      %v3416 = vpop.f32.mrb[0].mxu0
      %v3417 = vadd.f32 0.0, %v3416
      %v3418 = vpop.f32.mrb[0].mxu0
      %v3419 = vpop.f32.mrb[0].mxu0
      %v3420 = vadd.f32 0.0, %v3419
      %v3421 = vpop.f32.mrb[0].mxu0
      %3422 = vmatprep.mubr.bf16.mxu0 0
      %3423 = vmatmul.mubr.bf16.gmra.mrb[0].mxu0 %v3276
      %v3424 = vpop.f32.mrb[0].mxu0
      %v3425 = vadd.f32 0.0, %v3424
      %v3426 = vpop.f32.mrb[0].mxu0
      %v3427 = vpop.f32.mrb[0].mxu0
      %v3428 = vadd.f32 0.0, %v3427
      %v3429 = vpop.f32.mrb[0].mxu0
      %3430 = vmatprep.mubr.bf16.mxu0 0
      %3431 = vmatmul.mubr.bf16.gmra.mrb[0].mxu0 %v3278
      %v3432 = vpop.f32.mrb[0].mxu0
      %v3433 = vadd.f32 0.0, %v3432
      %v3434 = vpop.f32.mrb[0].mxu0
      %v3435 = vpop.f32.mrb[0].mxu0
      %v3436 = vadd.f32 0.0, %v3435
      %v3437 = vpop.f32.mrb[0].mxu0
      %3438 = vmatprep.mubr.bf16.mxu0 0
      %3439 = vmatmul.mubr.bf16.gmra.mrb[0].mxu0 %v3280
      %v3440 = vpop.f32.mrb[0].mxu0
      %v3441 = vadd.f32 0.0, %v3440
      %v3442 = vpop.f32.mrb[0].mxu0
      %v3443 = vpop.f32.mrb[0].mxu0
      %v3444 = vadd.f32 0.0, %v3443
      %v3445 = vpop.f32.mrb[0].mxu0
      %3446 = vmatprep.mubr.bf16.mxu0 0
      %3447 = vmatmul.mubr.bf16.gmra.mrb[0].mxu0 %v3282
      %v3448 = vpop.f32.mrb[0].mxu0
      %v3449 = vadd.f32 0.0, %v3448
      %v3450 = vpop.f32.mrb[0].mxu0
      %v3451 = vpop.f32.mrb[0].mxu0
      %v3452 = vadd.f32 0.0, %v3451
      %v3453 = vpop.f32.mrb[0].mxu0
      %3454 = vmatprep.mubr.bf16.mxu0 0
      %3455 = vmatmul.mubr.bf16.gmra.mrb[0].mxu0 %v3284
      %v3456 = vpop.f32.mrb[0].mxu0
      %v3457 = vadd.f32 0.0, %v3456
      %v3458 = vpop.f32.mrb[0].mxu0
      %v3459 = vpop.f32.mrb[0].mxu0
      %v3460 = vadd.f32 0.0, %v3459
      %v3461 = vpop.f32.mrb[0].mxu0
      %3462 = vmatprep.mubr.bf16.mxu0 0
      %3463 = vmatmul.mubr.bf16.gmra.mrb[0].mxu0 %v3286
      %v3464 = vpop.f32.mrb[0].mxu0
      %v3465 = vadd.f32 0.0, %v3464
      %v3466 = vpop.f32.mrb[0].mxu0
      %v3467 = vpop.f32.mrb[0].mxu0
      %v3468 = vadd.f32 0.0, %v3467
      %v3469 = vpop.f32.mrb[0].mxu0
      %3470 = vmatprep.mubr.bf16.mxu0 0
      %3471 = vmatmul.mubr.bf16.gmra.mrb[0].mxu0 %v3288
      %v3472 = vpop.f32.mrb[0].mxu0
      %v3473 = vadd.f32 0.0, %v3472
      %v3474 = vpop.f32.mrb[0].mxu0
      %v3475 = vpop.f32.mrb[0].mxu0
      %v3476 = vadd.f32 0.0, %v3475
      %v3477 = vpop.f32.mrb[0].mxu0
      %3478 = vmatprep.mubr.bf16.mxu0 0
      %3479 = vmatmul.mubr.bf16.gmra.mrb[0].mxu0 %v3290
      %v3480 = vpop.f32.mrb[0].mxu0
      %v3481 = vadd.f32 0.0, %v3480
      %v3482 = vpop.f32.mrb[0].mxu0
      %v3483 = vpop.f32.mrb[0].mxu0
      %v3484 = vadd.f32 0.0, %v3483
      %v3485 = vpop.f32.mrb[0].mxu0
      %3486 = vmatprep.mubr.bf16.mxu0 0
      %3487 = vmatmul.mubr.bf16.gmra.mrb[0].mxu0 %v3292
      %v3488 = vpop.f32.mrb[0].mxu0
      %v3489 = vadd.f32 0.0, %v3488
      %v3490 = vpop.f32.mrb[0].mxu0
      %v3491 = vpop.f32.mrb[0].mxu0
      %v3492 = vadd.f32 0.0, %v3491
      %v3493 = vpop.f32.mrb[0].mxu0
      %3494 = vmatprep.mubr.bf16.mxu0 0
      %3495 = vmatmul.mubr.bf16.gmra.mrb[0].mxu0 %v3294
      %v3496 = vpop.f32.mrb[0].mxu0
      %v3497 = vadd.f32 0.0, %v3496
      %v3498 = vpop.f32.mrb[0].mxu0
      %v3499 = vpop.f32.mrb[0].mxu0
      %v3500 = vadd.f32 0.0, %v3499
      %v3501 = vpop.f32.mrb[0].mxu0
      %3502 = vmatprep.mubr.bf16.mxu0 0
      %3503 = vmatmul.mubr.bf16.gmra.mrb[0].mxu0 %v3296
      %v3504 = vpop.f32.mrb[0].mxu0
      %v3505 = vadd.f32 0.0, %v3504
      %v3506 = vpop.f32.mrb[0].mxu0
      %v3507 = vpop.f32.mrb[0].mxu0
      %v3508 = vadd.f32 0.0, %v3507
      %v3509 = vpop.f32.mrb[0].mxu0
      %3510 = vmatprep.mubr.bf16.mxu0 0
      %3511 = vmatmul.mubr.bf16.gmra.mrb[0].mxu0 %v3298
      %v3512 = vpop.f32.mrb[0].mxu0
      %v3513 = vadd.f32 0.0, %v3512
      %v3514 = vpop.f32.mrb[0].mxu0
      %v3515 = vpop.f32.mrb[0].mxu0
      %v3516 = vadd.f32 0.0, %v3515
      %v3517 = vpop.f32.mrb[0].mxu0
      %3518 = vmatprep.mubr.bf16.mxu0 0
      %3519 = vmatmul.mubr.bf16.gmra.mrb[0].mxu0 %v3300
      %v3520 = vpop.f32.mrb[0].mxu0
      %v3521 = vadd.f32 0.0, %v3520
      %v3522 = vpop.f32.mrb[0].mxu0
      %v3523 = vpop.f32.mrb[0].mxu0
      %v3524 = vadd.f32 0.0, %v3523
      %v3525 = vpop.f32.mrb[0].mxu0
      %3526 = vmatprep.mubr.bf16.mxu0 0
      %3527 = vmatmul.mubr.bf16.gmra.mrb[0].mxu0 %v3299
      %v3528 = vpop.f32.mrb[0].mxu0
      %v3529 = vadd.f32 0.0, %v3528
      %v3530 = vpop.f32.mrb[0].mxu0
      %v3531 = vpop.f32.mrb[0].mxu0
      %v3532 = vpop.f32.mrb[0].mxu0
      %3533 = vdwg.mxu0
      %v3534 = vadd.f32 %v3101, %v3401
      %v3535 = vadd.f32 %v3104, %v3404
      %v3536 = vadd.f32 %v3109, %v3409
      %v3537 = vadd.f32 %v3112, %v3412
      %v3538 = vadd.f32 %v3117, %v3417
      %v3539 = vadd.f32 %v3120, %v3420
      %v3540 = vadd.f32 %v3125, %v3425
      %v3541 = vadd.f32 %v3128, %v3428
      %v3542 = vadd.f32 %v3133, %v3433
      %v3543 = vadd.f32 %v3136, %v3436
      %v3544 = vadd.f32 %v3141, %v3441
      %v3545 = vadd.f32 %v3144, %v3444
      %v3546 = vadd.f32 %v3149, %v3449
      %v3547 = vadd.f32 %v3152, %v3452
      %v3548 = vadd.f32 %v3157, %v3457
      %v3549 = vadd.f32 %v3160, %v3460
      %v3550 = vadd.f32 %v3165, %v3465
      %v3551 = vadd.f32 %v3168, %v3468
      %v3552 = vadd.f32 %v3173, %v3473
      %v3553 = vadd.f32 %v3176, %v3476
      %v3554 = vadd.f32 %v3181, %v3481
      %v3555 = vadd.f32 %v3184, %v3484
      %v3556 = vadd.f32 %v3189, %v3489
      %v3557 = vadd.f32 %v3192, %v3492
      %v3558 = vadd.f32 %v3197, %v3497
      %v3559 = vadd.f32 %v3200, %v3500
      %v3560 = vadd.f32 %v3205, %v3505
      %v3561 = vadd.f32 %v3208, %v3508
      %v3562 = vadd.f32 %v3213, %v3513
      %v3563 = vadd.f32 %v3216, %v3516
      %v3564 = vadd.f32 %v3221, %v3521
      %v3565 = vadd.f32 %v3224, %v3524
      %v3566 = vadd.f32 %v3229, %v3529
      %v3567 = vld [vmem:[%s9] sm:$0x1]
      %v3569 = vlaneseq
      %v3570 = vshrl.u32 %v3569, 7
      %v3571 = vsub.s32 0, %v3570
      %v3572 = vrot.slane %v3567, %v3571
      %v3574 = vmul.f32 %v3534, %v3572
      %v3575 = vmul.f32 %v3535, %v3572
      %v3576 = vmul.f32 %v3536, %v3572
      %v3577 = vmul.f32 %v3537, %v3572
      %v3578 = vmul.f32 %v3538, %v3572
      %v3579 = vmul.f32 %v3539, %v3572
      %v3580 = vmul.f32 %v3540, %v3572
      %v3581 = vmul.f32 %v3541, %v3572
      %v3582 = vmul.f32 %v3542, %v3572
      %v3583 = vmul.f32 %v3543, %v3572
      %v3584 = vmul.f32 %v3544, %v3572
      %v3585 = vmul.f32 %v3545, %v3572
      %v3586 = vmul.f32 %v3546, %v3572
      %v3587 = vmul.f32 %v3547, %v3572
      %v3588 = vmul.f32 %v3548, %v3572
      %v3589 = vmul.f32 %v3549, %v3572
      %v3590 = vmul.f32 %v3550, %v3572
      %v3591 = vmul.f32 %v3551, %v3572
      %v3592 = vmul.f32 %v3552, %v3572
      %v3593 = vmul.f32 %v3553, %v3572
      %v3594 = vmul.f32 %v3554, %v3572
      %v3595 = vmul.f32 %v3555, %v3572
      %v3596 = vmul.f32 %v3556, %v3572
      %v3597 = vmul.f32 %v3557, %v3572
      %v3598 = vmul.f32 %v3558, %v3572
      %v3599 = vmul.f32 %v3559, %v3572
      %v3600 = vmul.f32 %v3560, %v3572
      %v3601 = vmul.f32 %v3561, %v3572
      %v3602 = vmul.f32 %v3562, %v3572
      %v3603 = vmul.f32 %v3563, %v3572
      %v3604 = vmul.f32 %v3564, %v3572
      %v3605 = vmul.f32 %v3565, %v3572
      %v3606 = vmul.f32 %v3566, %v3572
      %v3607 = vld [vmem:[%s10] sm:$0x1]
      %v3609 = vlaneseq
      %v3610 = vshrl.u32 %v3609, 7
      %v3611 = vsub.s32 0, %v3610
      %v3612 = vrot.slane %v3607, %v3611
      %v3614 = vadd.f32 %v3574, %v3612
      %v3615 = vadd.f32 %v3575, %v3612
      %v3616 = vadd.f32 %v3576, %v3612
      %v3617 = vadd.f32 %v3577, %v3612
      %v3618 = vadd.f32 %v3578, %v3612
      %v3619 = vadd.f32 %v3579, %v3612
      %v3620 = vadd.f32 %v3580, %v3612
      %v3621 = vadd.f32 %v3581, %v3612
      %v3622 = vadd.f32 %v3582, %v3612
      %v3623 = vadd.f32 %v3583, %v3612
      %v3624 = vadd.f32 %v3584, %v3612
      %v3625 = vadd.f32 %v3585, %v3612
      %v3626 = vadd.f32 %v3586, %v3612
      %v3627 = vadd.f32 %v3587, %v3612
      %v3628 = vadd.f32 %v3588, %v3612
      %v3629 = vadd.f32 %v3589, %v3612
      %v3630 = vadd.f32 %v3590, %v3612
      %v3631 = vadd.f32 %v3591, %v3612
      %v3632 = vadd.f32 %v3592, %v3612
      %v3633 = vadd.f32 %v3593, %v3612
      %v3634 = vadd.f32 %v3594, %v3612
      %v3635 = vadd.f32 %v3595, %v3612
      %v3636 = vadd.f32 %v3596, %v3612
      %v3637 = vadd.f32 %v3597, %v3612
      %v3638 = vadd.f32 %v3598, %v3612
      %v3639 = vadd.f32 %v3599, %v3612
      %v3640 = vadd.f32 %v3600, %v3612
      %v3641 = vadd.f32 %v3601, %v3612
      %v3642 = vadd.f32 %v3602, %v3612
      %v3643 = vadd.f32 %v3603, %v3612
      %v3644 = vadd.f32 %v3604, %v3612
      %v3645 = vadd.f32 %v3605, %v3612
      %v3646 = vadd.f32 %v3606, %v3612
      %v3647 = vmax.f32 %v3614, 0.0
      %v3648 = vmax.f32 %v3615, 0.0
      %v3649 = vmax.f32 %v3616, 0.0
      %v3650 = vmax.f32 %v3617, 0.0
      %v3651 = vmax.f32 %v3618, 0.0
      %v3652 = vmax.f32 %v3619, 0.0
      %v3653 = vmax.f32 %v3620, 0.0
      %v3654 = vmax.f32 %v3621, 0.0
      %v3655 = vmax.f32 %v3622, 0.0
      %v3656 = vmax.f32 %v3623, 0.0
      %v3657 = vmax.f32 %v3624, 0.0
      %v3658 = vmax.f32 %v3625, 0.0
      %v3659 = vmax.f32 %v3626, 0.0
      %v3660 = vmax.f32 %v3627, 0.0
      %v3661 = vmax.f32 %v3628, 0.0
      %v3662 = vmax.f32 %v3629, 0.0
      %v3663 = vmax.f32 %v3630, 0.0
      %v3664 = vmax.f32 %v3631, 0.0
      %v3665 = vmax.f32 %v3632, 0.0
      %v3666 = vmax.f32 %v3633, 0.0
      %v3667 = vmax.f32 %v3634, 0.0
      %v3668 = vmax.f32 %v3635, 0.0
      %v3669 = vmax.f32 %v3636, 0.0
      %v3670 = vmax.f32 %v3637, 0.0
      %v3671 = vmax.f32 %v3638, 0.0
      %v3672 = vmax.f32 %v3639, 0.0
      %v3673 = vmax.f32 %v3640, 0.0
      %v3674 = vmax.f32 %v3641, 0.0
      %v3675 = vmax.f32 %v3642, 0.0
      %v3676 = vmax.f32 %v3643, 0.0
      %v3677 = vmax.f32 %v3644, 0.0
      %v3678 = vmax.f32 %v3645, 0.0
      %v3679 = vmax.f32 %v3646, 0.0
      %v3680 = vpack.c.bf16 %v3648, %v3647
      %v3681 = vpack.c.bf16 %v3650, %v3649
      %v3682 = vpack.c.bf16 %v3652, %v3651
      %v3683 = vpack.c.bf16 %v3654, %v3653
      %v3684 = vpack.c.bf16 %v3656, %v3655
      %v3685 = vpack.c.bf16 %v3658, %v3657
      %v3686 = vpack.c.bf16 %v3660, %v3659
      %v3687 = vpack.c.bf16 %v3662, %v3661
      %v3688 = vpack.c.bf16 %v3664, %v3663
      %v3689 = vpack.c.bf16 %v3666, %v3665
      %v3690 = vpack.c.bf16 %v3668, %v3667
      %v3691 = vpack.c.bf16 %v3670, %v3669
      %v3692 = vpack.c.bf16 %v3672, %v3671
      %v3693 = vpack.c.bf16 %v3674, %v3673
      %v3694 = vpack.c.bf16 %v3676, %v3675
      %v3695 = vpack.c.bf16 %v3678, %v3677
      %v3696 = vpack.c.bf16 %v3679, %v3679
      %v3697 = vld [vmem:[%s11] sm:$0xff]
      %v3698 = vld [vmem:[%s11 + $0x8] sm:$0xff]
      %v3699 = vld [vmem:[%s11 + $0x10] sm:$0xff]
      %v3700 = vld [vmem:[%s11 + $0x18] sm:$0xff]
      %v3701 = vld [vmem:[%s11 + $0x20] sm:$0xff]
      %v3702 = vld [vmem:[%s11 + $0x28] sm:$0xff]
      %v3703 = vld [vmem:[%s11 + $0x30] sm:$0xff]
      %v3704 = vld [vmem:[%s11 + $0x38] sm:$0xff]
      %v3705 = vld [vmem:[%s11 + $0x40] sm:$0xff]
      %v3706 = vld [vmem:[%s11 + $0x48] sm:$0xff]
      %v3707 = vld [vmem:[%s11 + $0x50] sm:$0xff]
      %v3708 = vld [vmem:[%s11 + $0x58] sm:$0xff]
      %v3709 = vld [vmem:[%s11 + $0x60] sm:$0xff]
      %v3710 = vld [vmem:[%s11 + $0x68] sm:$0xff]
      %v3711 = vld [vmem:[%s11 + $0x70] sm:$0xff]
      %v3712 = vld [vmem:[%s11 + $0x78] sm:$0xff]
      %s3713 = scalar_lea.vmem %s11, 128
      %v3714 = vld [vmem:[%s3713] sm:$0xff]
      %v3715 = vld [vmem:[%s3713 + $0x8] sm:$0xff]
      %v3716 = vld [vmem:[%s3713 + $0x10] sm:$0xff]
      %v3717 = vld [vmem:[%s3713 + $0x18] sm:$0xff]
      %v3718 = vld [vmem:[%s3713 + $0x20] sm:$0xff]
      %v3719 = vld [vmem:[%s3713 + $0x28] sm:$0xff]
      %v3720 = vld [vmem:[%s3713 + $0x30] sm:$0xff]
      %v3721 = vld [vmem:[%s3713 + $0x38] sm:$0xff]
      %v3722 = vld [vmem:[%s3713 + $0x40] sm:$0xff]
      %v3723 = vld [vmem:[%s3713 + $0x48] sm:$0xff]
      %v3724 = vld [vmem:[%s3713 + $0x50] sm:$0xff]
      %v3725 = vld [vmem:[%s3713 + $0x58] sm:$0xff]
      %v3726 = vld [vmem:[%s3713 + $0x60] sm:$0xff]
      %v3727 = vld [vmem:[%s3713 + $0x68] sm:$0xff]
      %v3728 = vld [vmem:[%s3713 + $0x70] sm:$0xff]
      %v3729 = vld [vmem:[%s3713 + $0x78] sm:$0xff]
      %v3731 = vshrl.u32 %v3680, 16
      %v3733 = vshll.u32 %v3680, 16
      %v3735 = vrot.slane %v3733, 1
      %v3736 = vor.u32 %v3731, %v3735
      %v3738 = vshll.u32 %v3681, 16
      %v3740 = vrot.slane %v3738, 1
      %v3741 = vsel %vm1502, %v3736, %v3740
      %v3742 = vshrl.u32 %v3681, 16
      %v3744 = vor.u32 %v3742, %v3740
      %v3746 = vshll.u32 %v3682, 16
      %v3748 = vrot.slane %v3746, 1
      %v3749 = vsel %vm1502, %v3744, %v3748
      %v3750 = vshrl.u32 %v3682, 16
      %v3752 = vor.u32 %v3750, %v3748
      %v3754 = vshll.u32 %v3683, 16
      %v3756 = vrot.slane %v3754, 1
      %v3757 = vsel %vm1502, %v3752, %v3756
      %v3758 = vshrl.u32 %v3683, 16
      %v3760 = vor.u32 %v3758, %v3756
      %v3762 = vshll.u32 %v3684, 16
      %v3764 = vrot.slane %v3762, 1
      %v3765 = vsel %vm1502, %v3760, %v3764
      %v3766 = vshrl.u32 %v3684, 16
      %v3768 = vor.u32 %v3766, %v3764
      %v3770 = vshll.u32 %v3685, 16
      %v3772 = vrot.slane %v3770, 1
      %v3773 = vsel %vm1502, %v3768, %v3772
      %v3774 = vshrl.u32 %v3685, 16
      %v3776 = vor.u32 %v3774, %v3772
      %v3778 = vshll.u32 %v3686, 16
      %v3780 = vrot.slane %v3778, 1
      %v3781 = vsel %vm1502, %v3776, %v3780
      %v3782 = vshrl.u32 %v3686, 16
      %v3784 = vor.u32 %v3782, %v3780
      %v3786 = vshll.u32 %v3687, 16
      %v3788 = vrot.slane %v3786, 1
      %v3789 = vsel %vm1502, %v3784, %v3788
      %v3790 = vshrl.u32 %v3687, 16
      %v3792 = vor.u32 %v3790, %v3788
      %v3794 = vshll.u32 %v3688, 16
      %v3796 = vrot.slane %v3794, 1
      %v3797 = vsel %vm1502, %v3792, %v3796
      %v3798 = vshrl.u32 %v3688, 16
      %v3800 = vor.u32 %v3798, %v3796
      %v3802 = vshll.u32 %v3689, 16
      %v3804 = vrot.slane %v3802, 1
      %v3805 = vsel %vm1502, %v3800, %v3804
      %v3806 = vshrl.u32 %v3689, 16
      %v3808 = vor.u32 %v3806, %v3804
      %v3810 = vshll.u32 %v3690, 16
      %v3812 = vrot.slane %v3810, 1
      %v3813 = vsel %vm1502, %v3808, %v3812
      %v3814 = vshrl.u32 %v3690, 16
      %v3816 = vor.u32 %v3814, %v3812
      %v3818 = vshll.u32 %v3691, 16
      %v3820 = vrot.slane %v3818, 1
      %v3821 = vsel %vm1502, %v3816, %v3820
      %v3822 = vshrl.u32 %v3691, 16
      %v3824 = vor.u32 %v3822, %v3820
      %v3826 = vshll.u32 %v3692, 16
      %v3828 = vrot.slane %v3826, 1
      %v3829 = vsel %vm1502, %v3824, %v3828
      %v3830 = vshrl.u32 %v3692, 16
      %v3832 = vor.u32 %v3830, %v3828
      %v3834 = vshll.u32 %v3693, 16
      %v3836 = vrot.slane %v3834, 1
      %v3837 = vsel %vm1502, %v3832, %v3836
      %v3838 = vshrl.u32 %v3693, 16
      %v3840 = vor.u32 %v3838, %v3836
      %v3842 = vshll.u32 %v3694, 16
      %v3844 = vrot.slane %v3842, 1
      %v3845 = vsel %vm1502, %v3840, %v3844
      %v3846 = vshrl.u32 %v3694, 16
      %v3848 = vor.u32 %v3846, %v3844
      %v3850 = vshll.u32 %v3695, 16
      %v3852 = vrot.slane %v3850, 1
      %v3853 = vsel %vm1502, %v3848, %v3852
      %v3854 = vshrl.u32 %v3695, 16
      %v3856 = vor.u32 %v3854, %v3852
      %v3858 = vshll.u32 %v3696, 16
      %v3860 = vrot.slane %v3858, 1
      %v3861 = vsel %vm1502, %v3856, %v3860
      %v3862 = vshrl.u32 %v3696, 16
      %v3864 = vor.u32 %v3862, %v3860
      %v3898 = vunpack.c.l.b16 %v3714
      %v3899 = vunpack.c.h.b16 %v3714
      %v3900 = vunpack.c.l.b16 %v3715
      %v3901 = vunpack.c.h.b16 %v3715
      %v3902 = vunpack.c.l.b16 %v3716
      %v3903 = vunpack.c.h.b16 %v3716
      %v3904 = vunpack.c.l.b16 %v3717
      %v3905 = vunpack.c.h.b16 %v3717
      %v3906 = vunpack.c.l.b16 %v3718
      %v3907 = vunpack.c.h.b16 %v3718
      %v3908 = vunpack.c.l.b16 %v3719
      %v3909 = vunpack.c.h.b16 %v3719
      %v3910 = vunpack.c.l.b16 %v3720
      %v3911 = vunpack.c.h.b16 %v3720
      %v3912 = vunpack.c.l.b16 %v3721
      %v3913 = vunpack.c.h.b16 %v3721
      %v3914 = vunpack.c.l.b16 %v3722
      %v3915 = vunpack.c.h.b16 %v3722
      %v3916 = vunpack.c.l.b16 %v3723
      %v3917 = vunpack.c.h.b16 %v3723
      %v3918 = vunpack.c.l.b16 %v3724
      %v3919 = vunpack.c.h.b16 %v3724
      %v3920 = vunpack.c.l.b16 %v3725
      %v3921 = vunpack.c.h.b16 %v3725
      %v3922 = vunpack.c.l.b16 %v3726
      %v3923 = vunpack.c.h.b16 %v3726
      %v3924 = vunpack.c.l.b16 %v3727
      %v3925 = vunpack.c.h.b16 %v3727
      %v3926 = vunpack.c.l.b16 %v3728
      %v3927 = vunpack.c.h.b16 %v3728
      %v3928 = vunpack.c.l.b16 %v3729
      %v3929 = vunpack.c.h.b16 %v3729
      %v3930 = vpack.c.b16 %v3900, %v3898
      %v3931 = vpack.c.b16 %v3901, %v3899
      %v3932 = vpack.c.b16 %v3904, %v3902
      %v3933 = vpack.c.b16 %v3905, %v3903
      %v3934 = vpack.c.b16 %v3908, %v3906
      %v3935 = vpack.c.b16 %v3909, %v3907
      %v3936 = vpack.c.b16 %v3912, %v3910
      %v3937 = vpack.c.b16 %v3913, %v3911
      %v3938 = vpack.c.b16 %v3916, %v3914
      %v3939 = vpack.c.b16 %v3917, %v3915
      %v3940 = vpack.c.b16 %v3920, %v3918
      %v3941 = vpack.c.b16 %v3921, %v3919
      %v3942 = vpack.c.b16 %v3924, %v3922
      %v3943 = vpack.c.b16 %v3925, %v3923
      %v3944 = vpack.c.b16 %v3928, %v3926
      %v3945 = vpack.c.b16 %v3929, %v3927
      %3962 = vmatprep.subr.bf16.mxu0 %v3931
      %3963 = vmatpush1.bf16.msra.mxu0 %v3930
      %3964 = vmatprep.subr.bf16.mxu0 %v3933
      %3965 = vmatpush1.bf16.msra.mxu0 %v3932
      %3966 = vmatprep.subr.bf16.mxu0 %v3935
      %3967 = vmatpush1.bf16.msra.mxu0 %v3934
      %3968 = vmatprep.subr.bf16.mxu0 %v3937
      %3969 = vmatpush1.bf16.msra.mxu0 %v3936
      %3970 = vmatprep.subr.bf16.mxu0 %v3939
      %3971 = vmatpush1.bf16.msra.mxu0 %v3938
      %3972 = vmatprep.subr.bf16.mxu0 %v3941
      %3973 = vmatpush1.bf16.msra.mxu0 %v3940
      %3974 = vmatprep.subr.bf16.mxu0 %v3943
      %3975 = vmatpush1.bf16.msra.mxu0 %v3942
      %3976 = vmatprep.subr.bf16.mxu0 %v3945
      %3977 = vmatpush1.bf16.msra.mxu0 %v3944
      %3978 = vmatprep.subr.bf16.mxu0 0
      %3979 = vmatpush1.bf16.msra.mxu0 0
      %3980 = vmatprep.subr.bf16.mxu0 0
      %3981 = vmatpush1.bf16.msra.mxu0 0
      %3982 = vmatprep.subr.bf16.mxu0 0
      %3983 = vmatpush1.bf16.msra.mxu0 0
      %3984 = vmatprep.subr.bf16.mxu0 0
      %3985 = vmatpush1.bf16.msra.mxu0 0
      %3986 = vmatprep.subr.bf16.mxu0 0
      %3987 = vmatpush1.bf16.msra.mxu0 0
      %3988 = vmatprep.subr.bf16.mxu0 0
      %3989 = vmatpush1.bf16.msra.mxu0 0
      %3990 = vmatprep.subr.bf16.mxu0 0
      %3991 = vmatpush1.bf16.msra.mxu0 0
      %3992 = vmatprep.subr.bf16.mxu0 0
      %3993 = vmatpush1.bf16.msra.mxu0 0
      %3994 = vmatprep.mubr.bf16.mxu0 0
      %3995 = vmatmul.mubr.bf16.gmra.mrb[0].mxu0 %v3741
      %v3996 = vpop.f32.mrb[0].mxu0
      %v3997 = vadd.f32 0.0, %v3996
      %v3998 = vpop.f32.mrb[0].mxu0
      %v3999 = vadd.f32 0.0, %v3998
      %v4000 = vpop.f32.mrb[0].mxu0
      %v4001 = vadd.f32 0.0, %v4000
      %v4002 = vpop.f32.mrb[0].mxu0
      %v4003 = vadd.f32 0.0, %v4002
      %4004 = vmatprep.mubr.bf16.mxu0 0
      %4005 = vmatmul.mubr.bf16.gmra.mrb[0].mxu0 %v3749
      %v4006 = vpop.f32.mrb[0].mxu0
      %v4007 = vadd.f32 0.0, %v4006
      %v4008 = vpop.f32.mrb[0].mxu0
      %v4009 = vadd.f32 0.0, %v4008
      %v4010 = vpop.f32.mrb[0].mxu0
      %v4011 = vadd.f32 0.0, %v4010
      %v4012 = vpop.f32.mrb[0].mxu0
      %v4013 = vadd.f32 0.0, %v4012
      %4014 = vmatprep.mubr.bf16.mxu0 0
      %4015 = vmatmul.mubr.bf16.gmra.mrb[0].mxu0 %v3757
      %v4016 = vpop.f32.mrb[0].mxu0
      %v4017 = vadd.f32 0.0, %v4016
      %v4018 = vpop.f32.mrb[0].mxu0
      %v4019 = vadd.f32 0.0, %v4018
      %v4020 = vpop.f32.mrb[0].mxu0
      %v4021 = vadd.f32 0.0, %v4020
      %v4022 = vpop.f32.mrb[0].mxu0
      %v4023 = vadd.f32 0.0, %v4022
      %4024 = vmatprep.mubr.bf16.mxu0 0
      %4025 = vmatmul.mubr.bf16.gmra.mrb[0].mxu0 %v3765
      %v4026 = vpop.f32.mrb[0].mxu0
      %v4027 = vadd.f32 0.0, %v4026
      %v4028 = vpop.f32.mrb[0].mxu0
      %v4029 = vadd.f32 0.0, %v4028
      %v4030 = vpop.f32.mrb[0].mxu0
      %v4031 = vadd.f32 0.0, %v4030
      %v4032 = vpop.f32.mrb[0].mxu0
      %v4033 = vadd.f32 0.0, %v4032
      %4034 = vmatprep.mubr.bf16.mxu0 0
      %4035 = vmatmul.mubr.bf16.gmra.mrb[0].mxu0 %v3773
      %v4036 = vpop.f32.mrb[0].mxu0
      %v4037 = vadd.f32 0.0, %v4036
      %v4038 = vpop.f32.mrb[0].mxu0
      %v4039 = vadd.f32 0.0, %v4038
      %v4040 = vpop.f32.mrb[0].mxu0
      %v4041 = vadd.f32 0.0, %v4040
      %v4042 = vpop.f32.mrb[0].mxu0
      %v4043 = vadd.f32 0.0, %v4042
      %4044 = vmatprep.mubr.bf16.mxu0 0
      %4045 = vmatmul.mubr.bf16.gmra.mrb[0].mxu0 %v3781
      %v4046 = vpop.f32.mrb[0].mxu0
      %v4047 = vadd.f32 0.0, %v4046
      %v4048 = vpop.f32.mrb[0].mxu0
      %v4049 = vadd.f32 0.0, %v4048
      %v4050 = vpop.f32.mrb[0].mxu0
      %v4051 = vadd.f32 0.0, %v4050
      %v4052 = vpop.f32.mrb[0].mxu0
      %v4053 = vadd.f32 0.0, %v4052
      %4054 = vmatprep.mubr.bf16.mxu0 0
      %4055 = vmatmul.mubr.bf16.gmra.mrb[0].mxu0 %v3789
      %v4056 = vpop.f32.mrb[0].mxu0
      %v4057 = vadd.f32 0.0, %v4056
      %v4058 = vpop.f32.mrb[0].mxu0
      %v4059 = vadd.f32 0.0, %v4058
      %v4060 = vpop.f32.mrb[0].mxu0
      %v4061 = vadd.f32 0.0, %v4060
      %v4062 = vpop.f32.mrb[0].mxu0
      %v4063 = vadd.f32 0.0, %v4062
      %4064 = vmatprep.mubr.bf16.mxu0 0
      %4065 = vmatmul.mubr.bf16.gmra.mrb[0].mxu0 %v3797
      %v4066 = vpop.f32.mrb[0].mxu0
      %v4067 = vadd.f32 0.0, %v4066
      %v4068 = vpop.f32.mrb[0].mxu0
      %v4069 = vadd.f32 0.0, %v4068
      %v4070 = vpop.f32.mrb[0].mxu0
      %v4071 = vadd.f32 0.0, %v4070
      %v4072 = vpop.f32.mrb[0].mxu0
      %v4073 = vadd.f32 0.0, %v4072
      %4074 = vmatprep.mubr.bf16.mxu0 0
      %4075 = vmatmul.mubr.bf16.gmra.mrb[0].mxu0 %v3805
      %v4076 = vpop.f32.mrb[0].mxu0
      %v4077 = vadd.f32 0.0, %v4076
      %v4078 = vpop.f32.mrb[0].mxu0
      %v4079 = vadd.f32 0.0, %v4078
      %v4080 = vpop.f32.mrb[0].mxu0
      %v4081 = vadd.f32 0.0, %v4080
      %v4082 = vpop.f32.mrb[0].mxu0
      %v4083 = vadd.f32 0.0, %v4082
      %4084 = vmatprep.mubr.bf16.mxu0 0
      %4085 = vmatmul.mubr.bf16.gmra.mrb[0].mxu0 %v3813
      %v4086 = vpop.f32.mrb[0].mxu0
      %v4087 = vadd.f32 0.0, %v4086
      %v4088 = vpop.f32.mrb[0].mxu0
      %v4089 = vadd.f32 0.0, %v4088
      %v4090 = vpop.f32.mrb[0].mxu0
      %v4091 = vadd.f32 0.0, %v4090
      %v4092 = vpop.f32.mrb[0].mxu0
      %v4093 = vadd.f32 0.0, %v4092
      %4094 = vmatprep.mubr.bf16.mxu0 0
      %4095 = vmatmul.mubr.bf16.gmra.mrb[0].mxu0 %v3821
      %v4096 = vpop.f32.mrb[0].mxu0
      %v4097 = vadd.f32 0.0, %v4096
      %v4098 = vpop.f32.mrb[0].mxu0
      %v4099 = vadd.f32 0.0, %v4098
      %v4100 = vpop.f32.mrb[0].mxu0
      %v4101 = vadd.f32 0.0, %v4100
      %v4102 = vpop.f32.mrb[0].mxu0
      %v4103 = vadd.f32 0.0, %v4102
      %4104 = vmatprep.mubr.bf16.mxu0 0
      %4105 = vmatmul.mubr.bf16.gmra.mrb[0].mxu0 %v3829
      %v4106 = vpop.f32.mrb[0].mxu0
      %v4107 = vadd.f32 0.0, %v4106
      %v4108 = vpop.f32.mrb[0].mxu0
      %v4109 = vadd.f32 0.0, %v4108
      %v4110 = vpop.f32.mrb[0].mxu0
      %v4111 = vadd.f32 0.0, %v4110
      %v4112 = vpop.f32.mrb[0].mxu0
      %v4113 = vadd.f32 0.0, %v4112
      %4114 = vmatprep.mubr.bf16.mxu0 0
      %4115 = vmatmul.mubr.bf16.gmra.mrb[0].mxu0 %v3837
      %v4116 = vpop.f32.mrb[0].mxu0
      %v4117 = vadd.f32 0.0, %v4116
      %v4118 = vpop.f32.mrb[0].mxu0
      %v4119 = vadd.f32 0.0, %v4118
      %v4120 = vpop.f32.mrb[0].mxu0
      %v4121 = vadd.f32 0.0, %v4120
      %v4122 = vpop.f32.mrb[0].mxu0
      %v4123 = vadd.f32 0.0, %v4122
      %4124 = vmatprep.mubr.bf16.mxu0 0
      %4125 = vmatmul.mubr.bf16.gmra.mrb[0].mxu0 %v3845
      %v4126 = vpop.f32.mrb[0].mxu0
      %v4127 = vadd.f32 0.0, %v4126
      %v4128 = vpop.f32.mrb[0].mxu0
      %v4129 = vadd.f32 0.0, %v4128
      %v4130 = vpop.f32.mrb[0].mxu0
      %v4131 = vadd.f32 0.0, %v4130
      %v4132 = vpop.f32.mrb[0].mxu0
      %v4133 = vadd.f32 0.0, %v4132
      %4134 = vmatprep.mubr.bf16.mxu0 0
      %4135 = vmatmul.mubr.bf16.gmra.mrb[0].mxu0 %v3853
      %v4136 = vpop.f32.mrb[0].mxu0
      %v4137 = vadd.f32 0.0, %v4136
      %v4138 = vpop.f32.mrb[0].mxu0
      %v4139 = vadd.f32 0.0, %v4138
      %v4140 = vpop.f32.mrb[0].mxu0
      %v4141 = vadd.f32 0.0, %v4140
      %v4142 = vpop.f32.mrb[0].mxu0
      %v4143 = vadd.f32 0.0, %v4142
      %4144 = vmatprep.mubr.bf16.mxu0 0
      %4145 = vmatmul.mubr.bf16.gmra.mrb[0].mxu0 %v3861
      %v4146 = vpop.f32.mrb[0].mxu0
      %v4147 = vadd.f32 0.0, %v4146
      %v4148 = vpop.f32.mrb[0].mxu0
      %v4149 = vadd.f32 0.0, %v4148
      %v4150 = vpop.f32.mrb[0].mxu0
      %v4151 = vadd.f32 0.0, %v4150
      %v4152 = vpop.f32.mrb[0].mxu0
      %v4153 = vadd.f32 0.0, %v4152
      %4154 = vmatprep.mubr.bf16.mxu0 0
      %4155 = vmatmul.mubr.bf16.gmra.mrb[0].mxu0 %v3864
      %v4156 = vpop.f32.mrb[0].mxu0
      %v4157 = vadd.f32 0.0, %v4156
      %v4158 = vpop.f32.mrb[0].mxu0
      %v4159 = vadd.f32 0.0, %v4158
      %v4160 = vpop.f32.mrb[0].mxu0
      %v4161 = vpop.f32.mrb[0].mxu0
      %4162 = vdwg.mxu0
      %v4179 = vunpack.c.l.b16 %v3697
      %v4180 = vunpack.c.h.b16 %v3697
      %v4181 = vunpack.c.l.b16 %v3698
      %v4182 = vunpack.c.h.b16 %v3698
      %v4183 = vunpack.c.l.b16 %v3699
      %v4184 = vunpack.c.h.b16 %v3699
      %v4185 = vunpack.c.l.b16 %v3700
      %v4186 = vunpack.c.h.b16 %v3700
      %v4187 = vunpack.c.l.b16 %v3701
      %v4188 = vunpack.c.h.b16 %v3701
      %v4189 = vunpack.c.l.b16 %v3702
      %v4190 = vunpack.c.h.b16 %v3702
      %v4191 = vunpack.c.l.b16 %v3703
      %v4192 = vunpack.c.h.b16 %v3703
      %v4193 = vunpack.c.l.b16 %v3704
      %v4194 = vunpack.c.h.b16 %v3704
      %v4195 = vunpack.c.l.b16 %v3705
      %v4196 = vunpack.c.h.b16 %v3705
      %v4197 = vunpack.c.l.b16 %v3706
      %v4198 = vunpack.c.h.b16 %v3706
      %v4199 = vunpack.c.l.b16 %v3707
      %v4200 = vunpack.c.h.b16 %v3707
      %v4201 = vunpack.c.l.b16 %v3708
      %v4202 = vunpack.c.h.b16 %v3708
      %v4203 = vunpack.c.l.b16 %v3709
      %v4204 = vunpack.c.h.b16 %v3709
      %v4205 = vunpack.c.l.b16 %v3710
      %v4206 = vunpack.c.h.b16 %v3710
      %v4207 = vunpack.c.l.b16 %v3711
      %v4208 = vunpack.c.h.b16 %v3711
      %v4209 = vunpack.c.l.b16 %v3712
      %v4210 = vunpack.c.h.b16 %v3712
      %v4211 = vpack.c.b16 %v4181, %v4179
      %v4212 = vpack.c.b16 %v4182, %v4180
      %v4213 = vpack.c.b16 %v4185, %v4183
      %v4214 = vpack.c.b16 %v4186, %v4184
      %v4215 = vpack.c.b16 %v4189, %v4187
      %v4216 = vpack.c.b16 %v4190, %v4188
      %v4217 = vpack.c.b16 %v4193, %v4191
      %v4218 = vpack.c.b16 %v4194, %v4192
      %v4219 = vpack.c.b16 %v4197, %v4195
      %v4220 = vpack.c.b16 %v4198, %v4196
      %v4221 = vpack.c.b16 %v4201, %v4199
      %v4222 = vpack.c.b16 %v4202, %v4200
      %v4223 = vpack.c.b16 %v4205, %v4203
      %v4224 = vpack.c.b16 %v4206, %v4204
      %v4225 = vpack.c.b16 %v4209, %v4207
      %v4226 = vpack.c.b16 %v4210, %v4208
      %4243 = vmatprep.subr.bf16.mxu0 %v4212
      %4244 = vmatpush1.bf16.msra.mxu0 %v4211
      %4245 = vmatprep.subr.bf16.mxu0 %v4214
      %4246 = vmatpush1.bf16.msra.mxu0 %v4213
      %4247 = vmatprep.subr.bf16.mxu0 %v4216
      %4248 = vmatpush1.bf16.msra.mxu0 %v4215
      %4249 = vmatprep.subr.bf16.mxu0 %v4218
      %4250 = vmatpush1.bf16.msra.mxu0 %v4217
      %4251 = vmatprep.subr.bf16.mxu0 %v4220
      %4252 = vmatpush1.bf16.msra.mxu0 %v4219
      %4253 = vmatprep.subr.bf16.mxu0 %v4222
      %4254 = vmatpush1.bf16.msra.mxu0 %v4221
      %4255 = vmatprep.subr.bf16.mxu0 %v4224
      %4256 = vmatpush1.bf16.msra.mxu0 %v4223
      %4257 = vmatprep.subr.bf16.mxu0 %v4226
      %4258 = vmatpush1.bf16.msra.mxu0 %v4225
      %4259 = vmatprep.subr.bf16.mxu0 0
      %4260 = vmatpush1.bf16.msra.mxu0 0
      %4261 = vmatprep.subr.bf16.mxu0 0
      %4262 = vmatpush1.bf16.msra.mxu0 0
      %4263 = vmatprep.subr.bf16.mxu0 0
      %4264 = vmatpush1.bf16.msra.mxu0 0
      %4265 = vmatprep.subr.bf16.mxu0 0
      %4266 = vmatpush1.bf16.msra.mxu0 0
      %4267 = vmatprep.subr.bf16.mxu0 0
      %4268 = vmatpush1.bf16.msra.mxu0 0
      %4269 = vmatprep.subr.bf16.mxu0 0
      %4270 = vmatpush1.bf16.msra.mxu0 0
      %4271 = vmatprep.subr.bf16.mxu0 0
      %4272 = vmatpush1.bf16.msra.mxu0 0
      %4273 = vmatprep.subr.bf16.mxu0 0
      %4274 = vmatpush1.bf16.msra.mxu0 0
      %4275 = vmatprep.mubr.bf16.mxu0 0
      %4276 = vmatmul.mubr.bf16.gmra.mrb[0].mxu0 %v3680
      %v4277 = vpop.f32.mrb[0].mxu0
      %v4278 = vadd.f32 %v3997, %v4277
      %v4279 = vpop.f32.mrb[0].mxu0
      %v4280 = vadd.f32 %v3999, %v4279
      %v4281 = vpop.f32.mrb[0].mxu0
      %v4282 = vadd.f32 %v4001, %v4281
      %v4283 = vpop.f32.mrb[0].mxu0
      %v4284 = vadd.f32 %v4003, %v4283
      %4285 = vmatprep.mubr.bf16.mxu0 0
      %4286 = vmatmul.mubr.bf16.gmra.mrb[0].mxu0 %v3681
      %v4287 = vpop.f32.mrb[0].mxu0
      %v4288 = vadd.f32 %v4007, %v4287
      %v4289 = vpop.f32.mrb[0].mxu0
      %v4290 = vadd.f32 %v4009, %v4289
      %v4291 = vpop.f32.mrb[0].mxu0
      %v4292 = vadd.f32 %v4011, %v4291
      %v4293 = vpop.f32.mrb[0].mxu0
      %v4294 = vadd.f32 %v4013, %v4293
      %4295 = vmatprep.mubr.bf16.mxu0 0
      %4296 = vmatmul.mubr.bf16.gmra.mrb[0].mxu0 %v3682
      %v4297 = vpop.f32.mrb[0].mxu0
      %v4298 = vadd.f32 %v4017, %v4297
      %v4299 = vpop.f32.mrb[0].mxu0
      %v4300 = vadd.f32 %v4019, %v4299
      %v4301 = vpop.f32.mrb[0].mxu0
      %v4302 = vadd.f32 %v4021, %v4301
      %v4303 = vpop.f32.mrb[0].mxu0
      %v4304 = vadd.f32 %v4023, %v4303
      %4305 = vmatprep.mubr.bf16.mxu0 0
      %4306 = vmatmul.mubr.bf16.gmra.mrb[0].mxu0 %v3683
      %v4307 = vpop.f32.mrb[0].mxu0
      %v4308 = vadd.f32 %v4027, %v4307
      %v4309 = vpop.f32.mrb[0].mxu0
      %v4310 = vadd.f32 %v4029, %v4309
      %v4311 = vpop.f32.mrb[0].mxu0
      %v4312 = vadd.f32 %v4031, %v4311
      %v4313 = vpop.f32.mrb[0].mxu0
      %v4314 = vadd.f32 %v4033, %v4313
      %4315 = vmatprep.mubr.bf16.mxu0 0
      %4316 = vmatmul.mubr.bf16.gmra.mrb[0].mxu0 %v3684
      %v4317 = vpop.f32.mrb[0].mxu0
      %v4318 = vadd.f32 %v4037, %v4317
      %v4319 = vpop.f32.mrb[0].mxu0
      %v4320 = vadd.f32 %v4039, %v4319
      %v4321 = vpop.f32.mrb[0].mxu0
      %v4322 = vadd.f32 %v4041, %v4321
      %v4323 = vpop.f32.mrb[0].mxu0
      %v4324 = vadd.f32 %v4043, %v4323
      %4325 = vmatprep.mubr.bf16.mxu0 0
      %4326 = vmatmul.mubr.bf16.gmra.mrb[0].mxu0 %v3685
      %v4327 = vpop.f32.mrb[0].mxu0
      %v4328 = vadd.f32 %v4047, %v4327
      %v4329 = vpop.f32.mrb[0].mxu0
      %v4330 = vadd.f32 %v4049, %v4329
      %v4331 = vpop.f32.mrb[0].mxu0
      %v4332 = vadd.f32 %v4051, %v4331
      %v4333 = vpop.f32.mrb[0].mxu0
      %v4334 = vadd.f32 %v4053, %v4333
      %4335 = vmatprep.mubr.bf16.mxu0 0
      %4336 = vmatmul.mubr.bf16.gmra.mrb[0].mxu0 %v3686
      %v4337 = vpop.f32.mrb[0].mxu0
      %v4338 = vadd.f32 %v4057, %v4337
      %v4339 = vpop.f32.mrb[0].mxu0
      %v4340 = vadd.f32 %v4059, %v4339
      %v4341 = vpop.f32.mrb[0].mxu0
      %v4342 = vadd.f32 %v4061, %v4341
      %v4343 = vpop.f32.mrb[0].mxu0
      %v4344 = vadd.f32 %v4063, %v4343
      %4345 = vmatprep.mubr.bf16.mxu0 0
      %4346 = vmatmul.mubr.bf16.gmra.mrb[0].mxu0 %v3687
      %v4347 = vpop.f32.mrb[0].mxu0
      %v4348 = vadd.f32 %v4067, %v4347
      %v4349 = vpop.f32.mrb[0].mxu0
      %v4350 = vadd.f32 %v4069, %v4349
      %v4351 = vpop.f32.mrb[0].mxu0
      %v4352 = vadd.f32 %v4071, %v4351
      %v4353 = vpop.f32.mrb[0].mxu0
      %v4354 = vadd.f32 %v4073, %v4353
      %4355 = vmatprep.mubr.bf16.mxu0 0
      %4356 = vmatmul.mubr.bf16.gmra.mrb[0].mxu0 %v3688
      %v4357 = vpop.f32.mrb[0].mxu0
      %v4358 = vadd.f32 %v4077, %v4357
      %v4359 = vpop.f32.mrb[0].mxu0
      %v4360 = vadd.f32 %v4079, %v4359
      %v4361 = vpop.f32.mrb[0].mxu0
      %v4362 = vadd.f32 %v4081, %v4361
      %v4363 = vpop.f32.mrb[0].mxu0
      %v4364 = vadd.f32 %v4083, %v4363
      %4365 = vmatprep.mubr.bf16.mxu0 0
      %4366 = vmatmul.mubr.bf16.gmra.mrb[0].mxu0 %v3689
      %v4367 = vpop.f32.mrb[0].mxu0
      %v4368 = vadd.f32 %v4087, %v4367
      %v4369 = vpop.f32.mrb[0].mxu0
      %v4370 = vadd.f32 %v4089, %v4369
      %v4371 = vpop.f32.mrb[0].mxu0
      %v4372 = vadd.f32 %v4091, %v4371
      %v4373 = vpop.f32.mrb[0].mxu0
      %v4374 = vadd.f32 %v4093, %v4373
      %4375 = vmatprep.mubr.bf16.mxu0 0
      %4376 = vmatmul.mubr.bf16.gmra.mrb[0].mxu0 %v3690
      %v4377 = vpop.f32.mrb[0].mxu0
      %v4378 = vadd.f32 %v4097, %v4377
      %v4379 = vpop.f32.mrb[0].mxu0
      %v4380 = vadd.f32 %v4099, %v4379
      %v4381 = vpop.f32.mrb[0].mxu0
      %v4382 = vadd.f32 %v4101, %v4381
      %v4383 = vpop.f32.mrb[0].mxu0
      %v4384 = vadd.f32 %v4103, %v4383
      %4385 = vmatprep.mubr.bf16.mxu0 0
      %4386 = vmatmul.mubr.bf16.gmra.mrb[0].mxu0 %v3691
      %v4387 = vpop.f32.mrb[0].mxu0
      %v4388 = vadd.f32 %v4107, %v4387
      %v4389 = vpop.f32.mrb[0].mxu0
      %v4390 = vadd.f32 %v4109, %v4389
      %v4391 = vpop.f32.mrb[0].mxu0
      %v4392 = vadd.f32 %v4111, %v4391
      %v4393 = vpop.f32.mrb[0].mxu0
      %v4394 = vadd.f32 %v4113, %v4393
      %4395 = vmatprep.mubr.bf16.mxu0 0
      %4396 = vmatmul.mubr.bf16.gmra.mrb[0].mxu0 %v3692
      %v4397 = vpop.f32.mrb[0].mxu0
      %v4398 = vadd.f32 %v4117, %v4397
      %v4399 = vpop.f32.mrb[0].mxu0
      %v4400 = vadd.f32 %v4119, %v4399
      %v4401 = vpop.f32.mrb[0].mxu0
      %v4402 = vadd.f32 %v4121, %v4401
      %v4403 = vpop.f32.mrb[0].mxu0
      %v4404 = vadd.f32 %v4123, %v4403
      %4405 = vmatprep.mubr.bf16.mxu0 0
      %4406 = vmatmul.mubr.bf16.gmra.mrb[0].mxu0 %v3693
      %v4407 = vpop.f32.mrb[0].mxu0
      %v4408 = vadd.f32 %v4127, %v4407
      %v4409 = vpop.f32.mrb[0].mxu0
      %v4410 = vadd.f32 %v4129, %v4409
      %v4411 = vpop.f32.mrb[0].mxu0
      %v4412 = vadd.f32 %v4131, %v4411
      %v4413 = vpop.f32.mrb[0].mxu0
      %v4414 = vadd.f32 %v4133, %v4413
      %4415 = vmatprep.mubr.bf16.mxu0 0
      %4416 = vmatmul.mubr.bf16.gmra.mrb[0].mxu0 %v3694
      %v4417 = vpop.f32.mrb[0].mxu0
      %v4418 = vadd.f32 %v4137, %v4417
      %v4419 = vpop.f32.mrb[0].mxu0
      %v4420 = vadd.f32 %v4139, %v4419
      %v4421 = vpop.f32.mrb[0].mxu0
      %v4422 = vadd.f32 %v4141, %v4421
      %v4423 = vpop.f32.mrb[0].mxu0
      %v4424 = vadd.f32 %v4143, %v4423
      %4425 = vmatprep.mubr.bf16.mxu0 0
      %4426 = vmatmul.mubr.bf16.gmra.mrb[0].mxu0 %v3695
      %v4427 = vpop.f32.mrb[0].mxu0
      %v4428 = vadd.f32 %v4147, %v4427
      %v4429 = vpop.f32.mrb[0].mxu0
      %v4430 = vadd.f32 %v4149, %v4429
      %v4431 = vpop.f32.mrb[0].mxu0
      %v4432 = vadd.f32 %v4151, %v4431
      %v4433 = vpop.f32.mrb[0].mxu0
      %v4434 = vadd.f32 %v4153, %v4433
      %4435 = vmatprep.mubr.bf16.mxu0 0
      %4436 = vmatmul.mubr.bf16.gmra.mrb[0].mxu0 %v3696
      %v4437 = vpop.f32.mrb[0].mxu0
      %v4438 = vadd.f32 %v4157, %v4437
      %v4439 = vpop.f32.mrb[0].mxu0
      %v4440 = vadd.f32 %v4159, %v4439
      %v4441 = vpop.f32.mrb[0].mxu0
      %v4442 = vpop.f32.mrb[0].mxu0
      %4443 = vdwg.mxu0
      %s4444 = scalar_lea.vmem %s11, 256
      %v4445 = vld [vmem:[%s4444] sm:$0xff]
      %v4446 = vld [vmem:[%s4444 + $0x8] sm:$0xff]
      %v4447 = vld [vmem:[%s4444 + $0x10] sm:$0xff]
      %v4448 = vld [vmem:[%s4444 + $0x18] sm:$0xff]
      %v4449 = vld [vmem:[%s4444 + $0x20] sm:$0xff]
      %v4450 = vld [vmem:[%s4444 + $0x28] sm:$0xff]
      %v4451 = vld [vmem:[%s4444 + $0x30] sm:$0xff]
      %v4452 = vld [vmem:[%s4444 + $0x38] sm:$0xff]
      %v4453 = vld [vmem:[%s4444 + $0x40] sm:$0xff]
      %v4454 = vld [vmem:[%s4444 + $0x48] sm:$0xff]
      %v4455 = vld [vmem:[%s4444 + $0x50] sm:$0xff]
      %v4456 = vld [vmem:[%s4444 + $0x58] sm:$0xff]
      %v4457 = vld [vmem:[%s4444 + $0x60] sm:$0xff]
      %v4458 = vld [vmem:[%s4444 + $0x68] sm:$0xff]
      %v4459 = vld [vmem:[%s4444 + $0x70] sm:$0xff]
      %v4460 = vld [vmem:[%s4444 + $0x78] sm:$0xff]
      %v4478 = vrot.slane %v3680, 1
      %v4479 = vrot.slane %v3681, 1
      %v4480 = vsel %vm2121, %v4478, %v4479
      %v4481 = vrot.slane %v3682, 1
      %v4482 = vsel %vm2121, %v4479, %v4481
      %v4483 = vrot.slane %v3683, 1
      %v4484 = vsel %vm2121, %v4481, %v4483
      %v4485 = vrot.slane %v3684, 1
      %v4486 = vsel %vm2121, %v4483, %v4485
      %v4487 = vrot.slane %v3685, 1
      %v4488 = vsel %vm2121, %v4485, %v4487
      %v4489 = vrot.slane %v3686, 1
      %v4490 = vsel %vm2121, %v4487, %v4489
      %v4491 = vrot.slane %v3687, 1
      %v4492 = vsel %vm2121, %v4489, %v4491
      %v4493 = vrot.slane %v3688, 1
      %v4494 = vsel %vm2121, %v4491, %v4493
      %v4495 = vrot.slane %v3689, 1
      %v4496 = vsel %vm2121, %v4493, %v4495
      %v4497 = vrot.slane %v3690, 1
      %v4498 = vsel %vm2121, %v4495, %v4497
      %v4499 = vrot.slane %v3691, 1
      %v4500 = vsel %vm2121, %v4497, %v4499
      %v4501 = vrot.slane %v3692, 1
      %v4502 = vsel %vm2121, %v4499, %v4501
      %v4503 = vrot.slane %v3693, 1
      %v4504 = vsel %vm2121, %v4501, %v4503
      %v4505 = vrot.slane %v3694, 1
      %v4506 = vsel %vm2121, %v4503, %v4505
      %v4507 = vrot.slane %v3695, 1
      %v4508 = vsel %vm2121, %v4505, %v4507
      %v4509 = vrot.slane %v3696, 1
      %v4510 = vsel %vm2121, %v4507, %v4509
      %v4544 = vunpack.c.l.b16 %v4445
      %v4545 = vunpack.c.h.b16 %v4445
      %v4546 = vunpack.c.l.b16 %v4446
      %v4547 = vunpack.c.h.b16 %v4446
      %v4548 = vunpack.c.l.b16 %v4447
      %v4549 = vunpack.c.h.b16 %v4447
      %v4550 = vunpack.c.l.b16 %v4448
      %v4551 = vunpack.c.h.b16 %v4448
      %v4552 = vunpack.c.l.b16 %v4449
      %v4553 = vunpack.c.h.b16 %v4449
      %v4554 = vunpack.c.l.b16 %v4450
      %v4555 = vunpack.c.h.b16 %v4450
      %v4556 = vunpack.c.l.b16 %v4451
      %v4557 = vunpack.c.h.b16 %v4451
      %v4558 = vunpack.c.l.b16 %v4452
      %v4559 = vunpack.c.h.b16 %v4452
      %v4560 = vunpack.c.l.b16 %v4453
      %v4561 = vunpack.c.h.b16 %v4453
      %v4562 = vunpack.c.l.b16 %v4454
      %v4563 = vunpack.c.h.b16 %v4454
      %v4564 = vunpack.c.l.b16 %v4455
      %v4565 = vunpack.c.h.b16 %v4455
      %v4566 = vunpack.c.l.b16 %v4456
      %v4567 = vunpack.c.h.b16 %v4456
      %v4568 = vunpack.c.l.b16 %v4457
      %v4569 = vunpack.c.h.b16 %v4457
      %v4570 = vunpack.c.l.b16 %v4458
      %v4571 = vunpack.c.h.b16 %v4458
      %v4572 = vunpack.c.l.b16 %v4459
      %v4573 = vunpack.c.h.b16 %v4459
      %v4574 = vunpack.c.l.b16 %v4460
      %v4575 = vunpack.c.h.b16 %v4460
      %v4576 = vpack.c.b16 %v4546, %v4544
      %v4577 = vpack.c.b16 %v4547, %v4545
      %v4578 = vpack.c.b16 %v4550, %v4548
      %v4579 = vpack.c.b16 %v4551, %v4549
      %v4580 = vpack.c.b16 %v4554, %v4552
      %v4581 = vpack.c.b16 %v4555, %v4553
      %v4582 = vpack.c.b16 %v4558, %v4556
      %v4583 = vpack.c.b16 %v4559, %v4557
      %v4584 = vpack.c.b16 %v4562, %v4560
      %v4585 = vpack.c.b16 %v4563, %v4561
      %v4586 = vpack.c.b16 %v4566, %v4564
      %v4587 = vpack.c.b16 %v4567, %v4565
      %v4588 = vpack.c.b16 %v4570, %v4568
      %v4589 = vpack.c.b16 %v4571, %v4569
      %v4590 = vpack.c.b16 %v4574, %v4572
      %v4591 = vpack.c.b16 %v4575, %v4573
      %4608 = vmatprep.subr.bf16.mxu0 %v4577
      %4609 = vmatpush1.bf16.msra.mxu0 %v4576
      %4610 = vmatprep.subr.bf16.mxu0 %v4579
      %4611 = vmatpush1.bf16.msra.mxu0 %v4578
      %4612 = vmatprep.subr.bf16.mxu0 %v4581
      %4613 = vmatpush1.bf16.msra.mxu0 %v4580
      %4614 = vmatprep.subr.bf16.mxu0 %v4583
      %4615 = vmatpush1.bf16.msra.mxu0 %v4582
      %4616 = vmatprep.subr.bf16.mxu0 %v4585
      %4617 = vmatpush1.bf16.msra.mxu0 %v4584
      %4618 = vmatprep.subr.bf16.mxu0 %v4587
      %4619 = vmatpush1.bf16.msra.mxu0 %v4586
      %4620 = vmatprep.subr.bf16.mxu0 %v4589
      %4621 = vmatpush1.bf16.msra.mxu0 %v4588
      %4622 = vmatprep.subr.bf16.mxu0 %v4591
      %4623 = vmatpush1.bf16.msra.mxu0 %v4590
      %4624 = vmatprep.subr.bf16.mxu0 0
      %4625 = vmatpush1.bf16.msra.mxu0 0
      %4626 = vmatprep.subr.bf16.mxu0 0
      %4627 = vmatpush1.bf16.msra.mxu0 0
      %4628 = vmatprep.subr.bf16.mxu0 0
      %4629 = vmatpush1.bf16.msra.mxu0 0
      %4630 = vmatprep.subr.bf16.mxu0 0
      %4631 = vmatpush1.bf16.msra.mxu0 0
      %4632 = vmatprep.subr.bf16.mxu0 0
      %4633 = vmatpush1.bf16.msra.mxu0 0
      %4634 = vmatprep.subr.bf16.mxu0 0
      %4635 = vmatpush1.bf16.msra.mxu0 0
      %4636 = vmatprep.subr.bf16.mxu0 0
      %4637 = vmatpush1.bf16.msra.mxu0 0
      %4638 = vmatprep.subr.bf16.mxu0 0
      %4639 = vmatpush1.bf16.msra.mxu0 0
      %4640 = vmatprep.mubr.bf16.mxu0 0
      %4641 = vmatmul.mubr.bf16.gmra.mrb[0].mxu0 %v4480
      %v4642 = vpop.f32.mrb[0].mxu0
      %v4643 = vadd.f32 0.0, %v4642
      %v4644 = vpop.f32.mrb[0].mxu0
      %v4645 = vadd.f32 0.0, %v4644
      %v4646 = vpop.f32.mrb[0].mxu0
      %v4647 = vadd.f32 0.0, %v4646
      %v4648 = vpop.f32.mrb[0].mxu0
      %v4649 = vadd.f32 0.0, %v4648
      %4650 = vmatprep.mubr.bf16.mxu0 0
      %4651 = vmatmul.mubr.bf16.gmra.mrb[0].mxu0 %v4482
      %v4652 = vpop.f32.mrb[0].mxu0
      %v4653 = vadd.f32 0.0, %v4652
      %v4654 = vpop.f32.mrb[0].mxu0
      %v4655 = vadd.f32 0.0, %v4654
      %v4656 = vpop.f32.mrb[0].mxu0
      %v4657 = vadd.f32 0.0, %v4656
      %v4658 = vpop.f32.mrb[0].mxu0
      %v4659 = vadd.f32 0.0, %v4658
      %4660 = vmatprep.mubr.bf16.mxu0 0
      %4661 = vmatmul.mubr.bf16.gmra.mrb[0].mxu0 %v4484
      %v4662 = vpop.f32.mrb[0].mxu0
      %v4663 = vadd.f32 0.0, %v4662
      %v4664 = vpop.f32.mrb[0].mxu0
      %v4665 = vadd.f32 0.0, %v4664
      %v4666 = vpop.f32.mrb[0].mxu0
      %v4667 = vadd.f32 0.0, %v4666
      %v4668 = vpop.f32.mrb[0].mxu0
      %v4669 = vadd.f32 0.0, %v4668
      %4670 = vmatprep.mubr.bf16.mxu0 0
      %4671 = vmatmul.mubr.bf16.gmra.mrb[0].mxu0 %v4486
      %v4672 = vpop.f32.mrb[0].mxu0
      %v4673 = vadd.f32 0.0, %v4672
      %v4674 = vpop.f32.mrb[0].mxu0
      %v4675 = vadd.f32 0.0, %v4674
      %v4676 = vpop.f32.mrb[0].mxu0
      %v4677 = vadd.f32 0.0, %v4676
      %v4678 = vpop.f32.mrb[0].mxu0
      %v4679 = vadd.f32 0.0, %v4678
      %4680 = vmatprep.mubr.bf16.mxu0 0
      %4681 = vmatmul.mubr.bf16.gmra.mrb[0].mxu0 %v4488
      %v4682 = vpop.f32.mrb[0].mxu0
      %v4683 = vadd.f32 0.0, %v4682
      %v4684 = vpop.f32.mrb[0].mxu0
      %v4685 = vadd.f32 0.0, %v4684
      %v4686 = vpop.f32.mrb[0].mxu0
      %v4687 = vadd.f32 0.0, %v4686
      %v4688 = vpop.f32.mrb[0].mxu0
      %v4689 = vadd.f32 0.0, %v4688
      %4690 = vmatprep.mubr.bf16.mxu0 0
      %4691 = vmatmul.mubr.bf16.gmra.mrb[0].mxu0 %v4490
      %v4692 = vpop.f32.mrb[0].mxu0
      %v4693 = vadd.f32 0.0, %v4692
      %v4694 = vpop.f32.mrb[0].mxu0
      %v4695 = vadd.f32 0.0, %v4694
      %v4696 = vpop.f32.mrb[0].mxu0
      %v4697 = vadd.f32 0.0, %v4696
      %v4698 = vpop.f32.mrb[0].mxu0
      %v4699 = vadd.f32 0.0, %v4698
      %4700 = vmatprep.mubr.bf16.mxu0 0
      %4701 = vmatmul.mubr.bf16.gmra.mrb[0].mxu0 %v4492
      %v4702 = vpop.f32.mrb[0].mxu0
      %v4703 = vadd.f32 0.0, %v4702
      %v4704 = vpop.f32.mrb[0].mxu0
      %v4705 = vadd.f32 0.0, %v4704
      %v4706 = vpop.f32.mrb[0].mxu0
      %v4707 = vadd.f32 0.0, %v4706
      %v4708 = vpop.f32.mrb[0].mxu0
      %v4709 = vadd.f32 0.0, %v4708
      %4710 = vmatprep.mubr.bf16.mxu0 0
      %4711 = vmatmul.mubr.bf16.gmra.mrb[0].mxu0 %v4494
      %v4712 = vpop.f32.mrb[0].mxu0
      %v4713 = vadd.f32 0.0, %v4712
      %v4714 = vpop.f32.mrb[0].mxu0
      %v4715 = vadd.f32 0.0, %v4714
      %v4716 = vpop.f32.mrb[0].mxu0
      %v4717 = vadd.f32 0.0, %v4716
      %v4718 = vpop.f32.mrb[0].mxu0
      %v4719 = vadd.f32 0.0, %v4718
      %4720 = vmatprep.mubr.bf16.mxu0 0
      %4721 = vmatmul.mubr.bf16.gmra.mrb[0].mxu0 %v4496
      %v4722 = vpop.f32.mrb[0].mxu0
      %v4723 = vadd.f32 0.0, %v4722
      %v4724 = vpop.f32.mrb[0].mxu0
      %v4725 = vadd.f32 0.0, %v4724
      %v4726 = vpop.f32.mrb[0].mxu0
      %v4727 = vadd.f32 0.0, %v4726
      %v4728 = vpop.f32.mrb[0].mxu0
      %v4729 = vadd.f32 0.0, %v4728
      %4730 = vmatprep.mubr.bf16.mxu0 0
      %4731 = vmatmul.mubr.bf16.gmra.mrb[0].mxu0 %v4498
      %v4732 = vpop.f32.mrb[0].mxu0
      %v4733 = vadd.f32 0.0, %v4732
      %v4734 = vpop.f32.mrb[0].mxu0
      %v4735 = vadd.f32 0.0, %v4734
      %v4736 = vpop.f32.mrb[0].mxu0
      %v4737 = vadd.f32 0.0, %v4736
      %v4738 = vpop.f32.mrb[0].mxu0
      %v4739 = vadd.f32 0.0, %v4738
      %4740 = vmatprep.mubr.bf16.mxu0 0
      %4741 = vmatmul.mubr.bf16.gmra.mrb[0].mxu0 %v4500
      %v4742 = vpop.f32.mrb[0].mxu0
      %v4743 = vadd.f32 0.0, %v4742
      %v4744 = vpop.f32.mrb[0].mxu0
      %v4745 = vadd.f32 0.0, %v4744
      %v4746 = vpop.f32.mrb[0].mxu0
      %v4747 = vadd.f32 0.0, %v4746
      %v4748 = vpop.f32.mrb[0].mxu0
      %v4749 = vadd.f32 0.0, %v4748
      %4750 = vmatprep.mubr.bf16.mxu0 0
      %4751 = vmatmul.mubr.bf16.gmra.mrb[0].mxu0 %v4502
      %v4752 = vpop.f32.mrb[0].mxu0
      %v4753 = vadd.f32 0.0, %v4752
      %v4754 = vpop.f32.mrb[0].mxu0
      %v4755 = vadd.f32 0.0, %v4754
      %v4756 = vpop.f32.mrb[0].mxu0
      %v4757 = vadd.f32 0.0, %v4756
      %v4758 = vpop.f32.mrb[0].mxu0
      %v4759 = vadd.f32 0.0, %v4758
      %4760 = vmatprep.mubr.bf16.mxu0 0
      %4761 = vmatmul.mubr.bf16.gmra.mrb[0].mxu0 %v4504
      %v4762 = vpop.f32.mrb[0].mxu0
      %v4763 = vadd.f32 0.0, %v4762
      %v4764 = vpop.f32.mrb[0].mxu0
      %v4765 = vadd.f32 0.0, %v4764
      %v4766 = vpop.f32.mrb[0].mxu0
      %v4767 = vadd.f32 0.0, %v4766
      %v4768 = vpop.f32.mrb[0].mxu0
      %v4769 = vadd.f32 0.0, %v4768
      %4770 = vmatprep.mubr.bf16.mxu0 0
      %4771 = vmatmul.mubr.bf16.gmra.mrb[0].mxu0 %v4506
      %v4772 = vpop.f32.mrb[0].mxu0
      %v4773 = vadd.f32 0.0, %v4772
      %v4774 = vpop.f32.mrb[0].mxu0
      %v4775 = vadd.f32 0.0, %v4774
      %v4776 = vpop.f32.mrb[0].mxu0
      %v4777 = vadd.f32 0.0, %v4776
      %v4778 = vpop.f32.mrb[0].mxu0
      %v4779 = vadd.f32 0.0, %v4778
      %4780 = vmatprep.mubr.bf16.mxu0 0
      %4781 = vmatmul.mubr.bf16.gmra.mrb[0].mxu0 %v4508
      %v4782 = vpop.f32.mrb[0].mxu0
      %v4783 = vadd.f32 0.0, %v4782
      %v4784 = vpop.f32.mrb[0].mxu0
      %v4785 = vadd.f32 0.0, %v4784
      %v4786 = vpop.f32.mrb[0].mxu0
      %v4787 = vadd.f32 0.0, %v4786
      %v4788 = vpop.f32.mrb[0].mxu0
      %v4789 = vadd.f32 0.0, %v4788
      %4790 = vmatprep.mubr.bf16.mxu0 0
      %4791 = vmatmul.mubr.bf16.gmra.mrb[0].mxu0 %v4510
      %v4792 = vpop.f32.mrb[0].mxu0
      %v4793 = vadd.f32 0.0, %v4792
      %v4794 = vpop.f32.mrb[0].mxu0
      %v4795 = vadd.f32 0.0, %v4794
      %v4796 = vpop.f32.mrb[0].mxu0
      %v4797 = vadd.f32 0.0, %v4796
      %v4798 = vpop.f32.mrb[0].mxu0
      %v4799 = vadd.f32 0.0, %v4798
      %4800 = vmatprep.mubr.bf16.mxu0 0
      %4801 = vmatmul.mubr.bf16.gmra.mrb[0].mxu0 %v4509
      %v4802 = vpop.f32.mrb[0].mxu0
      %v4803 = vadd.f32 0.0, %v4802
      %v4804 = vpop.f32.mrb[0].mxu0
      %v4805 = vadd.f32 0.0, %v4804
      %v4806 = vpop.f32.mrb[0].mxu0
      %v4807 = vpop.f32.mrb[0].mxu0
      %4808 = vdwg.mxu0
      %v4809 = vadd.f32 %v4278, %v4643
      %v4810 = vadd.f32 %v4280, %v4645
      %v4811 = vadd.f32 %v4282, %v4647
      %v4812 = vadd.f32 %v4284, %v4649
      %v4813 = vadd.f32 %v4288, %v4653
      %v4814 = vadd.f32 %v4290, %v4655
      %v4815 = vadd.f32 %v4292, %v4657
      %v4816 = vadd.f32 %v4294, %v4659
      %v4817 = vadd.f32 %v4298, %v4663
      %v4818 = vadd.f32 %v4300, %v4665
      %v4819 = vadd.f32 %v4302, %v4667
      %v4820 = vadd.f32 %v4304, %v4669
      %v4821 = vadd.f32 %v4308, %v4673
      %v4822 = vadd.f32 %v4310, %v4675
      %v4823 = vadd.f32 %v4312, %v4677
      %v4824 = vadd.f32 %v4314, %v4679
      %v4825 = vadd.f32 %v4318, %v4683
      %v4826 = vadd.f32 %v4320, %v4685
      %v4827 = vadd.f32 %v4322, %v4687
      %v4828 = vadd.f32 %v4324, %v4689
      %v4829 = vadd.f32 %v4328, %v4693
      %v4830 = vadd.f32 %v4330, %v4695
      %v4831 = vadd.f32 %v4332, %v4697
      %v4832 = vadd.f32 %v4334, %v4699
      %v4833 = vadd.f32 %v4338, %v4703
      %v4834 = vadd.f32 %v4340, %v4705
      %v4835 = vadd.f32 %v4342, %v4707
      %v4836 = vadd.f32 %v4344, %v4709
      %v4837 = vadd.f32 %v4348, %v4713
      %v4838 = vadd.f32 %v4350, %v4715
      %v4839 = vadd.f32 %v4352, %v4717
      %v4840 = vadd.f32 %v4354, %v4719
      %v4841 = vadd.f32 %v4358, %v4723
      %v4842 = vadd.f32 %v4360, %v4725
      %v4843 = vadd.f32 %v4362, %v4727
      %v4844 = vadd.f32 %v4364, %v4729
      %v4845 = vadd.f32 %v4368, %v4733
      %v4846 = vadd.f32 %v4370, %v4735
      %v4847 = vadd.f32 %v4372, %v4737
      %v4848 = vadd.f32 %v4374, %v4739
      %v4849 = vadd.f32 %v4378, %v4743
      %v4850 = vadd.f32 %v4380, %v4745
      %v4851 = vadd.f32 %v4382, %v4747
      %v4852 = vadd.f32 %v4384, %v4749
      %v4853 = vadd.f32 %v4388, %v4753
      %v4854 = vadd.f32 %v4390, %v4755
      %v4855 = vadd.f32 %v4392, %v4757
      %v4856 = vadd.f32 %v4394, %v4759
      %v4857 = vadd.f32 %v4398, %v4763
      %v4858 = vadd.f32 %v4400, %v4765
      %v4859 = vadd.f32 %v4402, %v4767
      %v4860 = vadd.f32 %v4404, %v4769
      %v4861 = vadd.f32 %v4408, %v4773
      %v4862 = vadd.f32 %v4410, %v4775
      %v4863 = vadd.f32 %v4412, %v4777
      %v4864 = vadd.f32 %v4414, %v4779
      %v4865 = vadd.f32 %v4418, %v4783
      %v4866 = vadd.f32 %v4420, %v4785
      %v4867 = vadd.f32 %v4422, %v4787
      %v4868 = vadd.f32 %v4424, %v4789
      %v4869 = vadd.f32 %v4428, %v4793
      %v4870 = vadd.f32 %v4430, %v4795
      %v4871 = vadd.f32 %v4432, %v4797
      %v4872 = vadd.f32 %v4434, %v4799
      %v4873 = vadd.f32 %v4438, %v4803
      %v4874 = vadd.f32 %v4440, %v4805
      %v4875 = vld [vmem:[%s12] sm:$0x3]
      %v4877 = vlaneseq
      %v4878 = vshrl.u32 %v4877, 7
      %v4879 = vsub.s32 0, %v4878
      %v4880 = vrot.slane %v4875, %v4879
      %v4881 = vlaneseq
      %v4882 = vshrl.u32 %v4881, 7
      %v4883 = vsub.s32 1, %v4882
      %v4884 = vrot.slane %v4875, %v4883
      %v4887 = vmul.f32 %v4809, %v4880
      %v4888 = vmul.f32 %v4810, %v4884
      %v4889 = vmul.f32 %v4811, %v4880
      %v4890 = vmul.f32 %v4812, %v4884
      %v4891 = vmul.f32 %v4813, %v4880
      %v4892 = vmul.f32 %v4814, %v4884
      %v4893 = vmul.f32 %v4815, %v4880
      %v4894 = vmul.f32 %v4816, %v4884
      %v4895 = vmul.f32 %v4817, %v4880
      %v4896 = vmul.f32 %v4818, %v4884
      %v4897 = vmul.f32 %v4819, %v4880
      %v4898 = vmul.f32 %v4820, %v4884
      %v4899 = vmul.f32 %v4821, %v4880
      %v4900 = vmul.f32 %v4822, %v4884
      %v4901 = vmul.f32 %v4823, %v4880
      %v4902 = vmul.f32 %v4824, %v4884
      %v4903 = vmul.f32 %v4825, %v4880
      %v4904 = vmul.f32 %v4826, %v4884
      %v4905 = vmul.f32 %v4827, %v4880
      %v4906 = vmul.f32 %v4828, %v4884
      %v4907 = vmul.f32 %v4829, %v4880
      %v4908 = vmul.f32 %v4830, %v4884
      %v4909 = vmul.f32 %v4831, %v4880
      %v4910 = vmul.f32 %v4832, %v4884
      %v4911 = vmul.f32 %v4833, %v4880
      %v4912 = vmul.f32 %v4834, %v4884
      %v4913 = vmul.f32 %v4835, %v4880
      %v4914 = vmul.f32 %v4836, %v4884
      %v4915 = vmul.f32 %v4837, %v4880
      %v4916 = vmul.f32 %v4838, %v4884
      %v4917 = vmul.f32 %v4839, %v4880
      %v4918 = vmul.f32 %v4840, %v4884
      %v4919 = vmul.f32 %v4841, %v4880
      %v4920 = vmul.f32 %v4842, %v4884
      %v4921 = vmul.f32 %v4843, %v4880
      %v4922 = vmul.f32 %v4844, %v4884
      %v4923 = vmul.f32 %v4845, %v4880
      %v4924 = vmul.f32 %v4846, %v4884
      %v4925 = vmul.f32 %v4847, %v4880
      %v4926 = vmul.f32 %v4848, %v4884
      %v4927 = vmul.f32 %v4849, %v4880
      %v4928 = vmul.f32 %v4850, %v4884
      %v4929 = vmul.f32 %v4851, %v4880
      %v4930 = vmul.f32 %v4852, %v4884
      %v4931 = vmul.f32 %v4853, %v4880
      %v4932 = vmul.f32 %v4854, %v4884
      %v4933 = vmul.f32 %v4855, %v4880
      %v4934 = vmul.f32 %v4856, %v4884
      %v4935 = vmul.f32 %v4857, %v4880
      %v4936 = vmul.f32 %v4858, %v4884
      %v4937 = vmul.f32 %v4859, %v4880
      %v4938 = vmul.f32 %v4860, %v4884
      %v4939 = vmul.f32 %v4861, %v4880
      %v4940 = vmul.f32 %v4862, %v4884
      %v4941 = vmul.f32 %v4863, %v4880
      %v4942 = vmul.f32 %v4864, %v4884
      %v4943 = vmul.f32 %v4865, %v4880
      %v4944 = vmul.f32 %v4866, %v4884
      %v4945 = vmul.f32 %v4867, %v4880
      %v4946 = vmul.f32 %v4868, %v4884
      %v4947 = vmul.f32 %v4869, %v4880
      %v4948 = vmul.f32 %v4870, %v4884
      %v4949 = vmul.f32 %v4871, %v4880
      %v4950 = vmul.f32 %v4872, %v4884
      %v4951 = vmul.f32 %v4873, %v4880
      %v4952 = vmul.f32 %v4874, %v4884
      %v4953 = vld [vmem:[%s13] sm:$0x3]
      %v4955 = vlaneseq
      %v4956 = vshrl.u32 %v4955, 7
      %v4957 = vsub.s32 0, %v4956
      %v4958 = vrot.slane %v4953, %v4957
      %v4959 = vlaneseq
      %v4960 = vshrl.u32 %v4959, 7
      %v4961 = vsub.s32 1, %v4960
      %v4962 = vrot.slane %v4953, %v4961
      %v4965 = vadd.f32 %v4887, %v4958
      %v4966 = vadd.f32 %v4888, %v4962
      %v4967 = vadd.f32 %v4889, %v4958
      %v4968 = vadd.f32 %v4890, %v4962
      %v4969 = vadd.f32 %v4891, %v4958
      %v4970 = vadd.f32 %v4892, %v4962
      %v4971 = vadd.f32 %v4893, %v4958
      %v4972 = vadd.f32 %v4894, %v4962
      %v4973 = vadd.f32 %v4895, %v4958
      %v4974 = vadd.f32 %v4896, %v4962
      %v4975 = vadd.f32 %v4897, %v4958
      %v4976 = vadd.f32 %v4898, %v4962
      %v4977 = vadd.f32 %v4899, %v4958
      %v4978 = vadd.f32 %v4900, %v4962
      %v4979 = vadd.f32 %v4901, %v4958
      %v4980 = vadd.f32 %v4902, %v4962
      %v4981 = vadd.f32 %v4903, %v4958
      %v4982 = vadd.f32 %v4904, %v4962
      %v4983 = vadd.f32 %v4905, %v4958
      %v4984 = vadd.f32 %v4906, %v4962
      %v4985 = vadd.f32 %v4907, %v4958
      %v4986 = vadd.f32 %v4908, %v4962
      %v4987 = vadd.f32 %v4909, %v4958
      %v4988 = vadd.f32 %v4910, %v4962
      %v4989 = vadd.f32 %v4911, %v4958
      %v4990 = vadd.f32 %v4912, %v4962
      %v4991 = vadd.f32 %v4913, %v4958
      %v4992 = vadd.f32 %v4914, %v4962
      %v4993 = vadd.f32 %v4915, %v4958
      %v4994 = vadd.f32 %v4916, %v4962
      %v4995 = vadd.f32 %v4917, %v4958
      %v4996 = vadd.f32 %v4918, %v4962
      %v4997 = vadd.f32 %v4919, %v4958
      %v4998 = vadd.f32 %v4920, %v4962
      %v4999 = vadd.f32 %v4921, %v4958
      %v5000 = vadd.f32 %v4922, %v4962
      %v5001 = vadd.f32 %v4923, %v4958
      %v5002 = vadd.f32 %v4924, %v4962
      %v5003 = vadd.f32 %v4925, %v4958
      %v5004 = vadd.f32 %v4926, %v4962
      %v5005 = vadd.f32 %v4927, %v4958
      %v5006 = vadd.f32 %v4928, %v4962
      %v5007 = vadd.f32 %v4929, %v4958
      %v5008 = vadd.f32 %v4930, %v4962
      %v5009 = vadd.f32 %v4931, %v4958
      %v5010 = vadd.f32 %v4932, %v4962
      %v5011 = vadd.f32 %v4933, %v4958
      %v5012 = vadd.f32 %v4934, %v4962
      %v5013 = vadd.f32 %v4935, %v4958
      %v5014 = vadd.f32 %v4936, %v4962
      %v5015 = vadd.f32 %v4937, %v4958
      %v5016 = vadd.f32 %v4938, %v4962
      %v5017 = vadd.f32 %v4939, %v4958
      %v5018 = vadd.f32 %v4940, %v4962
      %v5019 = vadd.f32 %v4941, %v4958
      %v5020 = vadd.f32 %v4942, %v4962
      %v5021 = vadd.f32 %v4943, %v4958
      %v5022 = vadd.f32 %v4944, %v4962
      %v5023 = vadd.f32 %v4945, %v4958
      %v5024 = vadd.f32 %v4946, %v4962
      %v5025 = vadd.f32 %v4947, %v4958
      %v5026 = vadd.f32 %v4948, %v4962
      %v5027 = vadd.f32 %v4949, %v4958
      %v5028 = vadd.f32 %v4950, %v4962
      %v5029 = vadd.f32 %v4951, %v4958
      %v5030 = vadd.f32 %v4952, %v4962
      %v5031 = vmax.f32 %v4965, 0.0
      %v5032 = vmax.f32 %v4966, 0.0
      %v5033 = vmax.f32 %v4967, 0.0
      %v5034 = vmax.f32 %v4968, 0.0
      %v5035 = vmax.f32 %v4969, 0.0
      %v5036 = vmax.f32 %v4970, 0.0
      %v5037 = vmax.f32 %v4971, 0.0
      %v5038 = vmax.f32 %v4972, 0.0
      %v5039 = vmax.f32 %v4973, 0.0
      %v5040 = vmax.f32 %v4974, 0.0
      %v5041 = vmax.f32 %v4975, 0.0
      %v5042 = vmax.f32 %v4976, 0.0
      %v5043 = vmax.f32 %v4977, 0.0
      %v5044 = vmax.f32 %v4978, 0.0
      %v5045 = vmax.f32 %v4979, 0.0
      %v5046 = vmax.f32 %v4980, 0.0
      %v5047 = vmax.f32 %v4981, 0.0
      %v5048 = vmax.f32 %v4982, 0.0
      %v5049 = vmax.f32 %v4983, 0.0
      %v5050 = vmax.f32 %v4984, 0.0
      %v5051 = vmax.f32 %v4985, 0.0
      %v5052 = vmax.f32 %v4986, 0.0
      %v5053 = vmax.f32 %v4987, 0.0
      %v5054 = vmax.f32 %v4988, 0.0
      %v5055 = vmax.f32 %v4989, 0.0
      %v5056 = vmax.f32 %v4990, 0.0
      %v5057 = vmax.f32 %v4991, 0.0
      %v5058 = vmax.f32 %v4992, 0.0
      %v5059 = vmax.f32 %v4993, 0.0
      %v5060 = vmax.f32 %v4994, 0.0
      %v5061 = vmax.f32 %v4995, 0.0
      %v5062 = vmax.f32 %v4996, 0.0
      %v5063 = vmax.f32 %v4997, 0.0
      %v5064 = vmax.f32 %v4998, 0.0
      %v5065 = vmax.f32 %v4999, 0.0
      %v5066 = vmax.f32 %v5000, 0.0
      %v5067 = vmax.f32 %v5001, 0.0
      %v5068 = vmax.f32 %v5002, 0.0
      %v5069 = vmax.f32 %v5003, 0.0
      %v5070 = vmax.f32 %v5004, 0.0
      %v5071 = vmax.f32 %v5005, 0.0
      %v5072 = vmax.f32 %v5006, 0.0
      %v5073 = vmax.f32 %v5007, 0.0
      %v5074 = vmax.f32 %v5008, 0.0
      %v5075 = vmax.f32 %v5009, 0.0
      %v5076 = vmax.f32 %v5010, 0.0
      %v5077 = vmax.f32 %v5011, 0.0
      %v5078 = vmax.f32 %v5012, 0.0
      %v5079 = vmax.f32 %v5013, 0.0
      %v5080 = vmax.f32 %v5014, 0.0
      %v5081 = vmax.f32 %v5015, 0.0
      %v5082 = vmax.f32 %v5016, 0.0
      %v5083 = vmax.f32 %v5017, 0.0
      %v5084 = vmax.f32 %v5018, 0.0
      %v5085 = vmax.f32 %v5019, 0.0
      %v5086 = vmax.f32 %v5020, 0.0
      %v5087 = vmax.f32 %v5021, 0.0
      %v5088 = vmax.f32 %v5022, 0.0
      %v5089 = vmax.f32 %v5023, 0.0
      %v5090 = vmax.f32 %v5024, 0.0
      %v5091 = vmax.f32 %v5025, 0.0
      %v5092 = vmax.f32 %v5026, 0.0
      %v5093 = vmax.f32 %v5027, 0.0
      %v5094 = vmax.f32 %v5028, 0.0
      %v5095 = vmax.f32 %v5029, 0.0
      %v5096 = vmax.f32 %v5030, 0.0
      %v5097 = vpack.c.bf16 %v5033, %v5031
      %v5098 = vpack.c.bf16 %v5034, %v5032
      %v5099 = vpack.c.bf16 %v5037, %v5035
      %v5100 = vpack.c.bf16 %v5038, %v5036
      %v5101 = vpack.c.bf16 %v5041, %v5039
      %v5102 = vpack.c.bf16 %v5042, %v5040
      %v5103 = vpack.c.bf16 %v5045, %v5043
      %v5104 = vpack.c.bf16 %v5046, %v5044
      %v5105 = vpack.c.bf16 %v5049, %v5047
      %v5106 = vpack.c.bf16 %v5050, %v5048
      %v5107 = vpack.c.bf16 %v5053, %v5051
      %v5108 = vpack.c.bf16 %v5054, %v5052
      %v5109 = vpack.c.bf16 %v5057, %v5055
      %v5110 = vpack.c.bf16 %v5058, %v5056
      %v5111 = vpack.c.bf16 %v5061, %v5059
      %v5112 = vpack.c.bf16 %v5062, %v5060
      %v5113 = vpack.c.bf16 %v5065, %v5063
      %v5114 = vpack.c.bf16 %v5066, %v5064
      %v5115 = vpack.c.bf16 %v5069, %v5067
      %v5116 = vpack.c.bf16 %v5070, %v5068
      %v5117 = vpack.c.bf16 %v5073, %v5071
      %v5118 = vpack.c.bf16 %v5074, %v5072
      %v5119 = vpack.c.bf16 %v5077, %v5075
      %v5120 = vpack.c.bf16 %v5078, %v5076
      %v5121 = vpack.c.bf16 %v5081, %v5079
      %v5122 = vpack.c.bf16 %v5082, %v5080
      %v5123 = vpack.c.bf16 %v5085, %v5083
      %v5124 = vpack.c.bf16 %v5086, %v5084
      %v5125 = vpack.c.bf16 %v5089, %v5087
      %v5126 = vpack.c.bf16 %v5090, %v5088
      %v5127 = vpack.c.bf16 %v5093, %v5091
      %v5128 = vpack.c.bf16 %v5094, %v5092
      %v5129 = vpack.c.bf16 %v5095, %v5095
      %v5130 = vpack.c.bf16 %v5096, %v5096
      %v5131 = vld [vmem:[%s14] sm:$0xff]
      %v5132 = vld [vmem:[%s14 + $0x8] sm:$0xff]
      %v5133 = vld [vmem:[%s14 + $0x10] sm:$0xff]
      %v5134 = vld [vmem:[%s14 + $0x18] sm:$0xff]
      %v5135 = vld [vmem:[%s14 + $0x20] sm:$0xff]
      %v5136 = vld [vmem:[%s14 + $0x28] sm:$0xff]
      %v5137 = vld [vmem:[%s14 + $0x30] sm:$0xff]
      %v5138 = vld [vmem:[%s14 + $0x38] sm:$0xff]
      %v5139 = vld [vmem:[%s14 + $0x40] sm:$0xff]
      %v5140 = vld [vmem:[%s14 + $0x48] sm:$0xff]
      %v5141 = vld [vmem:[%s14 + $0x50] sm:$0xff]
      %v5142 = vld [vmem:[%s14 + $0x58] sm:$0xff]
      %v5143 = vld [vmem:[%s14 + $0x60] sm:$0xff]
      %v5144 = vld [vmem:[%s14 + $0x68] sm:$0xff]
      %v5145 = vld [vmem:[%s14 + $0x70] sm:$0xff]
      %v5146 = vld [vmem:[%s14 + $0x78] sm:$0xff]
      %v5147 = vld [vmem:[%s14 + $0x80] sm:$0xff]
      %v5148 = vld [vmem:[%s14 + $0x88] sm:$0xff]
      %v5149 = vld [vmem:[%s14 + $0x90] sm:$0xff]
      %v5150 = vld [vmem:[%s14 + $0x98] sm:$0xff]
      %v5151 = vld [vmem:[%s14 + $0xa0] sm:$0xff]
      %v5152 = vld [vmem:[%s14 + $0xa8] sm:$0xff]
      %v5153 = vld [vmem:[%s14 + $0xb0] sm:$0xff]
      %v5154 = vld [vmem:[%s14 + $0xb8] sm:$0xff]
      %v5155 = vld [vmem:[%s14 + $0xc0] sm:$0xff]
      %v5156 = vld [vmem:[%s14 + $0xc8] sm:$0xff]
      %v5157 = vld [vmem:[%s14 + $0xd0] sm:$0xff]
      %v5158 = vld [vmem:[%s14 + $0xd8] sm:$0xff]
      %v5159 = vld [vmem:[%s14 + $0xe0] sm:$0xff]
      %v5160 = vld [vmem:[%s14 + $0xe8] sm:$0xff]
      %v5161 = vld [vmem:[%s14 + $0xf0] sm:$0xff]
      %v5162 = vld [vmem:[%s14 + $0xf8] sm:$0xff]
      %v5163 = vld [vmem:[%s14 + $0x100] sm:$0xff]
      %v5164 = vld [vmem:[%s14 + $0x108] sm:$0xff]
      %v5165 = vld [vmem:[%s14 + $0x110] sm:$0xff]
      %v5166 = vld [vmem:[%s14 + $0x118] sm:$0xff]
      %v5167 = vld [vmem:[%s14 + $0x120] sm:$0xff]
      %v5168 = vld [vmem:[%s14 + $0x128] sm:$0xff]
      %v5169 = vld [vmem:[%s14 + $0x130] sm:$0xff]
      %v5170 = vld [vmem:[%s14 + $0x138] sm:$0xff]
      %v5171 = vld [vmem:[%s14 + $0x140] sm:$0xff]
      %v5172 = vld [vmem:[%s14 + $0x148] sm:$0xff]
      %v5173 = vld [vmem:[%s14 + $0x150] sm:$0xff]
      %v5174 = vld [vmem:[%s14 + $0x158] sm:$0xff]
      %v5175 = vld [vmem:[%s14 + $0x160] sm:$0xff]
      %v5176 = vld [vmem:[%s14 + $0x168] sm:$0xff]
      %v5177 = vld [vmem:[%s14 + $0x170] sm:$0xff]
      %v5178 = vld [vmem:[%s14 + $0x178] sm:$0xff]
      %v5179 = vld [vmem:[%s14 + $0x180] sm:$0xff]
      %v5180 = vld [vmem:[%s14 + $0x188] sm:$0xff]
      %v5181 = vld [vmem:[%s14 + $0x190] sm:$0xff]
      %v5182 = vld [vmem:[%s14 + $0x198] sm:$0xff]
      %v5183 = vld [vmem:[%s14 + $0x1a0] sm:$0xff]
      %v5184 = vld [vmem:[%s14 + $0x1a8] sm:$0xff]
      %v5185 = vld [vmem:[%s14 + $0x1b0] sm:$0xff]
      %v5186 = vld [vmem:[%s14 + $0x1b8] sm:$0xff]
      %v5187 = vld [vmem:[%s14 + $0x1c0] sm:$0xff]
      %v5188 = vld [vmem:[%s14 + $0x1c8] sm:$0xff]
      %v5189 = vld [vmem:[%s14 + $0x1d0] sm:$0xff]
      %v5190 = vld [vmem:[%s14 + $0x1d8] sm:$0xff]
      %v5191 = vld [vmem:[%s14 + $0x1e0] sm:$0xff]
      %v5192 = vld [vmem:[%s14 + $0x1e8] sm:$0xff]
      %v5193 = vld [vmem:[%s14 + $0x1f0] sm:$0xff]
      %v5194 = vld [vmem:[%s14 + $0x1f8] sm:$0xff]
      %s5195 = scalar_lea.vmem %s14, 512
      %v5196 = vld [vmem:[%s5195] sm:$0xff]
      %v5197 = vld [vmem:[%s5195 + $0x8] sm:$0xff]
      %v5198 = vld [vmem:[%s5195 + $0x10] sm:$0xff]
      %v5199 = vld [vmem:[%s5195 + $0x18] sm:$0xff]
      %v5200 = vld [vmem:[%s5195 + $0x20] sm:$0xff]
      %v5201 = vld [vmem:[%s5195 + $0x28] sm:$0xff]
      %v5202 = vld [vmem:[%s5195 + $0x30] sm:$0xff]
      %v5203 = vld [vmem:[%s5195 + $0x38] sm:$0xff]
      %v5204 = vld [vmem:[%s5195 + $0x40] sm:$0xff]
      %v5205 = vld [vmem:[%s5195 + $0x48] sm:$0xff]
      %v5206 = vld [vmem:[%s5195 + $0x50] sm:$0xff]
      %v5207 = vld [vmem:[%s5195 + $0x58] sm:$0xff]
      %v5208 = vld [vmem:[%s5195 + $0x60] sm:$0xff]
      %v5209 = vld [vmem:[%s5195 + $0x68] sm:$0xff]
      %v5210 = vld [vmem:[%s5195 + $0x70] sm:$0xff]
      %v5211 = vld [vmem:[%s5195 + $0x78] sm:$0xff]
      %v5212 = vld [vmem:[%s5195 + $0x80] sm:$0xff]
      %v5213 = vld [vmem:[%s5195 + $0x88] sm:$0xff]
      %v5214 = vld [vmem:[%s5195 + $0x90] sm:$0xff]
      %v5215 = vld [vmem:[%s5195 + $0x98] sm:$0xff]
      %v5216 = vld [vmem:[%s5195 + $0xa0] sm:$0xff]
      %v5217 = vld [vmem:[%s5195 + $0xa8] sm:$0xff]
      %v5218 = vld [vmem:[%s5195 + $0xb0] sm:$0xff]
      %v5219 = vld [vmem:[%s5195 + $0xb8] sm:$0xff]
      %v5220 = vld [vmem:[%s5195 + $0xc0] sm:$0xff]
      %v5221 = vld [vmem:[%s5195 + $0xc8] sm:$0xff]
      %v5222 = vld [vmem:[%s5195 + $0xd0] sm:$0xff]
      %v5223 = vld [vmem:[%s5195 + $0xd8] sm:$0xff]
      %v5224 = vld [vmem:[%s5195 + $0xe0] sm:$0xff]
      %v5225 = vld [vmem:[%s5195 + $0xe8] sm:$0xff]
      %v5226 = vld [vmem:[%s5195 + $0xf0] sm:$0xff]
      %v5227 = vld [vmem:[%s5195 + $0xf8] sm:$0xff]
      %v5228 = vld [vmem:[%s5195 + $0x100] sm:$0xff]
      %v5229 = vld [vmem:[%s5195 + $0x108] sm:$0xff]
      %v5230 = vld [vmem:[%s5195 + $0x110] sm:$0xff]
      %v5231 = vld [vmem:[%s5195 + $0x118] sm:$0xff]
      %v5232 = vld [vmem:[%s5195 + $0x120] sm:$0xff]
      %v5233 = vld [vmem:[%s5195 + $0x128] sm:$0xff]
      %v5234 = vld [vmem:[%s5195 + $0x130] sm:$0xff]
      %v5235 = vld [vmem:[%s5195 + $0x138] sm:$0xff]
      %v5236 = vld [vmem:[%s5195 + $0x140] sm:$0xff]
      %v5237 = vld [vmem:[%s5195 + $0x148] sm:$0xff]
      %v5238 = vld [vmem:[%s5195 + $0x150] sm:$0xff]
      %v5239 = vld [vmem:[%s5195 + $0x158] sm:$0xff]
      %v5240 = vld [vmem:[%s5195 + $0x160] sm:$0xff]
      %v5241 = vld [vmem:[%s5195 + $0x168] sm:$0xff]
      %v5242 = vld [vmem:[%s5195 + $0x170] sm:$0xff]
      %v5243 = vld [vmem:[%s5195 + $0x178] sm:$0xff]
      %v5244 = vld [vmem:[%s5195 + $0x180] sm:$0xff]
      %v5245 = vld [vmem:[%s5195 + $0x188] sm:$0xff]
      %v5246 = vld [vmem:[%s5195 + $0x190] sm:$0xff]
      %v5247 = vld [vmem:[%s5195 + $0x198] sm:$0xff]
      %v5248 = vld [vmem:[%s5195 + $0x1a0] sm:$0xff]
      %v5249 = vld [vmem:[%s5195 + $0x1a8] sm:$0xff]
      %v5250 = vld [vmem:[%s5195 + $0x1b0] sm:$0xff]
      %v5251 = vld [vmem:[%s5195 + $0x1b8] sm:$0xff]
      %v5252 = vld [vmem:[%s5195 + $0x1c0] sm:$0xff]
      %v5253 = vld [vmem:[%s5195 + $0x1c8] sm:$0xff]
      %v5254 = vld [vmem:[%s5195 + $0x1d0] sm:$0xff]
      %v5255 = vld [vmem:[%s5195 + $0x1d8] sm:$0xff]
      %v5256 = vld [vmem:[%s5195 + $0x1e0] sm:$0xff]
      %v5257 = vld [vmem:[%s5195 + $0x1e8] sm:$0xff]
      %v5258 = vld [vmem:[%s5195 + $0x1f0] sm:$0xff]
      %v5259 = vld [vmem:[%s5195 + $0x1f8] sm:$0xff]
      %v5261 = vshrl.u32 %v5097, 16
      %v5263 = vshll.u32 %v5097, 16
      %v5265 = vrot.slane %v5263, 1
      %v5266 = vor.u32 %v5261, %v5265
      %v5268 = vshll.u32 %v5099, 16
      %v5270 = vrot.slane %v5268, 1
      %v5271 = vsel %vm1502, %v5266, %v5270
      %v5273 = vshrl.u32 %v5098, 16
      %v5275 = vshll.u32 %v5098, 16
      %v5277 = vrot.slane %v5275, 1
      %v5278 = vor.u32 %v5273, %v5277
      %v5280 = vshll.u32 %v5100, 16
      %v5282 = vrot.slane %v5280, 1
      %v5283 = vsel %vm1502, %v5278, %v5282
      %v5284 = vshrl.u32 %v5099, 16
      %v5286 = vor.u32 %v5284, %v5270
      %v5288 = vshll.u32 %v5101, 16
      %v5290 = vrot.slane %v5288, 1
      %v5291 = vsel %vm1502, %v5286, %v5290
      %v5292 = vshrl.u32 %v5100, 16
      %v5294 = vor.u32 %v5292, %v5282
      %v5296 = vshll.u32 %v5102, 16
      %v5298 = vrot.slane %v5296, 1
      %v5299 = vsel %vm1502, %v5294, %v5298
      %v5300 = vshrl.u32 %v5101, 16
      %v5302 = vor.u32 %v5300, %v5290
      %v5304 = vshll.u32 %v5103, 16
      %v5306 = vrot.slane %v5304, 1
      %v5307 = vsel %vm1502, %v5302, %v5306
      %v5308 = vshrl.u32 %v5102, 16
      %v5310 = vor.u32 %v5308, %v5298
      %v5312 = vshll.u32 %v5104, 16
      %v5314 = vrot.slane %v5312, 1
      %v5315 = vsel %vm1502, %v5310, %v5314
      %v5316 = vshrl.u32 %v5103, 16
      %v5318 = vor.u32 %v5316, %v5306
      %v5320 = vshll.u32 %v5105, 16
      %v5322 = vrot.slane %v5320, 1
      %v5323 = vsel %vm1502, %v5318, %v5322
      %v5324 = vshrl.u32 %v5104, 16
      %v5326 = vor.u32 %v5324, %v5314
      %v5328 = vshll.u32 %v5106, 16
      %v5330 = vrot.slane %v5328, 1
      %v5331 = vsel %vm1502, %v5326, %v5330
      %v5332 = vshrl.u32 %v5105, 16
      %v5334 = vor.u32 %v5332, %v5322
      %v5336 = vshll.u32 %v5107, 16
      %v5338 = vrot.slane %v5336, 1
      %v5339 = vsel %vm1502, %v5334, %v5338
      %v5340 = vshrl.u32 %v5106, 16
      %v5342 = vor.u32 %v5340, %v5330
      %v5344 = vshll.u32 %v5108, 16
      %v5346 = vrot.slane %v5344, 1
      %v5347 = vsel %vm1502, %v5342, %v5346
      %v5348 = vshrl.u32 %v5107, 16
      %v5350 = vor.u32 %v5348, %v5338
      %v5352 = vshll.u32 %v5109, 16
      %v5354 = vrot.slane %v5352, 1
      %v5355 = vsel %vm1502, %v5350, %v5354
      %v5356 = vshrl.u32 %v5108, 16
      %v5358 = vor.u32 %v5356, %v5346
      %v5360 = vshll.u32 %v5110, 16
      %v5362 = vrot.slane %v5360, 1
      %v5363 = vsel %vm1502, %v5358, %v5362
      %v5364 = vshrl.u32 %v5109, 16
      %v5366 = vor.u32 %v5364, %v5354
      %v5368 = vshll.u32 %v5111, 16
      %v5370 = vrot.slane %v5368, 1
      %v5371 = vsel %vm1502, %v5366, %v5370
      %v5372 = vshrl.u32 %v5110, 16
      %v5374 = vor.u32 %v5372, %v5362
      %v5376 = vshll.u32 %v5112, 16
      %v5378 = vrot.slane %v5376, 1
      %v5379 = vsel %vm1502, %v5374, %v5378
      %v5380 = vshrl.u32 %v5111, 16
      %v5382 = vor.u32 %v5380, %v5370
      %v5384 = vshll.u32 %v5113, 16
      %v5386 = vrot.slane %v5384, 1
      %v5387 = vsel %vm1502, %v5382, %v5386
      %v5388 = vshrl.u32 %v5112, 16
      %v5390 = vor.u32 %v5388, %v5378
      %v5392 = vshll.u32 %v5114, 16
      %v5394 = vrot.slane %v5392, 1
      %v5395 = vsel %vm1502, %v5390, %v5394
      %v5396 = vshrl.u32 %v5113, 16
      %v5398 = vor.u32 %v5396, %v5386
      %v5400 = vshll.u32 %v5115, 16
      %v5402 = vrot.slane %v5400, 1
      %v5403 = vsel %vm1502, %v5398, %v5402
      %v5404 = vshrl.u32 %v5114, 16
      %v5406 = vor.u32 %v5404, %v5394
      %v5408 = vshll.u32 %v5116, 16
      %v5410 = vrot.slane %v5408, 1
      %v5411 = vsel %vm1502, %v5406, %v5410
      %v5412 = vshrl.u32 %v5115, 16
      %v5414 = vor.u32 %v5412, %v5402
      %v5416 = vshll.u32 %v5117, 16
      %v5418 = vrot.slane %v5416, 1
      %v5419 = vsel %vm1502, %v5414, %v5418
      %v5420 = vshrl.u32 %v5116, 16
      %v5422 = vor.u32 %v5420, %v5410
      %v5424 = vshll.u32 %v5118, 16
      %v5426 = vrot.slane %v5424, 1
      %v5427 = vsel %vm1502, %v5422, %v5426
      %v5428 = vshrl.u32 %v5117, 16
      %v5430 = vor.u32 %v5428, %v5418
      %v5432 = vshll.u32 %v5119, 16
      %v5434 = vrot.slane %v5432, 1
      %v5435 = vsel %vm1502, %v5430, %v5434
      %v5436 = vshrl.u32 %v5118, 16
      %v5438 = vor.u32 %v5436, %v5426
      %v5440 = vshll.u32 %v5120, 16
      %v5442 = vrot.slane %v5440, 1
      %v5443 = vsel %vm1502, %v5438, %v5442
      %v5444 = vshrl.u32 %v5119, 16
      %v5446 = vor.u32 %v5444, %v5434
      %v5448 = vshll.u32 %v5121, 16
      %v5450 = vrot.slane %v5448, 1
      %v5451 = vsel %vm1502, %v5446, %v5450
      %v5452 = vshrl.u32 %v5120, 16
      %v5454 = vor.u32 %v5452, %v5442
      %v5456 = vshll.u32 %v5122, 16
      %v5458 = vrot.slane %v5456, 1
      %v5459 = vsel %vm1502, %v5454, %v5458
      %v5460 = vshrl.u32 %v5121, 16
      %v5462 = vor.u32 %v5460, %v5450
      %v5464 = vshll.u32 %v5123, 16
      %v5466 = vrot.slane %v5464, 1
      %v5467 = vsel %vm1502, %v5462, %v5466
      %v5468 = vshrl.u32 %v5122, 16
      %v5470 = vor.u32 %v5468, %v5458
      %v5472 = vshll.u32 %v5124, 16
      %v5474 = vrot.slane %v5472, 1
      %v5475 = vsel %vm1502, %v5470, %v5474
      %v5476 = vshrl.u32 %v5123, 16
      %v5478 = vor.u32 %v5476, %v5466
      %v5480 = vshll.u32 %v5125, 16
      %v5482 = vrot.slane %v5480, 1
      %v5483 = vsel %vm1502, %v5478, %v5482
      %v5484 = vshrl.u32 %v5124, 16
      %v5486 = vor.u32 %v5484, %v5474
      %v5488 = vshll.u32 %v5126, 16
      %v5490 = vrot.slane %v5488, 1
      %v5491 = vsel %vm1502, %v5486, %v5490
      %v5492 = vshrl.u32 %v5125, 16
      %v5494 = vor.u32 %v5492, %v5482
      %v5496 = vshll.u32 %v5127, 16
      %v5498 = vrot.slane %v5496, 1
      %v5499 = vsel %vm1502, %v5494, %v5498
      %v5500 = vshrl.u32 %v5126, 16
      %v5502 = vor.u32 %v5500, %v5490
      %v5504 = vshll.u32 %v5128, 16
      %v5506 = vrot.slane %v5504, 1
      %v5507 = vsel %vm1502, %v5502, %v5506
      %v5508 = vshrl.u32 %v5127, 16
      %v5510 = vor.u32 %v5508, %v5498
      %v5512 = vshll.u32 %v5129, 16
      %v5514 = vrot.slane %v5512, 1
      %v5515 = vsel %vm1502, %v5510, %v5514
      %v5516 = vshrl.u32 %v5128, 16
      %v5518 = vor.u32 %v5516, %v5506
      %v5520 = vshll.u32 %v5130, 16
      %v5522 = vrot.slane %v5520, 1
      %v5523 = vsel %vm1502, %v5518, %v5522
      %v5620 = vunpack.c.l.b16 %v5196
      %v5621 = vunpack.c.h.b16 %v5196
      %v5622 = vunpack.c.l.b16 %v5197
      %v5623 = vunpack.c.h.b16 %v5197
      %v5624 = vunpack.c.l.b16 %v5198
      %v5625 = vunpack.c.h.b16 %v5198
      %v5626 = vunpack.c.l.b16 %v5199
      %v5627 = vunpack.c.h.b16 %v5199
      %v5628 = vunpack.c.l.b16 %v5200
      %v5629 = vunpack.c.h.b16 %v5200
      %v5630 = vunpack.c.l.b16 %v5201
      %v5631 = vunpack.c.h.b16 %v5201
      %v5632 = vunpack.c.l.b16 %v5202
      %v5633 = vunpack.c.h.b16 %v5202
      %v5634 = vunpack.c.l.b16 %v5203
      %v5635 = vunpack.c.h.b16 %v5203
      %v5636 = vunpack.c.l.b16 %v5204
      %v5637 = vunpack.c.h.b16 %v5204
      %v5638 = vunpack.c.l.b16 %v5205
      %v5639 = vunpack.c.h.b16 %v5205
      %v5640 = vunpack.c.l.b16 %v5206
      %v5641 = vunpack.c.h.b16 %v5206
      %v5642 = vunpack.c.l.b16 %v5207
      %v5643 = vunpack.c.h.b16 %v5207
      %v5644 = vunpack.c.l.b16 %v5208
      %v5645 = vunpack.c.h.b16 %v5208
      %v5646 = vunpack.c.l.b16 %v5209
      %v5647 = vunpack.c.h.b16 %v5209
      %v5648 = vunpack.c.l.b16 %v5210
      %v5649 = vunpack.c.h.b16 %v5210
      %v5650 = vunpack.c.l.b16 %v5211
      %v5651 = vunpack.c.h.b16 %v5211
      %v5652 = vunpack.c.l.b16 %v5212
      %v5653 = vunpack.c.h.b16 %v5212
      %v5654 = vunpack.c.l.b16 %v5213
      %v5655 = vunpack.c.h.b16 %v5213
      %v5656 = vunpack.c.l.b16 %v5214
      %v5657 = vunpack.c.h.b16 %v5214
      %v5658 = vunpack.c.l.b16 %v5215
      %v5659 = vunpack.c.h.b16 %v5215
      %v5660 = vunpack.c.l.b16 %v5216
      %v5661 = vunpack.c.h.b16 %v5216
      %v5662 = vunpack.c.l.b16 %v5217
      %v5663 = vunpack.c.h.b16 %v5217
      %v5664 = vunpack.c.l.b16 %v5218
      %v5665 = vunpack.c.h.b16 %v5218
      %v5666 = vunpack.c.l.b16 %v5219
      %v5667 = vunpack.c.h.b16 %v5219
      %v5668 = vunpack.c.l.b16 %v5220
      %v5669 = vunpack.c.h.b16 %v5220
      %v5670 = vunpack.c.l.b16 %v5221
      %v5671 = vunpack.c.h.b16 %v5221
      %v5672 = vunpack.c.l.b16 %v5222
      %v5673 = vunpack.c.h.b16 %v5222
      %v5674 = vunpack.c.l.b16 %v5223
      %v5675 = vunpack.c.h.b16 %v5223
      %v5676 = vunpack.c.l.b16 %v5224
      %v5677 = vunpack.c.h.b16 %v5224
      %v5678 = vunpack.c.l.b16 %v5225
      %v5679 = vunpack.c.h.b16 %v5225
      %v5680 = vunpack.c.l.b16 %v5226
      %v5681 = vunpack.c.h.b16 %v5226
      %v5682 = vunpack.c.l.b16 %v5227
      %v5683 = vunpack.c.h.b16 %v5227
      %v5684 = vunpack.c.l.b16 %v5228
      %v5685 = vunpack.c.h.b16 %v5228
      %v5686 = vunpack.c.l.b16 %v5229
      %v5687 = vunpack.c.h.b16 %v5229
      %v5688 = vunpack.c.l.b16 %v5230
      %v5689 = vunpack.c.h.b16 %v5230
      %v5690 = vunpack.c.l.b16 %v5231
      %v5691 = vunpack.c.h.b16 %v5231
      %v5692 = vunpack.c.l.b16 %v5232
      %v5693 = vunpack.c.h.b16 %v5232
      %v5694 = vunpack.c.l.b16 %v5233
      %v5695 = vunpack.c.h.b16 %v5233
      %v5696 = vunpack.c.l.b16 %v5234
      %v5697 = vunpack.c.h.b16 %v5234
      %v5698 = vunpack.c.l.b16 %v5235
      %v5699 = vunpack.c.h.b16 %v5235
      %v5700 = vunpack.c.l.b16 %v5236
      %v5701 = vunpack.c.h.b16 %v5236
      %v5702 = vunpack.c.l.b16 %v5237
      %v5703 = vunpack.c.h.b16 %v5237
      %v5704 = vunpack.c.l.b16 %v5238
      %v5705 = vunpack.c.h.b16 %v5238
      %v5706 = vunpack.c.l.b16 %v5239
      %v5707 = vunpack.c.h.b16 %v5239
      %v5708 = vunpack.c.l.b16 %v5240
      %v5709 = vunpack.c.h.b16 %v5240
      %v5710 = vunpack.c.l.b16 %v5241
      %v5711 = vunpack.c.h.b16 %v5241
      %v5712 = vunpack.c.l.b16 %v5242
      %v5713 = vunpack.c.h.b16 %v5242
      %v5714 = vunpack.c.l.b16 %v5243
      %v5715 = vunpack.c.h.b16 %v5243
      %v5716 = vunpack.c.l.b16 %v5244
      %v5717 = vunpack.c.h.b16 %v5244
      %v5718 = vunpack.c.l.b16 %v5245
      %v5719 = vunpack.c.h.b16 %v5245
      %v5720 = vunpack.c.l.b16 %v5246
      %v5721 = vunpack.c.h.b16 %v5246
      %v5722 = vunpack.c.l.b16 %v5247
      %v5723 = vunpack.c.h.b16 %v5247
      %v5724 = vunpack.c.l.b16 %v5248
      %v5725 = vunpack.c.h.b16 %v5248
      %v5726 = vunpack.c.l.b16 %v5249
      %v5727 = vunpack.c.h.b16 %v5249
      %v5728 = vunpack.c.l.b16 %v5250
      %v5729 = vunpack.c.h.b16 %v5250
      %v5730 = vunpack.c.l.b16 %v5251
      %v5731 = vunpack.c.h.b16 %v5251
      %v5732 = vunpack.c.l.b16 %v5252
      %v5733 = vunpack.c.h.b16 %v5252
      %v5734 = vunpack.c.l.b16 %v5253
      %v5735 = vunpack.c.h.b16 %v5253
      %v5736 = vunpack.c.l.b16 %v5254
      %v5737 = vunpack.c.h.b16 %v5254
      %v5738 = vunpack.c.l.b16 %v5255
      %v5739 = vunpack.c.h.b16 %v5255
      %v5740 = vunpack.c.l.b16 %v5256
      %v5741 = vunpack.c.h.b16 %v5256
      %v5742 = vunpack.c.l.b16 %v5257
      %v5743 = vunpack.c.h.b16 %v5257
      %v5744 = vunpack.c.l.b16 %v5258
      %v5745 = vunpack.c.h.b16 %v5258
      %v5746 = vunpack.c.l.b16 %v5259
      %v5747 = vunpack.c.h.b16 %v5259
      %v5748 = vpack.c.b16 %v5624, %v5620
      %v5749 = vpack.c.b16 %v5625, %v5621
      %v5750 = vpack.c.b16 %v5626, %v5622
      %v5751 = vpack.c.b16 %v5627, %v5623
      %v5752 = vpack.c.b16 %v5632, %v5628
      %v5753 = vpack.c.b16 %v5633, %v5629
      %v5754 = vpack.c.b16 %v5634, %v5630
      %v5755 = vpack.c.b16 %v5635, %v5631
      %v5756 = vpack.c.b16 %v5640, %v5636
      %v5757 = vpack.c.b16 %v5641, %v5637
      %v5758 = vpack.c.b16 %v5642, %v5638
      %v5759 = vpack.c.b16 %v5643, %v5639
      %v5760 = vpack.c.b16 %v5648, %v5644
      %v5761 = vpack.c.b16 %v5649, %v5645
      %v5762 = vpack.c.b16 %v5650, %v5646
      %v5763 = vpack.c.b16 %v5651, %v5647
      %v5764 = vpack.c.b16 %v5656, %v5652
      %v5765 = vpack.c.b16 %v5657, %v5653
      %v5766 = vpack.c.b16 %v5658, %v5654
      %v5767 = vpack.c.b16 %v5659, %v5655
      %v5768 = vpack.c.b16 %v5664, %v5660
      %v5769 = vpack.c.b16 %v5665, %v5661
      %v5770 = vpack.c.b16 %v5666, %v5662
      %v5771 = vpack.c.b16 %v5667, %v5663
      %v5772 = vpack.c.b16 %v5672, %v5668
      %v5773 = vpack.c.b16 %v5673, %v5669
      %v5774 = vpack.c.b16 %v5674, %v5670
      %v5775 = vpack.c.b16 %v5675, %v5671
      %v5776 = vpack.c.b16 %v5680, %v5676
      %v5777 = vpack.c.b16 %v5681, %v5677
      %v5778 = vpack.c.b16 %v5682, %v5678
      %v5779 = vpack.c.b16 %v5683, %v5679
      %v5780 = vpack.c.b16 %v5688, %v5684
      %v5781 = vpack.c.b16 %v5689, %v5685
      %v5782 = vpack.c.b16 %v5690, %v5686
      %v5783 = vpack.c.b16 %v5691, %v5687
      %v5784 = vpack.c.b16 %v5696, %v5692
      %v5785 = vpack.c.b16 %v5697, %v5693
      %v5786 = vpack.c.b16 %v5698, %v5694
      %v5787 = vpack.c.b16 %v5699, %v5695
      %v5788 = vpack.c.b16 %v5704, %v5700
      %v5789 = vpack.c.b16 %v5705, %v5701
      %v5790 = vpack.c.b16 %v5706, %v5702
      %v5791 = vpack.c.b16 %v5707, %v5703
      %v5792 = vpack.c.b16 %v5712, %v5708
      %v5793 = vpack.c.b16 %v5713, %v5709
      %v5794 = vpack.c.b16 %v5714, %v5710
      %v5795 = vpack.c.b16 %v5715, %v5711
      %v5796 = vpack.c.b16 %v5720, %v5716
      %v5797 = vpack.c.b16 %v5721, %v5717
      %v5798 = vpack.c.b16 %v5722, %v5718
      %v5799 = vpack.c.b16 %v5723, %v5719
      %v5800 = vpack.c.b16 %v5728, %v5724
      %v5801 = vpack.c.b16 %v5729, %v5725
      %v5802 = vpack.c.b16 %v5730, %v5726
      %v5803 = vpack.c.b16 %v5731, %v5727
      %v5804 = vpack.c.b16 %v5736, %v5732
      %v5805 = vpack.c.b16 %v5737, %v5733
      %v5806 = vpack.c.b16 %v5738, %v5734
      %v5807 = vpack.c.b16 %v5739, %v5735
      %v5808 = vpack.c.b16 %v5744, %v5740
      %v5809 = vpack.c.b16 %v5745, %v5741
      %v5810 = vpack.c.b16 %v5746, %v5742
      %v5811 = vpack.c.b16 %v5747, %v5743
      %5876 = vmatprep.subr.bf16.mxu0 %v5749
      %5877 = vmatpush1.bf16.msra.mxu0 %v5748
      %5878 = vmatprep.subr.bf16.mxu0 %v5753
      %5879 = vmatpush1.bf16.msra.mxu0 %v5752
      %5880 = vmatprep.subr.bf16.mxu0 %v5757
      %5881 = vmatpush1.bf16.msra.mxu0 %v5756
      %5882 = vmatprep.subr.bf16.mxu0 %v5761
      %5883 = vmatpush1.bf16.msra.mxu0 %v5760
      %5884 = vmatprep.subr.bf16.mxu0 %v5765
      %5885 = vmatpush1.bf16.msra.mxu0 %v5764
      %5886 = vmatprep.subr.bf16.mxu0 %v5769
      %5887 = vmatpush1.bf16.msra.mxu0 %v5768
      %5888 = vmatprep.subr.bf16.mxu0 %v5773
      %5889 = vmatpush1.bf16.msra.mxu0 %v5772
      %5890 = vmatprep.subr.bf16.mxu0 %v5777
      %5891 = vmatpush1.bf16.msra.mxu0 %v5776
      %5892 = vmatprep.subr.bf16.mxu0 %v5781
      %5893 = vmatpush1.bf16.msra.mxu0 %v5780
      %5894 = vmatprep.subr.bf16.mxu0 %v5785
      %5895 = vmatpush1.bf16.msra.mxu0 %v5784
      %5896 = vmatprep.subr.bf16.mxu0 %v5789
      %5897 = vmatpush1.bf16.msra.mxu0 %v5788
      %5898 = vmatprep.subr.bf16.mxu0 %v5793
      %5899 = vmatpush1.bf16.msra.mxu0 %v5792
      %5900 = vmatprep.subr.bf16.mxu0 %v5797
      %5901 = vmatpush1.bf16.msra.mxu0 %v5796
      %5902 = vmatprep.subr.bf16.mxu0 %v5801
      %5903 = vmatpush1.bf16.msra.mxu0 %v5800
      %5904 = vmatprep.subr.bf16.mxu0 %v5805
      %5905 = vmatpush1.bf16.msra.mxu0 %v5804
      %5906 = vmatprep.subr.bf16.mxu0 %v5809
      %5907 = vmatpush1.bf16.msra.mxu0 %v5808
      %5908 = vmatprep.mubr.bf16.mxu0 %v5283
      %5909 = vmatmul.mubr.bf16.gmra.mrb[0].mxu0 %v5271
      %v5910 = vpop.f32.mrb[0].mxu0
      %v5911 = vadd.f32 0.0, %v5910
      %v5912 = vpop.f32.mrb[0].mxu0
      %v5913 = vadd.f32 0.0, %v5912
      %v5914 = vpop.f32.mrb[0].mxu0
      %v5915 = vadd.f32 0.0, %v5914
      %v5916 = vpop.f32.mrb[0].mxu0
      %v5917 = vadd.f32 0.0, %v5916
      %5918 = vmatprep.mubr.bf16.mxu0 %v5299
      %5919 = vmatmul.mubr.bf16.gmra.mrb[0].mxu0 %v5291
      %v5920 = vpop.f32.mrb[0].mxu0
      %v5921 = vadd.f32 0.0, %v5920
      %v5922 = vpop.f32.mrb[0].mxu0
      %v5923 = vadd.f32 0.0, %v5922
      %v5924 = vpop.f32.mrb[0].mxu0
      %v5925 = vpop.f32.mrb[0].mxu0
      %5926 = vmatprep.mubr.bf16.mxu0 %v5315
      %5927 = vmatmul.mubr.bf16.gmra.mrb[0].mxu0 %v5307
      %v5928 = vpop.f32.mrb[0].mxu0
      %v5929 = vadd.f32 0.0, %v5928
      %v5930 = vpop.f32.mrb[0].mxu0
      %v5931 = vadd.f32 0.0, %v5930
      %v5932 = vpop.f32.mrb[0].mxu0
      %v5933 = vadd.f32 0.0, %v5932
      %v5934 = vpop.f32.mrb[0].mxu0
      %v5935 = vadd.f32 0.0, %v5934
      %5936 = vmatprep.mubr.bf16.mxu0 %v5331
      %5937 = vmatmul.mubr.bf16.gmra.mrb[0].mxu0 %v5323
      %v5938 = vpop.f32.mrb[0].mxu0
      %v5939 = vadd.f32 0.0, %v5938
      %v5940 = vpop.f32.mrb[0].mxu0
      %v5941 = vadd.f32 0.0, %v5940
      %v5942 = vpop.f32.mrb[0].mxu0
      %v5943 = vpop.f32.mrb[0].mxu0
      %5944 = vmatprep.mubr.bf16.mxu0 %v5347
      %5945 = vmatmul.mubr.bf16.gmra.mrb[0].mxu0 %v5339
      %v5946 = vpop.f32.mrb[0].mxu0
      %v5947 = vadd.f32 0.0, %v5946
      %v5948 = vpop.f32.mrb[0].mxu0
      %v5949 = vadd.f32 0.0, %v5948
      %v5950 = vpop.f32.mrb[0].mxu0
      %v5951 = vadd.f32 0.0, %v5950
      %v5952 = vpop.f32.mrb[0].mxu0
      %v5953 = vadd.f32 0.0, %v5952
      %5954 = vmatprep.mubr.bf16.mxu0 %v5363
      %5955 = vmatmul.mubr.bf16.gmra.mrb[0].mxu0 %v5355
      %v5956 = vpop.f32.mrb[0].mxu0
      %v5957 = vadd.f32 0.0, %v5956
      %v5958 = vpop.f32.mrb[0].mxu0
      %v5959 = vadd.f32 0.0, %v5958
      %v5960 = vpop.f32.mrb[0].mxu0
      %v5961 = vpop.f32.mrb[0].mxu0
      %5962 = vmatprep.mubr.bf16.mxu0 %v5379
      %5963 = vmatmul.mubr.bf16.gmra.mrb[0].mxu0 %v5371
      %v5964 = vpop.f32.mrb[0].mxu0
      %v5965 = vadd.f32 0.0, %v5964
      %v5966 = vpop.f32.mrb[0].mxu0
      %v5967 = vadd.f32 0.0, %v5966
      %v5968 = vpop.f32.mrb[0].mxu0
      %v5969 = vadd.f32 0.0, %v5968
      %v5970 = vpop.f32.mrb[0].mxu0
      %v5971 = vadd.f32 0.0, %v5970
      %5972 = vmatprep.mubr.bf16.mxu0 %v5395
      %5973 = vmatmul.mubr.bf16.gmra.mrb[0].mxu0 %v5387
      %v5974 = vpop.f32.mrb[0].mxu0
      %v5975 = vadd.f32 0.0, %v5974
      %v5976 = vpop.f32.mrb[0].mxu0
      %v5977 = vadd.f32 0.0, %v5976
      %v5978 = vpop.f32.mrb[0].mxu0
      %v5979 = vpop.f32.mrb[0].mxu0
      %5980 = vmatprep.mubr.bf16.mxu0 %v5411
      %5981 = vmatmul.mubr.bf16.gmra.mrb[0].mxu0 %v5403
      %v5982 = vpop.f32.mrb[0].mxu0
      %v5983 = vadd.f32 0.0, %v5982
      %v5984 = vpop.f32.mrb[0].mxu0
      %v5985 = vadd.f32 0.0, %v5984
      %v5986 = vpop.f32.mrb[0].mxu0
      %v5987 = vadd.f32 0.0, %v5986
      %v5988 = vpop.f32.mrb[0].mxu0
      %v5989 = vadd.f32 0.0, %v5988
      %5990 = vmatprep.mubr.bf16.mxu0 %v5427
      %5991 = vmatmul.mubr.bf16.gmra.mrb[0].mxu0 %v5419
      %v5992 = vpop.f32.mrb[0].mxu0
      %v5993 = vadd.f32 0.0, %v5992
      %v5994 = vpop.f32.mrb[0].mxu0
      %v5995 = vadd.f32 0.0, %v5994
      %v5996 = vpop.f32.mrb[0].mxu0
      %v5997 = vpop.f32.mrb[0].mxu0
      %5998 = vmatprep.mubr.bf16.mxu0 %v5443
      %5999 = vmatmul.mubr.bf16.gmra.mrb[0].mxu0 %v5435
      %v6000 = vpop.f32.mrb[0].mxu0
      %v6001 = vadd.f32 0.0, %v6000
      %v6002 = vpop.f32.mrb[0].mxu0
      %v6003 = vadd.f32 0.0, %v6002
      %v6004 = vpop.f32.mrb[0].mxu0
      %v6005 = vadd.f32 0.0, %v6004
      %v6006 = vpop.f32.mrb[0].mxu0
      %v6007 = vadd.f32 0.0, %v6006
      %6008 = vmatprep.mubr.bf16.mxu0 %v5459
      %6009 = vmatmul.mubr.bf16.gmra.mrb[0].mxu0 %v5451
      %v6010 = vpop.f32.mrb[0].mxu0
      %v6011 = vadd.f32 0.0, %v6010
      %v6012 = vpop.f32.mrb[0].mxu0
      %v6013 = vadd.f32 0.0, %v6012
      %v6014 = vpop.f32.mrb[0].mxu0
      %v6015 = vpop.f32.mrb[0].mxu0
      %6016 = vmatprep.mubr.bf16.mxu0 %v5475
      %6017 = vmatmul.mubr.bf16.gmra.mrb[0].mxu0 %v5467
      %v6018 = vpop.f32.mrb[0].mxu0
      %v6019 = vadd.f32 0.0, %v6018
      %v6020 = vpop.f32.mrb[0].mxu0
      %v6021 = vadd.f32 0.0, %v6020
      %v6022 = vpop.f32.mrb[0].mxu0
      %v6023 = vadd.f32 0.0, %v6022
      %v6024 = vpop.f32.mrb[0].mxu0
      %v6025 = vadd.f32 0.0, %v6024
      %6026 = vmatprep.mubr.bf16.mxu0 %v5491
      %6027 = vmatmul.mubr.bf16.gmra.mrb[0].mxu0 %v5483
      %v6028 = vpop.f32.mrb[0].mxu0
      %v6029 = vadd.f32 0.0, %v6028
      %v6030 = vpop.f32.mrb[0].mxu0
      %v6031 = vadd.f32 0.0, %v6030
      %v6032 = vpop.f32.mrb[0].mxu0
      %v6033 = vpop.f32.mrb[0].mxu0
      %6034 = vmatprep.mubr.bf16.mxu0 %v5507
      %6035 = vmatmul.mubr.bf16.gmra.mrb[0].mxu0 %v5499
      %v6036 = vpop.f32.mrb[0].mxu0
      %v6037 = vadd.f32 0.0, %v6036
      %v6038 = vpop.f32.mrb[0].mxu0
      %v6039 = vadd.f32 0.0, %v6038
      %v6040 = vpop.f32.mrb[0].mxu0
      %v6041 = vadd.f32 0.0, %v6040
      %v6042 = vpop.f32.mrb[0].mxu0
      %v6043 = vadd.f32 0.0, %v6042
      %6044 = vmatprep.mubr.bf16.mxu0 %v5523
      %6045 = vmatmul.mubr.bf16.gmra.mrb[0].mxu0 %v5515
      %v6046 = vpop.f32.mrb[0].mxu0
      %v6047 = vadd.f32 0.0, %v6046
      %v6048 = vpop.f32.mrb[0].mxu0
      %v6049 = vadd.f32 0.0, %v6048
      %v6050 = vpop.f32.mrb[0].mxu0
      %v6051 = vpop.f32.mrb[0].mxu0
      %6052 = vdwg.mxu0
      %6053 = vmatprep.subr.bf16.mxu0 %v5751
      %6054 = vmatpush1.bf16.msra.mxu0 %v5750
      %6055 = vmatprep.subr.bf16.mxu0 %v5755
      %6056 = vmatpush1.bf16.msra.mxu0 %v5754
      %6057 = vmatprep.subr.bf16.mxu0 %v5759
      %6058 = vmatpush1.bf16.msra.mxu0 %v5758
      %6059 = vmatprep.subr.bf16.mxu0 %v5763
      %6060 = vmatpush1.bf16.msra.mxu0 %v5762
      %6061 = vmatprep.subr.bf16.mxu0 %v5767
      %6062 = vmatpush1.bf16.msra.mxu0 %v5766
      %6063 = vmatprep.subr.bf16.mxu0 %v5771
      %6064 = vmatpush1.bf16.msra.mxu0 %v5770
      %6065 = vmatprep.subr.bf16.mxu0 %v5775
      %6066 = vmatpush1.bf16.msra.mxu0 %v5774
      %6067 = vmatprep.subr.bf16.mxu0 %v5779
      %6068 = vmatpush1.bf16.msra.mxu0 %v5778
      %6069 = vmatprep.subr.bf16.mxu0 %v5783
      %6070 = vmatpush1.bf16.msra.mxu0 %v5782
      %6071 = vmatprep.subr.bf16.mxu0 %v5787
      %6072 = vmatpush1.bf16.msra.mxu0 %v5786
      %6073 = vmatprep.subr.bf16.mxu0 %v5791
      %6074 = vmatpush1.bf16.msra.mxu0 %v5790
      %6075 = vmatprep.subr.bf16.mxu0 %v5795
      %6076 = vmatpush1.bf16.msra.mxu0 %v5794
      %6077 = vmatprep.subr.bf16.mxu0 %v5799
      %6078 = vmatpush1.bf16.msra.mxu0 %v5798
      %6079 = vmatprep.subr.bf16.mxu0 %v5803
      %6080 = vmatpush1.bf16.msra.mxu0 %v5802
      %6081 = vmatprep.subr.bf16.mxu0 %v5807
      %6082 = vmatpush1.bf16.msra.mxu0 %v5806
      %6083 = vmatprep.subr.bf16.mxu0 %v5811
      %6084 = vmatpush1.bf16.msra.mxu0 %v5810
      %6085 = vmatprep.mubr.bf16.mxu0 %v5283
      %6086 = vmatmul.mubr.bf16.gmra.mrb[0].mxu0 %v5271
      %v6087 = vpop.f32.mrb[0].mxu0
      %v6088 = vadd.f32 0.0, %v6087
      %v6089 = vpop.f32.mrb[0].mxu0
      %v6090 = vadd.f32 0.0, %v6089
      %v6091 = vpop.f32.mrb[0].mxu0
      %v6092 = vadd.f32 0.0, %v6091
      %v6093 = vpop.f32.mrb[0].mxu0
      %v6094 = vadd.f32 0.0, %v6093
      %6095 = vmatprep.mubr.bf16.mxu0 %v5299
      %6096 = vmatmul.mubr.bf16.gmra.mrb[0].mxu0 %v5291
      %v6097 = vpop.f32.mrb[0].mxu0
      %v6098 = vadd.f32 0.0, %v6097
      %v6099 = vpop.f32.mrb[0].mxu0
      %v6100 = vadd.f32 0.0, %v6099
      %v6101 = vpop.f32.mrb[0].mxu0
      %v6102 = vpop.f32.mrb[0].mxu0
      %6103 = vmatprep.mubr.bf16.mxu0 %v5315
      %6104 = vmatmul.mubr.bf16.gmra.mrb[0].mxu0 %v5307
      %v6105 = vpop.f32.mrb[0].mxu0
      %v6106 = vadd.f32 0.0, %v6105
      %v6107 = vpop.f32.mrb[0].mxu0
      %v6108 = vadd.f32 0.0, %v6107
      %v6109 = vpop.f32.mrb[0].mxu0
      %v6110 = vadd.f32 0.0, %v6109
      %v6111 = vpop.f32.mrb[0].mxu0
      %v6112 = vadd.f32 0.0, %v6111
      %6113 = vmatprep.mubr.bf16.mxu0 %v5331
      %6114 = vmatmul.mubr.bf16.gmra.mrb[0].mxu0 %v5323
      %v6115 = vpop.f32.mrb[0].mxu0
      %v6116 = vadd.f32 0.0, %v6115
      %v6117 = vpop.f32.mrb[0].mxu0
      %v6118 = vadd.f32 0.0, %v6117
      %v6119 = vpop.f32.mrb[0].mxu0
      %v6120 = vpop.f32.mrb[0].mxu0
      %6121 = vmatprep.mubr.bf16.mxu0 %v5347
      %6122 = vmatmul.mubr.bf16.gmra.mrb[0].mxu0 %v5339
      %v6123 = vpop.f32.mrb[0].mxu0
      %v6124 = vadd.f32 0.0, %v6123
      %v6125 = vpop.f32.mrb[0].mxu0
      %v6126 = vadd.f32 0.0, %v6125
      %v6127 = vpop.f32.mrb[0].mxu0
      %v6128 = vadd.f32 0.0, %v6127
      %v6129 = vpop.f32.mrb[0].mxu0
      %v6130 = vadd.f32 0.0, %v6129
      %6131 = vmatprep.mubr.bf16.mxu0 %v5363
      %6132 = vmatmul.mubr.bf16.gmra.mrb[0].mxu0 %v5355
      %v6133 = vpop.f32.mrb[0].mxu0
      %v6134 = vadd.f32 0.0, %v6133
      %v6135 = vpop.f32.mrb[0].mxu0
      %v6136 = vadd.f32 0.0, %v6135
      %v6137 = vpop.f32.mrb[0].mxu0
      %v6138 = vpop.f32.mrb[0].mxu0
      %6139 = vmatprep.mubr.bf16.mxu0 %v5379
      %6140 = vmatmul.mubr.bf16.gmra.mrb[0].mxu0 %v5371
      %v6141 = vpop.f32.mrb[0].mxu0
      %v6142 = vadd.f32 0.0, %v6141
      %v6143 = vpop.f32.mrb[0].mxu0
      %v6144 = vadd.f32 0.0, %v6143
      %v6145 = vpop.f32.mrb[0].mxu0
      %v6146 = vadd.f32 0.0, %v6145
      %v6147 = vpop.f32.mrb[0].mxu0
      %v6148 = vadd.f32 0.0, %v6147
      %6149 = vmatprep.mubr.bf16.mxu0 %v5395
      %6150 = vmatmul.mubr.bf16.gmra.mrb[0].mxu0 %v5387
      %v6151 = vpop.f32.mrb[0].mxu0
      %v6152 = vadd.f32 0.0, %v6151
      %v6153 = vpop.f32.mrb[0].mxu0
      %v6154 = vadd.f32 0.0, %v6153
      %v6155 = vpop.f32.mrb[0].mxu0
      %v6156 = vpop.f32.mrb[0].mxu0
      %6157 = vmatprep.mubr.bf16.mxu0 %v5411
      %6158 = vmatmul.mubr.bf16.gmra.mrb[0].mxu0 %v5403
      %v6159 = vpop.f32.mrb[0].mxu0
      %v6160 = vadd.f32 0.0, %v6159
      %v6161 = vpop.f32.mrb[0].mxu0
      %v6162 = vadd.f32 0.0, %v6161
      %v6163 = vpop.f32.mrb[0].mxu0
      %v6164 = vadd.f32 0.0, %v6163
      %v6165 = vpop.f32.mrb[0].mxu0
      %v6166 = vadd.f32 0.0, %v6165
      %6167 = vmatprep.mubr.bf16.mxu0 %v5427
      %6168 = vmatmul.mubr.bf16.gmra.mrb[0].mxu0 %v5419
      %v6169 = vpop.f32.mrb[0].mxu0
      %v6170 = vadd.f32 0.0, %v6169
      %v6171 = vpop.f32.mrb[0].mxu0
      %v6172 = vadd.f32 0.0, %v6171
      %v6173 = vpop.f32.mrb[0].mxu0
      %v6174 = vpop.f32.mrb[0].mxu0
      %6175 = vmatprep.mubr.bf16.mxu0 %v5443
      %6176 = vmatmul.mubr.bf16.gmra.mrb[0].mxu0 %v5435
      %v6177 = vpop.f32.mrb[0].mxu0
      %v6178 = vadd.f32 0.0, %v6177
      %v6179 = vpop.f32.mrb[0].mxu0
      %v6180 = vadd.f32 0.0, %v6179
      %v6181 = vpop.f32.mrb[0].mxu0
      %v6182 = vadd.f32 0.0, %v6181
      %v6183 = vpop.f32.mrb[0].mxu0
      %v6184 = vadd.f32 0.0, %v6183
      %6185 = vmatprep.mubr.bf16.mxu0 %v5459
      %6186 = vmatmul.mubr.bf16.gmra.mrb[0].mxu0 %v5451
      %v6187 = vpop.f32.mrb[0].mxu0
      %v6188 = vadd.f32 0.0, %v6187
      %v6189 = vpop.f32.mrb[0].mxu0
      %v6190 = vadd.f32 0.0, %v6189
      %v6191 = vpop.f32.mrb[0].mxu0
      %v6192 = vpop.f32.mrb[0].mxu0
      %6193 = vmatprep.mubr.bf16.mxu0 %v5475
      %6194 = vmatmul.mubr.bf16.gmra.mrb[0].mxu0 %v5467
      %v6195 = vpop.f32.mrb[0].mxu0
      %v6196 = vadd.f32 0.0, %v6195
      %v6197 = vpop.f32.mrb[0].mxu0
      %v6198 = vadd.f32 0.0, %v6197
      %v6199 = vpop.f32.mrb[0].mxu0
      %v6200 = vadd.f32 0.0, %v6199
      %v6201 = vpop.f32.mrb[0].mxu0
      %v6202 = vadd.f32 0.0, %v6201
      %6203 = vmatprep.mubr.bf16.mxu0 %v5491
      %6204 = vmatmul.mubr.bf16.gmra.mrb[0].mxu0 %v5483
      %v6205 = vpop.f32.mrb[0].mxu0
      %v6206 = vadd.f32 0.0, %v6205
      %v6207 = vpop.f32.mrb[0].mxu0
      %v6208 = vadd.f32 0.0, %v6207
      %v6209 = vpop.f32.mrb[0].mxu0
      %v6210 = vpop.f32.mrb[0].mxu0
      %6211 = vmatprep.mubr.bf16.mxu0 %v5507
      %6212 = vmatmul.mubr.bf16.gmra.mrb[0].mxu0 %v5499
      %v6213 = vpop.f32.mrb[0].mxu0
      %v6214 = vadd.f32 0.0, %v6213
      %v6215 = vpop.f32.mrb[0].mxu0
      %v6216 = vadd.f32 0.0, %v6215
      %v6217 = vpop.f32.mrb[0].mxu0
      %v6218 = vadd.f32 0.0, %v6217
      %v6219 = vpop.f32.mrb[0].mxu0
      %v6220 = vadd.f32 0.0, %v6219
      %6221 = vmatprep.mubr.bf16.mxu0 %v5523
      %6222 = vmatmul.mubr.bf16.gmra.mrb[0].mxu0 %v5515
      %v6223 = vpop.f32.mrb[0].mxu0
      %v6224 = vadd.f32 0.0, %v6223
      %v6225 = vpop.f32.mrb[0].mxu0
      %v6226 = vadd.f32 0.0, %v6225
      %v6227 = vpop.f32.mrb[0].mxu0
      %v6228 = vpop.f32.mrb[0].mxu0
      %6229 = vdwg.mxu0
      %v6294 = vunpack.c.l.b16 %v5131
      %v6295 = vunpack.c.h.b16 %v5131
      %v6296 = vunpack.c.l.b16 %v5132
      %v6297 = vunpack.c.h.b16 %v5132
      %v6298 = vunpack.c.l.b16 %v5133
      %v6299 = vunpack.c.h.b16 %v5133
      %v6300 = vunpack.c.l.b16 %v5134
      %v6301 = vunpack.c.h.b16 %v5134
      %v6302 = vunpack.c.l.b16 %v5135
      %v6303 = vunpack.c.h.b16 %v5135
      %v6304 = vunpack.c.l.b16 %v5136
      %v6305 = vunpack.c.h.b16 %v5136
      %v6306 = vunpack.c.l.b16 %v5137
      %v6307 = vunpack.c.h.b16 %v5137
      %v6308 = vunpack.c.l.b16 %v5138
      %v6309 = vunpack.c.h.b16 %v5138
      %v6310 = vunpack.c.l.b16 %v5139
      %v6311 = vunpack.c.h.b16 %v5139
      %v6312 = vunpack.c.l.b16 %v5140
      %v6313 = vunpack.c.h.b16 %v5140
      %v6314 = vunpack.c.l.b16 %v5141
      %v6315 = vunpack.c.h.b16 %v5141
      %v6316 = vunpack.c.l.b16 %v5142
      %v6317 = vunpack.c.h.b16 %v5142
      %v6318 = vunpack.c.l.b16 %v5143
      %v6319 = vunpack.c.h.b16 %v5143
      %v6320 = vunpack.c.l.b16 %v5144
      %v6321 = vunpack.c.h.b16 %v5144
      %v6322 = vunpack.c.l.b16 %v5145
      %v6323 = vunpack.c.h.b16 %v5145
      %v6324 = vunpack.c.l.b16 %v5146
      %v6325 = vunpack.c.h.b16 %v5146
      %v6326 = vunpack.c.l.b16 %v5147
      %v6327 = vunpack.c.h.b16 %v5147
      %v6328 = vunpack.c.l.b16 %v5148
      %v6329 = vunpack.c.h.b16 %v5148
      %v6330 = vunpack.c.l.b16 %v5149
      %v6331 = vunpack.c.h.b16 %v5149
      %v6332 = vunpack.c.l.b16 %v5150
      %v6333 = vunpack.c.h.b16 %v5150
      %v6334 = vunpack.c.l.b16 %v5151
      %v6335 = vunpack.c.h.b16 %v5151
      %v6336 = vunpack.c.l.b16 %v5152
      %v6337 = vunpack.c.h.b16 %v5152
      %v6338 = vunpack.c.l.b16 %v5153
      %v6339 = vunpack.c.h.b16 %v5153
      %v6340 = vunpack.c.l.b16 %v5154
      %v6341 = vunpack.c.h.b16 %v5154
      %v6342 = vunpack.c.l.b16 %v5155
      %v6343 = vunpack.c.h.b16 %v5155
      %v6344 = vunpack.c.l.b16 %v5156
      %v6345 = vunpack.c.h.b16 %v5156
      %v6346 = vunpack.c.l.b16 %v5157
      %v6347 = vunpack.c.h.b16 %v5157
      %v6348 = vunpack.c.l.b16 %v5158
      %v6349 = vunpack.c.h.b16 %v5158
      %v6350 = vunpack.c.l.b16 %v5159
      %v6351 = vunpack.c.h.b16 %v5159
      %v6352 = vunpack.c.l.b16 %v5160
      %v6353 = vunpack.c.h.b16 %v5160
      %v6354 = vunpack.c.l.b16 %v5161
      %v6355 = vunpack.c.h.b16 %v5161
      %v6356 = vunpack.c.l.b16 %v5162
      %v6357 = vunpack.c.h.b16 %v5162
      %v6358 = vunpack.c.l.b16 %v5163
      %v6359 = vunpack.c.h.b16 %v5163
      %v6360 = vunpack.c.l.b16 %v5164
      %v6361 = vunpack.c.h.b16 %v5164
      %v6362 = vunpack.c.l.b16 %v5165
      %v6363 = vunpack.c.h.b16 %v5165
      %v6364 = vunpack.c.l.b16 %v5166
      %v6365 = vunpack.c.h.b16 %v5166
      %v6366 = vunpack.c.l.b16 %v5167
      %v6367 = vunpack.c.h.b16 %v5167
      %v6368 = vunpack.c.l.b16 %v5168
      %v6369 = vunpack.c.h.b16 %v5168
      %v6370 = vunpack.c.l.b16 %v5169
      %v6371 = vunpack.c.h.b16 %v5169
      %v6372 = vunpack.c.l.b16 %v5170
      %v6373 = vunpack.c.h.b16 %v5170
      %v6374 = vunpack.c.l.b16 %v5171
      %v6375 = vunpack.c.h.b16 %v5171
      %v6376 = vunpack.c.l.b16 %v5172
      %v6377 = vunpack.c.h.b16 %v5172
      %v6378 = vunpack.c.l.b16 %v5173
      %v6379 = vunpack.c.h.b16 %v5173
      %v6380 = vunpack.c.l.b16 %v5174
      %v6381 = vunpack.c.h.b16 %v5174
      %v6382 = vunpack.c.l.b16 %v5175
      %v6383 = vunpack.c.h.b16 %v5175
      %v6384 = vunpack.c.l.b16 %v5176
      %v6385 = vunpack.c.h.b16 %v5176
      %v6386 = vunpack.c.l.b16 %v5177
      %v6387 = vunpack.c.h.b16 %v5177
      %v6388 = vunpack.c.l.b16 %v5178
      %v6389 = vunpack.c.h.b16 %v5178
      %v6390 = vunpack.c.l.b16 %v5179
      %v6391 = vunpack.c.h.b16 %v5179
      %v6392 = vunpack.c.l.b16 %v5180
      %v6393 = vunpack.c.h.b16 %v5180
      %v6394 = vunpack.c.l.b16 %v5181
      %v6395 = vunpack.c.h.b16 %v5181
      %v6396 = vunpack.c.l.b16 %v5182
      %v6397 = vunpack.c.h.b16 %v5182
      %v6398 = vunpack.c.l.b16 %v5183
      %v6399 = vunpack.c.h.b16 %v5183
      %v6400 = vunpack.c.l.b16 %v5184
      %v6401 = vunpack.c.h.b16 %v5184
      %v6402 = vunpack.c.l.b16 %v5185
      %v6403 = vunpack.c.h.b16 %v5185
      %v6404 = vunpack.c.l.b16 %v5186
      %v6405 = vunpack.c.h.b16 %v5186
      %v6406 = vunpack.c.l.b16 %v5187
      %v6407 = vunpack.c.h.b16 %v5187
      %v6408 = vunpack.c.l.b16 %v5188
      %v6409 = vunpack.c.h.b16 %v5188
      %v6410 = vunpack.c.l.b16 %v5189
      %v6411 = vunpack.c.h.b16 %v5189
      %v6412 = vunpack.c.l.b16 %v5190
      %v6413 = vunpack.c.h.b16 %v5190
      %v6414 = vunpack.c.l.b16 %v5191
      %v6415 = vunpack.c.h.b16 %v5191
      %v6416 = vunpack.c.l.b16 %v5192
      %v6417 = vunpack.c.h.b16 %v5192
      %v6418 = vunpack.c.l.b16 %v5193
      %v6419 = vunpack.c.h.b16 %v5193
      %v6420 = vunpack.c.l.b16 %v5194
      %v6421 = vunpack.c.h.b16 %v5194
      %v6422 = vpack.c.b16 %v6298, %v6294
      %v6423 = vpack.c.b16 %v6299, %v6295
      %v6424 = vpack.c.b16 %v6300, %v6296
      %v6425 = vpack.c.b16 %v6301, %v6297
      %v6426 = vpack.c.b16 %v6306, %v6302
      %v6427 = vpack.c.b16 %v6307, %v6303
      %v6428 = vpack.c.b16 %v6308, %v6304
      %v6429 = vpack.c.b16 %v6309, %v6305
      %v6430 = vpack.c.b16 %v6314, %v6310
      %v6431 = vpack.c.b16 %v6315, %v6311
      %v6432 = vpack.c.b16 %v6316, %v6312
      %v6433 = vpack.c.b16 %v6317, %v6313
      %v6434 = vpack.c.b16 %v6322, %v6318
      %v6435 = vpack.c.b16 %v6323, %v6319
      %v6436 = vpack.c.b16 %v6324, %v6320
      %v6437 = vpack.c.b16 %v6325, %v6321
      %v6438 = vpack.c.b16 %v6330, %v6326
      %v6439 = vpack.c.b16 %v6331, %v6327
      %v6440 = vpack.c.b16 %v6332, %v6328
      %v6441 = vpack.c.b16 %v6333, %v6329
      %v6442 = vpack.c.b16 %v6338, %v6334
      %v6443 = vpack.c.b16 %v6339, %v6335
      %v6444 = vpack.c.b16 %v6340, %v6336
      %v6445 = vpack.c.b16 %v6341, %v6337
      %v6446 = vpack.c.b16 %v6346, %v6342
      %v6447 = vpack.c.b16 %v6347, %v6343
      %v6448 = vpack.c.b16 %v6348, %v6344
      %v6449 = vpack.c.b16 %v6349, %v6345
      %v6450 = vpack.c.b16 %v6354, %v6350
      %v6451 = vpack.c.b16 %v6355, %v6351
      %v6452 = vpack.c.b16 %v6356, %v6352
      %v6453 = vpack.c.b16 %v6357, %v6353
      %v6454 = vpack.c.b16 %v6362, %v6358
      %v6455 = vpack.c.b16 %v6363, %v6359
      %v6456 = vpack.c.b16 %v6364, %v6360
      %v6457 = vpack.c.b16 %v6365, %v6361
      %v6458 = vpack.c.b16 %v6370, %v6366
      %v6459 = vpack.c.b16 %v6371, %v6367
      %v6460 = vpack.c.b16 %v6372, %v6368
      %v6461 = vpack.c.b16 %v6373, %v6369
      %v6462 = vpack.c.b16 %v6378, %v6374
      %v6463 = vpack.c.b16 %v6379, %v6375
      %v6464 = vpack.c.b16 %v6380, %v6376
      %v6465 = vpack.c.b16 %v6381, %v6377
      %v6466 = vpack.c.b16 %v6386, %v6382
      %v6467 = vpack.c.b16 %v6387, %v6383
      %v6468 = vpack.c.b16 %v6388, %v6384
      %v6469 = vpack.c.b16 %v6389, %v6385
      %v6470 = vpack.c.b16 %v6394, %v6390
      %v6471 = vpack.c.b16 %v6395, %v6391
      %v6472 = vpack.c.b16 %v6396, %v6392
      %v6473 = vpack.c.b16 %v6397, %v6393
      %v6474 = vpack.c.b16 %v6402, %v6398
      %v6475 = vpack.c.b16 %v6403, %v6399
      %v6476 = vpack.c.b16 %v6404, %v6400
      %v6477 = vpack.c.b16 %v6405, %v6401
      %v6478 = vpack.c.b16 %v6410, %v6406
      %v6479 = vpack.c.b16 %v6411, %v6407
      %v6480 = vpack.c.b16 %v6412, %v6408
      %v6481 = vpack.c.b16 %v6413, %v6409
      %v6482 = vpack.c.b16 %v6418, %v6414
      %v6483 = vpack.c.b16 %v6419, %v6415
      %v6484 = vpack.c.b16 %v6420, %v6416
      %v6485 = vpack.c.b16 %v6421, %v6417
      %6550 = vmatprep.subr.bf16.mxu0 %v6423
      %6551 = vmatpush1.bf16.msra.mxu0 %v6422
      %6552 = vmatprep.subr.bf16.mxu0 %v6427
      %6553 = vmatpush1.bf16.msra.mxu0 %v6426
      %6554 = vmatprep.subr.bf16.mxu0 %v6431
      %6555 = vmatpush1.bf16.msra.mxu0 %v6430
      %6556 = vmatprep.subr.bf16.mxu0 %v6435
      %6557 = vmatpush1.bf16.msra.mxu0 %v6434
      %6558 = vmatprep.subr.bf16.mxu0 %v6439
      %6559 = vmatpush1.bf16.msra.mxu0 %v6438
      %6560 = vmatprep.subr.bf16.mxu0 %v6443
      %6561 = vmatpush1.bf16.msra.mxu0 %v6442
      %6562 = vmatprep.subr.bf16.mxu0 %v6447
      %6563 = vmatpush1.bf16.msra.mxu0 %v6446
      %6564 = vmatprep.subr.bf16.mxu0 %v6451
      %6565 = vmatpush1.bf16.msra.mxu0 %v6450
      %6566 = vmatprep.subr.bf16.mxu0 %v6455
      %6567 = vmatpush1.bf16.msra.mxu0 %v6454
      %6568 = vmatprep.subr.bf16.mxu0 %v6459
      %6569 = vmatpush1.bf16.msra.mxu0 %v6458
      %6570 = vmatprep.subr.bf16.mxu0 %v6463
      %6571 = vmatpush1.bf16.msra.mxu0 %v6462
      %6572 = vmatprep.subr.bf16.mxu0 %v6467
      %6573 = vmatpush1.bf16.msra.mxu0 %v6466
      %6574 = vmatprep.subr.bf16.mxu0 %v6471
      %6575 = vmatpush1.bf16.msra.mxu0 %v6470
      %6576 = vmatprep.subr.bf16.mxu0 %v6475
      %6577 = vmatpush1.bf16.msra.mxu0 %v6474
      %6578 = vmatprep.subr.bf16.mxu0 %v6479
      %6579 = vmatpush1.bf16.msra.mxu0 %v6478
      %6580 = vmatprep.subr.bf16.mxu0 %v6483
      %6581 = vmatpush1.bf16.msra.mxu0 %v6482
      %6582 = vmatprep.mubr.bf16.mxu0 %v5098
      %6583 = vmatmul.mubr.bf16.gmra.mrb[0].mxu0 %v5097
      %v6584 = vpop.f32.mrb[0].mxu0
      %v6585 = vadd.f32 %v5911, %v6584
      %v6586 = vpop.f32.mrb[0].mxu0
      %v6587 = vadd.f32 %v5913, %v6586
      %v6588 = vpop.f32.mrb[0].mxu0
      %v6589 = vadd.f32 %v5915, %v6588
      %v6590 = vpop.f32.mrb[0].mxu0
      %v6591 = vadd.f32 %v5917, %v6590
      %6592 = vmatprep.mubr.bf16.mxu0 %v5100
      %6593 = vmatmul.mubr.bf16.gmra.mrb[0].mxu0 %v5099
      %v6594 = vpop.f32.mrb[0].mxu0
      %v6595 = vadd.f32 %v5921, %v6594
      %v6596 = vpop.f32.mrb[0].mxu0
      %v6597 = vadd.f32 %v5923, %v6596
      %v6598 = vpop.f32.mrb[0].mxu0
      %v6599 = vpop.f32.mrb[0].mxu0
      %6600 = vmatprep.mubr.bf16.mxu0 %v5102
      %6601 = vmatmul.mubr.bf16.gmra.mrb[0].mxu0 %v5101
      %v6602 = vpop.f32.mrb[0].mxu0
      %v6603 = vadd.f32 %v5929, %v6602
      %v6604 = vpop.f32.mrb[0].mxu0
      %v6605 = vadd.f32 %v5931, %v6604
      %v6606 = vpop.f32.mrb[0].mxu0
      %v6607 = vadd.f32 %v5933, %v6606
      %v6608 = vpop.f32.mrb[0].mxu0
      %v6609 = vadd.f32 %v5935, %v6608
      %6610 = vmatprep.mubr.bf16.mxu0 %v5104
      %6611 = vmatmul.mubr.bf16.gmra.mrb[0].mxu0 %v5103
      %v6612 = vpop.f32.mrb[0].mxu0
      %v6613 = vadd.f32 %v5939, %v6612
      %v6614 = vpop.f32.mrb[0].mxu0
      %v6615 = vadd.f32 %v5941, %v6614
      %v6616 = vpop.f32.mrb[0].mxu0
      %v6617 = vpop.f32.mrb[0].mxu0
      %6618 = vmatprep.mubr.bf16.mxu0 %v5106
      %6619 = vmatmul.mubr.bf16.gmra.mrb[0].mxu0 %v5105
      %v6620 = vpop.f32.mrb[0].mxu0
      %v6621 = vadd.f32 %v5947, %v6620
      %v6622 = vpop.f32.mrb[0].mxu0
      %v6623 = vadd.f32 %v5949, %v6622
      %v6624 = vpop.f32.mrb[0].mxu0
      %v6625 = vadd.f32 %v5951, %v6624
      %v6626 = vpop.f32.mrb[0].mxu0
      %v6627 = vadd.f32 %v5953, %v6626
      %6628 = vmatprep.mubr.bf16.mxu0 %v5108
      %6629 = vmatmul.mubr.bf16.gmra.mrb[0].mxu0 %v5107
      %v6630 = vpop.f32.mrb[0].mxu0
      %v6631 = vadd.f32 %v5957, %v6630
      %v6632 = vpop.f32.mrb[0].mxu0
      %v6633 = vadd.f32 %v5959, %v6632
      %v6634 = vpop.f32.mrb[0].mxu0
      %v6635 = vpop.f32.mrb[0].mxu0
      %6636 = vmatprep.mubr.bf16.mxu0 %v5110
      %6637 = vmatmul.mubr.bf16.gmra.mrb[0].mxu0 %v5109
      %v6638 = vpop.f32.mrb[0].mxu0
      %v6639 = vadd.f32 %v5965, %v6638
      %v6640 = vpop.f32.mrb[0].mxu0
      %v6641 = vadd.f32 %v5967, %v6640
      %v6642 = vpop.f32.mrb[0].mxu0
      %v6643 = vadd.f32 %v5969, %v6642
      %v6644 = vpop.f32.mrb[0].mxu0
      %v6645 = vadd.f32 %v5971, %v6644
      %6646 = vmatprep.mubr.bf16.mxu0 %v5112
      %6647 = vmatmul.mubr.bf16.gmra.mrb[0].mxu0 %v5111
      %v6648 = vpop.f32.mrb[0].mxu0
      %v6649 = vadd.f32 %v5975, %v6648
      %v6650 = vpop.f32.mrb[0].mxu0
      %v6651 = vadd.f32 %v5977, %v6650
      %v6652 = vpop.f32.mrb[0].mxu0
      %v6653 = vpop.f32.mrb[0].mxu0
      %6654 = vmatprep.mubr.bf16.mxu0 %v5114
      %6655 = vmatmul.mubr.bf16.gmra.mrb[0].mxu0 %v5113
      %v6656 = vpop.f32.mrb[0].mxu0
      %v6657 = vadd.f32 %v5983, %v6656
      %v6658 = vpop.f32.mrb[0].mxu0
      %v6659 = vadd.f32 %v5985, %v6658
      %v6660 = vpop.f32.mrb[0].mxu0
      %v6661 = vadd.f32 %v5987, %v6660
      %v6662 = vpop.f32.mrb[0].mxu0
      %v6663 = vadd.f32 %v5989, %v6662
      %6664 = vmatprep.mubr.bf16.mxu0 %v5116
      %6665 = vmatmul.mubr.bf16.gmra.mrb[0].mxu0 %v5115
      %v6666 = vpop.f32.mrb[0].mxu0
      %v6667 = vadd.f32 %v5993, %v6666
      %v6668 = vpop.f32.mrb[0].mxu0
      %v6669 = vadd.f32 %v5995, %v6668
      %v6670 = vpop.f32.mrb[0].mxu0
      %v6671 = vpop.f32.mrb[0].mxu0
      %6672 = vmatprep.mubr.bf16.mxu0 %v5118
      %6673 = vmatmul.mubr.bf16.gmra.mrb[0].mxu0 %v5117
      %v6674 = vpop.f32.mrb[0].mxu0
      %v6675 = vadd.f32 %v6001, %v6674
      %v6676 = vpop.f32.mrb[0].mxu0
      %v6677 = vadd.f32 %v6003, %v6676
      %v6678 = vpop.f32.mrb[0].mxu0
      %v6679 = vadd.f32 %v6005, %v6678
      %v6680 = vpop.f32.mrb[0].mxu0
      %v6681 = vadd.f32 %v6007, %v6680
      %6682 = vmatprep.mubr.bf16.mxu0 %v5120
      %6683 = vmatmul.mubr.bf16.gmra.mrb[0].mxu0 %v5119
      %v6684 = vpop.f32.mrb[0].mxu0
      %v6685 = vadd.f32 %v6011, %v6684
      %v6686 = vpop.f32.mrb[0].mxu0
      %v6687 = vadd.f32 %v6013, %v6686
      %v6688 = vpop.f32.mrb[0].mxu0
      %v6689 = vpop.f32.mrb[0].mxu0
      %6690 = vmatprep.mubr.bf16.mxu0 %v5122
      %6691 = vmatmul.mubr.bf16.gmra.mrb[0].mxu0 %v5121
      %v6692 = vpop.f32.mrb[0].mxu0
      %v6693 = vadd.f32 %v6019, %v6692
      %v6694 = vpop.f32.mrb[0].mxu0
      %v6695 = vadd.f32 %v6021, %v6694
      %v6696 = vpop.f32.mrb[0].mxu0
      %v6697 = vadd.f32 %v6023, %v6696
      %v6698 = vpop.f32.mrb[0].mxu0
      %v6699 = vadd.f32 %v6025, %v6698
      %6700 = vmatprep.mubr.bf16.mxu0 %v5124
      %6701 = vmatmul.mubr.bf16.gmra.mrb[0].mxu0 %v5123
      %v6702 = vpop.f32.mrb[0].mxu0
      %v6703 = vadd.f32 %v6029, %v6702
      %v6704 = vpop.f32.mrb[0].mxu0
      %v6705 = vadd.f32 %v6031, %v6704
      %v6706 = vpop.f32.mrb[0].mxu0
      %v6707 = vpop.f32.mrb[0].mxu0
      %6708 = vmatprep.mubr.bf16.mxu0 %v5126
      %6709 = vmatmul.mubr.bf16.gmra.mrb[0].mxu0 %v5125
      %v6710 = vpop.f32.mrb[0].mxu0
      %v6711 = vadd.f32 %v6037, %v6710
      %v6712 = vpop.f32.mrb[0].mxu0
      %v6713 = vadd.f32 %v6039, %v6712
      %v6714 = vpop.f32.mrb[0].mxu0
      %v6715 = vadd.f32 %v6041, %v6714
      %v6716 = vpop.f32.mrb[0].mxu0
      %v6717 = vadd.f32 %v6043, %v6716
      %6718 = vmatprep.mubr.bf16.mxu0 %v5128
      %6719 = vmatmul.mubr.bf16.gmra.mrb[0].mxu0 %v5127
      %v6720 = vpop.f32.mrb[0].mxu0
      %v6721 = vadd.f32 %v6047, %v6720
      %v6722 = vpop.f32.mrb[0].mxu0
      %v6723 = vadd.f32 %v6049, %v6722
      %v6724 = vpop.f32.mrb[0].mxu0
      %v6725 = vpop.f32.mrb[0].mxu0
      %6726 = vdwg.mxu0
      %6727 = vmatprep.subr.bf16.mxu0 %v6425
      %6728 = vmatpush1.bf16.msra.mxu0 %v6424
      %6729 = vmatprep.subr.bf16.mxu0 %v6429
      %6730 = vmatpush1.bf16.msra.mxu0 %v6428
      %6731 = vmatprep.subr.bf16.mxu0 %v6433
      %6732 = vmatpush1.bf16.msra.mxu0 %v6432
      %6733 = vmatprep.subr.bf16.mxu0 %v6437
      %6734 = vmatpush1.bf16.msra.mxu0 %v6436
      %6735 = vmatprep.subr.bf16.mxu0 %v6441
      %6736 = vmatpush1.bf16.msra.mxu0 %v6440
      %6737 = vmatprep.subr.bf16.mxu0 %v6445
      %6738 = vmatpush1.bf16.msra.mxu0 %v6444
      %6739 = vmatprep.subr.bf16.mxu0 %v6449
      %6740 = vmatpush1.bf16.msra.mxu0 %v6448
      %6741 = vmatprep.subr.bf16.mxu0 %v6453
      %6742 = vmatpush1.bf16.msra.mxu0 %v6452
      %6743 = vmatprep.subr.bf16.mxu0 %v6457
      %6744 = vmatpush1.bf16.msra.mxu0 %v6456
      %6745 = vmatprep.subr.bf16.mxu0 %v6461
      %6746 = vmatpush1.bf16.msra.mxu0 %v6460
      %6747 = vmatprep.subr.bf16.mxu0 %v6465
      %6748 = vmatpush1.bf16.msra.mxu0 %v6464
      %6749 = vmatprep.subr.bf16.mxu0 %v6469
      %6750 = vmatpush1.bf16.msra.mxu0 %v6468
      %6751 = vmatprep.subr.bf16.mxu0 %v6473
      %6752 = vmatpush1.bf16.msra.mxu0 %v6472
      %6753 = vmatprep.subr.bf16.mxu0 %v6477
      %6754 = vmatpush1.bf16.msra.mxu0 %v6476
      %6755 = vmatprep.subr.bf16.mxu0 %v6481
      %6756 = vmatpush1.bf16.msra.mxu0 %v6480
      %6757 = vmatprep.subr.bf16.mxu0 %v6485
      %6758 = vmatpush1.bf16.msra.mxu0 %v6484
      %6759 = vmatprep.mubr.bf16.mxu0 %v5098
      %6760 = vmatmul.mubr.bf16.gmra.mrb[0].mxu0 %v5097
      %v6761 = vpop.f32.mrb[0].mxu0
      %v6762 = vadd.f32 %v6088, %v6761
      %v6763 = vpop.f32.mrb[0].mxu0
      %v6764 = vadd.f32 %v6090, %v6763
      %v6765 = vpop.f32.mrb[0].mxu0
      %v6766 = vadd.f32 %v6092, %v6765
      %v6767 = vpop.f32.mrb[0].mxu0
      %v6768 = vadd.f32 %v6094, %v6767
      %6769 = vmatprep.mubr.bf16.mxu0 %v5100
      %6770 = vmatmul.mubr.bf16.gmra.mrb[0].mxu0 %v5099
      %v6771 = vpop.f32.mrb[0].mxu0
      %v6772 = vadd.f32 %v6098, %v6771
      %v6773 = vpop.f32.mrb[0].mxu0
      %v6774 = vadd.f32 %v6100, %v6773
      %v6775 = vpop.f32.mrb[0].mxu0
      %v6776 = vpop.f32.mrb[0].mxu0
      %6777 = vmatprep.mubr.bf16.mxu0 %v5102
      %6778 = vmatmul.mubr.bf16.gmra.mrb[0].mxu0 %v5101
      %v6779 = vpop.f32.mrb[0].mxu0
      %v6780 = vadd.f32 %v6106, %v6779
      %v6781 = vpop.f32.mrb[0].mxu0
      %v6782 = vadd.f32 %v6108, %v6781
      %v6783 = vpop.f32.mrb[0].mxu0
      %v6784 = vadd.f32 %v6110, %v6783
      %v6785 = vpop.f32.mrb[0].mxu0
      %v6786 = vadd.f32 %v6112, %v6785
      %6787 = vmatprep.mubr.bf16.mxu0 %v5104
      %6788 = vmatmul.mubr.bf16.gmra.mrb[0].mxu0 %v5103
      %v6789 = vpop.f32.mrb[0].mxu0
      %v6790 = vadd.f32 %v6116, %v6789
      %v6791 = vpop.f32.mrb[0].mxu0
      %v6792 = vadd.f32 %v6118, %v6791
      %v6793 = vpop.f32.mrb[0].mxu0
      %v6794 = vpop.f32.mrb[0].mxu0
      %6795 = vmatprep.mubr.bf16.mxu0 %v5106
      %6796 = vmatmul.mubr.bf16.gmra.mrb[0].mxu0 %v5105
      %v6797 = vpop.f32.mrb[0].mxu0
      %v6798 = vadd.f32 %v6124, %v6797
      %v6799 = vpop.f32.mrb[0].mxu0
      %v6800 = vadd.f32 %v6126, %v6799
      %v6801 = vpop.f32.mrb[0].mxu0
      %v6802 = vadd.f32 %v6128, %v6801
      %v6803 = vpop.f32.mrb[0].mxu0
      %v6804 = vadd.f32 %v6130, %v6803
      %6805 = vmatprep.mubr.bf16.mxu0 %v5108
      %6806 = vmatmul.mubr.bf16.gmra.mrb[0].mxu0 %v5107
      %v6807 = vpop.f32.mrb[0].mxu0
      %v6808 = vadd.f32 %v6134, %v6807
      %v6809 = vpop.f32.mrb[0].mxu0
      %v6810 = vadd.f32 %v6136, %v6809
      %v6811 = vpop.f32.mrb[0].mxu0
      %v6812 = vpop.f32.mrb[0].mxu0
      %6813 = vmatprep.mubr.bf16.mxu0 %v5110
      %6814 = vmatmul.mubr.bf16.gmra.mrb[0].mxu0 %v5109
      %v6815 = vpop.f32.mrb[0].mxu0
      %v6816 = vadd.f32 %v6142, %v6815
      %v6817 = vpop.f32.mrb[0].mxu0
      %v6818 = vadd.f32 %v6144, %v6817
      %v6819 = vpop.f32.mrb[0].mxu0
      %v6820 = vadd.f32 %v6146, %v6819
      %v6821 = vpop.f32.mrb[0].mxu0
      %v6822 = vadd.f32 %v6148, %v6821
      %6823 = vmatprep.mubr.bf16.mxu0 %v5112
      %6824 = vmatmul.mubr.bf16.gmra.mrb[0].mxu0 %v5111
      %v6825 = vpop.f32.mrb[0].mxu0
      %v6826 = vadd.f32 %v6152, %v6825
      %v6827 = vpop.f32.mrb[0].mxu0
      %v6828 = vadd.f32 %v6154, %v6827
      %v6829 = vpop.f32.mrb[0].mxu0
      %v6830 = vpop.f32.mrb[0].mxu0
      %6831 = vmatprep.mubr.bf16.mxu0 %v5114
      %6832 = vmatmul.mubr.bf16.gmra.mrb[0].mxu0 %v5113
      %v6833 = vpop.f32.mrb[0].mxu0
      %v6834 = vadd.f32 %v6160, %v6833
      %v6835 = vpop.f32.mrb[0].mxu0
      %v6836 = vadd.f32 %v6162, %v6835
      %v6837 = vpop.f32.mrb[0].mxu0
      %v6838 = vadd.f32 %v6164, %v6837
      %v6839 = vpop.f32.mrb[0].mxu0
      %v6840 = vadd.f32 %v6166, %v6839
      %6841 = vmatprep.mubr.bf16.mxu0 %v5116
      %6842 = vmatmul.mubr.bf16.gmra.mrb[0].mxu0 %v5115
      %v6843 = vpop.f32.mrb[0].mxu0
      %v6844 = vadd.f32 %v6170, %v6843
      %v6845 = vpop.f32.mrb[0].mxu0
      %v6846 = vadd.f32 %v6172, %v6845
      %v6847 = vpop.f32.mrb[0].mxu0
      %v6848 = vpop.f32.mrb[0].mxu0
      %6849 = vmatprep.mubr.bf16.mxu0 %v5118
      %6850 = vmatmul.mubr.bf16.gmra.mrb[0].mxu0 %v5117
      %v6851 = vpop.f32.mrb[0].mxu0
      %v6852 = vadd.f32 %v6178, %v6851
      %v6853 = vpop.f32.mrb[0].mxu0
      %v6854 = vadd.f32 %v6180, %v6853
      %v6855 = vpop.f32.mrb[0].mxu0
      %v6856 = vadd.f32 %v6182, %v6855
      %v6857 = vpop.f32.mrb[0].mxu0
      %v6858 = vadd.f32 %v6184, %v6857
      %6859 = vmatprep.mubr.bf16.mxu0 %v5120
      %6860 = vmatmul.mubr.bf16.gmra.mrb[0].mxu0 %v5119
      %v6861 = vpop.f32.mrb[0].mxu0
      %v6862 = vadd.f32 %v6188, %v6861
      %v6863 = vpop.f32.mrb[0].mxu0
      %v6864 = vadd.f32 %v6190, %v6863
      %v6865 = vpop.f32.mrb[0].mxu0
      %v6866 = vpop.f32.mrb[0].mxu0
      %6867 = vmatprep.mubr.bf16.mxu0 %v5122
      %6868 = vmatmul.mubr.bf16.gmra.mrb[0].mxu0 %v5121
      %v6869 = vpop.f32.mrb[0].mxu0
      %v6870 = vadd.f32 %v6196, %v6869
      %v6871 = vpop.f32.mrb[0].mxu0
      %v6872 = vadd.f32 %v6198, %v6871
      %v6873 = vpop.f32.mrb[0].mxu0
      %v6874 = vadd.f32 %v6200, %v6873
      %v6875 = vpop.f32.mrb[0].mxu0
      %v6876 = vadd.f32 %v6202, %v6875
      %6877 = vmatprep.mubr.bf16.mxu0 %v5124
      %6878 = vmatmul.mubr.bf16.gmra.mrb[0].mxu0 %v5123
      %v6879 = vpop.f32.mrb[0].mxu0
      %v6880 = vadd.f32 %v6206, %v6879
      %v6881 = vpop.f32.mrb[0].mxu0
      %v6882 = vadd.f32 %v6208, %v6881
      %v6883 = vpop.f32.mrb[0].mxu0
      %v6884 = vpop.f32.mrb[0].mxu0
      %6885 = vmatprep.mubr.bf16.mxu0 %v5126
      %6886 = vmatmul.mubr.bf16.gmra.mrb[0].mxu0 %v5125
      %v6887 = vpop.f32.mrb[0].mxu0
      %v6888 = vadd.f32 %v6214, %v6887
      %v6889 = vpop.f32.mrb[0].mxu0
      %v6890 = vadd.f32 %v6216, %v6889
      %v6891 = vpop.f32.mrb[0].mxu0
      %v6892 = vadd.f32 %v6218, %v6891
      %v6893 = vpop.f32.mrb[0].mxu0
      %v6894 = vadd.f32 %v6220, %v6893
      %6895 = vmatprep.mubr.bf16.mxu0 %v5128
      %6896 = vmatmul.mubr.bf16.gmra.mrb[0].mxu0 %v5127
      %v6897 = vpop.f32.mrb[0].mxu0
      %v6898 = vadd.f32 %v6224, %v6897
      %v6899 = vpop.f32.mrb[0].mxu0
      %v6900 = vadd.f32 %v6226, %v6899
      %v6901 = vpop.f32.mrb[0].mxu0
      %v6902 = vpop.f32.mrb[0].mxu0
      %6903 = vdwg.mxu0
      %s6904 = scalar_lea.vmem %s14, 1024
      %v6905 = vld [vmem:[%s6904] sm:$0xff]
      %v6906 = vld [vmem:[%s6904 + $0x8] sm:$0xff]
      %v6907 = vld [vmem:[%s6904 + $0x10] sm:$0xff]
      %v6908 = vld [vmem:[%s6904 + $0x18] sm:$0xff]
      %v6909 = vld [vmem:[%s6904 + $0x20] sm:$0xff]
      %v6910 = vld [vmem:[%s6904 + $0x28] sm:$0xff]
      %v6911 = vld [vmem:[%s6904 + $0x30] sm:$0xff]
      %v6912 = vld [vmem:[%s6904 + $0x38] sm:$0xff]
      %v6913 = vld [vmem:[%s6904 + $0x40] sm:$0xff]
      %v6914 = vld [vmem:[%s6904 + $0x48] sm:$0xff]
      %v6915 = vld [vmem:[%s6904 + $0x50] sm:$0xff]
      %v6916 = vld [vmem:[%s6904 + $0x58] sm:$0xff]
      %v6917 = vld [vmem:[%s6904 + $0x60] sm:$0xff]
      %v6918 = vld [vmem:[%s6904 + $0x68] sm:$0xff]
      %v6919 = vld [vmem:[%s6904 + $0x70] sm:$0xff]
      %v6920 = vld [vmem:[%s6904 + $0x78] sm:$0xff]
      %v6921 = vld [vmem:[%s6904 + $0x80] sm:$0xff]
      %v6922 = vld [vmem:[%s6904 + $0x88] sm:$0xff]
      %v6923 = vld [vmem:[%s6904 + $0x90] sm:$0xff]
      %v6924 = vld [vmem:[%s6904 + $0x98] sm:$0xff]
      %v6925 = vld [vmem:[%s6904 + $0xa0] sm:$0xff]
      %v6926 = vld [vmem:[%s6904 + $0xa8] sm:$0xff]
      %v6927 = vld [vmem:[%s6904 + $0xb0] sm:$0xff]
      %v6928 = vld [vmem:[%s6904 + $0xb8] sm:$0xff]
      %v6929 = vld [vmem:[%s6904 + $0xc0] sm:$0xff]
      %v6930 = vld [vmem:[%s6904 + $0xc8] sm:$0xff]
      %v6931 = vld [vmem:[%s6904 + $0xd0] sm:$0xff]
      %v6932 = vld [vmem:[%s6904 + $0xd8] sm:$0xff]
      %v6933 = vld [vmem:[%s6904 + $0xe0] sm:$0xff]
      %v6934 = vld [vmem:[%s6904 + $0xe8] sm:$0xff]
      %v6935 = vld [vmem:[%s6904 + $0xf0] sm:$0xff]
      %v6936 = vld [vmem:[%s6904 + $0xf8] sm:$0xff]
      %v6937 = vld [vmem:[%s6904 + $0x100] sm:$0xff]
      %v6938 = vld [vmem:[%s6904 + $0x108] sm:$0xff]
      %v6939 = vld [vmem:[%s6904 + $0x110] sm:$0xff]
      %v6940 = vld [vmem:[%s6904 + $0x118] sm:$0xff]
      %v6941 = vld [vmem:[%s6904 + $0x120] sm:$0xff]
      %v6942 = vld [vmem:[%s6904 + $0x128] sm:$0xff]
      %v6943 = vld [vmem:[%s6904 + $0x130] sm:$0xff]
      %v6944 = vld [vmem:[%s6904 + $0x138] sm:$0xff]
      %v6945 = vld [vmem:[%s6904 + $0x140] sm:$0xff]
      %v6946 = vld [vmem:[%s6904 + $0x148] sm:$0xff]
      %v6947 = vld [vmem:[%s6904 + $0x150] sm:$0xff]
      %v6948 = vld [vmem:[%s6904 + $0x158] sm:$0xff]
      %v6949 = vld [vmem:[%s6904 + $0x160] sm:$0xff]
      %v6950 = vld [vmem:[%s6904 + $0x168] sm:$0xff]
      %v6951 = vld [vmem:[%s6904 + $0x170] sm:$0xff]
      %v6952 = vld [vmem:[%s6904 + $0x178] sm:$0xff]
      %v6953 = vld [vmem:[%s6904 + $0x180] sm:$0xff]
      %v6954 = vld [vmem:[%s6904 + $0x188] sm:$0xff]
      %v6955 = vld [vmem:[%s6904 + $0x190] sm:$0xff]
      %v6956 = vld [vmem:[%s6904 + $0x198] sm:$0xff]
      %v6957 = vld [vmem:[%s6904 + $0x1a0] sm:$0xff]
      %v6958 = vld [vmem:[%s6904 + $0x1a8] sm:$0xff]
      %v6959 = vld [vmem:[%s6904 + $0x1b0] sm:$0xff]
      %v6960 = vld [vmem:[%s6904 + $0x1b8] sm:$0xff]
      %v6961 = vld [vmem:[%s6904 + $0x1c0] sm:$0xff]
      %v6962 = vld [vmem:[%s6904 + $0x1c8] sm:$0xff]
      %v6963 = vld [vmem:[%s6904 + $0x1d0] sm:$0xff]
      %v6964 = vld [vmem:[%s6904 + $0x1d8] sm:$0xff]
      %v6965 = vld [vmem:[%s6904 + $0x1e0] sm:$0xff]
      %v6966 = vld [vmem:[%s6904 + $0x1e8] sm:$0xff]
      %v6967 = vld [vmem:[%s6904 + $0x1f0] sm:$0xff]
      %v6968 = vld [vmem:[%s6904 + $0x1f8] sm:$0xff]
      %v7003 = vrot.slane %v5097, 1
      %v7004 = vrot.slane %v5099, 1
      %v7005 = vsel %vm2121, %v7003, %v7004
      %v7006 = vrot.slane %v5098, 1
      %v7007 = vrot.slane %v5100, 1
      %v7008 = vsel %vm2121, %v7006, %v7007
      %v7009 = vrot.slane %v5101, 1
      %v7010 = vsel %vm2121, %v7004, %v7009
      %v7011 = vrot.slane %v5102, 1
      %v7012 = vsel %vm2121, %v7007, %v7011
      %v7013 = vrot.slane %v5103, 1
      %v7014 = vsel %vm2121, %v7009, %v7013
      %v7015 = vrot.slane %v5104, 1
      %v7016 = vsel %vm2121, %v7011, %v7015
      %v7017 = vrot.slane %v5105, 1
      %v7018 = vsel %vm2121, %v7013, %v7017
      %v7019 = vrot.slane %v5106, 1
      %v7020 = vsel %vm2121, %v7015, %v7019
      %v7021 = vrot.slane %v5107, 1
      %v7022 = vsel %vm2121, %v7017, %v7021
      %v7023 = vrot.slane %v5108, 1
      %v7024 = vsel %vm2121, %v7019, %v7023
      %v7025 = vrot.slane %v5109, 1
      %v7026 = vsel %vm2121, %v7021, %v7025
      %v7027 = vrot.slane %v5110, 1
      %v7028 = vsel %vm2121, %v7023, %v7027
      %v7029 = vrot.slane %v5111, 1
      %v7030 = vsel %vm2121, %v7025, %v7029
      %v7031 = vrot.slane %v5112, 1
      %v7032 = vsel %vm2121, %v7027, %v7031
      %v7033 = vrot.slane %v5113, 1
      %v7034 = vsel %vm2121, %v7029, %v7033
      %v7035 = vrot.slane %v5114, 1
      %v7036 = vsel %vm2121, %v7031, %v7035
      %v7037 = vrot.slane %v5115, 1
      %v7038 = vsel %vm2121, %v7033, %v7037
      %v7039 = vrot.slane %v5116, 1
      %v7040 = vsel %vm2121, %v7035, %v7039
      %v7041 = vrot.slane %v5117, 1
      %v7042 = vsel %vm2121, %v7037, %v7041
      %v7043 = vrot.slane %v5118, 1
      %v7044 = vsel %vm2121, %v7039, %v7043
      %v7045 = vrot.slane %v5119, 1
      %v7046 = vsel %vm2121, %v7041, %v7045
      %v7047 = vrot.slane %v5120, 1
      %v7048 = vsel %vm2121, %v7043, %v7047
      %v7049 = vrot.slane %v5121, 1
      %v7050 = vsel %vm2121, %v7045, %v7049
      %v7051 = vrot.slane %v5122, 1
      %v7052 = vsel %vm2121, %v7047, %v7051
      %v7053 = vrot.slane %v5123, 1
      %v7054 = vsel %vm2121, %v7049, %v7053
      %v7055 = vrot.slane %v5124, 1
      %v7056 = vsel %vm2121, %v7051, %v7055
      %v7057 = vrot.slane %v5125, 1
      %v7058 = vsel %vm2121, %v7053, %v7057
      %v7059 = vrot.slane %v5126, 1
      %v7060 = vsel %vm2121, %v7055, %v7059
      %v7061 = vrot.slane %v5127, 1
      %v7062 = vsel %vm2121, %v7057, %v7061
      %v7063 = vrot.slane %v5128, 1
      %v7064 = vsel %vm2121, %v7059, %v7063
      %v7065 = vrot.slane %v5129, 1
      %v7066 = vsel %vm2121, %v7061, %v7065
      %v7067 = vrot.slane %v5130, 1
      %v7068 = vsel %vm2121, %v7063, %v7067
      %v7165 = vunpack.c.l.b16 %v6905
      %v7166 = vunpack.c.h.b16 %v6905
      %v7167 = vunpack.c.l.b16 %v6906
      %v7168 = vunpack.c.h.b16 %v6906
      %v7169 = vunpack.c.l.b16 %v6907
      %v7170 = vunpack.c.h.b16 %v6907
      %v7171 = vunpack.c.l.b16 %v6908
      %v7172 = vunpack.c.h.b16 %v6908
      %v7173 = vunpack.c.l.b16 %v6909
      %v7174 = vunpack.c.h.b16 %v6909
      %v7175 = vunpack.c.l.b16 %v6910
      %v7176 = vunpack.c.h.b16 %v6910
      %v7177 = vunpack.c.l.b16 %v6911
      %v7178 = vunpack.c.h.b16 %v6911
      %v7179 = vunpack.c.l.b16 %v6912
      %v7180 = vunpack.c.h.b16 %v6912
      %v7181 = vunpack.c.l.b16 %v6913
      %v7182 = vunpack.c.h.b16 %v6913
      %v7183 = vunpack.c.l.b16 %v6914
      %v7184 = vunpack.c.h.b16 %v6914
      %v7185 = vunpack.c.l.b16 %v6915
      %v7186 = vunpack.c.h.b16 %v6915
      %v7187 = vunpack.c.l.b16 %v6916
      %v7188 = vunpack.c.h.b16 %v6916
      %v7189 = vunpack.c.l.b16 %v6917
      %v7190 = vunpack.c.h.b16 %v6917
      %v7191 = vunpack.c.l.b16 %v6918
      %v7192 = vunpack.c.h.b16 %v6918
      %v7193 = vunpack.c.l.b16 %v6919
      %v7194 = vunpack.c.h.b16 %v6919
      %v7195 = vunpack.c.l.b16 %v6920
      %v7196 = vunpack.c.h.b16 %v6920
      %v7197 = vunpack.c.l.b16 %v6921
      %v7198 = vunpack.c.h.b16 %v6921
      %v7199 = vunpack.c.l.b16 %v6922
      %v7200 = vunpack.c.h.b16 %v6922
      %v7201 = vunpack.c.l.b16 %v6923
      %v7202 = vunpack.c.h.b16 %v6923
      %v7203 = vunpack.c.l.b16 %v6924
      %v7204 = vunpack.c.h.b16 %v6924
      %v7205 = vunpack.c.l.b16 %v6925
      %v7206 = vunpack.c.h.b16 %v6925
      %v7207 = vunpack.c.l.b16 %v6926
      %v7208 = vunpack.c.h.b16 %v6926
      %v7209 = vunpack.c.l.b16 %v6927
      %v7210 = vunpack.c.h.b16 %v6927
      %v7211 = vunpack.c.l.b16 %v6928
      %v7212 = vunpack.c.h.b16 %v6928
      %v7213 = vunpack.c.l.b16 %v6929
      %v7214 = vunpack.c.h.b16 %v6929
      %v7215 = vunpack.c.l.b16 %v6930
      %v7216 = vunpack.c.h.b16 %v6930
      %v7217 = vunpack.c.l.b16 %v6931
      %v7218 = vunpack.c.h.b16 %v6931
      %v7219 = vunpack.c.l.b16 %v6932
      %v7220 = vunpack.c.h.b16 %v6932
      %v7221 = vunpack.c.l.b16 %v6933
      %v7222 = vunpack.c.h.b16 %v6933
      %v7223 = vunpack.c.l.b16 %v6934
      %v7224 = vunpack.c.h.b16 %v6934
      %v7225 = vunpack.c.l.b16 %v6935
      %v7226 = vunpack.c.h.b16 %v6935
      %v7227 = vunpack.c.l.b16 %v6936
      %v7228 = vunpack.c.h.b16 %v6936
      %v7229 = vunpack.c.l.b16 %v6937
      %v7230 = vunpack.c.h.b16 %v6937
      %v7231 = vunpack.c.l.b16 %v6938
      %v7232 = vunpack.c.h.b16 %v6938
      %v7233 = vunpack.c.l.b16 %v6939
      %v7234 = vunpack.c.h.b16 %v6939
      %v7235 = vunpack.c.l.b16 %v6940
      %v7236 = vunpack.c.h.b16 %v6940
      %v7237 = vunpack.c.l.b16 %v6941
      %v7238 = vunpack.c.h.b16 %v6941
      %v7239 = vunpack.c.l.b16 %v6942
      %v7240 = vunpack.c.h.b16 %v6942
      %v7241 = vunpack.c.l.b16 %v6943
      %v7242 = vunpack.c.h.b16 %v6943
      %v7243 = vunpack.c.l.b16 %v6944
      %v7244 = vunpack.c.h.b16 %v6944
      %v7245 = vunpack.c.l.b16 %v6945
      %v7246 = vunpack.c.h.b16 %v6945
      %v7247 = vunpack.c.l.b16 %v6946
      %v7248 = vunpack.c.h.b16 %v6946
      %v7249 = vunpack.c.l.b16 %v6947
      %v7250 = vunpack.c.h.b16 %v6947
      %v7251 = vunpack.c.l.b16 %v6948
      %v7252 = vunpack.c.h.b16 %v6948
      %v7253 = vunpack.c.l.b16 %v6949
      %v7254 = vunpack.c.h.b16 %v6949
      %v7255 = vunpack.c.l.b16 %v6950
      %v7256 = vunpack.c.h.b16 %v6950
      %v7257 = vunpack.c.l.b16 %v6951
      %v7258 = vunpack.c.h.b16 %v6951
      %v7259 = vunpack.c.l.b16 %v6952
      %v7260 = vunpack.c.h.b16 %v6952
      %v7261 = vunpack.c.l.b16 %v6953
      %v7262 = vunpack.c.h.b16 %v6953
      %v7263 = vunpack.c.l.b16 %v6954
      %v7264 = vunpack.c.h.b16 %v6954
      %v7265 = vunpack.c.l.b16 %v6955
      %v7266 = vunpack.c.h.b16 %v6955
      %v7267 = vunpack.c.l.b16 %v6956
      %v7268 = vunpack.c.h.b16 %v6956
      %v7269 = vunpack.c.l.b16 %v6957
      %v7270 = vunpack.c.h.b16 %v6957
      %v7271 = vunpack.c.l.b16 %v6958
      %v7272 = vunpack.c.h.b16 %v6958
      %v7273 = vunpack.c.l.b16 %v6959
      %v7274 = vunpack.c.h.b16 %v6959
      %v7275 = vunpack.c.l.b16 %v6960
      %v7276 = vunpack.c.h.b16 %v6960
      %v7277 = vunpack.c.l.b16 %v6961
      %v7278 = vunpack.c.h.b16 %v6961
      %v7279 = vunpack.c.l.b16 %v6962
      %v7280 = vunpack.c.h.b16 %v6962
      %v7281 = vunpack.c.l.b16 %v6963
      %v7282 = vunpack.c.h.b16 %v6963
      %v7283 = vunpack.c.l.b16 %v6964
      %v7284 = vunpack.c.h.b16 %v6964
      %v7285 = vunpack.c.l.b16 %v6965
      %v7286 = vunpack.c.h.b16 %v6965
      %v7287 = vunpack.c.l.b16 %v6966
      %v7288 = vunpack.c.h.b16 %v6966
      %v7289 = vunpack.c.l.b16 %v6967
      %v7290 = vunpack.c.h.b16 %v6967
      %v7291 = vunpack.c.l.b16 %v6968
      %v7292 = vunpack.c.h.b16 %v6968
      %v7293 = vpack.c.b16 %v7169, %v7165
      %v7294 = vpack.c.b16 %v7170, %v7166
      %v7295 = vpack.c.b16 %v7171, %v7167
      %v7296 = vpack.c.b16 %v7172, %v7168
      %v7297 = vpack.c.b16 %v7177, %v7173
      %v7298 = vpack.c.b16 %v7178, %v7174
      %v7299 = vpack.c.b16 %v7179, %v7175
      %v7300 = vpack.c.b16 %v7180, %v7176
      %v7301 = vpack.c.b16 %v7185, %v7181
      %v7302 = vpack.c.b16 %v7186, %v7182
      %v7303 = vpack.c.b16 %v7187, %v7183
      %v7304 = vpack.c.b16 %v7188, %v7184
      %v7305 = vpack.c.b16 %v7193, %v7189
      %v7306 = vpack.c.b16 %v7194, %v7190
      %v7307 = vpack.c.b16 %v7195, %v7191
      %v7308 = vpack.c.b16 %v7196, %v7192
      %v7309 = vpack.c.b16 %v7201, %v7197
      %v7310 = vpack.c.b16 %v7202, %v7198
      %v7311 = vpack.c.b16 %v7203, %v7199
      %v7312 = vpack.c.b16 %v7204, %v7200
      %v7313 = vpack.c.b16 %v7209, %v7205
      %v7314 = vpack.c.b16 %v7210, %v7206
      %v7315 = vpack.c.b16 %v7211, %v7207
      %v7316 = vpack.c.b16 %v7212, %v7208
      %v7317 = vpack.c.b16 %v7217, %v7213
      %v7318 = vpack.c.b16 %v7218, %v7214
      %v7319 = vpack.c.b16 %v7219, %v7215
      %v7320 = vpack.c.b16 %v7220, %v7216
      %v7321 = vpack.c.b16 %v7225, %v7221
      %v7322 = vpack.c.b16 %v7226, %v7222
      %v7323 = vpack.c.b16 %v7227, %v7223
      %v7324 = vpack.c.b16 %v7228, %v7224
      %v7325 = vpack.c.b16 %v7233, %v7229
      %v7326 = vpack.c.b16 %v7234, %v7230
      %v7327 = vpack.c.b16 %v7235, %v7231
      %v7328 = vpack.c.b16 %v7236, %v7232
      %v7329 = vpack.c.b16 %v7241, %v7237
      %v7330 = vpack.c.b16 %v7242, %v7238
      %v7331 = vpack.c.b16 %v7243, %v7239
      %v7332 = vpack.c.b16 %v7244, %v7240
      %v7333 = vpack.c.b16 %v7249, %v7245
      %v7334 = vpack.c.b16 %v7250, %v7246
      %v7335 = vpack.c.b16 %v7251, %v7247
      %v7336 = vpack.c.b16 %v7252, %v7248
      %v7337 = vpack.c.b16 %v7257, %v7253
      %v7338 = vpack.c.b16 %v7258, %v7254
      %v7339 = vpack.c.b16 %v7259, %v7255
      %v7340 = vpack.c.b16 %v7260, %v7256
      %v7341 = vpack.c.b16 %v7265, %v7261
      %v7342 = vpack.c.b16 %v7266, %v7262
      %v7343 = vpack.c.b16 %v7267, %v7263
      %v7344 = vpack.c.b16 %v7268, %v7264
      %v7345 = vpack.c.b16 %v7273, %v7269
      %v7346 = vpack.c.b16 %v7274, %v7270
      %v7347 = vpack.c.b16 %v7275, %v7271
      %v7348 = vpack.c.b16 %v7276, %v7272
      %v7349 = vpack.c.b16 %v7281, %v7277
      %v7350 = vpack.c.b16 %v7282, %v7278
      %v7351 = vpack.c.b16 %v7283, %v7279
      %v7352 = vpack.c.b16 %v7284, %v7280
      %v7353 = vpack.c.b16 %v7289, %v7285
      %v7354 = vpack.c.b16 %v7290, %v7286
      %v7355 = vpack.c.b16 %v7291, %v7287
      %v7356 = vpack.c.b16 %v7292, %v7288
      %7421 = vmatprep.subr.bf16.mxu0 %v7294
      %7422 = vmatpush1.bf16.msra.mxu0 %v7293
      %7423 = vmatprep.subr.bf16.mxu0 %v7298
      %7424 = vmatpush1.bf16.msra.mxu0 %v7297
      %7425 = vmatprep.subr.bf16.mxu0 %v7302
      %7426 = vmatpush1.bf16.msra.mxu0 %v7301
      %7427 = vmatprep.subr.bf16.mxu0 %v7306
      %7428 = vmatpush1.bf16.msra.mxu0 %v7305
      %7429 = vmatprep.subr.bf16.mxu0 %v7310
      %7430 = vmatpush1.bf16.msra.mxu0 %v7309
      %7431 = vmatprep.subr.bf16.mxu0 %v7314
      %7432 = vmatpush1.bf16.msra.mxu0 %v7313
      %7433 = vmatprep.subr.bf16.mxu0 %v7318
      %7434 = vmatpush1.bf16.msra.mxu0 %v7317
      %7435 = vmatprep.subr.bf16.mxu0 %v7322
      %7436 = vmatpush1.bf16.msra.mxu0 %v7321
      %7437 = vmatprep.subr.bf16.mxu0 %v7326
      %7438 = vmatpush1.bf16.msra.mxu0 %v7325
      %7439 = vmatprep.subr.bf16.mxu0 %v7330
      %7440 = vmatpush1.bf16.msra.mxu0 %v7329
      %7441 = vmatprep.subr.bf16.mxu0 %v7334
      %7442 = vmatpush1.bf16.msra.mxu0 %v7333
      %7443 = vmatprep.subr.bf16.mxu0 %v7338
      %7444 = vmatpush1.bf16.msra.mxu0 %v7337
      %7445 = vmatprep.subr.bf16.mxu0 %v7342
      %7446 = vmatpush1.bf16.msra.mxu0 %v7341
      %7447 = vmatprep.subr.bf16.mxu0 %v7346
      %7448 = vmatpush1.bf16.msra.mxu0 %v7345
      %7449 = vmatprep.subr.bf16.mxu0 %v7350
      %7450 = vmatpush1.bf16.msra.mxu0 %v7349
      %7451 = vmatprep.subr.bf16.mxu0 %v7354
      %7452 = vmatpush1.bf16.msra.mxu0 %v7353
      %7453 = vmatprep.mubr.bf16.mxu0 %v7008
      %7454 = vmatmul.mubr.bf16.gmra.mrb[0].mxu0 %v7005
      %v7455 = vpop.f32.mrb[0].mxu0
      %v7456 = vadd.f32 0.0, %v7455
      %v7457 = vpop.f32.mrb[0].mxu0
      %v7458 = vadd.f32 0.0, %v7457
      %v7459 = vpop.f32.mrb[0].mxu0
      %v7460 = vadd.f32 0.0, %v7459
      %v7461 = vpop.f32.mrb[0].mxu0
      %v7462 = vadd.f32 0.0, %v7461
      %7463 = vmatprep.mubr.bf16.mxu0 %v7012
      %7464 = vmatmul.mubr.bf16.gmra.mrb[0].mxu0 %v7010
      %v7465 = vpop.f32.mrb[0].mxu0
      %v7466 = vadd.f32 0.0, %v7465
      %v7467 = vpop.f32.mrb[0].mxu0
      %v7468 = vadd.f32 0.0, %v7467
      %v7469 = vpop.f32.mrb[0].mxu0
      %v7470 = vpop.f32.mrb[0].mxu0
      %7471 = vmatprep.mubr.bf16.mxu0 %v7016
      %7472 = vmatmul.mubr.bf16.gmra.mrb[0].mxu0 %v7014
      %v7473 = vpop.f32.mrb[0].mxu0
      %v7474 = vadd.f32 0.0, %v7473
      %v7475 = vpop.f32.mrb[0].mxu0
      %v7476 = vadd.f32 0.0, %v7475
      %v7477 = vpop.f32.mrb[0].mxu0
      %v7478 = vadd.f32 0.0, %v7477
      %v7479 = vpop.f32.mrb[0].mxu0
      %v7480 = vadd.f32 0.0, %v7479
      %7481 = vmatprep.mubr.bf16.mxu0 %v7020
      %7482 = vmatmul.mubr.bf16.gmra.mrb[0].mxu0 %v7018
      %v7483 = vpop.f32.mrb[0].mxu0
      %v7484 = vadd.f32 0.0, %v7483
      %v7485 = vpop.f32.mrb[0].mxu0
      %v7486 = vadd.f32 0.0, %v7485
      %v7487 = vpop.f32.mrb[0].mxu0
      %v7488 = vpop.f32.mrb[0].mxu0
      %7489 = vmatprep.mubr.bf16.mxu0 %v7024
      %7490 = vmatmul.mubr.bf16.gmra.mrb[0].mxu0 %v7022
      %v7491 = vpop.f32.mrb[0].mxu0
      %v7492 = vadd.f32 0.0, %v7491
      %v7493 = vpop.f32.mrb[0].mxu0
      %v7494 = vadd.f32 0.0, %v7493
      %v7495 = vpop.f32.mrb[0].mxu0
      %v7496 = vadd.f32 0.0, %v7495
      %v7497 = vpop.f32.mrb[0].mxu0
      %v7498 = vadd.f32 0.0, %v7497
      %7499 = vmatprep.mubr.bf16.mxu0 %v7028
      %7500 = vmatmul.mubr.bf16.gmra.mrb[0].mxu0 %v7026
      %v7501 = vpop.f32.mrb[0].mxu0
      %v7502 = vadd.f32 0.0, %v7501
      %v7503 = vpop.f32.mrb[0].mxu0
      %v7504 = vadd.f32 0.0, %v7503
      %v7505 = vpop.f32.mrb[0].mxu0
      %v7506 = vpop.f32.mrb[0].mxu0
      %7507 = vmatprep.mubr.bf16.mxu0 %v7032
      %7508 = vmatmul.mubr.bf16.gmra.mrb[0].mxu0 %v7030
      %v7509 = vpop.f32.mrb[0].mxu0
      %v7510 = vadd.f32 0.0, %v7509
      %v7511 = vpop.f32.mrb[0].mxu0
      %v7512 = vadd.f32 0.0, %v7511
      %v7513 = vpop.f32.mrb[0].mxu0
      %v7514 = vadd.f32 0.0, %v7513
      %v7515 = vpop.f32.mrb[0].mxu0
      %v7516 = vadd.f32 0.0, %v7515
      %7517 = vmatprep.mubr.bf16.mxu0 %v7036
      %7518 = vmatmul.mubr.bf16.gmra.mrb[0].mxu0 %v7034
      %v7519 = vpop.f32.mrb[0].mxu0
      %v7520 = vadd.f32 0.0, %v7519
      %v7521 = vpop.f32.mrb[0].mxu0
      %v7522 = vadd.f32 0.0, %v7521
      %v7523 = vpop.f32.mrb[0].mxu0
      %v7524 = vpop.f32.mrb[0].mxu0
      %7525 = vmatprep.mubr.bf16.mxu0 %v7040
      %7526 = vmatmul.mubr.bf16.gmra.mrb[0].mxu0 %v7038
      %v7527 = vpop.f32.mrb[0].mxu0
      %v7528 = vadd.f32 0.0, %v7527
      %v7529 = vpop.f32.mrb[0].mxu0
      %v7530 = vadd.f32 0.0, %v7529
      %v7531 = vpop.f32.mrb[0].mxu0
      %v7532 = vadd.f32 0.0, %v7531
      %v7533 = vpop.f32.mrb[0].mxu0
      %v7534 = vadd.f32 0.0, %v7533
      %7535 = vmatprep.mubr.bf16.mxu0 %v7044
      %7536 = vmatmul.mubr.bf16.gmra.mrb[0].mxu0 %v7042
      %v7537 = vpop.f32.mrb[0].mxu0
      %v7538 = vadd.f32 0.0, %v7537
      %v7539 = vpop.f32.mrb[0].mxu0
      %v7540 = vadd.f32 0.0, %v7539
      %v7541 = vpop.f32.mrb[0].mxu0
      %v7542 = vpop.f32.mrb[0].mxu0
      %7543 = vmatprep.mubr.bf16.mxu0 %v7048
      %7544 = vmatmul.mubr.bf16.gmra.mrb[0].mxu0 %v7046
      %v7545 = vpop.f32.mrb[0].mxu0
      %v7546 = vadd.f32 0.0, %v7545
      %v7547 = vpop.f32.mrb[0].mxu0
      %v7548 = vadd.f32 0.0, %v7547
      %v7549 = vpop.f32.mrb[0].mxu0
      %v7550 = vadd.f32 0.0, %v7549
      %v7551 = vpop.f32.mrb[0].mxu0
      %v7552 = vadd.f32 0.0, %v7551
      %7553 = vmatprep.mubr.bf16.mxu0 %v7052
      %7554 = vmatmul.mubr.bf16.gmra.mrb[0].mxu0 %v7050
      %v7555 = vpop.f32.mrb[0].mxu0
      %v7556 = vadd.f32 0.0, %v7555
      %v7557 = vpop.f32.mrb[0].mxu0
      %v7558 = vadd.f32 0.0, %v7557
      %v7559 = vpop.f32.mrb[0].mxu0
      %v7560 = vpop.f32.mrb[0].mxu0
      %7561 = vmatprep.mubr.bf16.mxu0 %v7056
      %7562 = vmatmul.mubr.bf16.gmra.mrb[0].mxu0 %v7054
      %v7563 = vpop.f32.mrb[0].mxu0
      %v7564 = vadd.f32 0.0, %v7563
      %v7565 = vpop.f32.mrb[0].mxu0
      %v7566 = vadd.f32 0.0, %v7565
      %v7567 = vpop.f32.mrb[0].mxu0
      %v7568 = vadd.f32 0.0, %v7567
      %v7569 = vpop.f32.mrb[0].mxu0
      %v7570 = vadd.f32 0.0, %v7569
      %7571 = vmatprep.mubr.bf16.mxu0 %v7060
      %7572 = vmatmul.mubr.bf16.gmra.mrb[0].mxu0 %v7058
      %v7573 = vpop.f32.mrb[0].mxu0
      %v7574 = vadd.f32 0.0, %v7573
      %v7575 = vpop.f32.mrb[0].mxu0
      %v7576 = vadd.f32 0.0, %v7575
      %v7577 = vpop.f32.mrb[0].mxu0
      %v7578 = vpop.f32.mrb[0].mxu0
      %7579 = vmatprep.mubr.bf16.mxu0 %v7064
      %7580 = vmatmul.mubr.bf16.gmra.mrb[0].mxu0 %v7062
      %v7581 = vpop.f32.mrb[0].mxu0
      %v7582 = vadd.f32 0.0, %v7581
      %v7583 = vpop.f32.mrb[0].mxu0
      %v7584 = vadd.f32 0.0, %v7583
      %v7585 = vpop.f32.mrb[0].mxu0
      %v7586 = vadd.f32 0.0, %v7585
      %v7587 = vpop.f32.mrb[0].mxu0
      %v7588 = vadd.f32 0.0, %v7587
      %7589 = vmatprep.mubr.bf16.mxu0 %v7068
      %7590 = vmatmul.mubr.bf16.gmra.mrb[0].mxu0 %v7066
      %v7591 = vpop.f32.mrb[0].mxu0
      %v7592 = vadd.f32 0.0, %v7591
      %v7593 = vpop.f32.mrb[0].mxu0
      %v7594 = vadd.f32 0.0, %v7593
      %v7595 = vpop.f32.mrb[0].mxu0
      %v7596 = vpop.f32.mrb[0].mxu0
      %7597 = vdwg.mxu0
      %7598 = vmatprep.subr.bf16.mxu0 %v7296
      %7599 = vmatpush1.bf16.msra.mxu0 %v7295
      %7600 = vmatprep.subr.bf16.mxu0 %v7300
      %7601 = vmatpush1.bf16.msra.mxu0 %v7299
      %7602 = vmatprep.subr.bf16.mxu0 %v7304
      %7603 = vmatpush1.bf16.msra.mxu0 %v7303
      %7604 = vmatprep.subr.bf16.mxu0 %v7308
      %7605 = vmatpush1.bf16.msra.mxu0 %v7307
      %7606 = vmatprep.subr.bf16.mxu0 %v7312
      %7607 = vmatpush1.bf16.msra.mxu0 %v7311
      %7608 = vmatprep.subr.bf16.mxu0 %v7316
      %7609 = vmatpush1.bf16.msra.mxu0 %v7315
      %7610 = vmatprep.subr.bf16.mxu0 %v7320
      %7611 = vmatpush1.bf16.msra.mxu0 %v7319
      %7612 = vmatprep.subr.bf16.mxu0 %v7324
      %7613 = vmatpush1.bf16.msra.mxu0 %v7323
      %7614 = vmatprep.subr.bf16.mxu0 %v7328
      %7615 = vmatpush1.bf16.msra.mxu0 %v7327
      %7616 = vmatprep.subr.bf16.mxu0 %v7332
      %7617 = vmatpush1.bf16.msra.mxu0 %v7331
      %7618 = vmatprep.subr.bf16.mxu0 %v7336
      %7619 = vmatpush1.bf16.msra.mxu0 %v7335
      %7620 = vmatprep.subr.bf16.mxu0 %v7340
      %7621 = vmatpush1.bf16.msra.mxu0 %v7339
      %7622 = vmatprep.subr.bf16.mxu0 %v7344
      %7623 = vmatpush1.bf16.msra.mxu0 %v7343
      %7624 = vmatprep.subr.bf16.mxu0 %v7348
      %7625 = vmatpush1.bf16.msra.mxu0 %v7347
      %7626 = vmatprep.subr.bf16.mxu0 %v7352
      %7627 = vmatpush1.bf16.msra.mxu0 %v7351
      %7628 = vmatprep.subr.bf16.mxu0 %v7356
      %7629 = vmatpush1.bf16.msra.mxu0 %v7355
      %7630 = vmatprep.mubr.bf16.mxu0 %v7008
      %7631 = vmatmul.mubr.bf16.gmra.mrb[0].mxu0 %v7005
      %v7632 = vpop.f32.mrb[0].mxu0
      %v7633 = vadd.f32 0.0, %v7632
      %v7634 = vpop.f32.mrb[0].mxu0
      %v7635 = vadd.f32 0.0, %v7634
      %v7636 = vpop.f32.mrb[0].mxu0
      %v7637 = vadd.f32 0.0, %v7636
      %v7638 = vpop.f32.mrb[0].mxu0
      %v7639 = vadd.f32 0.0, %v7638
      %7640 = vmatprep.mubr.bf16.mxu0 %v7012
      %7641 = vmatmul.mubr.bf16.gmra.mrb[0].mxu0 %v7010
      %v7642 = vpop.f32.mrb[0].mxu0
      %v7643 = vadd.f32 0.0, %v7642
      %v7644 = vpop.f32.mrb[0].mxu0
      %v7645 = vadd.f32 0.0, %v7644
      %v7646 = vpop.f32.mrb[0].mxu0
      %v7647 = vpop.f32.mrb[0].mxu0
      %7648 = vmatprep.mubr.bf16.mxu0 %v7016
      %7649 = vmatmul.mubr.bf16.gmra.mrb[0].mxu0 %v7014
      %v7650 = vpop.f32.mrb[0].mxu0
      %v7651 = vadd.f32 0.0, %v7650
      %v7652 = vpop.f32.mrb[0].mxu0
      %v7653 = vadd.f32 0.0, %v7652
      %v7654 = vpop.f32.mrb[0].mxu0
      %v7655 = vadd.f32 0.0, %v7654
      %v7656 = vpop.f32.mrb[0].mxu0
      %v7657 = vadd.f32 0.0, %v7656
      %7658 = vmatprep.mubr.bf16.mxu0 %v7020
      %7659 = vmatmul.mubr.bf16.gmra.mrb[0].mxu0 %v7018
      %v7660 = vpop.f32.mrb[0].mxu0
      %v7661 = vadd.f32 0.0, %v7660
      %v7662 = vpop.f32.mrb[0].mxu0
      %v7663 = vadd.f32 0.0, %v7662
      %v7664 = vpop.f32.mrb[0].mxu0
      %v7665 = vpop.f32.mrb[0].mxu0
      %7666 = vmatprep.mubr.bf16.mxu0 %v7024
      %7667 = vmatmul.mubr.bf16.gmra.mrb[0].mxu0 %v7022
      %v7668 = vpop.f32.mrb[0].mxu0
      %v7669 = vadd.f32 0.0, %v7668
      %v7670 = vpop.f32.mrb[0].mxu0
      %v7671 = vadd.f32 0.0, %v7670
      %v7672 = vpop.f32.mrb[0].mxu0
      %v7673 = vadd.f32 0.0, %v7672
      %v7674 = vpop.f32.mrb[0].mxu0
      %v7675 = vadd.f32 0.0, %v7674
      %7676 = vmatprep.mubr.bf16.mxu0 %v7028
      %7677 = vmatmul.mubr.bf16.gmra.mrb[0].mxu0 %v7026
      %v7678 = vpop.f32.mrb[0].mxu0
      %v7679 = vadd.f32 0.0, %v7678
      %v7680 = vpop.f32.mrb[0].mxu0
      %v7681 = vadd.f32 0.0, %v7680
      %v7682 = vpop.f32.mrb[0].mxu0
      %v7683 = vpop.f32.mrb[0].mxu0
      %7684 = vmatprep.mubr.bf16.mxu0 %v7032
      %7685 = vmatmul.mubr.bf16.gmra.mrb[0].mxu0 %v7030
      %v7686 = vpop.f32.mrb[0].mxu0
      %v7687 = vadd.f32 0.0, %v7686
      %v7688 = vpop.f32.mrb[0].mxu0
      %v7689 = vadd.f32 0.0, %v7688
      %v7690 = vpop.f32.mrb[0].mxu0
      %v7691 = vadd.f32 0.0, %v7690
      %v7692 = vpop.f32.mrb[0].mxu0
      %v7693 = vadd.f32 0.0, %v7692
      %7694 = vmatprep.mubr.bf16.mxu0 %v7036
      %7695 = vmatmul.mubr.bf16.gmra.mrb[0].mxu0 %v7034
      %v7696 = vpop.f32.mrb[0].mxu0
      %v7697 = vadd.f32 0.0, %v7696
      %v7698 = vpop.f32.mrb[0].mxu0
      %v7699 = vadd.f32 0.0, %v7698
      %v7700 = vpop.f32.mrb[0].mxu0
      %v7701 = vpop.f32.mrb[0].mxu0
      %7702 = vmatprep.mubr.bf16.mxu0 %v7040
      %7703 = vmatmul.mubr.bf16.gmra.mrb[0].mxu0 %v7038
      %v7704 = vpop.f32.mrb[0].mxu0
      %v7705 = vadd.f32 0.0, %v7704
      %v7706 = vpop.f32.mrb[0].mxu0
      %v7707 = vadd.f32 0.0, %v7706
      %v7708 = vpop.f32.mrb[0].mxu0
      %v7709 = vadd.f32 0.0, %v7708
      %v7710 = vpop.f32.mrb[0].mxu0
      %v7711 = vadd.f32 0.0, %v7710
      %7712 = vmatprep.mubr.bf16.mxu0 %v7044
      %7713 = vmatmul.mubr.bf16.gmra.mrb[0].mxu0 %v7042
      %v7714 = vpop.f32.mrb[0].mxu0
      %v7715 = vadd.f32 0.0, %v7714
      %v7716 = vpop.f32.mrb[0].mxu0
      %v7717 = vadd.f32 0.0, %v7716
      %v7718 = vpop.f32.mrb[0].mxu0
      %v7719 = vpop.f32.mrb[0].mxu0
      %7720 = vmatprep.mubr.bf16.mxu0 %v7048
      %7721 = vmatmul.mubr.bf16.gmra.mrb[0].mxu0 %v7046
      %v7722 = vpop.f32.mrb[0].mxu0
      %v7723 = vadd.f32 0.0, %v7722
      %v7724 = vpop.f32.mrb[0].mxu0
      %v7725 = vadd.f32 0.0, %v7724
      %v7726 = vpop.f32.mrb[0].mxu0
      %v7727 = vadd.f32 0.0, %v7726
      %v7728 = vpop.f32.mrb[0].mxu0
      %v7729 = vadd.f32 0.0, %v7728
      %7730 = vmatprep.mubr.bf16.mxu0 %v7052
      %7731 = vmatmul.mubr.bf16.gmra.mrb[0].mxu0 %v7050
      %v7732 = vpop.f32.mrb[0].mxu0
      %v7733 = vadd.f32 0.0, %v7732
      %v7734 = vpop.f32.mrb[0].mxu0
      %v7735 = vadd.f32 0.0, %v7734
      %v7736 = vpop.f32.mrb[0].mxu0
      %v7737 = vpop.f32.mrb[0].mxu0
      %7738 = vmatprep.mubr.bf16.mxu0 %v7056
      %7739 = vmatmul.mubr.bf16.gmra.mrb[0].mxu0 %v7054
      %v7740 = vpop.f32.mrb[0].mxu0
      %v7741 = vadd.f32 0.0, %v7740
      %v7742 = vpop.f32.mrb[0].mxu0
      %v7743 = vadd.f32 0.0, %v7742
      %v7744 = vpop.f32.mrb[0].mxu0
      %v7745 = vadd.f32 0.0, %v7744
      %v7746 = vpop.f32.mrb[0].mxu0
      %v7747 = vadd.f32 0.0, %v7746
      %7748 = vmatprep.mubr.bf16.mxu0 %v7060
      %7749 = vmatmul.mubr.bf16.gmra.mrb[0].mxu0 %v7058
      %v7750 = vpop.f32.mrb[0].mxu0
      %v7751 = vadd.f32 0.0, %v7750
      %v7752 = vpop.f32.mrb[0].mxu0
      %v7753 = vadd.f32 0.0, %v7752
      %v7754 = vpop.f32.mrb[0].mxu0
      %v7755 = vpop.f32.mrb[0].mxu0
      %7756 = vmatprep.mubr.bf16.mxu0 %v7064
      %7757 = vmatmul.mubr.bf16.gmra.mrb[0].mxu0 %v7062
      %v7758 = vpop.f32.mrb[0].mxu0
      %v7759 = vadd.f32 0.0, %v7758
      %v7760 = vpop.f32.mrb[0].mxu0
      %v7761 = vadd.f32 0.0, %v7760
      %v7762 = vpop.f32.mrb[0].mxu0
      %v7763 = vadd.f32 0.0, %v7762
      %v7764 = vpop.f32.mrb[0].mxu0
      %v7765 = vadd.f32 0.0, %v7764
      %7766 = vmatprep.mubr.bf16.mxu0 %v7068
      %7767 = vmatmul.mubr.bf16.gmra.mrb[0].mxu0 %v7066
      %v7768 = vpop.f32.mrb[0].mxu0
      %v7769 = vadd.f32 0.0, %v7768
      %v7770 = vpop.f32.mrb[0].mxu0
      %v7771 = vadd.f32 0.0, %v7770
      %v7772 = vpop.f32.mrb[0].mxu0
      %v7773 = vpop.f32.mrb[0].mxu0
      %7774 = vdwg.mxu0
      %v7775 = vadd.f32 %v6585, %v7456
      %v7776 = vadd.f32 %v6587, %v7458
      %v7777 = vadd.f32 %v6762, %v7633
      %v7778 = vadd.f32 %v6764, %v7635
      %v7779 = vadd.f32 %v6589, %v7460
      %v7780 = vadd.f32 %v6591, %v7462
      %v7781 = vadd.f32 %v6766, %v7637
      %v7782 = vadd.f32 %v6768, %v7639
      %v7783 = vadd.f32 %v6595, %v7466
      %v7784 = vadd.f32 %v6597, %v7468
      %v7785 = vadd.f32 %v6772, %v7643
      %v7786 = vadd.f32 %v6774, %v7645
      %v7787 = vadd.f32 %v6603, %v7474
      %v7788 = vadd.f32 %v6605, %v7476
      %v7789 = vadd.f32 %v6780, %v7651
      %v7790 = vadd.f32 %v6782, %v7653
      %v7791 = vadd.f32 %v6607, %v7478
      %v7792 = vadd.f32 %v6609, %v7480
      %v7793 = vadd.f32 %v6784, %v7655
      %v7794 = vadd.f32 %v6786, %v7657
      %v7795 = vadd.f32 %v6613, %v7484
      %v7796 = vadd.f32 %v6615, %v7486
      %v7797 = vadd.f32 %v6790, %v7661
      %v7798 = vadd.f32 %v6792, %v7663
      %v7799 = vadd.f32 %v6621, %v7492
      %v7800 = vadd.f32 %v6623, %v7494
      %v7801 = vadd.f32 %v6798, %v7669
      %v7802 = vadd.f32 %v6800, %v7671
      %v7803 = vadd.f32 %v6625, %v7496
      %v7804 = vadd.f32 %v6627, %v7498
      %v7805 = vadd.f32 %v6802, %v7673
      %v7806 = vadd.f32 %v6804, %v7675
      %v7807 = vadd.f32 %v6631, %v7502
      %v7808 = vadd.f32 %v6633, %v7504
      %v7809 = vadd.f32 %v6808, %v7679
      %v7810 = vadd.f32 %v6810, %v7681
      %v7811 = vadd.f32 %v6639, %v7510
      %v7812 = vadd.f32 %v6641, %v7512
      %v7813 = vadd.f32 %v6816, %v7687
      %v7814 = vadd.f32 %v6818, %v7689
      %v7815 = vadd.f32 %v6643, %v7514
      %v7816 = vadd.f32 %v6645, %v7516
      %v7817 = vadd.f32 %v6820, %v7691
      %v7818 = vadd.f32 %v6822, %v7693
      %v7819 = vadd.f32 %v6649, %v7520
      %v7820 = vadd.f32 %v6651, %v7522
      %v7821 = vadd.f32 %v6826, %v7697
      %v7822 = vadd.f32 %v6828, %v7699
      %v7823 = vadd.f32 %v6657, %v7528
      %v7824 = vadd.f32 %v6659, %v7530
      %v7825 = vadd.f32 %v6834, %v7705
      %v7826 = vadd.f32 %v6836, %v7707
      %v7827 = vadd.f32 %v6661, %v7532
      %v7828 = vadd.f32 %v6663, %v7534
      %v7829 = vadd.f32 %v6838, %v7709
      %v7830 = vadd.f32 %v6840, %v7711
      %v7831 = vadd.f32 %v6667, %v7538
      %v7832 = vadd.f32 %v6669, %v7540
      %v7833 = vadd.f32 %v6844, %v7715
      %v7834 = vadd.f32 %v6846, %v7717
      %v7835 = vadd.f32 %v6675, %v7546
      %v7836 = vadd.f32 %v6677, %v7548
      %v7837 = vadd.f32 %v6852, %v7723
      %v7838 = vadd.f32 %v6854, %v7725
      %v7839 = vadd.f32 %v6679, %v7550
      %v7840 = vadd.f32 %v6681, %v7552
      %v7841 = vadd.f32 %v6856, %v7727
      %v7842 = vadd.f32 %v6858, %v7729
      %v7843 = vadd.f32 %v6685, %v7556
      %v7844 = vadd.f32 %v6687, %v7558
      %v7845 = vadd.f32 %v6862, %v7733
      %v7846 = vadd.f32 %v6864, %v7735
      %v7847 = vadd.f32 %v6693, %v7564
      %v7848 = vadd.f32 %v6695, %v7566
      %v7849 = vadd.f32 %v6870, %v7741
      %v7850 = vadd.f32 %v6872, %v7743
      %v7851 = vadd.f32 %v6697, %v7568
      %v7852 = vadd.f32 %v6699, %v7570
      %v7853 = vadd.f32 %v6874, %v7745
      %v7854 = vadd.f32 %v6876, %v7747
      %v7855 = vadd.f32 %v6703, %v7574
      %v7856 = vadd.f32 %v6705, %v7576
      %v7857 = vadd.f32 %v6880, %v7751
      %v7858 = vadd.f32 %v6882, %v7753
      %v7859 = vadd.f32 %v6711, %v7582
      %v7860 = vadd.f32 %v6713, %v7584
      %v7861 = vadd.f32 %v6888, %v7759
      %v7862 = vadd.f32 %v6890, %v7761
      %v7863 = vadd.f32 %v6715, %v7586
      %v7864 = vadd.f32 %v6717, %v7588
      %v7865 = vadd.f32 %v6892, %v7763
      %v7866 = vadd.f32 %v6894, %v7765
      %v7867 = vadd.f32 %v6721, %v7592
      %v7868 = vadd.f32 %v6723, %v7594
      %v7869 = vadd.f32 %v6898, %v7769
      %v7870 = vadd.f32 %v6900, %v7771
      %v7871 = vld [vmem:[%s15] sm:$0xf]
      %v7873 = vlaneseq
      %v7874 = vshrl.u32 %v7873, 7
      %v7875 = vsub.s32 0, %v7874
      %v7876 = vrot.slane %v7871, %v7875
      %v7877 = vlaneseq
      %v7878 = vshrl.u32 %v7877, 7
      %v7879 = vsub.s32 1, %v7878
      %v7880 = vrot.slane %v7871, %v7879
      %v7881 = vlaneseq
      %v7882 = vshrl.u32 %v7881, 7
      %v7883 = vsub.s32 2, %v7882
      %v7884 = vrot.slane %v7871, %v7883
      %v7885 = vlaneseq
      %v7886 = vshrl.u32 %v7885, 7
      %v7887 = vsub.s32 3, %v7886
      %v7888 = vrot.slane %v7871, %v7887
      %v7893 = vmul.f32 %v7775, %v7876
      %v7894 = vmul.f32 %v7776, %v7880
      %v7895 = vmul.f32 %v7777, %v7884
      %v7896 = vmul.f32 %v7778, %v7888
      %v7897 = vmul.f32 %v7779, %v7876
      %v7898 = vmul.f32 %v7780, %v7880
      %v7899 = vmul.f32 %v7781, %v7884
      %v7900 = vmul.f32 %v7782, %v7888
      %v7901 = vmul.f32 %v7783, %v7876
      %v7902 = vmul.f32 %v7784, %v7880
      %v7903 = vmul.f32 %v7785, %v7884
      %v7904 = vmul.f32 %v7786, %v7888
      %v7905 = vmul.f32 %v7787, %v7876
      %v7906 = vmul.f32 %v7788, %v7880
      %v7907 = vmul.f32 %v7789, %v7884
      %v7908 = vmul.f32 %v7790, %v7888
      %v7909 = vmul.f32 %v7791, %v7876
      %v7910 = vmul.f32 %v7792, %v7880
      %v7911 = vmul.f32 %v7793, %v7884
      %v7912 = vmul.f32 %v7794, %v7888
      %v7913 = vmul.f32 %v7795, %v7876
      %v7914 = vmul.f32 %v7796, %v7880
      %v7915 = vmul.f32 %v7797, %v7884
      %v7916 = vmul.f32 %v7798, %v7888
      %v7917 = vmul.f32 %v7799, %v7876
      %v7918 = vmul.f32 %v7800, %v7880
      %v7919 = vmul.f32 %v7801, %v7884
      %v7920 = vmul.f32 %v7802, %v7888
      %v7921 = vmul.f32 %v7803, %v7876
      %v7922 = vmul.f32 %v7804, %v7880
      %v7923 = vmul.f32 %v7805, %v7884
      %v7924 = vmul.f32 %v7806, %v7888
      %v7925 = vmul.f32 %v7807, %v7876
      %v7926 = vmul.f32 %v7808, %v7880
      %v7927 = vmul.f32 %v7809, %v7884
      %v7928 = vmul.f32 %v7810, %v7888
      %v7929 = vmul.f32 %v7811, %v7876
      %v7930 = vmul.f32 %v7812, %v7880
      %v7931 = vmul.f32 %v7813, %v7884
      %v7932 = vmul.f32 %v7814, %v7888
      %v7933 = vmul.f32 %v7815, %v7876
      %v7934 = vmul.f32 %v7816, %v7880
      %v7935 = vmul.f32 %v7817, %v7884
      %v7936 = vmul.f32 %v7818, %v7888
      %v7937 = vmul.f32 %v7819, %v7876
      %v7938 = vmul.f32 %v7820, %v7880
      %v7939 = vmul.f32 %v7821, %v7884
      %v7940 = vmul.f32 %v7822, %v7888
      %v7941 = vmul.f32 %v7823, %v7876
      %v7942 = vmul.f32 %v7824, %v7880
      %v7943 = vmul.f32 %v7825, %v7884
      %v7944 = vmul.f32 %v7826, %v7888
      %v7945 = vmul.f32 %v7827, %v7876
      %v7946 = vmul.f32 %v7828, %v7880
      %v7947 = vmul.f32 %v7829, %v7884
      %v7948 = vmul.f32 %v7830, %v7888
      %v7949 = vmul.f32 %v7831, %v7876
      %v7950 = vmul.f32 %v7832, %v7880
      %v7951 = vmul.f32 %v7833, %v7884
      %v7952 = vmul.f32 %v7834, %v7888
      %v7953 = vmul.f32 %v7835, %v7876
      %v7954 = vmul.f32 %v7836, %v7880
      %v7955 = vmul.f32 %v7837, %v7884
      %v7956 = vmul.f32 %v7838, %v7888
      %v7957 = vmul.f32 %v7839, %v7876
      %v7958 = vmul.f32 %v7840, %v7880
      %v7959 = vmul.f32 %v7841, %v7884
      %v7960 = vmul.f32 %v7842, %v7888
      %v7961 = vmul.f32 %v7843, %v7876
      %v7962 = vmul.f32 %v7844, %v7880
      %v7963 = vmul.f32 %v7845, %v7884
      %v7964 = vmul.f32 %v7846, %v7888
      %v7965 = vmul.f32 %v7847, %v7876
      %v7966 = vmul.f32 %v7848, %v7880
      %v7967 = vmul.f32 %v7849, %v7884
      %v7968 = vmul.f32 %v7850, %v7888
      %v7969 = vmul.f32 %v7851, %v7876
      %v7970 = vmul.f32 %v7852, %v7880
      %v7971 = vmul.f32 %v7853, %v7884
      %v7972 = vmul.f32 %v7854, %v7888
      %v7973 = vmul.f32 %v7855, %v7876
      %v7974 = vmul.f32 %v7856, %v7880
      %v7975 = vmul.f32 %v7857, %v7884
      %v7976 = vmul.f32 %v7858, %v7888
      %v7977 = vmul.f32 %v7859, %v7876
      %v7978 = vmul.f32 %v7860, %v7880
      %v7979 = vmul.f32 %v7861, %v7884
      %v7980 = vmul.f32 %v7862, %v7888
      %v7981 = vmul.f32 %v7863, %v7876
      %v7982 = vmul.f32 %v7864, %v7880
      %v7983 = vmul.f32 %v7865, %v7884
      %v7984 = vmul.f32 %v7866, %v7888
      %v7985 = vmul.f32 %v7867, %v7876
      %v7986 = vmul.f32 %v7868, %v7880
      %v7987 = vmul.f32 %v7869, %v7884
      %v7988 = vmul.f32 %v7870, %v7888
      %v7989 = vld [vmem:[%s16] sm:$0xf]
      %v7991 = vlaneseq
      %v7992 = vshrl.u32 %v7991, 7
      %v7993 = vsub.s32 0, %v7992
      %v7994 = vrot.slane %v7989, %v7993
      %v7995 = vlaneseq
      %v7996 = vshrl.u32 %v7995, 7
      %v7997 = vsub.s32 1, %v7996
      %v7998 = vrot.slane %v7989, %v7997
      %v7999 = vlaneseq
      %v8000 = vshrl.u32 %v7999, 7
      %v8001 = vsub.s32 2, %v8000
      %v8002 = vrot.slane %v7989, %v8001
      %v8003 = vlaneseq
      %v8004 = vshrl.u32 %v8003, 7
      %v8005 = vsub.s32 3, %v8004
      %v8006 = vrot.slane %v7989, %v8005
      %v8011 = vadd.f32 %v7893, %v7994
      %v8012 = vadd.f32 %v7894, %v7998
      %v8013 = vadd.f32 %v7895, %v8002
      %v8014 = vadd.f32 %v7896, %v8006
      %v8015 = vadd.f32 %v7897, %v7994
      %v8016 = vadd.f32 %v7898, %v7998
      %v8017 = vadd.f32 %v7899, %v8002
      %v8018 = vadd.f32 %v7900, %v8006
      %v8019 = vadd.f32 %v7901, %v7994
      %v8020 = vadd.f32 %v7902, %v7998
      %v8021 = vadd.f32 %v7903, %v8002
      %v8022 = vadd.f32 %v7904, %v8006
      %v8023 = vadd.f32 %v7905, %v7994
      %v8024 = vadd.f32 %v7906, %v7998
      %v8025 = vadd.f32 %v7907, %v8002
      %v8026 = vadd.f32 %v7908, %v8006
      %v8027 = vadd.f32 %v7909, %v7994
      %v8028 = vadd.f32 %v7910, %v7998
      %v8029 = vadd.f32 %v7911, %v8002
      %v8030 = vadd.f32 %v7912, %v8006
      %v8031 = vadd.f32 %v7913, %v7994
      %v8032 = vadd.f32 %v7914, %v7998
      %v8033 = vadd.f32 %v7915, %v8002
      %v8034 = vadd.f32 %v7916, %v8006
      %v8035 = vadd.f32 %v7917, %v7994
      %v8036 = vadd.f32 %v7918, %v7998
      %v8037 = vadd.f32 %v7919, %v8002
      %v8038 = vadd.f32 %v7920, %v8006
      %v8039 = vadd.f32 %v7921, %v7994
      %v8040 = vadd.f32 %v7922, %v7998
      %v8041 = vadd.f32 %v7923, %v8002
      %v8042 = vadd.f32 %v7924, %v8006
      %v8043 = vadd.f32 %v7925, %v7994
      %v8044 = vadd.f32 %v7926, %v7998
      %v8045 = vadd.f32 %v7927, %v8002
      %v8046 = vadd.f32 %v7928, %v8006
      %v8047 = vadd.f32 %v7929, %v7994
      %v8048 = vadd.f32 %v7930, %v7998
      %v8049 = vadd.f32 %v7931, %v8002
      %v8050 = vadd.f32 %v7932, %v8006
      %v8051 = vadd.f32 %v7933, %v7994
      %v8052 = vadd.f32 %v7934, %v7998
      %v8053 = vadd.f32 %v7935, %v8002
      %v8054 = vadd.f32 %v7936, %v8006
      %v8055 = vadd.f32 %v7937, %v7994
      %v8056 = vadd.f32 %v7938, %v7998
      %v8057 = vadd.f32 %v7939, %v8002
      %v8058 = vadd.f32 %v7940, %v8006
      %v8059 = vadd.f32 %v7941, %v7994
      %v8060 = vadd.f32 %v7942, %v7998
      %v8061 = vadd.f32 %v7943, %v8002
      %v8062 = vadd.f32 %v7944, %v8006
      %v8063 = vadd.f32 %v7945, %v7994
      %v8064 = vadd.f32 %v7946, %v7998
      %v8065 = vadd.f32 %v7947, %v8002
      %v8066 = vadd.f32 %v7948, %v8006
      %v8067 = vadd.f32 %v7949, %v7994
      %v8068 = vadd.f32 %v7950, %v7998
      %v8069 = vadd.f32 %v7951, %v8002
      %v8070 = vadd.f32 %v7952, %v8006
      %v8071 = vadd.f32 %v7953, %v7994
      %v8072 = vadd.f32 %v7954, %v7998
      %v8073 = vadd.f32 %v7955, %v8002
      %v8074 = vadd.f32 %v7956, %v8006
      %v8075 = vadd.f32 %v7957, %v7994
      %v8076 = vadd.f32 %v7958, %v7998
      %v8077 = vadd.f32 %v7959, %v8002
      %v8078 = vadd.f32 %v7960, %v8006
      %v8079 = vadd.f32 %v7961, %v7994
      %v8080 = vadd.f32 %v7962, %v7998
      %v8081 = vadd.f32 %v7963, %v8002
      %v8082 = vadd.f32 %v7964, %v8006
      %v8083 = vadd.f32 %v7965, %v7994
      %v8084 = vadd.f32 %v7966, %v7998
      %v8085 = vadd.f32 %v7967, %v8002
      %v8086 = vadd.f32 %v7968, %v8006
      %v8087 = vadd.f32 %v7969, %v7994
      %v8088 = vadd.f32 %v7970, %v7998
      %v8089 = vadd.f32 %v7971, %v8002
      %v8090 = vadd.f32 %v7972, %v8006
      %v8091 = vadd.f32 %v7973, %v7994
      %v8092 = vadd.f32 %v7974, %v7998
      %v8093 = vadd.f32 %v7975, %v8002
      %v8094 = vadd.f32 %v7976, %v8006
      %v8095 = vadd.f32 %v7977, %v7994
      %v8096 = vadd.f32 %v7978, %v7998
      %v8097 = vadd.f32 %v7979, %v8002
      %v8098 = vadd.f32 %v7980, %v8006
      %v8099 = vadd.f32 %v7981, %v7994
      %v8100 = vadd.f32 %v7982, %v7998
      %v8101 = vadd.f32 %v7983, %v8002
      %v8102 = vadd.f32 %v7984, %v8006
      %v8103 = vadd.f32 %v7985, %v7994
      %v8104 = vadd.f32 %v7986, %v7998
      %v8105 = vadd.f32 %v7987, %v8002
      %v8106 = vadd.f32 %v7988, %v8006
      %v8107 = vmax.f32 %v8011, 0.0
      %v8108 = vmax.f32 %v8012, 0.0
      %v8109 = vmax.f32 %v8013, 0.0
      %v8110 = vmax.f32 %v8014, 0.0
      %v8111 = vmax.f32 %v8015, 0.0
      %v8112 = vmax.f32 %v8016, 0.0
      %v8113 = vmax.f32 %v8017, 0.0
      %v8114 = vmax.f32 %v8018, 0.0
      %v8115 = vmax.f32 %v8019, 0.0
      %v8116 = vmax.f32 %v8020, 0.0
      %v8117 = vmax.f32 %v8021, 0.0
      %v8118 = vmax.f32 %v8022, 0.0
      %v8119 = vmax.f32 %v8023, 0.0
      %v8120 = vmax.f32 %v8024, 0.0
      %v8121 = vmax.f32 %v8025, 0.0
      %v8122 = vmax.f32 %v8026, 0.0
      %v8123 = vmax.f32 %v8027, 0.0
      %v8124 = vmax.f32 %v8028, 0.0
      %v8125 = vmax.f32 %v8029, 0.0
      %v8126 = vmax.f32 %v8030, 0.0
      %v8127 = vmax.f32 %v8031, 0.0
      %v8128 = vmax.f32 %v8032, 0.0
      %v8129 = vmax.f32 %v8033, 0.0
      %v8130 = vmax.f32 %v8034, 0.0
      %v8131 = vmax.f32 %v8035, 0.0
      %v8132 = vmax.f32 %v8036, 0.0
      %v8133 = vmax.f32 %v8037, 0.0
      %v8134 = vmax.f32 %v8038, 0.0
      %v8135 = vmax.f32 %v8039, 0.0
      %v8136 = vmax.f32 %v8040, 0.0
      %v8137 = vmax.f32 %v8041, 0.0
      %v8138 = vmax.f32 %v8042, 0.0
      %v8139 = vmax.f32 %v8043, 0.0
      %v8140 = vmax.f32 %v8044, 0.0
      %v8141 = vmax.f32 %v8045, 0.0
      %v8142 = vmax.f32 %v8046, 0.0
      %v8143 = vmax.f32 %v8047, 0.0
      %v8144 = vmax.f32 %v8048, 0.0
      %v8145 = vmax.f32 %v8049, 0.0
      %v8146 = vmax.f32 %v8050, 0.0
      %v8147 = vmax.f32 %v8051, 0.0
      %v8148 = vmax.f32 %v8052, 0.0
      %v8149 = vmax.f32 %v8053, 0.0
      %v8150 = vmax.f32 %v8054, 0.0
      %v8151 = vmax.f32 %v8055, 0.0
      %v8152 = vmax.f32 %v8056, 0.0
      %v8153 = vmax.f32 %v8057, 0.0
      %v8154 = vmax.f32 %v8058, 0.0
      %v8155 = vmax.f32 %v8059, 0.0
      %v8156 = vmax.f32 %v8060, 0.0
      %v8157 = vmax.f32 %v8061, 0.0
      %v8158 = vmax.f32 %v8062, 0.0
      %v8159 = vmax.f32 %v8063, 0.0
      %v8160 = vmax.f32 %v8064, 0.0
      %v8161 = vmax.f32 %v8065, 0.0
      %v8162 = vmax.f32 %v8066, 0.0
      %v8163 = vmax.f32 %v8067, 0.0
      %v8164 = vmax.f32 %v8068, 0.0
      %v8165 = vmax.f32 %v8069, 0.0
      %v8166 = vmax.f32 %v8070, 0.0
      %v8167 = vmax.f32 %v8071, 0.0
      %v8168 = vmax.f32 %v8072, 0.0
      %v8169 = vmax.f32 %v8073, 0.0
      %v8170 = vmax.f32 %v8074, 0.0
      %v8171 = vmax.f32 %v8075, 0.0
      %v8172 = vmax.f32 %v8076, 0.0
      %v8173 = vmax.f32 %v8077, 0.0
      %v8174 = vmax.f32 %v8078, 0.0
      %v8175 = vmax.f32 %v8079, 0.0
      %v8176 = vmax.f32 %v8080, 0.0
      %v8177 = vmax.f32 %v8081, 0.0
      %v8178 = vmax.f32 %v8082, 0.0
      %v8179 = vmax.f32 %v8083, 0.0
      %v8180 = vmax.f32 %v8084, 0.0
      %v8181 = vmax.f32 %v8085, 0.0
      %v8182 = vmax.f32 %v8086, 0.0
      %v8183 = vmax.f32 %v8087, 0.0
      %v8184 = vmax.f32 %v8088, 0.0
      %v8185 = vmax.f32 %v8089, 0.0
      %v8186 = vmax.f32 %v8090, 0.0
      %v8187 = vmax.f32 %v8091, 0.0
      %v8188 = vmax.f32 %v8092, 0.0
      %v8189 = vmax.f32 %v8093, 0.0
      %v8190 = vmax.f32 %v8094, 0.0
      %v8191 = vmax.f32 %v8095, 0.0
      %v8192 = vmax.f32 %v8096, 0.0
      %v8193 = vmax.f32 %v8097, 0.0
      %v8194 = vmax.f32 %v8098, 0.0
      %v8195 = vmax.f32 %v8099, 0.0
      %v8196 = vmax.f32 %v8100, 0.0
      %v8197 = vmax.f32 %v8101, 0.0
      %v8198 = vmax.f32 %v8102, 0.0
      %v8199 = vmax.f32 %v8103, 0.0
      %v8200 = vmax.f32 %v8104, 0.0
      %v8201 = vmax.f32 %v8105, 0.0
      %v8202 = vmax.f32 %v8106, 0.0
      %vm8203 = vcmask 1045504
      %v8204 = vsel %vm8203, %v8107, -inf
      %v8205 = vrot.slane %v8204, 4
      %v8206 = vmax.f32 %v8204, %v8205
      %v8207 = vrot.slane %v8206, 2
      %v8208 = vmax.f32 %v8206, %v8207
      %v8209 = vrot.slane %v8208, 1
      %v8210 = vmax.f32 %v8208, %v8209
      %v8211 = vsel %vm8203, %v8108, -inf
      %v8212 = vrot.slane %v8211, 4
      %v8213 = vmax.f32 %v8211, %v8212
      %v8214 = vrot.slane %v8213, 2
      %v8215 = vmax.f32 %v8213, %v8214
      %v8216 = vrot.slane %v8215, 1
      %v8217 = vmax.f32 %v8215, %v8216
      %v8218 = vsel %vm8203, %v8109, -inf
      %v8219 = vrot.slane %v8218, 4
      %v8220 = vmax.f32 %v8218, %v8219
      %v8221 = vrot.slane %v8220, 2
      %v8222 = vmax.f32 %v8220, %v8221
      %v8223 = vrot.slane %v8222, 1
      %v8224 = vmax.f32 %v8222, %v8223
      %v8225 = vsel %vm8203, %v8110, -inf
      %v8226 = vrot.slane %v8225, 4
      %v8227 = vmax.f32 %v8225, %v8226
      %v8228 = vrot.slane %v8227, 2
      %v8229 = vmax.f32 %v8227, %v8228
      %v8230 = vrot.slane %v8229, 1
      %v8231 = vmax.f32 %v8229, %v8230
      %v8232 = vsel %vm8203, %v8119, -inf
      %v8233 = vrot.slane %v8232, 4
      %v8234 = vmax.f32 %v8232, %v8233
      %v8235 = vrot.slane %v8234, 2
      %v8236 = vmax.f32 %v8234, %v8235
      %v8237 = vrot.slane %v8236, 1
      %v8238 = vmax.f32 %v8236, %v8237
      %v8239 = vsel %vm8203, %v8120, -inf
      %v8240 = vrot.slane %v8239, 4
      %v8241 = vmax.f32 %v8239, %v8240
      %v8242 = vrot.slane %v8241, 2
      %v8243 = vmax.f32 %v8241, %v8242
      %v8244 = vrot.slane %v8243, 1
      %v8245 = vmax.f32 %v8243, %v8244
      %v8246 = vsel %vm8203, %v8121, -inf
      %v8247 = vrot.slane %v8246, 4
      %v8248 = vmax.f32 %v8246, %v8247
      %v8249 = vrot.slane %v8248, 2
      %v8250 = vmax.f32 %v8248, %v8249
      %v8251 = vrot.slane %v8250, 1
      %v8252 = vmax.f32 %v8250, %v8251
      %v8253 = vsel %vm8203, %v8122, -inf
      %v8254 = vrot.slane %v8253, 4
      %v8255 = vmax.f32 %v8253, %v8254
      %v8256 = vrot.slane %v8255, 2
      %v8257 = vmax.f32 %v8255, %v8256
      %v8258 = vrot.slane %v8257, 1
      %v8259 = vmax.f32 %v8257, %v8258
      %v8260 = vsel %vm8203, %v8131, -inf
      %v8261 = vrot.slane %v8260, 4
      %v8262 = vmax.f32 %v8260, %v8261
      %v8263 = vrot.slane %v8262, 2
      %v8264 = vmax.f32 %v8262, %v8263
      %v8265 = vrot.slane %v8264, 1
      %v8266 = vmax.f32 %v8264, %v8265
      %v8267 = vsel %vm8203, %v8132, -inf
      %v8268 = vrot.slane %v8267, 4
      %v8269 = vmax.f32 %v8267, %v8268
      %v8270 = vrot.slane %v8269, 2
      %v8271 = vmax.f32 %v8269, %v8270
      %v8272 = vrot.slane %v8271, 1
      %v8273 = vmax.f32 %v8271, %v8272
      %v8274 = vsel %vm8203, %v8133, -inf
      %v8275 = vrot.slane %v8274, 4
      %v8276 = vmax.f32 %v8274, %v8275
      %v8277 = vrot.slane %v8276, 2
      %v8278 = vmax.f32 %v8276, %v8277
      %v8279 = vrot.slane %v8278, 1
      %v8280 = vmax.f32 %v8278, %v8279
      %v8281 = vsel %vm8203, %v8134, -inf
      %v8282 = vrot.slane %v8281, 4
      %v8283 = vmax.f32 %v8281, %v8282
      %v8284 = vrot.slane %v8283, 2
      %v8285 = vmax.f32 %v8283, %v8284
      %v8286 = vrot.slane %v8285, 1
      %v8287 = vmax.f32 %v8285, %v8286
      %v8288 = vsel %vm8203, %v8143, -inf
      %v8289 = vrot.slane %v8288, 4
      %v8290 = vmax.f32 %v8288, %v8289
      %v8291 = vrot.slane %v8290, 2
      %v8292 = vmax.f32 %v8290, %v8291
      %v8293 = vrot.slane %v8292, 1
      %v8294 = vmax.f32 %v8292, %v8293
      %v8295 = vsel %vm8203, %v8144, -inf
      %v8296 = vrot.slane %v8295, 4
      %v8297 = vmax.f32 %v8295, %v8296
      %v8298 = vrot.slane %v8297, 2
      %v8299 = vmax.f32 %v8297, %v8298
      %v8300 = vrot.slane %v8299, 1
      %v8301 = vmax.f32 %v8299, %v8300
      %v8302 = vsel %vm8203, %v8145, -inf
      %v8303 = vrot.slane %v8302, 4
      %v8304 = vmax.f32 %v8302, %v8303
      %v8305 = vrot.slane %v8304, 2
      %v8306 = vmax.f32 %v8304, %v8305
      %v8307 = vrot.slane %v8306, 1
      %v8308 = vmax.f32 %v8306, %v8307
      %v8309 = vsel %vm8203, %v8146, -inf
      %v8310 = vrot.slane %v8309, 4
      %v8311 = vmax.f32 %v8309, %v8310
      %v8312 = vrot.slane %v8311, 2
      %v8313 = vmax.f32 %v8311, %v8312
      %v8314 = vrot.slane %v8313, 1
      %v8315 = vmax.f32 %v8313, %v8314
      %v8316 = vsel %vm8203, %v8155, -inf
      %v8317 = vrot.slane %v8316, 4
      %v8318 = vmax.f32 %v8316, %v8317
      %v8319 = vrot.slane %v8318, 2
      %v8320 = vmax.f32 %v8318, %v8319
      %v8321 = vrot.slane %v8320, 1
      %v8322 = vmax.f32 %v8320, %v8321
      %v8323 = vsel %vm8203, %v8156, -inf
      %v8324 = vrot.slane %v8323, 4
      %v8325 = vmax.f32 %v8323, %v8324
      %v8326 = vrot.slane %v8325, 2
      %v8327 = vmax.f32 %v8325, %v8326
      %v8328 = vrot.slane %v8327, 1
      %v8329 = vmax.f32 %v8327, %v8328
      %v8330 = vsel %vm8203, %v8157, -inf
      %v8331 = vrot.slane %v8330, 4
      %v8332 = vmax.f32 %v8330, %v8331
      %v8333 = vrot.slane %v8332, 2
      %v8334 = vmax.f32 %v8332, %v8333
      %v8335 = vrot.slane %v8334, 1
      %v8336 = vmax.f32 %v8334, %v8335
      %v8337 = vsel %vm8203, %v8158, -inf
      %v8338 = vrot.slane %v8337, 4
      %v8339 = vmax.f32 %v8337, %v8338
      %v8340 = vrot.slane %v8339, 2
      %v8341 = vmax.f32 %v8339, %v8340
      %v8342 = vrot.slane %v8341, 1
      %v8343 = vmax.f32 %v8341, %v8342
      %v8344 = vsel %vm8203, %v8167, -inf
      %v8345 = vrot.slane %v8344, 4
      %v8346 = vmax.f32 %v8344, %v8345
      %v8347 = vrot.slane %v8346, 2
      %v8348 = vmax.f32 %v8346, %v8347
      %v8349 = vrot.slane %v8348, 1
      %v8350 = vmax.f32 %v8348, %v8349
      %v8351 = vsel %vm8203, %v8168, -inf
      %v8352 = vrot.slane %v8351, 4
      %v8353 = vmax.f32 %v8351, %v8352
      %v8354 = vrot.slane %v8353, 2
      %v8355 = vmax.f32 %v8353, %v8354
      %v8356 = vrot.slane %v8355, 1
      %v8357 = vmax.f32 %v8355, %v8356
      %v8358 = vsel %vm8203, %v8169, -inf
      %v8359 = vrot.slane %v8358, 4
      %v8360 = vmax.f32 %v8358, %v8359
      %v8361 = vrot.slane %v8360, 2
      %v8362 = vmax.f32 %v8360, %v8361
      %v8363 = vrot.slane %v8362, 1
      %v8364 = vmax.f32 %v8362, %v8363
      %v8365 = vsel %vm8203, %v8170, -inf
      %v8366 = vrot.slane %v8365, 4
      %v8367 = vmax.f32 %v8365, %v8366
      %v8368 = vrot.slane %v8367, 2
      %v8369 = vmax.f32 %v8367, %v8368
      %v8370 = vrot.slane %v8369, 1
      %v8371 = vmax.f32 %v8369, %v8370
      %v8372 = vsel %vm8203, %v8179, -inf
      %v8373 = vrot.slane %v8372, 4
      %v8374 = vmax.f32 %v8372, %v8373
      %v8375 = vrot.slane %v8374, 2
      %v8376 = vmax.f32 %v8374, %v8375
      %v8377 = vrot.slane %v8376, 1
      %v8378 = vmax.f32 %v8376, %v8377
      %v8379 = vsel %vm8203, %v8180, -inf
      %v8380 = vrot.slane %v8379, 4
      %v8381 = vmax.f32 %v8379, %v8380
      %v8382 = vrot.slane %v8381, 2
      %v8383 = vmax.f32 %v8381, %v8382
      %v8384 = vrot.slane %v8383, 1
      %v8385 = vmax.f32 %v8383, %v8384
      %v8386 = vsel %vm8203, %v8181, -inf
      %v8387 = vrot.slane %v8386, 4
      %v8388 = vmax.f32 %v8386, %v8387
      %v8389 = vrot.slane %v8388, 2
      %v8390 = vmax.f32 %v8388, %v8389
      %v8391 = vrot.slane %v8390, 1
      %v8392 = vmax.f32 %v8390, %v8391
      %v8393 = vsel %vm8203, %v8182, -inf
      %v8394 = vrot.slane %v8393, 4
      %v8395 = vmax.f32 %v8393, %v8394
      %v8396 = vrot.slane %v8395, 2
      %v8397 = vmax.f32 %v8395, %v8396
      %v8398 = vrot.slane %v8397, 1
      %v8399 = vmax.f32 %v8397, %v8398
      %v8400 = vsel %vm8203, %v8191, -inf
      %v8401 = vrot.slane %v8400, 4
      %v8402 = vmax.f32 %v8400, %v8401
      %v8403 = vrot.slane %v8402, 2
      %v8404 = vmax.f32 %v8402, %v8403
      %v8405 = vrot.slane %v8404, 1
      %v8406 = vmax.f32 %v8404, %v8405
      %v8407 = vsel %vm8203, %v8192, -inf
      %v8408 = vrot.slane %v8407, 4
      %v8409 = vmax.f32 %v8407, %v8408
      %v8410 = vrot.slane %v8409, 2
      %v8411 = vmax.f32 %v8409, %v8410
      %v8412 = vrot.slane %v8411, 1
      %v8413 = vmax.f32 %v8411, %v8412
      %v8414 = vsel %vm8203, %v8193, -inf
      %v8415 = vrot.slane %v8414, 4
      %v8416 = vmax.f32 %v8414, %v8415
      %v8417 = vrot.slane %v8416, 2
      %v8418 = vmax.f32 %v8416, %v8417
      %v8419 = vrot.slane %v8418, 1
      %v8420 = vmax.f32 %v8418, %v8419
      %v8421 = vsel %vm8203, %v8194, -inf
      %v8422 = vrot.slane %v8421, 4
      %v8423 = vmax.f32 %v8421, %v8422
      %v8424 = vrot.slane %v8423, 2
      %v8425 = vmax.f32 %v8423, %v8424
      %v8426 = vrot.slane %v8425, 1
      %v8427 = vmax.f32 %v8425, %v8426
      %vm8428 = vcmask 1047558
      %v8429 = vsel %vm8428, %v8107, -inf
      %v8430 = vsel %vm756, %v8111, -inf
      %v8431 = vmax.f32 %v8429, %v8430
      %v8432 = vrot.slane %v8431, 4
      %v8433 = vmax.f32 %v8431, %v8432
      %v8434 = vrot.slane %v8433, 2
      %v8435 = vmax.f32 %v8433, %v8434
      %v8436 = vrot.slane %v8435, 1
      %v8437 = vmax.f32 %v8435, %v8436
      %v8438 = vsel %vm8428, %v8108, -inf
      %v8439 = vsel %vm756, %v8112, -inf
      %v8440 = vmax.f32 %v8438, %v8439
      %v8441 = vrot.slane %v8440, 4
      %v8442 = vmax.f32 %v8440, %v8441
      %v8443 = vrot.slane %v8442, 2
      %v8444 = vmax.f32 %v8442, %v8443
      %v8445 = vrot.slane %v8444, 1
      %v8446 = vmax.f32 %v8444, %v8445
      %v8447 = vsel %vm8428, %v8109, -inf
      %v8448 = vsel %vm756, %v8113, -inf
      %v8449 = vmax.f32 %v8447, %v8448
      %v8450 = vrot.slane %v8449, 4
      %v8451 = vmax.f32 %v8449, %v8450
      %v8452 = vrot.slane %v8451, 2
      %v8453 = vmax.f32 %v8451, %v8452
      %v8454 = vrot.slane %v8453, 1
      %v8455 = vmax.f32 %v8453, %v8454
      %v8456 = vsel %vm8428, %v8110, -inf
      %v8457 = vsel %vm756, %v8114, -inf
      %v8458 = vmax.f32 %v8456, %v8457
      %v8459 = vrot.slane %v8458, 4
      %v8460 = vmax.f32 %v8458, %v8459
      %v8461 = vrot.slane %v8460, 2
      %v8462 = vmax.f32 %v8460, %v8461
      %v8463 = vrot.slane %v8462, 1
      %v8464 = vmax.f32 %v8462, %v8463
      %v8465 = vsel %vm8428, %v8119, -inf
      %v8466 = vsel %vm756, %v8123, -inf
      %v8467 = vmax.f32 %v8465, %v8466
      %v8468 = vrot.slane %v8467, 4
      %v8469 = vmax.f32 %v8467, %v8468
      %v8470 = vrot.slane %v8469, 2
      %v8471 = vmax.f32 %v8469, %v8470
      %v8472 = vrot.slane %v8471, 1
      %v8473 = vmax.f32 %v8471, %v8472
      %v8474 = vsel %vm8428, %v8120, -inf
      %v8475 = vsel %vm756, %v8124, -inf
      %v8476 = vmax.f32 %v8474, %v8475
      %v8477 = vrot.slane %v8476, 4
      %v8478 = vmax.f32 %v8476, %v8477
      %v8479 = vrot.slane %v8478, 2
      %v8480 = vmax.f32 %v8478, %v8479
      %v8481 = vrot.slane %v8480, 1
      %v8482 = vmax.f32 %v8480, %v8481
      %v8483 = vsel %vm8428, %v8121, -inf
      %v8484 = vsel %vm756, %v8125, -inf
      %v8485 = vmax.f32 %v8483, %v8484
      %v8486 = vrot.slane %v8485, 4
      %v8487 = vmax.f32 %v8485, %v8486
      %v8488 = vrot.slane %v8487, 2
      %v8489 = vmax.f32 %v8487, %v8488
      %v8490 = vrot.slane %v8489, 1
      %v8491 = vmax.f32 %v8489, %v8490
      %v8492 = vsel %vm8428, %v8122, -inf
      %v8493 = vsel %vm756, %v8126, -inf
      %v8494 = vmax.f32 %v8492, %v8493
      %v8495 = vrot.slane %v8494, 4
      %v8496 = vmax.f32 %v8494, %v8495
      %v8497 = vrot.slane %v8496, 2
      %v8498 = vmax.f32 %v8496, %v8497
      %v8499 = vrot.slane %v8498, 1
      %v8500 = vmax.f32 %v8498, %v8499
      %v8501 = vsel %vm8428, %v8131, -inf
      %v8502 = vsel %vm756, %v8135, -inf
      %v8503 = vmax.f32 %v8501, %v8502
      %v8504 = vrot.slane %v8503, 4
      %v8505 = vmax.f32 %v8503, %v8504
      %v8506 = vrot.slane %v8505, 2
      %v8507 = vmax.f32 %v8505, %v8506
      %v8508 = vrot.slane %v8507, 1
      %v8509 = vmax.f32 %v8507, %v8508
      %v8510 = vsel %vm8428, %v8132, -inf
      %v8511 = vsel %vm756, %v8136, -inf
      %v8512 = vmax.f32 %v8510, %v8511
      %v8513 = vrot.slane %v8512, 4
      %v8514 = vmax.f32 %v8512, %v8513
      %v8515 = vrot.slane %v8514, 2
      %v8516 = vmax.f32 %v8514, %v8515
      %v8517 = vrot.slane %v8516, 1
      %v8518 = vmax.f32 %v8516, %v8517
      %v8519 = vsel %vm8428, %v8133, -inf
      %v8520 = vsel %vm756, %v8137, -inf
      %v8521 = vmax.f32 %v8519, %v8520
      %v8522 = vrot.slane %v8521, 4
      %v8523 = vmax.f32 %v8521, %v8522
      %v8524 = vrot.slane %v8523, 2
      %v8525 = vmax.f32 %v8523, %v8524
      %v8526 = vrot.slane %v8525, 1
      %v8527 = vmax.f32 %v8525, %v8526
      %v8528 = vsel %vm8428, %v8134, -inf
      %v8529 = vsel %vm756, %v8138, -inf
      %v8530 = vmax.f32 %v8528, %v8529
      %v8531 = vrot.slane %v8530, 4
      %v8532 = vmax.f32 %v8530, %v8531
      %v8533 = vrot.slane %v8532, 2
      %v8534 = vmax.f32 %v8532, %v8533
      %v8535 = vrot.slane %v8534, 1
      %v8536 = vmax.f32 %v8534, %v8535
      %v8537 = vsel %vm8428, %v8143, -inf
      %v8538 = vsel %vm756, %v8147, -inf
      %v8539 = vmax.f32 %v8537, %v8538
      %v8540 = vrot.slane %v8539, 4
      %v8541 = vmax.f32 %v8539, %v8540
      %v8542 = vrot.slane %v8541, 2
      %v8543 = vmax.f32 %v8541, %v8542
      %v8544 = vrot.slane %v8543, 1
      %v8545 = vmax.f32 %v8543, %v8544
      %v8546 = vsel %vm8428, %v8144, -inf
      %v8547 = vsel %vm756, %v8148, -inf
      %v8548 = vmax.f32 %v8546, %v8547
      %v8549 = vrot.slane %v8548, 4
      %v8550 = vmax.f32 %v8548, %v8549
      %v8551 = vrot.slane %v8550, 2
      %v8552 = vmax.f32 %v8550, %v8551
      %v8553 = vrot.slane %v8552, 1
      %v8554 = vmax.f32 %v8552, %v8553
      %v8555 = vsel %vm8428, %v8145, -inf
      %v8556 = vsel %vm756, %v8149, -inf
      %v8557 = vmax.f32 %v8555, %v8556
      %v8558 = vrot.slane %v8557, 4
      %v8559 = vmax.f32 %v8557, %v8558
      %v8560 = vrot.slane %v8559, 2
      %v8561 = vmax.f32 %v8559, %v8560
      %v8562 = vrot.slane %v8561, 1
      %v8563 = vmax.f32 %v8561, %v8562
      %v8564 = vsel %vm8428, %v8146, -inf
      %v8565 = vsel %vm756, %v8150, -inf
      %v8566 = vmax.f32 %v8564, %v8565
      %v8567 = vrot.slane %v8566, 4
      %v8568 = vmax.f32 %v8566, %v8567
      %v8569 = vrot.slane %v8568, 2
      %v8570 = vmax.f32 %v8568, %v8569
      %v8571 = vrot.slane %v8570, 1
      %v8572 = vmax.f32 %v8570, %v8571
      %v8573 = vsel %vm8428, %v8155, -inf
      %v8574 = vsel %vm756, %v8159, -inf
      %v8575 = vmax.f32 %v8573, %v8574
      %v8576 = vrot.slane %v8575, 4
      %v8577 = vmax.f32 %v8575, %v8576
      %v8578 = vrot.slane %v8577, 2
      %v8579 = vmax.f32 %v8577, %v8578
      %v8580 = vrot.slane %v8579, 1
      %v8581 = vmax.f32 %v8579, %v8580
      %v8582 = vsel %vm8428, %v8156, -inf
      %v8583 = vsel %vm756, %v8160, -inf
      %v8584 = vmax.f32 %v8582, %v8583
      %v8585 = vrot.slane %v8584, 4
      %v8586 = vmax.f32 %v8584, %v8585
      %v8587 = vrot.slane %v8586, 2
      %v8588 = vmax.f32 %v8586, %v8587
      %v8589 = vrot.slane %v8588, 1
      %v8590 = vmax.f32 %v8588, %v8589
      %v8591 = vsel %vm8428, %v8157, -inf
      %v8592 = vsel %vm756, %v8161, -inf
      %v8593 = vmax.f32 %v8591, %v8592
      %v8594 = vrot.slane %v8593, 4
      %v8595 = vmax.f32 %v8593, %v8594
      %v8596 = vrot.slane %v8595, 2
      %v8597 = vmax.f32 %v8595, %v8596
      %v8598 = vrot.slane %v8597, 1
      %v8599 = vmax.f32 %v8597, %v8598
      %v8600 = vsel %vm8428, %v8158, -inf
      %v8601 = vsel %vm756, %v8162, -inf
      %v8602 = vmax.f32 %v8600, %v8601
      %v8603 = vrot.slane %v8602, 4
      %v8604 = vmax.f32 %v8602, %v8603
      %v8605 = vrot.slane %v8604, 2
      %v8606 = vmax.f32 %v8604, %v8605
      %v8607 = vrot.slane %v8606, 1
      %v8608 = vmax.f32 %v8606, %v8607
      %v8609 = vsel %vm8428, %v8167, -inf
      %v8610 = vsel %vm756, %v8171, -inf
      %v8611 = vmax.f32 %v8609, %v8610
      %v8612 = vrot.slane %v8611, 4
      %v8613 = vmax.f32 %v8611, %v8612
      %v8614 = vrot.slane %v8613, 2
      %v8615 = vmax.f32 %v8613, %v8614
      %v8616 = vrot.slane %v8615, 1
      %v8617 = vmax.f32 %v8615, %v8616
      %v8618 = vsel %vm8428, %v8168, -inf
      %v8619 = vsel %vm756, %v8172, -inf
      %v8620 = vmax.f32 %v8618, %v8619
      %v8621 = vrot.slane %v8620, 4
      %v8622 = vmax.f32 %v8620, %v8621
      %v8623 = vrot.slane %v8622, 2
      %v8624 = vmax.f32 %v8622, %v8623
      %v8625 = vrot.slane %v8624, 1
      %v8626 = vmax.f32 %v8624, %v8625
      %v8627 = vsel %vm8428, %v8169, -inf
      %v8628 = vsel %vm756, %v8173, -inf
      %v8629 = vmax.f32 %v8627, %v8628
      %v8630 = vrot.slane %v8629, 4
      %v8631 = vmax.f32 %v8629, %v8630
      %v8632 = vrot.slane %v8631, 2
      %v8633 = vmax.f32 %v8631, %v8632
      %v8634 = vrot.slane %v8633, 1
      %v8635 = vmax.f32 %v8633, %v8634
      %v8636 = vsel %vm8428, %v8170, -inf
      %v8637 = vsel %vm756, %v8174, -inf
      %v8638 = vmax.f32 %v8636, %v8637
      %v8639 = vrot.slane %v8638, 4
      %v8640 = vmax.f32 %v8638, %v8639
      %v8641 = vrot.slane %v8640, 2
      %v8642 = vmax.f32 %v8640, %v8641
      %v8643 = vrot.slane %v8642, 1
      %v8644 = vmax.f32 %v8642, %v8643
      %v8645 = vsel %vm8428, %v8179, -inf
      %v8646 = vsel %vm756, %v8183, -inf
      %v8647 = vmax.f32 %v8645, %v8646
      %v8648 = vrot.slane %v8647, 4
      %v8649 = vmax.f32 %v8647, %v8648
      %v8650 = vrot.slane %v8649, 2
      %v8651 = vmax.f32 %v8649, %v8650
      %v8652 = vrot.slane %v8651, 1
      %v8653 = vmax.f32 %v8651, %v8652
      %v8654 = vsel %vm8428, %v8180, -inf
      %v8655 = vsel %vm756, %v8184, -inf
      %v8656 = vmax.f32 %v8654, %v8655
      %v8657 = vrot.slane %v8656, 4
      %v8658 = vmax.f32 %v8656, %v8657
      %v8659 = vrot.slane %v8658, 2
      %v8660 = vmax.f32 %v8658, %v8659
      %v8661 = vrot.slane %v8660, 1
      %v8662 = vmax.f32 %v8660, %v8661
      %v8663 = vsel %vm8428, %v8181, -inf
      %v8664 = vsel %vm756, %v8185, -inf
      %v8665 = vmax.f32 %v8663, %v8664
      %v8666 = vrot.slane %v8665, 4
      %v8667 = vmax.f32 %v8665, %v8666
      %v8668 = vrot.slane %v8667, 2
      %v8669 = vmax.f32 %v8667, %v8668
      %v8670 = vrot.slane %v8669, 1
      %v8671 = vmax.f32 %v8669, %v8670
      %v8672 = vsel %vm8428, %v8182, -inf
      %v8673 = vsel %vm756, %v8186, -inf
      %v8674 = vmax.f32 %v8672, %v8673
      %v8675 = vrot.slane %v8674, 4
      %v8676 = vmax.f32 %v8674, %v8675
      %v8677 = vrot.slane %v8676, 2
      %v8678 = vmax.f32 %v8676, %v8677
      %v8679 = vrot.slane %v8678, 1
      %v8680 = vmax.f32 %v8678, %v8679
      %v8681 = vsel %vm8428, %v8191, -inf
      %v8682 = vsel %vm756, %v8195, -inf
      %v8683 = vmax.f32 %v8681, %v8682
      %v8684 = vrot.slane %v8683, 4
      %v8685 = vmax.f32 %v8683, %v8684
      %v8686 = vrot.slane %v8685, 2
      %v8687 = vmax.f32 %v8685, %v8686
      %v8688 = vrot.slane %v8687, 1
      %v8689 = vmax.f32 %v8687, %v8688
      %v8690 = vsel %vm8428, %v8192, -inf
      %v8691 = vsel %vm756, %v8196, -inf
      %v8692 = vmax.f32 %v8690, %v8691
      %v8693 = vrot.slane %v8692, 4
      %v8694 = vmax.f32 %v8692, %v8693
      %v8695 = vrot.slane %v8694, 2
      %v8696 = vmax.f32 %v8694, %v8695
      %v8697 = vrot.slane %v8696, 1
      %v8698 = vmax.f32 %v8696, %v8697
      %v8699 = vsel %vm8428, %v8193, -inf
      %v8700 = vsel %vm756, %v8197, -inf
      %v8701 = vmax.f32 %v8699, %v8700
      %v8702 = vrot.slane %v8701, 4
      %v8703 = vmax.f32 %v8701, %v8702
      %v8704 = vrot.slane %v8703, 2
      %v8705 = vmax.f32 %v8703, %v8704
      %v8706 = vrot.slane %v8705, 1
      %v8707 = vmax.f32 %v8705, %v8706
      %v8708 = vsel %vm8428, %v8194, -inf
      %v8709 = vsel %vm756, %v8198, -inf
      %v8710 = vmax.f32 %v8708, %v8709
      %v8711 = vrot.slane %v8710, 4
      %v8712 = vmax.f32 %v8710, %v8711
      %v8713 = vrot.slane %v8712, 2
      %v8714 = vmax.f32 %v8712, %v8713
      %v8715 = vrot.slane %v8714, 1
      %v8716 = vmax.f32 %v8714, %v8715
      %vm8717 = vcmask 1047556
      %v8718 = vsel %vm8717, %v8111, -inf
      %vm8719 = vcmask 1041408
      %v8720 = vsel %vm8719, %v8115, -inf
      %v8721 = vmax.f32 %v8718, %v8720
      %v8722 = vrot.slane %v8721, 4
      %v8723 = vmax.f32 %v8721, %v8722
      %v8724 = vrot.slane %v8723, 2
      %v8725 = vmax.f32 %v8723, %v8724
      %v8726 = vrot.slane %v8725, 1
      %v8727 = vmax.f32 %v8725, %v8726
      %v8728 = vsel %vm8717, %v8112, -inf
      %v8729 = vsel %vm8719, %v8116, -inf
      %v8730 = vmax.f32 %v8728, %v8729
      %v8731 = vrot.slane %v8730, 4
      %v8732 = vmax.f32 %v8730, %v8731
      %v8733 = vrot.slane %v8732, 2
      %v8734 = vmax.f32 %v8732, %v8733
      %v8735 = vrot.slane %v8734, 1
      %v8736 = vmax.f32 %v8734, %v8735
      %v8737 = vsel %vm8717, %v8113, -inf
      %v8738 = vsel %vm8719, %v8117, -inf
      %v8739 = vmax.f32 %v8737, %v8738
      %v8740 = vrot.slane %v8739, 4
      %v8741 = vmax.f32 %v8739, %v8740
      %v8742 = vrot.slane %v8741, 2
      %v8743 = vmax.f32 %v8741, %v8742
      %v8744 = vrot.slane %v8743, 1
      %v8745 = vmax.f32 %v8743, %v8744
      %v8746 = vsel %vm8717, %v8114, -inf
      %v8747 = vsel %vm8719, %v8118, -inf
      %v8748 = vmax.f32 %v8746, %v8747
      %v8749 = vrot.slane %v8748, 4
      %v8750 = vmax.f32 %v8748, %v8749
      %v8751 = vrot.slane %v8750, 2
      %v8752 = vmax.f32 %v8750, %v8751
      %v8753 = vrot.slane %v8752, 1
      %v8754 = vmax.f32 %v8752, %v8753
      %v8755 = vsel %vm8717, %v8123, -inf
      %v8756 = vsel %vm8719, %v8127, -inf
      %v8757 = vmax.f32 %v8755, %v8756
      %v8758 = vrot.slane %v8757, 4
      %v8759 = vmax.f32 %v8757, %v8758
      %v8760 = vrot.slane %v8759, 2
      %v8761 = vmax.f32 %v8759, %v8760
      %v8762 = vrot.slane %v8761, 1
      %v8763 = vmax.f32 %v8761, %v8762
      %v8764 = vsel %vm8717, %v8124, -inf
      %v8765 = vsel %vm8719, %v8128, -inf
      %v8766 = vmax.f32 %v8764, %v8765
      %v8767 = vrot.slane %v8766, 4
      %v8768 = vmax.f32 %v8766, %v8767
      %v8769 = vrot.slane %v8768, 2
      %v8770 = vmax.f32 %v8768, %v8769
      %v8771 = vrot.slane %v8770, 1
      %v8772 = vmax.f32 %v8770, %v8771
      %v8773 = vsel %vm8717, %v8125, -inf
      %v8774 = vsel %vm8719, %v8129, -inf
      %v8775 = vmax.f32 %v8773, %v8774
      %v8776 = vrot.slane %v8775, 4
      %v8777 = vmax.f32 %v8775, %v8776
      %v8778 = vrot.slane %v8777, 2
      %v8779 = vmax.f32 %v8777, %v8778
      %v8780 = vrot.slane %v8779, 1
      %v8781 = vmax.f32 %v8779, %v8780
      %v8782 = vsel %vm8717, %v8126, -inf
      %v8783 = vsel %vm8719, %v8130, -inf
      %v8784 = vmax.f32 %v8782, %v8783
      %v8785 = vrot.slane %v8784, 4
      %v8786 = vmax.f32 %v8784, %v8785
      %v8787 = vrot.slane %v8786, 2
      %v8788 = vmax.f32 %v8786, %v8787
      %v8789 = vrot.slane %v8788, 1
      %v8790 = vmax.f32 %v8788, %v8789
      %v8791 = vsel %vm8717, %v8135, -inf
      %v8792 = vsel %vm8719, %v8139, -inf
      %v8793 = vmax.f32 %v8791, %v8792
      %v8794 = vrot.slane %v8793, 4
      %v8795 = vmax.f32 %v8793, %v8794
      %v8796 = vrot.slane %v8795, 2
      %v8797 = vmax.f32 %v8795, %v8796
      %v8798 = vrot.slane %v8797, 1
      %v8799 = vmax.f32 %v8797, %v8798
      %v8800 = vsel %vm8717, %v8136, -inf
      %v8801 = vsel %vm8719, %v8140, -inf
      %v8802 = vmax.f32 %v8800, %v8801
      %v8803 = vrot.slane %v8802, 4
      %v8804 = vmax.f32 %v8802, %v8803
      %v8805 = vrot.slane %v8804, 2
      %v8806 = vmax.f32 %v8804, %v8805
      %v8807 = vrot.slane %v8806, 1
      %v8808 = vmax.f32 %v8806, %v8807
      %v8809 = vsel %vm8717, %v8137, -inf
      %v8810 = vsel %vm8719, %v8141, -inf
      %v8811 = vmax.f32 %v8809, %v8810
      %v8812 = vrot.slane %v8811, 4
      %v8813 = vmax.f32 %v8811, %v8812
      %v8814 = vrot.slane %v8813, 2
      %v8815 = vmax.f32 %v8813, %v8814
      %v8816 = vrot.slane %v8815, 1
      %v8817 = vmax.f32 %v8815, %v8816
      %v8818 = vsel %vm8717, %v8138, -inf
      %v8819 = vsel %vm8719, %v8142, -inf
      %v8820 = vmax.f32 %v8818, %v8819
      %v8821 = vrot.slane %v8820, 4
      %v8822 = vmax.f32 %v8820, %v8821
      %v8823 = vrot.slane %v8822, 2
      %v8824 = vmax.f32 %v8822, %v8823
      %v8825 = vrot.slane %v8824, 1
      %v8826 = vmax.f32 %v8824, %v8825
      %v8827 = vsel %vm8717, %v8147, -inf
      %v8828 = vsel %vm8719, %v8151, -inf
      %v8829 = vmax.f32 %v8827, %v8828
      %v8830 = vrot.slane %v8829, 4
      %v8831 = vmax.f32 %v8829, %v8830
      %v8832 = vrot.slane %v8831, 2
      %v8833 = vmax.f32 %v8831, %v8832
      %v8834 = vrot.slane %v8833, 1
      %v8835 = vmax.f32 %v8833, %v8834
      %v8836 = vsel %vm8717, %v8148, -inf
      %v8837 = vsel %vm8719, %v8152, -inf
      %v8838 = vmax.f32 %v8836, %v8837
      %v8839 = vrot.slane %v8838, 4
      %v8840 = vmax.f32 %v8838, %v8839
      %v8841 = vrot.slane %v8840, 2
      %v8842 = vmax.f32 %v8840, %v8841
      %v8843 = vrot.slane %v8842, 1
      %v8844 = vmax.f32 %v8842, %v8843
      %v8845 = vsel %vm8717, %v8149, -inf
      %v8846 = vsel %vm8719, %v8153, -inf
      %v8847 = vmax.f32 %v8845, %v8846
      %v8848 = vrot.slane %v8847, 4
      %v8849 = vmax.f32 %v8847, %v8848
      %v8850 = vrot.slane %v8849, 2
      %v8851 = vmax.f32 %v8849, %v8850
      %v8852 = vrot.slane %v8851, 1
      %v8853 = vmax.f32 %v8851, %v8852
      %v8854 = vsel %vm8717, %v8150, -inf
      %v8855 = vsel %vm8719, %v8154, -inf
      %v8856 = vmax.f32 %v8854, %v8855
      %v8857 = vrot.slane %v8856, 4
      %v8858 = vmax.f32 %v8856, %v8857
      %v8859 = vrot.slane %v8858, 2
      %v8860 = vmax.f32 %v8858, %v8859
      %v8861 = vrot.slane %v8860, 1
      %v8862 = vmax.f32 %v8860, %v8861
      %v8863 = vsel %vm8717, %v8159, -inf
      %v8864 = vsel %vm8719, %v8163, -inf
      %v8865 = vmax.f32 %v8863, %v8864
      %v8866 = vrot.slane %v8865, 4
      %v8867 = vmax.f32 %v8865, %v8866
      %v8868 = vrot.slane %v8867, 2
      %v8869 = vmax.f32 %v8867, %v8868
      %v8870 = vrot.slane %v8869, 1
      %v8871 = vmax.f32 %v8869, %v8870
      %v8872 = vsel %vm8717, %v8160, -inf
      %v8873 = vsel %vm8719, %v8164, -inf
      %v8874 = vmax.f32 %v8872, %v8873
      %v8875 = vrot.slane %v8874, 4
      %v8876 = vmax.f32 %v8874, %v8875
      %v8877 = vrot.slane %v8876, 2
      %v8878 = vmax.f32 %v8876, %v8877
      %v8879 = vrot.slane %v8878, 1
      %v8880 = vmax.f32 %v8878, %v8879
      %v8881 = vsel %vm8717, %v8161, -inf
      %v8882 = vsel %vm8719, %v8165, -inf
      %v8883 = vmax.f32 %v8881, %v8882
      %v8884 = vrot.slane %v8883, 4
      %v8885 = vmax.f32 %v8883, %v8884
      %v8886 = vrot.slane %v8885, 2
      %v8887 = vmax.f32 %v8885, %v8886
      %v8888 = vrot.slane %v8887, 1
      %v8889 = vmax.f32 %v8887, %v8888
      %v8890 = vsel %vm8717, %v8162, -inf
      %v8891 = vsel %vm8719, %v8166, -inf
      %v8892 = vmax.f32 %v8890, %v8891
      %v8893 = vrot.slane %v8892, 4
      %v8894 = vmax.f32 %v8892, %v8893
      %v8895 = vrot.slane %v8894, 2
      %v8896 = vmax.f32 %v8894, %v8895
      %v8897 = vrot.slane %v8896, 1
      %v8898 = vmax.f32 %v8896, %v8897
      %v8899 = vsel %vm8717, %v8171, -inf
      %v8900 = vsel %vm8719, %v8175, -inf
      %v8901 = vmax.f32 %v8899, %v8900
      %v8902 = vrot.slane %v8901, 4
      %v8903 = vmax.f32 %v8901, %v8902
      %v8904 = vrot.slane %v8903, 2
      %v8905 = vmax.f32 %v8903, %v8904
      %v8906 = vrot.slane %v8905, 1
      %v8907 = vmax.f32 %v8905, %v8906
      %v8908 = vsel %vm8717, %v8172, -inf
      %v8909 = vsel %vm8719, %v8176, -inf
      %v8910 = vmax.f32 %v8908, %v8909
      %v8911 = vrot.slane %v8910, 4
      %v8912 = vmax.f32 %v8910, %v8911
      %v8913 = vrot.slane %v8912, 2
      %v8914 = vmax.f32 %v8912, %v8913
      %v8915 = vrot.slane %v8914, 1
      %v8916 = vmax.f32 %v8914, %v8915
      %v8917 = vsel %vm8717, %v8173, -inf
      %v8918 = vsel %vm8719, %v8177, -inf
      %v8919 = vmax.f32 %v8917, %v8918
      %v8920 = vrot.slane %v8919, 4
      %v8921 = vmax.f32 %v8919, %v8920
      %v8922 = vrot.slane %v8921, 2
      %v8923 = vmax.f32 %v8921, %v8922
      %v8924 = vrot.slane %v8923, 1
      %v8925 = vmax.f32 %v8923, %v8924
      %v8926 = vsel %vm8717, %v8174, -inf
      %v8927 = vsel %vm8719, %v8178, -inf
      %v8928 = vmax.f32 %v8926, %v8927
      %v8929 = vrot.slane %v8928, 4
      %v8930 = vmax.f32 %v8928, %v8929
      %v8931 = vrot.slane %v8930, 2
      %v8932 = vmax.f32 %v8930, %v8931
      %v8933 = vrot.slane %v8932, 1
      %v8934 = vmax.f32 %v8932, %v8933
      %v8935 = vsel %vm8717, %v8183, -inf
      %v8936 = vsel %vm8719, %v8187, -inf
      %v8937 = vmax.f32 %v8935, %v8936
      %v8938 = vrot.slane %v8937, 4
      %v8939 = vmax.f32 %v8937, %v8938
      %v8940 = vrot.slane %v8939, 2
      %v8941 = vmax.f32 %v8939, %v8940
      %v8942 = vrot.slane %v8941, 1
      %v8943 = vmax.f32 %v8941, %v8942
      %v8944 = vsel %vm8717, %v8184, -inf
      %v8945 = vsel %vm8719, %v8188, -inf
      %v8946 = vmax.f32 %v8944, %v8945
      %v8947 = vrot.slane %v8946, 4
      %v8948 = vmax.f32 %v8946, %v8947
      %v8949 = vrot.slane %v8948, 2
      %v8950 = vmax.f32 %v8948, %v8949
      %v8951 = vrot.slane %v8950, 1
      %v8952 = vmax.f32 %v8950, %v8951
      %v8953 = vsel %vm8717, %v8185, -inf
      %v8954 = vsel %vm8719, %v8189, -inf
      %v8955 = vmax.f32 %v8953, %v8954
      %v8956 = vrot.slane %v8955, 4
      %v8957 = vmax.f32 %v8955, %v8956
      %v8958 = vrot.slane %v8957, 2
      %v8959 = vmax.f32 %v8957, %v8958
      %v8960 = vrot.slane %v8959, 1
      %v8961 = vmax.f32 %v8959, %v8960
      %v8962 = vsel %vm8717, %v8186, -inf
      %v8963 = vsel %vm8719, %v8190, -inf
      %v8964 = vmax.f32 %v8962, %v8963
      %v8965 = vrot.slane %v8964, 4
      %v8966 = vmax.f32 %v8964, %v8965
      %v8967 = vrot.slane %v8966, 2
      %v8968 = vmax.f32 %v8966, %v8967
      %v8969 = vrot.slane %v8968, 1
      %v8970 = vmax.f32 %v8968, %v8969
      %v8971 = vsel %vm8717, %v8195, -inf
      %v8972 = vsel %vm8719, %v8199, -inf
      %v8973 = vmax.f32 %v8971, %v8972
      %v8974 = vrot.slane %v8973, 4
      %v8975 = vmax.f32 %v8973, %v8974
      %v8976 = vrot.slane %v8975, 2
      %v8977 = vmax.f32 %v8975, %v8976
      %v8978 = vrot.slane %v8977, 1
      %v8979 = vmax.f32 %v8977, %v8978
      %v8980 = vsel %vm8717, %v8196, -inf
      %v8981 = vsel %vm8719, %v8200, -inf
      %v8982 = vmax.f32 %v8980, %v8981
      %v8983 = vrot.slane %v8982, 4
      %v8984 = vmax.f32 %v8982, %v8983
      %v8985 = vrot.slane %v8984, 2
      %v8986 = vmax.f32 %v8984, %v8985
      %v8987 = vrot.slane %v8986, 1
      %v8988 = vmax.f32 %v8986, %v8987
      %v8989 = vsel %vm8717, %v8197, -inf
      %v8990 = vsel %vm8719, %v8201, -inf
      %v8991 = vmax.f32 %v8989, %v8990
      %v8992 = vrot.slane %v8991, 4
      %v8993 = vmax.f32 %v8991, %v8992
      %v8994 = vrot.slane %v8993, 2
      %v8995 = vmax.f32 %v8993, %v8994
      %v8996 = vrot.slane %v8995, 1
      %v8997 = vmax.f32 %v8995, %v8996
      %v8998 = vsel %vm8717, %v8198, -inf
      %v8999 = vsel %vm8719, %v8202, -inf
      %v9000 = vmax.f32 %v8998, %v8999
      %v9001 = vrot.slane %v9000, 4
      %v9002 = vmax.f32 %v9000, %v9001
      %v9003 = vrot.slane %v9002, 2
      %v9004 = vmax.f32 %v9002, %v9003
      %v9005 = vrot.slane %v9004, 1
      %v9006 = vmax.f32 %v9004, %v9005
      %vm9007 = vcmask 1047554
      %v9008 = vsel %vm9007, %v8115, -inf
      %v9009 = vrot.slane %v9008, 4
      %v9010 = vmax.f32 %v9008, %v9009
      %v9011 = vrot.slane %v9010, 2
      %v9012 = vmax.f32 %v9010, %v9011
      %v9013 = vrot.slane %v9012, 1
      %v9014 = vmax.f32 %v9012, %v9013
      %v9015 = vsel %vm9007, %v8116, -inf
      %v9016 = vrot.slane %v9015, 4
      %v9017 = vmax.f32 %v9015, %v9016
      %v9018 = vrot.slane %v9017, 2
      %v9019 = vmax.f32 %v9017, %v9018
      %v9020 = vrot.slane %v9019, 1
      %v9021 = vmax.f32 %v9019, %v9020
      %v9022 = vsel %vm9007, %v8117, -inf
      %v9023 = vrot.slane %v9022, 4
      %v9024 = vmax.f32 %v9022, %v9023
      %v9025 = vrot.slane %v9024, 2
      %v9026 = vmax.f32 %v9024, %v9025
      %v9027 = vrot.slane %v9026, 1
      %v9028 = vmax.f32 %v9026, %v9027
      %v9029 = vsel %vm9007, %v8118, -inf
      %v9030 = vrot.slane %v9029, 4
      %v9031 = vmax.f32 %v9029, %v9030
      %v9032 = vrot.slane %v9031, 2
      %v9033 = vmax.f32 %v9031, %v9032
      %v9034 = vrot.slane %v9033, 1
      %v9035 = vmax.f32 %v9033, %v9034
      %v9036 = vsel %vm9007, %v8127, -inf
      %v9037 = vrot.slane %v9036, 4
      %v9038 = vmax.f32 %v9036, %v9037
      %v9039 = vrot.slane %v9038, 2
      %v9040 = vmax.f32 %v9038, %v9039
      %v9041 = vrot.slane %v9040, 1
      %v9042 = vmax.f32 %v9040, %v9041
      %v9043 = vsel %vm9007, %v8128, -inf
      %v9044 = vrot.slane %v9043, 4
      %v9045 = vmax.f32 %v9043, %v9044
      %v9046 = vrot.slane %v9045, 2
      %v9047 = vmax.f32 %v9045, %v9046
      %v9048 = vrot.slane %v9047, 1
      %v9049 = vmax.f32 %v9047, %v9048
      %v9050 = vsel %vm9007, %v8129, -inf
      %v9051 = vrot.slane %v9050, 4
      %v9052 = vmax.f32 %v9050, %v9051
      %v9053 = vrot.slane %v9052, 2
      %v9054 = vmax.f32 %v9052, %v9053
      %v9055 = vrot.slane %v9054, 1
      %v9056 = vmax.f32 %v9054, %v9055
      %v9057 = vsel %vm9007, %v8130, -inf
      %v9058 = vrot.slane %v9057, 4
      %v9059 = vmax.f32 %v9057, %v9058
      %v9060 = vrot.slane %v9059, 2
      %v9061 = vmax.f32 %v9059, %v9060
      %v9062 = vrot.slane %v9061, 1
      %v9063 = vmax.f32 %v9061, %v9062
      %v9064 = vsel %vm9007, %v8139, -inf
      %v9065 = vrot.slane %v9064, 4
      %v9066 = vmax.f32 %v9064, %v9065
      %v9067 = vrot.slane %v9066, 2
      %v9068 = vmax.f32 %v9066, %v9067
      %v9069 = vrot.slane %v9068, 1
      %v9070 = vmax.f32 %v9068, %v9069
      %v9071 = vsel %vm9007, %v8140, -inf
      %v9072 = vrot.slane %v9071, 4
      %v9073 = vmax.f32 %v9071, %v9072
      %v9074 = vrot.slane %v9073, 2
      %v9075 = vmax.f32 %v9073, %v9074
      %v9076 = vrot.slane %v9075, 1
      %v9077 = vmax.f32 %v9075, %v9076
      %v9078 = vsel %vm9007, %v8141, -inf
      %v9079 = vrot.slane %v9078, 4
      %v9080 = vmax.f32 %v9078, %v9079
      %v9081 = vrot.slane %v9080, 2
      %v9082 = vmax.f32 %v9080, %v9081
      %v9083 = vrot.slane %v9082, 1
      %v9084 = vmax.f32 %v9082, %v9083
      %v9085 = vsel %vm9007, %v8142, -inf
      %v9086 = vrot.slane %v9085, 4
      %v9087 = vmax.f32 %v9085, %v9086
      %v9088 = vrot.slane %v9087, 2
      %v9089 = vmax.f32 %v9087, %v9088
      %v9090 = vrot.slane %v9089, 1
      %v9091 = vmax.f32 %v9089, %v9090
      %v9092 = vsel %vm9007, %v8151, -inf
      %v9093 = vrot.slane %v9092, 4
      %v9094 = vmax.f32 %v9092, %v9093
      %v9095 = vrot.slane %v9094, 2
      %v9096 = vmax.f32 %v9094, %v9095
      %v9097 = vrot.slane %v9096, 1
      %v9098 = vmax.f32 %v9096, %v9097
      %v9099 = vsel %vm9007, %v8152, -inf
      %v9100 = vrot.slane %v9099, 4
      %v9101 = vmax.f32 %v9099, %v9100
      %v9102 = vrot.slane %v9101, 2
      %v9103 = vmax.f32 %v9101, %v9102
      %v9104 = vrot.slane %v9103, 1
      %v9105 = vmax.f32 %v9103, %v9104
      %v9106 = vsel %vm9007, %v8153, -inf
      %v9107 = vrot.slane %v9106, 4
      %v9108 = vmax.f32 %v9106, %v9107
      %v9109 = vrot.slane %v9108, 2
      %v9110 = vmax.f32 %v9108, %v9109
      %v9111 = vrot.slane %v9110, 1
      %v9112 = vmax.f32 %v9110, %v9111
      %v9113 = vsel %vm9007, %v8154, -inf
      %v9114 = vrot.slane %v9113, 4
      %v9115 = vmax.f32 %v9113, %v9114
      %v9116 = vrot.slane %v9115, 2
      %v9117 = vmax.f32 %v9115, %v9116
      %v9118 = vrot.slane %v9117, 1
      %v9119 = vmax.f32 %v9117, %v9118
      %v9120 = vsel %vm9007, %v8163, -inf
      %v9121 = vrot.slane %v9120, 4
      %v9122 = vmax.f32 %v9120, %v9121
      %v9123 = vrot.slane %v9122, 2
      %v9124 = vmax.f32 %v9122, %v9123
      %v9125 = vrot.slane %v9124, 1
      %v9126 = vmax.f32 %v9124, %v9125
      %v9127 = vsel %vm9007, %v8164, -inf
      %v9128 = vrot.slane %v9127, 4
      %v9129 = vmax.f32 %v9127, %v9128
      %v9130 = vrot.slane %v9129, 2
      %v9131 = vmax.f32 %v9129, %v9130
      %v9132 = vrot.slane %v9131, 1
      %v9133 = vmax.f32 %v9131, %v9132
      %v9134 = vsel %vm9007, %v8165, -inf
      %v9135 = vrot.slane %v9134, 4
      %v9136 = vmax.f32 %v9134, %v9135
      %v9137 = vrot.slane %v9136, 2
      %v9138 = vmax.f32 %v9136, %v9137
      %v9139 = vrot.slane %v9138, 1
      %v9140 = vmax.f32 %v9138, %v9139
      %v9141 = vsel %vm9007, %v8166, -inf
      %v9142 = vrot.slane %v9141, 4
      %v9143 = vmax.f32 %v9141, %v9142
      %v9144 = vrot.slane %v9143, 2
      %v9145 = vmax.f32 %v9143, %v9144
      %v9146 = vrot.slane %v9145, 1
      %v9147 = vmax.f32 %v9145, %v9146
      %v9148 = vsel %vm9007, %v8175, -inf
      %v9149 = vrot.slane %v9148, 4
      %v9150 = vmax.f32 %v9148, %v9149
      %v9151 = vrot.slane %v9150, 2
      %v9152 = vmax.f32 %v9150, %v9151
      %v9153 = vrot.slane %v9152, 1
      %v9154 = vmax.f32 %v9152, %v9153
      %v9155 = vsel %vm9007, %v8176, -inf
      %v9156 = vrot.slane %v9155, 4
      %v9157 = vmax.f32 %v9155, %v9156
      %v9158 = vrot.slane %v9157, 2
      %v9159 = vmax.f32 %v9157, %v9158
      %v9160 = vrot.slane %v9159, 1
      %v9161 = vmax.f32 %v9159, %v9160
      %v9162 = vsel %vm9007, %v8177, -inf
      %v9163 = vrot.slane %v9162, 4
      %v9164 = vmax.f32 %v9162, %v9163
      %v9165 = vrot.slane %v9164, 2
      %v9166 = vmax.f32 %v9164, %v9165
      %v9167 = vrot.slane %v9166, 1
      %v9168 = vmax.f32 %v9166, %v9167
      %v9169 = vsel %vm9007, %v8178, -inf
      %v9170 = vrot.slane %v9169, 4
      %v9171 = vmax.f32 %v9169, %v9170
      %v9172 = vrot.slane %v9171, 2
      %v9173 = vmax.f32 %v9171, %v9172
      %v9174 = vrot.slane %v9173, 1
      %v9175 = vmax.f32 %v9173, %v9174
      %v9176 = vsel %vm9007, %v8187, -inf
      %v9177 = vrot.slane %v9176, 4
      %v9178 = vmax.f32 %v9176, %v9177
      %v9179 = vrot.slane %v9178, 2
      %v9180 = vmax.f32 %v9178, %v9179
      %v9181 = vrot.slane %v9180, 1
      %v9182 = vmax.f32 %v9180, %v9181
      %v9183 = vsel %vm9007, %v8188, -inf
      %v9184 = vrot.slane %v9183, 4
      %v9185 = vmax.f32 %v9183, %v9184
      %v9186 = vrot.slane %v9185, 2
      %v9187 = vmax.f32 %v9185, %v9186
      %v9188 = vrot.slane %v9187, 1
      %v9189 = vmax.f32 %v9187, %v9188
      %v9190 = vsel %vm9007, %v8189, -inf
      %v9191 = vrot.slane %v9190, 4
      %v9192 = vmax.f32 %v9190, %v9191
      %v9193 = vrot.slane %v9192, 2
      %v9194 = vmax.f32 %v9192, %v9193
      %v9195 = vrot.slane %v9194, 1
      %v9196 = vmax.f32 %v9194, %v9195
      %v9197 = vsel %vm9007, %v8190, -inf
      %v9198 = vrot.slane %v9197, 4
      %v9199 = vmax.f32 %v9197, %v9198
      %v9200 = vrot.slane %v9199, 2
      %v9201 = vmax.f32 %v9199, %v9200
      %v9202 = vrot.slane %v9201, 1
      %v9203 = vmax.f32 %v9201, %v9202
      %v9204 = vsel %vm9007, %v8199, -inf
      %v9205 = vrot.slane %v9204, 4
      %v9206 = vmax.f32 %v9204, %v9205
      %v9207 = vrot.slane %v9206, 2
      %v9208 = vmax.f32 %v9206, %v9207
      %v9209 = vrot.slane %v9208, 1
      %v9210 = vmax.f32 %v9208, %v9209
      %v9211 = vsel %vm9007, %v8200, -inf
      %v9212 = vrot.slane %v9211, 4
      %v9213 = vmax.f32 %v9211, %v9212
      %v9214 = vrot.slane %v9213, 2
      %v9215 = vmax.f32 %v9213, %v9214
      %v9216 = vrot.slane %v9215, 1
      %v9217 = vmax.f32 %v9215, %v9216
      %v9218 = vsel %vm9007, %v8201, -inf
      %v9219 = vrot.slane %v9218, 4
      %v9220 = vmax.f32 %v9218, %v9219
      %v9221 = vrot.slane %v9220, 2
      %v9222 = vmax.f32 %v9220, %v9221
      %v9223 = vrot.slane %v9222, 1
      %v9224 = vmax.f32 %v9222, %v9223
      %v9225 = vsel %vm9007, %v8202, -inf
      %v9226 = vrot.slane %v9225, 4
      %v9227 = vmax.f32 %v9225, %v9226
      %v9228 = vrot.slane %v9227, 2
      %v9229 = vmax.f32 %v9227, %v9228
      %v9230 = vrot.slane %v9229, 1
      %v9231 = vmax.f32 %v9229, %v9230
      %vm9264 = vcmask 1041409
      %v9265 = vsel %vm9264, %v8238, %v8210
      %vm9266 = vcmask 1042434
      %v9267 = vsel %vm9266, %v8266, %v9265
      %vm9268 = vcmask 1043459
      %v9269 = vsel %vm9268, %v8294, %v9267
      %vm9270 = vcmask 1044484
      %v9271 = vsel %vm9270, %v8322, %v9269
      %vm9272 = vcmask 1045509
      %v9273 = vsel %vm9272, %v8350, %v9271
      %vm9274 = vcmask 1046534
      %v9275 = vsel %vm9274, %v8378, %v9273
      %vm9276 = vcmask 1047559
      %v9277 = vsel %vm9276, %v8406, %v9275
      %v9278 = vsel %vm9264, %v8245, %v8217
      %v9279 = vsel %vm9266, %v8273, %v9278
      %v9280 = vsel %vm9268, %v8301, %v9279
      %v9281 = vsel %vm9270, %v8329, %v9280
      %v9282 = vsel %vm9272, %v8357, %v9281
      %v9283 = vsel %vm9274, %v8385, %v9282
      %v9284 = vsel %vm9276, %v8413, %v9283
      %v9285 = vsel %vm9264, %v8252, %v8224
      %v9286 = vsel %vm9266, %v8280, %v9285
      %v9287 = vsel %vm9268, %v8308, %v9286
      %v9288 = vsel %vm9270, %v8336, %v9287
      %v9289 = vsel %vm9272, %v8364, %v9288
      %v9290 = vsel %vm9274, %v8392, %v9289
      %v9291 = vsel %vm9276, %v8420, %v9290
      %v9292 = vsel %vm9264, %v8259, %v8231
      %v9293 = vsel %vm9266, %v8287, %v9292
      %v9294 = vsel %vm9268, %v8315, %v9293
      %v9295 = vsel %vm9270, %v8343, %v9294
      %v9296 = vsel %vm9272, %v8371, %v9295
      %v9297 = vsel %vm9274, %v8399, %v9296
      %v9298 = vsel %vm9276, %v8427, %v9297
      %v9335 = vsel %vm9264, %v8473, %v8437
      %v9336 = vsel %vm9266, %v8509, %v9335
      %v9337 = vsel %vm9268, %v8545, %v9336
      %v9338 = vsel %vm9270, %v8581, %v9337
      %v9339 = vsel %vm9272, %v8617, %v9338
      %v9340 = vsel %vm9274, %v8653, %v9339
      %v9341 = vsel %vm9276, %v8689, %v9340
      %v9342 = vsel %vm9264, %v8482, %v8446
      %v9343 = vsel %vm9266, %v8518, %v9342
      %v9344 = vsel %vm9268, %v8554, %v9343
      %v9345 = vsel %vm9270, %v8590, %v9344
      %v9346 = vsel %vm9272, %v8626, %v9345
      %v9347 = vsel %vm9274, %v8662, %v9346
      %v9348 = vsel %vm9276, %v8698, %v9347
      %v9349 = vsel %vm9264, %v8491, %v8455
      %v9350 = vsel %vm9266, %v8527, %v9349
      %v9351 = vsel %vm9268, %v8563, %v9350
      %v9352 = vsel %vm9270, %v8599, %v9351
      %v9353 = vsel %vm9272, %v8635, %v9352
      %v9354 = vsel %vm9274, %v8671, %v9353
      %v9355 = vsel %vm9276, %v8707, %v9354
      %v9356 = vsel %vm9264, %v8500, %v8464
      %v9357 = vsel %vm9266, %v8536, %v9356
      %v9358 = vsel %vm9268, %v8572, %v9357
      %v9359 = vsel %vm9270, %v8608, %v9358
      %v9360 = vsel %vm9272, %v8644, %v9359
      %v9361 = vsel %vm9274, %v8680, %v9360
      %v9362 = vsel %vm9276, %v8716, %v9361
      %v9399 = vsel %vm9264, %v8763, %v8727
      %v9400 = vsel %vm9266, %v8799, %v9399
      %v9401 = vsel %vm9268, %v8835, %v9400
      %v9402 = vsel %vm9270, %v8871, %v9401
      %v9403 = vsel %vm9272, %v8907, %v9402
      %v9404 = vsel %vm9274, %v8943, %v9403
      %v9405 = vsel %vm9276, %v8979, %v9404
      %v9406 = vsel %vm9264, %v8772, %v8736
      %v9407 = vsel %vm9266, %v8808, %v9406
      %v9408 = vsel %vm9268, %v8844, %v9407
      %v9409 = vsel %vm9270, %v8880, %v9408
      %v9410 = vsel %vm9272, %v8916, %v9409
      %v9411 = vsel %vm9274, %v8952, %v9410
      %v9412 = vsel %vm9276, %v8988, %v9411
      %v9413 = vsel %vm9264, %v8781, %v8745
      %v9414 = vsel %vm9266, %v8817, %v9413
      %v9415 = vsel %vm9268, %v8853, %v9414
      %v9416 = vsel %vm9270, %v8889, %v9415
      %v9417 = vsel %vm9272, %v8925, %v9416
      %v9418 = vsel %vm9274, %v8961, %v9417
      %v9419 = vsel %vm9276, %v8997, %v9418
      %v9420 = vsel %vm9264, %v8790, %v8754
      %v9421 = vsel %vm9266, %v8826, %v9420
      %v9422 = vsel %vm9268, %v8862, %v9421
      %v9423 = vsel %vm9270, %v8898, %v9422
      %v9424 = vsel %vm9272, %v8934, %v9423
      %v9425 = vsel %vm9274, %v8970, %v9424
      %v9426 = vsel %vm9276, %v9006, %v9425
      %v9463 = vsel %vm9264, %v9042, %v9014
      %v9464 = vsel %vm9266, %v9070, %v9463
      %v9465 = vsel %vm9268, %v9098, %v9464
      %v9466 = vsel %vm9270, %v9126, %v9465
      %v9467 = vsel %vm9272, %v9154, %v9466
      %v9468 = vsel %vm9274, %v9182, %v9467
      %v9469 = vsel %vm9276, %v9210, %v9468
      %v9470 = vsel %vm9264, %v9049, %v9021
      %v9471 = vsel %vm9266, %v9077, %v9470
      %v9472 = vsel %vm9268, %v9105, %v9471
      %v9473 = vsel %vm9270, %v9133, %v9472
      %v9474 = vsel %vm9272, %v9161, %v9473
      %v9475 = vsel %vm9274, %v9189, %v9474
      %v9476 = vsel %vm9276, %v9217, %v9475
      %v9477 = vsel %vm9264, %v9056, %v9028
      %v9478 = vsel %vm9266, %v9084, %v9477
      %v9479 = vsel %vm9268, %v9112, %v9478
      %v9480 = vsel %vm9270, %v9140, %v9479
      %v9481 = vsel %vm9272, %v9168, %v9480
      %v9482 = vsel %vm9274, %v9196, %v9481
      %v9483 = vsel %vm9276, %v9224, %v9482
      %v9484 = vsel %vm9264, %v9063, %v9035
      %v9485 = vsel %vm9266, %v9091, %v9484
      %v9486 = vsel %vm9268, %v9119, %v9485
      %v9487 = vsel %vm9270, %v9147, %v9486
      %v9488 = vsel %vm9272, %v9175, %v9487
      %v9489 = vsel %vm9274, %v9203, %v9488
      %v9490 = vsel %vm9276, %v9231, %v9489
      %v9495 = vpack.c.bf16 %v9277, %v9277
      %v9496 = vpack.c.bf16 %v9284, %v9284
      %v9497 = vpack.c.bf16 %v9291, %v9291
      %v9498 = vpack.c.bf16 %v9298, %v9298
      %v9499 = vpack.c.bf16 %v9341, %v9341
      %v9500 = vpack.c.bf16 %v9348, %v9348
      %v9501 = vpack.c.bf16 %v9355, %v9355
      %v9502 = vpack.c.bf16 %v9362, %v9362
      %v9503 = vpack.c.bf16 %v9405, %v9405
      %v9504 = vpack.c.bf16 %v9412, %v9412
      %v9505 = vpack.c.bf16 %v9419, %v9419
      %v9506 = vpack.c.bf16 %v9426, %v9426
      %v9507 = vpack.c.bf16 %v9469, %v9469
      %v9508 = vpack.c.bf16 %v9476, %v9476
      %v9509 = vpack.c.bf16 %v9483, %v9483
      %v9510 = vpack.c.bf16 %v9490, %v9490
      %v9511 = vld [vmem:[%s17] sm:$0xff]
      %v9512 = vld [vmem:[%s17 + $0x8] sm:$0xff]
      %v9513 = vld [vmem:[%s17 + $0x10] sm:$0xff]
      %v9514 = vld [vmem:[%s17 + $0x18] sm:$0xff]
      %v9515 = vld [vmem:[%s17 + $0x20] sm:$0xff]
      %v9516 = vld [vmem:[%s17 + $0x28] sm:$0xff]
      %v9517 = vld [vmem:[%s17 + $0x30] sm:$0xff]
      %v9518 = vld [vmem:[%s17 + $0x38] sm:$0xff]
      %v9519 = vld [vmem:[%s17 + $0x40] sm:$0xff]
      %v9520 = vld [vmem:[%s17 + $0x48] sm:$0xff]
      %v9521 = vld [vmem:[%s17 + $0x50] sm:$0xff]
      %v9522 = vld [vmem:[%s17 + $0x58] sm:$0xff]
      %v9523 = vld [vmem:[%s17 + $0x60] sm:$0xff]
      %v9524 = vld [vmem:[%s17 + $0x68] sm:$0xff]
      %v9525 = vld [vmem:[%s17 + $0x70] sm:$0xff]
      %v9526 = vld [vmem:[%s17 + $0x78] sm:$0xff]
      %v9527 = vld [vmem:[%s17 + $0x80] sm:$0xff]
      %v9528 = vld [vmem:[%s17 + $0x88] sm:$0xff]
      %v9529 = vld [vmem:[%s17 + $0x90] sm:$0xff]
      %v9530 = vld [vmem:[%s17 + $0x98] sm:$0xff]
      %v9531 = vld [vmem:[%s17 + $0xa0] sm:$0xff]
      %v9532 = vld [vmem:[%s17 + $0xa8] sm:$0xff]
      %v9533 = vld [vmem:[%s17 + $0xb0] sm:$0xff]
      %v9534 = vld [vmem:[%s17 + $0xb8] sm:$0xff]
      %v9535 = vld [vmem:[%s17 + $0xc0] sm:$0xff]
      %v9536 = vld [vmem:[%s17 + $0xc8] sm:$0xff]
      %v9537 = vld [vmem:[%s17 + $0xd0] sm:$0xff]
      %v9538 = vld [vmem:[%s17 + $0xd8] sm:$0xff]
      %v9539 = vld [vmem:[%s17 + $0xe0] sm:$0xff]
      %v9540 = vld [vmem:[%s17 + $0xe8] sm:$0xff]
      %v9541 = vld [vmem:[%s17 + $0xf0] sm:$0xff]
      %v9542 = vld [vmem:[%s17 + $0xf8] sm:$0xff]
      %v9543 = vld [vmem:[%s17 + $0x100] sm:$0xff]
      %v9544 = vld [vmem:[%s17 + $0x108] sm:$0xff]
      %v9545 = vld [vmem:[%s17 + $0x110] sm:$0xff]
      %v9546 = vld [vmem:[%s17 + $0x118] sm:$0xff]
      %v9547 = vld [vmem:[%s17 + $0x120] sm:$0xff]
      %v9548 = vld [vmem:[%s17 + $0x128] sm:$0xff]
      %v9549 = vld [vmem:[%s17 + $0x130] sm:$0xff]
      %v9550 = vld [vmem:[%s17 + $0x138] sm:$0xff]
      %v9551 = vld [vmem:[%s17 + $0x140] sm:$0xff]
      %v9552 = vld [vmem:[%s17 + $0x148] sm:$0xff]
      %v9553 = vld [vmem:[%s17 + $0x150] sm:$0xff]
      %v9554 = vld [vmem:[%s17 + $0x158] sm:$0xff]
      %v9555 = vld [vmem:[%s17 + $0x160] sm:$0xff]
      %v9556 = vld [vmem:[%s17 + $0x168] sm:$0xff]
      %v9557 = vld [vmem:[%s17 + $0x170] sm:$0xff]
      %v9558 = vld [vmem:[%s17 + $0x178] sm:$0xff]
      %v9559 = vld [vmem:[%s17 + $0x180] sm:$0xff]
      %v9560 = vld [vmem:[%s17 + $0x188] sm:$0xff]
      %v9561 = vld [vmem:[%s17 + $0x190] sm:$0xff]
      %v9562 = vld [vmem:[%s17 + $0x198] sm:$0xff]
      %v9563 = vld [vmem:[%s17 + $0x1a0] sm:$0xff]
      %v9564 = vld [vmem:[%s17 + $0x1a8] sm:$0xff]
      %v9565 = vld [vmem:[%s17 + $0x1b0] sm:$0xff]
      %v9566 = vld [vmem:[%s17 + $0x1b8] sm:$0xff]
      %v9567 = vld [vmem:[%s17 + $0x1c0] sm:$0xff]
      %v9568 = vld [vmem:[%s17 + $0x1c8] sm:$0xff]
      %v9569 = vld [vmem:[%s17 + $0x1d0] sm:$0xff]
      %v9570 = vld [vmem:[%s17 + $0x1d8] sm:$0xff]
      %v9571 = vld [vmem:[%s17 + $0x1e0] sm:$0xff]
      %v9572 = vld [vmem:[%s17 + $0x1e8] sm:$0xff]
      %v9573 = vld [vmem:[%s17 + $0x1f0] sm:$0xff]
      %v9574 = vld [vmem:[%s17 + $0x1f8] sm:$0xff]
      %v9575 = vld [vmem:[%s17 + $0x200] sm:$0xff]
      %v9576 = vld [vmem:[%s17 + $0x208] sm:$0xff]
      %v9577 = vld [vmem:[%s17 + $0x210] sm:$0xff]
      %v9578 = vld [vmem:[%s17 + $0x218] sm:$0xff]
      %v9579 = vld [vmem:[%s17 + $0x220] sm:$0xff]
      %v9580 = vld [vmem:[%s17 + $0x228] sm:$0xff]
      %v9581 = vld [vmem:[%s17 + $0x230] sm:$0xff]
      %v9582 = vld [vmem:[%s17 + $0x238] sm:$0xff]
      %v9583 = vld [vmem:[%s17 + $0x240] sm:$0xff]
      %v9584 = vld [vmem:[%s17 + $0x248] sm:$0xff]
      %v9585 = vld [vmem:[%s17 + $0x250] sm:$0xff]
      %v9586 = vld [vmem:[%s17 + $0x258] sm:$0xff]
      %v9587 = vld [vmem:[%s17 + $0x260] sm:$0xff]
      %v9588 = vld [vmem:[%s17 + $0x268] sm:$0xff]
      %v9589 = vld [vmem:[%s17 + $0x270] sm:$0xff]
      %v9590 = vld [vmem:[%s17 + $0x278] sm:$0xff]
      %v9591 = vld [vmem:[%s17 + $0x280] sm:$0xff]
      %v9592 = vld [vmem:[%s17 + $0x288] sm:$0xff]
      %v9593 = vld [vmem:[%s17 + $0x290] sm:$0xff]
      %v9594 = vld [vmem:[%s17 + $0x298] sm:$0xff]
      %v9595 = vld [vmem:[%s17 + $0x2a0] sm:$0xff]
      %v9596 = vld [vmem:[%s17 + $0x2a8] sm:$0xff]
      %v9597 = vld [vmem:[%s17 + $0x2b0] sm:$0xff]
      %v9598 = vld [vmem:[%s17 + $0x2b8] sm:$0xff]
      %v9599 = vld [vmem:[%s17 + $0x2c0] sm:$0xff]
      %v9600 = vld [vmem:[%s17 + $0x2c8] sm:$0xff]
      %v9601 = vld [vmem:[%s17 + $0x2d0] sm:$0xff]
      %v9602 = vld [vmem:[%s17 + $0x2d8] sm:$0xff]
      %v9603 = vld [vmem:[%s17 + $0x2e0] sm:$0xff]
      %v9604 = vld [vmem:[%s17 + $0x2e8] sm:$0xff]
      %v9605 = vld [vmem:[%s17 + $0x2f0] sm:$0xff]
      %v9606 = vld [vmem:[%s17 + $0x2f8] sm:$0xff]
      %v9607 = vld [vmem:[%s17 + $0x300] sm:$0xff]
      %v9608 = vld [vmem:[%s17 + $0x308] sm:$0xff]
      %v9609 = vld [vmem:[%s17 + $0x310] sm:$0xff]
      %v9610 = vld [vmem:[%s17 + $0x318] sm:$0xff]
      %v9611 = vld [vmem:[%s17 + $0x320] sm:$0xff]
      %v9612 = vld [vmem:[%s17 + $0x328] sm:$0xff]
      %v9613 = vld [vmem:[%s17 + $0x330] sm:$0xff]
      %v9614 = vld [vmem:[%s17 + $0x338] sm:$0xff]
      %v9615 = vld [vmem:[%s17 + $0x340] sm:$0xff]
      %v9616 = vld [vmem:[%s17 + $0x348] sm:$0xff]
      %v9617 = vld [vmem:[%s17 + $0x350] sm:$0xff]
      %v9618 = vld [vmem:[%s17 + $0x358] sm:$0xff]
      %v9619 = vld [vmem:[%s17 + $0x360] sm:$0xff]
      %v9620 = vld [vmem:[%s17 + $0x368] sm:$0xff]
      %v9621 = vld [vmem:[%s17 + $0x370] sm:$0xff]
      %v9622 = vld [vmem:[%s17 + $0x378] sm:$0xff]
      %v9623 = vld [vmem:[%s17 + $0x380] sm:$0xff]
      %v9624 = vld [vmem:[%s17 + $0x388] sm:$0xff]
      %v9625 = vld [vmem:[%s17 + $0x390] sm:$0xff]
      %v9626 = vld [vmem:[%s17 + $0x398] sm:$0xff]
      %v9627 = vld [vmem:[%s17 + $0x3a0] sm:$0xff]
      %v9628 = vld [vmem:[%s17 + $0x3a8] sm:$0xff]
      %v9629 = vld [vmem:[%s17 + $0x3b0] sm:$0xff]
      %v9630 = vld [vmem:[%s17 + $0x3b8] sm:$0xff]
      %v9631 = vld [vmem:[%s17 + $0x3c0] sm:$0xff]
      %v9632 = vld [vmem:[%s17 + $0x3c8] sm:$0xff]
      %v9633 = vld [vmem:[%s17 + $0x3d0] sm:$0xff]
      %v9634 = vld [vmem:[%s17 + $0x3d8] sm:$0xff]
      %v9635 = vld [vmem:[%s17 + $0x3e0] sm:$0xff]
      %v9636 = vld [vmem:[%s17 + $0x3e8] sm:$0xff]
      %v9637 = vld [vmem:[%s17 + $0x3f0] sm:$0xff]
      %v9638 = vld [vmem:[%s17 + $0x3f8] sm:$0xff]
      %v9639 = vld [vmem:[%s17 + $0x400] sm:$0xff]
      %v9640 = vld [vmem:[%s17 + $0x408] sm:$0xff]
      %v9641 = vld [vmem:[%s17 + $0x410] sm:$0xff]
      %v9642 = vld [vmem:[%s17 + $0x418] sm:$0xff]
      %v9643 = vld [vmem:[%s17 + $0x420] sm:$0xff]
      %v9644 = vld [vmem:[%s17 + $0x428] sm:$0xff]
      %v9645 = vld [vmem:[%s17 + $0x430] sm:$0xff]
      %v9646 = vld [vmem:[%s17 + $0x438] sm:$0xff]
      %v9647 = vld [vmem:[%s17 + $0x440] sm:$0xff]
      %v9648 = vld [vmem:[%s17 + $0x448] sm:$0xff]
      %v9649 = vld [vmem:[%s17 + $0x450] sm:$0xff]
      %v9650 = vld [vmem:[%s17 + $0x458] sm:$0xff]
      %v9651 = vld [vmem:[%s17 + $0x460] sm:$0xff]
      %v9652 = vld [vmem:[%s17 + $0x468] sm:$0xff]
      %v9653 = vld [vmem:[%s17 + $0x470] sm:$0xff]
      %v9654 = vld [vmem:[%s17 + $0x478] sm:$0xff]
      %v9655 = vld [vmem:[%s17 + $0x480] sm:$0xff]
      %v9656 = vld [vmem:[%s17 + $0x488] sm:$0xff]
      %v9657 = vld [vmem:[%s17 + $0x490] sm:$0xff]
      %v9658 = vld [vmem:[%s17 + $0x498] sm:$0xff]
      %v9659 = vld [vmem:[%s17 + $0x4a0] sm:$0xff]
      %v9660 = vld [vmem:[%s17 + $0x4a8] sm:$0xff]
      %v9661 = vld [vmem:[%s17 + $0x4b0] sm:$0xff]
      %v9662 = vld [vmem:[%s17 + $0x4b8] sm:$0xff]
      %v9663 = vld [vmem:[%s17 + $0x4c0] sm:$0xff]
      %v9664 = vld [vmem:[%s17 + $0x4c8] sm:$0xff]
      %v9665 = vld [vmem:[%s17 + $0x4d0] sm:$0xff]
      %v9666 = vld [vmem:[%s17 + $0x4d8] sm:$0xff]
      %v9667 = vld [vmem:[%s17 + $0x4e0] sm:$0xff]
      %v9668 = vld [vmem:[%s17 + $0x4e8] sm:$0xff]
      %v9669 = vld [vmem:[%s17 + $0x4f0] sm:$0xff]
      %v9670 = vld [vmem:[%s17 + $0x4f8] sm:$0xff]
      %v9671 = vld [vmem:[%s17 + $0x500] sm:$0xff]
      %v9672 = vld [vmem:[%s17 + $0x508] sm:$0xff]
      %v9673 = vld [vmem:[%s17 + $0x510] sm:$0xff]
      %v9674 = vld [vmem:[%s17 + $0x518] sm:$0xff]
      %v9675 = vld [vmem:[%s17 + $0x520] sm:$0xff]
      %v9676 = vld [vmem:[%s17 + $0x528] sm:$0xff]
      %v9677 = vld [vmem:[%s17 + $0x530] sm:$0xff]
      %v9678 = vld [vmem:[%s17 + $0x538] sm:$0xff]
      %v9679 = vld [vmem:[%s17 + $0x540] sm:$0xff]
      %v9680 = vld [vmem:[%s17 + $0x548] sm:$0xff]
      %v9681 = vld [vmem:[%s17 + $0x550] sm:$0xff]
      %v9682 = vld [vmem:[%s17 + $0x558] sm:$0xff]
      %v9683 = vld [vmem:[%s17 + $0x560] sm:$0xff]
      %v9684 = vld [vmem:[%s17 + $0x568] sm:$0xff]
      %v9685 = vld [vmem:[%s17 + $0x570] sm:$0xff]
      %v9686 = vld [vmem:[%s17 + $0x578] sm:$0xff]
      %v9687 = vld [vmem:[%s17 + $0x580] sm:$0xff]
      %v9688 = vld [vmem:[%s17 + $0x588] sm:$0xff]
      %v9689 = vld [vmem:[%s17 + $0x590] sm:$0xff]
      %v9690 = vld [vmem:[%s17 + $0x598] sm:$0xff]
      %v9691 = vld [vmem:[%s17 + $0x5a0] sm:$0xff]
      %v9692 = vld [vmem:[%s17 + $0x5a8] sm:$0xff]
      %v9693 = vld [vmem:[%s17 + $0x5b0] sm:$0xff]
      %v9694 = vld [vmem:[%s17 + $0x5b8] sm:$0xff]
      %v9695 = vld [vmem:[%s17 + $0x5c0] sm:$0xff]
      %v9696 = vld [vmem:[%s17 + $0x5c8] sm:$0xff]
      %v9697 = vld [vmem:[%s17 + $0x5d0] sm:$0xff]
      %v9698 = vld [vmem:[%s17 + $0x5d8] sm:$0xff]
      %v9699 = vld [vmem:[%s17 + $0x5e0] sm:$0xff]
      %v9700 = vld [vmem:[%s17 + $0x5e8] sm:$0xff]
      %v9701 = vld [vmem:[%s17 + $0x5f0] sm:$0xff]
      %v9702 = vld [vmem:[%s17 + $0x5f8] sm:$0xff]
      %v9703 = vld [vmem:[%s17 + $0x600] sm:$0xff]
      %v9704 = vld [vmem:[%s17 + $0x608] sm:$0xff]
      %v9705 = vld [vmem:[%s17 + $0x610] sm:$0xff]
      %v9706 = vld [vmem:[%s17 + $0x618] sm:$0xff]
      %v9707 = vld [vmem:[%s17 + $0x620] sm:$0xff]
      %v9708 = vld [vmem:[%s17 + $0x628] sm:$0xff]
      %v9709 = vld [vmem:[%s17 + $0x630] sm:$0xff]
      %v9710 = vld [vmem:[%s17 + $0x638] sm:$0xff]
      %v9711 = vld [vmem:[%s17 + $0x640] sm:$0xff]
      %v9712 = vld [vmem:[%s17 + $0x648] sm:$0xff]
      %v9713 = vld [vmem:[%s17 + $0x650] sm:$0xff]
      %v9714 = vld [vmem:[%s17 + $0x658] sm:$0xff]
      %v9715 = vld [vmem:[%s17 + $0x660] sm:$0xff]
      %v9716 = vld [vmem:[%s17 + $0x668] sm:$0xff]
      %v9717 = vld [vmem:[%s17 + $0x670] sm:$0xff]
      %v9718 = vld [vmem:[%s17 + $0x678] sm:$0xff]
      %v9719 = vld [vmem:[%s17 + $0x680] sm:$0xff]
      %v9720 = vld [vmem:[%s17 + $0x688] sm:$0xff]
      %v9721 = vld [vmem:[%s17 + $0x690] sm:$0xff]
      %v9722 = vld [vmem:[%s17 + $0x698] sm:$0xff]
      %v9723 = vld [vmem:[%s17 + $0x6a0] sm:$0xff]
      %v9724 = vld [vmem:[%s17 + $0x6a8] sm:$0xff]
      %v9725 = vld [vmem:[%s17 + $0x6b0] sm:$0xff]
      %v9726 = vld [vmem:[%s17 + $0x6b8] sm:$0xff]
      %v9727 = vld [vmem:[%s17 + $0x6c0] sm:$0xff]
      %v9728 = vld [vmem:[%s17 + $0x6c8] sm:$0xff]
      %v9729 = vld [vmem:[%s17 + $0x6d0] sm:$0xff]
      %v9730 = vld [vmem:[%s17 + $0x6d8] sm:$0xff]
      %v9731 = vld [vmem:[%s17 + $0x6e0] sm:$0xff]
      %v9732 = vld [vmem:[%s17 + $0x6e8] sm:$0xff]
      %v9733 = vld [vmem:[%s17 + $0x6f0] sm:$0xff]
      %v9734 = vld [vmem:[%s17 + $0x6f8] sm:$0xff]
      %v9735 = vld [vmem:[%s17 + $0x700] sm:$0xff]
      %v9736 = vld [vmem:[%s17 + $0x708] sm:$0xff]
      %v9737 = vld [vmem:[%s17 + $0x710] sm:$0xff]
      %v9738 = vld [vmem:[%s17 + $0x718] sm:$0xff]
      %v9739 = vld [vmem:[%s17 + $0x720] sm:$0xff]
      %v9740 = vld [vmem:[%s17 + $0x728] sm:$0xff]
      %v9741 = vld [vmem:[%s17 + $0x730] sm:$0xff]
      %v9742 = vld [vmem:[%s17 + $0x738] sm:$0xff]
      %v9743 = vld [vmem:[%s17 + $0x740] sm:$0xff]
      %v9744 = vld [vmem:[%s17 + $0x748] sm:$0xff]
      %v9745 = vld [vmem:[%s17 + $0x750] sm:$0xff]
      %v9746 = vld [vmem:[%s17 + $0x758] sm:$0xff]
      %v9747 = vld [vmem:[%s17 + $0x760] sm:$0xff]
      %v9748 = vld [vmem:[%s17 + $0x768] sm:$0xff]
      %v9749 = vld [vmem:[%s17 + $0x770] sm:$0xff]
      %v9750 = vld [vmem:[%s17 + $0x778] sm:$0xff]
      %v9751 = vld [vmem:[%s17 + $0x780] sm:$0xff]
      %v9752 = vld [vmem:[%s17 + $0x788] sm:$0xff]
      %v9753 = vld [vmem:[%s17 + $0x790] sm:$0xff]
      %v9754 = vld [vmem:[%s17 + $0x798] sm:$0xff]
      %v9755 = vld [vmem:[%s17 + $0x7a0] sm:$0xff]
      %v9756 = vld [vmem:[%s17 + $0x7a8] sm:$0xff]
      %v9757 = vld [vmem:[%s17 + $0x7b0] sm:$0xff]
      %v9758 = vld [vmem:[%s17 + $0x7b8] sm:$0xff]
      %v9759 = vld [vmem:[%s17 + $0x7c0] sm:$0xff]
      %v9760 = vld [vmem:[%s17 + $0x7c8] sm:$0xff]
      %v9761 = vld [vmem:[%s17 + $0x7d0] sm:$0xff]
      %v9762 = vld [vmem:[%s17 + $0x7d8] sm:$0xff]
      %v9763 = vld [vmem:[%s17 + $0x7e0] sm:$0xff]
      %v9764 = vld [vmem:[%s17 + $0x7e8] sm:$0xff]
      %v9765 = vld [vmem:[%s17 + $0x7f0] sm:$0xff]
      %v9766 = vld [vmem:[%s17 + $0x7f8] sm:$0xff]
      %v9767 = vld [vmem:[%s18] sm:$0x3]
      %v9769 = vlaneseq
      %v9770 = vshrl.u32 %v9769, 7
      %v9771 = vsub.s32 0, %v9770
      %v9772 = vrot.slane %v9767, %v9771
      %v9773 = vlaneseq
      %v9774 = vshrl.u32 %v9773, 7
      %v9775 = vsub.s32 1, %v9774
      %v9776 = vrot.slane %v9767, %v9775
      %v10035 = vunpack.c.l.b16 %v9511
      %v10036 = vunpack.c.h.b16 %v9511
      %v10037 = vunpack.c.l.b16 %v9512
      %v10038 = vunpack.c.h.b16 %v9512
      %v10039 = vunpack.c.l.b16 %v9513
      %v10040 = vunpack.c.h.b16 %v9513
      %v10041 = vunpack.c.l.b16 %v9514
      %v10042 = vunpack.c.h.b16 %v9514
      %v10043 = vunpack.c.l.b16 %v9515
      %v10044 = vunpack.c.h.b16 %v9515
      %v10045 = vunpack.c.l.b16 %v9516
      %v10046 = vunpack.c.h.b16 %v9516
      %v10047 = vunpack.c.l.b16 %v9517
      %v10048 = vunpack.c.h.b16 %v9517
      %v10049 = vunpack.c.l.b16 %v9518
      %v10050 = vunpack.c.h.b16 %v9518
      %v10051 = vunpack.c.l.b16 %v9519
      %v10052 = vunpack.c.h.b16 %v9519
      %v10053 = vunpack.c.l.b16 %v9520
      %v10054 = vunpack.c.h.b16 %v9520
      %v10055 = vunpack.c.l.b16 %v9521
      %v10056 = vunpack.c.h.b16 %v9521
      %v10057 = vunpack.c.l.b16 %v9522
      %v10058 = vunpack.c.h.b16 %v9522
      %v10059 = vunpack.c.l.b16 %v9523
      %v10060 = vunpack.c.h.b16 %v9523
      %v10061 = vunpack.c.l.b16 %v9524
      %v10062 = vunpack.c.h.b16 %v9524
      %v10063 = vunpack.c.l.b16 %v9525
      %v10064 = vunpack.c.h.b16 %v9525
      %v10065 = vunpack.c.l.b16 %v9526
      %v10066 = vunpack.c.h.b16 %v9526
      %v10067 = vunpack.c.l.b16 %v9527
      %v10068 = vunpack.c.h.b16 %v9527
      %v10069 = vunpack.c.l.b16 %v9528
      %v10070 = vunpack.c.h.b16 %v9528
      %v10071 = vunpack.c.l.b16 %v9529
      %v10072 = vunpack.c.h.b16 %v9529
      %v10073 = vunpack.c.l.b16 %v9530
      %v10074 = vunpack.c.h.b16 %v9530
      %v10075 = vunpack.c.l.b16 %v9531
      %v10076 = vunpack.c.h.b16 %v9531
      %v10077 = vunpack.c.l.b16 %v9532
      %v10078 = vunpack.c.h.b16 %v9532
      %v10079 = vunpack.c.l.b16 %v9533
      %v10080 = vunpack.c.h.b16 %v9533
      %v10081 = vunpack.c.l.b16 %v9534
      %v10082 = vunpack.c.h.b16 %v9534
      %v10083 = vunpack.c.l.b16 %v9535
      %v10084 = vunpack.c.h.b16 %v9535
      %v10085 = vunpack.c.l.b16 %v9536
      %v10086 = vunpack.c.h.b16 %v9536
      %v10087 = vunpack.c.l.b16 %v9537
      %v10088 = vunpack.c.h.b16 %v9537
      %v10089 = vunpack.c.l.b16 %v9538
      %v10090 = vunpack.c.h.b16 %v9538
      %v10091 = vunpack.c.l.b16 %v9539
      %v10092 = vunpack.c.h.b16 %v9539
      %v10093 = vunpack.c.l.b16 %v9540
      %v10094 = vunpack.c.h.b16 %v9540
      %v10095 = vunpack.c.l.b16 %v9541
      %v10096 = vunpack.c.h.b16 %v9541
      %v10097 = vunpack.c.l.b16 %v9542
      %v10098 = vunpack.c.h.b16 %v9542
      %v10099 = vunpack.c.l.b16 %v9543
      %v10100 = vunpack.c.h.b16 %v9543
      %v10101 = vunpack.c.l.b16 %v9544
      %v10102 = vunpack.c.h.b16 %v9544
      %v10103 = vunpack.c.l.b16 %v9545
      %v10104 = vunpack.c.h.b16 %v9545
      %v10105 = vunpack.c.l.b16 %v9546
      %v10106 = vunpack.c.h.b16 %v9546
      %v10107 = vunpack.c.l.b16 %v9547
      %v10108 = vunpack.c.h.b16 %v9547
      %v10109 = vunpack.c.l.b16 %v9548
      %v10110 = vunpack.c.h.b16 %v9548
      %v10111 = vunpack.c.l.b16 %v9549
      %v10112 = vunpack.c.h.b16 %v9549
      %v10113 = vunpack.c.l.b16 %v9550
      %v10114 = vunpack.c.h.b16 %v9550
      %v10115 = vunpack.c.l.b16 %v9551
      %v10116 = vunpack.c.h.b16 %v9551
      %v10117 = vunpack.c.l.b16 %v9552
      %v10118 = vunpack.c.h.b16 %v9552
      %v10119 = vunpack.c.l.b16 %v9553
      %v10120 = vunpack.c.h.b16 %v9553
      %v10121 = vunpack.c.l.b16 %v9554
      %v10122 = vunpack.c.h.b16 %v9554
      %v10123 = vunpack.c.l.b16 %v9555
      %v10124 = vunpack.c.h.b16 %v9555
      %v10125 = vunpack.c.l.b16 %v9556
      %v10126 = vunpack.c.h.b16 %v9556
      %v10127 = vunpack.c.l.b16 %v9557
      %v10128 = vunpack.c.h.b16 %v9557
      %v10129 = vunpack.c.l.b16 %v9558
      %v10130 = vunpack.c.h.b16 %v9558
      %v10131 = vunpack.c.l.b16 %v9559
      %v10132 = vunpack.c.h.b16 %v9559
      %v10133 = vunpack.c.l.b16 %v9560
      %v10134 = vunpack.c.h.b16 %v9560
      %v10135 = vunpack.c.l.b16 %v9561
      %v10136 = vunpack.c.h.b16 %v9561
      %v10137 = vunpack.c.l.b16 %v9562
      %v10138 = vunpack.c.h.b16 %v9562
      %v10139 = vunpack.c.l.b16 %v9563
      %v10140 = vunpack.c.h.b16 %v9563
      %v10141 = vunpack.c.l.b16 %v9564
      %v10142 = vunpack.c.h.b16 %v9564
      %v10143 = vunpack.c.l.b16 %v9565
      %v10144 = vunpack.c.h.b16 %v9565
      %v10145 = vunpack.c.l.b16 %v9566
      %v10146 = vunpack.c.h.b16 %v9566
      %v10147 = vunpack.c.l.b16 %v9567
      %v10148 = vunpack.c.h.b16 %v9567
      %v10149 = vunpack.c.l.b16 %v9568
      %v10150 = vunpack.c.h.b16 %v9568
      %v10151 = vunpack.c.l.b16 %v9569
      %v10152 = vunpack.c.h.b16 %v9569
      %v10153 = vunpack.c.l.b16 %v9570
      %v10154 = vunpack.c.h.b16 %v9570
      %v10155 = vunpack.c.l.b16 %v9571
      %v10156 = vunpack.c.h.b16 %v9571
      %v10157 = vunpack.c.l.b16 %v9572
      %v10158 = vunpack.c.h.b16 %v9572
      %v10159 = vunpack.c.l.b16 %v9573
      %v10160 = vunpack.c.h.b16 %v9573
      %v10161 = vunpack.c.l.b16 %v9574
      %v10162 = vunpack.c.h.b16 %v9574
      %v10163 = vunpack.c.l.b16 %v9575
      %v10164 = vunpack.c.h.b16 %v9575
      %v10165 = vunpack.c.l.b16 %v9576
      %v10166 = vunpack.c.h.b16 %v9576
      %v10167 = vunpack.c.l.b16 %v9577
      %v10168 = vunpack.c.h.b16 %v9577
      %v10169 = vunpack.c.l.b16 %v9578
      %v10170 = vunpack.c.h.b16 %v9578
      %v10171 = vunpack.c.l.b16 %v9579
      %v10172 = vunpack.c.h.b16 %v9579
      %v10173 = vunpack.c.l.b16 %v9580
      %v10174 = vunpack.c.h.b16 %v9580
      %v10175 = vunpack.c.l.b16 %v9581
      %v10176 = vunpack.c.h.b16 %v9581
      %v10177 = vunpack.c.l.b16 %v9582
      %v10178 = vunpack.c.h.b16 %v9582
      %v10179 = vunpack.c.l.b16 %v9583
      %v10180 = vunpack.c.h.b16 %v9583
      %v10181 = vunpack.c.l.b16 %v9584
      %v10182 = vunpack.c.h.b16 %v9584
      %v10183 = vunpack.c.l.b16 %v9585
      %v10184 = vunpack.c.h.b16 %v9585
      %v10185 = vunpack.c.l.b16 %v9586
      %v10186 = vunpack.c.h.b16 %v9586
      %v10187 = vunpack.c.l.b16 %v9587
      %v10188 = vunpack.c.h.b16 %v9587
      %v10189 = vunpack.c.l.b16 %v9588
      %v10190 = vunpack.c.h.b16 %v9588
      %v10191 = vunpack.c.l.b16 %v9589
      %v10192 = vunpack.c.h.b16 %v9589
      %v10193 = vunpack.c.l.b16 %v9590
      %v10194 = vunpack.c.h.b16 %v9590
      %v10195 = vunpack.c.l.b16 %v9591
      %v10196 = vunpack.c.h.b16 %v9591
      %v10197 = vunpack.c.l.b16 %v9592
      %v10198 = vunpack.c.h.b16 %v9592
      %v10199 = vunpack.c.l.b16 %v9593
      %v10200 = vunpack.c.h.b16 %v9593
      %v10201 = vunpack.c.l.b16 %v9594
      %v10202 = vunpack.c.h.b16 %v9594
      %v10203 = vunpack.c.l.b16 %v9595
      %v10204 = vunpack.c.h.b16 %v9595
      %v10205 = vunpack.c.l.b16 %v9596
      %v10206 = vunpack.c.h.b16 %v9596
      %v10207 = vunpack.c.l.b16 %v9597
      %v10208 = vunpack.c.h.b16 %v9597
      %v10209 = vunpack.c.l.b16 %v9598
      %v10210 = vunpack.c.h.b16 %v9598
      %v10211 = vunpack.c.l.b16 %v9599
      %v10212 = vunpack.c.h.b16 %v9599
      %v10213 = vunpack.c.l.b16 %v9600
      %v10214 = vunpack.c.h.b16 %v9600
      %v10215 = vunpack.c.l.b16 %v9601
      %v10216 = vunpack.c.h.b16 %v9601
      %v10217 = vunpack.c.l.b16 %v9602
      %v10218 = vunpack.c.h.b16 %v9602
      %v10219 = vunpack.c.l.b16 %v9603
      %v10220 = vunpack.c.h.b16 %v9603
      %v10221 = vunpack.c.l.b16 %v9604
      %v10222 = vunpack.c.h.b16 %v9604
      %v10223 = vunpack.c.l.b16 %v9605
      %v10224 = vunpack.c.h.b16 %v9605
      %v10225 = vunpack.c.l.b16 %v9606
      %v10226 = vunpack.c.h.b16 %v9606
      %v10227 = vunpack.c.l.b16 %v9607
      %v10228 = vunpack.c.h.b16 %v9607
      %v10229 = vunpack.c.l.b16 %v9608
      %v10230 = vunpack.c.h.b16 %v9608
      %v10231 = vunpack.c.l.b16 %v9609
      %v10232 = vunpack.c.h.b16 %v9609
      %v10233 = vunpack.c.l.b16 %v9610
      %v10234 = vunpack.c.h.b16 %v9610
      %v10235 = vunpack.c.l.b16 %v9611
      %v10236 = vunpack.c.h.b16 %v9611
      %v10237 = vunpack.c.l.b16 %v9612
      %v10238 = vunpack.c.h.b16 %v9612
      %v10239 = vunpack.c.l.b16 %v9613
      %v10240 = vunpack.c.h.b16 %v9613
      %v10241 = vunpack.c.l.b16 %v9614
      %v10242 = vunpack.c.h.b16 %v9614
      %v10243 = vunpack.c.l.b16 %v9615
      %v10244 = vunpack.c.h.b16 %v9615
      %v10245 = vunpack.c.l.b16 %v9616
      %v10246 = vunpack.c.h.b16 %v9616
      %v10247 = vunpack.c.l.b16 %v9617
      %v10248 = vunpack.c.h.b16 %v9617
      %v10249 = vunpack.c.l.b16 %v9618
      %v10250 = vunpack.c.h.b16 %v9618
      %v10251 = vunpack.c.l.b16 %v9619
      %v10252 = vunpack.c.h.b16 %v9619
      %v10253 = vunpack.c.l.b16 %v9620
      %v10254 = vunpack.c.h.b16 %v9620
      %v10255 = vunpack.c.l.b16 %v9621
      %v10256 = vunpack.c.h.b16 %v9621
      %v10257 = vunpack.c.l.b16 %v9622
      %v10258 = vunpack.c.h.b16 %v9622
      %v10259 = vunpack.c.l.b16 %v9623
      %v10260 = vunpack.c.h.b16 %v9623
      %v10261 = vunpack.c.l.b16 %v9624
      %v10262 = vunpack.c.h.b16 %v9624
      %v10263 = vunpack.c.l.b16 %v9625
      %v10264 = vunpack.c.h.b16 %v9625
      %v10265 = vunpack.c.l.b16 %v9626
      %v10266 = vunpack.c.h.b16 %v9626
      %v10267 = vunpack.c.l.b16 %v9627
      %v10268 = vunpack.c.h.b16 %v9627
      %v10269 = vunpack.c.l.b16 %v9628
      %v10270 = vunpack.c.h.b16 %v9628
      %v10271 = vunpack.c.l.b16 %v9629
      %v10272 = vunpack.c.h.b16 %v9629
      %v10273 = vunpack.c.l.b16 %v9630
      %v10274 = vunpack.c.h.b16 %v9630
      %v10275 = vunpack.c.l.b16 %v9631
      %v10276 = vunpack.c.h.b16 %v9631
      %v10277 = vunpack.c.l.b16 %v9632
      %v10278 = vunpack.c.h.b16 %v9632
      %v10279 = vunpack.c.l.b16 %v9633
      %v10280 = vunpack.c.h.b16 %v9633
      %v10281 = vunpack.c.l.b16 %v9634
      %v10282 = vunpack.c.h.b16 %v9634
      %v10283 = vunpack.c.l.b16 %v9635
      %v10284 = vunpack.c.h.b16 %v9635
      %v10285 = vunpack.c.l.b16 %v9636
      %v10286 = vunpack.c.h.b16 %v9636
      %v10287 = vunpack.c.l.b16 %v9637
      %v10288 = vunpack.c.h.b16 %v9637
      %v10289 = vunpack.c.l.b16 %v9638
      %v10290 = vunpack.c.h.b16 %v9638
      %v10291 = vunpack.c.l.b16 %v9639
      %v10292 = vunpack.c.h.b16 %v9639
      %v10293 = vunpack.c.l.b16 %v9640
      %v10294 = vunpack.c.h.b16 %v9640
      %v10295 = vunpack.c.l.b16 %v9641
      %v10296 = vunpack.c.h.b16 %v9641
      %v10297 = vunpack.c.l.b16 %v9642
      %v10298 = vunpack.c.h.b16 %v9642
      %v10299 = vunpack.c.l.b16 %v9643
      %v10300 = vunpack.c.h.b16 %v9643
      %v10301 = vunpack.c.l.b16 %v9644
      %v10302 = vunpack.c.h.b16 %v9644
      %v10303 = vunpack.c.l.b16 %v9645
      %v10304 = vunpack.c.h.b16 %v9645
      %v10305 = vunpack.c.l.b16 %v9646
      %v10306 = vunpack.c.h.b16 %v9646
      %v10307 = vunpack.c.l.b16 %v9647
      %v10308 = vunpack.c.h.b16 %v9647
      %v10309 = vunpack.c.l.b16 %v9648
      %v10310 = vunpack.c.h.b16 %v9648
      %v10311 = vunpack.c.l.b16 %v9649
      %v10312 = vunpack.c.h.b16 %v9649
      %v10313 = vunpack.c.l.b16 %v9650
      %v10314 = vunpack.c.h.b16 %v9650
      %v10315 = vunpack.c.l.b16 %v9651
      %v10316 = vunpack.c.h.b16 %v9651
      %v10317 = vunpack.c.l.b16 %v9652
      %v10318 = vunpack.c.h.b16 %v9652
      %v10319 = vunpack.c.l.b16 %v9653
      %v10320 = vunpack.c.h.b16 %v9653
      %v10321 = vunpack.c.l.b16 %v9654
      %v10322 = vunpack.c.h.b16 %v9654
      %v10323 = vunpack.c.l.b16 %v9655
      %v10324 = vunpack.c.h.b16 %v9655
      %v10325 = vunpack.c.l.b16 %v9656
      %v10326 = vunpack.c.h.b16 %v9656
      %v10327 = vunpack.c.l.b16 %v9657
      %v10328 = vunpack.c.h.b16 %v9657
      %v10329 = vunpack.c.l.b16 %v9658
      %v10330 = vunpack.c.h.b16 %v9658
      %v10331 = vunpack.c.l.b16 %v9659
      %v10332 = vunpack.c.h.b16 %v9659
      %v10333 = vunpack.c.l.b16 %v9660
      %v10334 = vunpack.c.h.b16 %v9660
      %v10335 = vunpack.c.l.b16 %v9661
      %v10336 = vunpack.c.h.b16 %v9661
      %v10337 = vunpack.c.l.b16 %v9662
      %v10338 = vunpack.c.h.b16 %v9662
      %v10339 = vunpack.c.l.b16 %v9663
      %v10340 = vunpack.c.h.b16 %v9663
      %v10341 = vunpack.c.l.b16 %v9664
      %v10342 = vunpack.c.h.b16 %v9664
      %v10343 = vunpack.c.l.b16 %v9665
      %v10344 = vunpack.c.h.b16 %v9665
      %v10345 = vunpack.c.l.b16 %v9666
      %v10346 = vunpack.c.h.b16 %v9666
      %v10347 = vunpack.c.l.b16 %v9667
      %v10348 = vunpack.c.h.b16 %v9667
      %v10349 = vunpack.c.l.b16 %v9668
      %v10350 = vunpack.c.h.b16 %v9668
      %v10351 = vunpack.c.l.b16 %v9669
      %v10352 = vunpack.c.h.b16 %v9669
      %v10353 = vunpack.c.l.b16 %v9670
      %v10354 = vunpack.c.h.b16 %v9670
      %v10355 = vunpack.c.l.b16 %v9671
      %v10356 = vunpack.c.h.b16 %v9671
      %v10357 = vunpack.c.l.b16 %v9672
      %v10358 = vunpack.c.h.b16 %v9672
      %v10359 = vunpack.c.l.b16 %v9673
      %v10360 = vunpack.c.h.b16 %v9673
      %v10361 = vunpack.c.l.b16 %v9674
      %v10362 = vunpack.c.h.b16 %v9674
      %v10363 = vunpack.c.l.b16 %v9675
      %v10364 = vunpack.c.h.b16 %v9675
      %v10365 = vunpack.c.l.b16 %v9676
      %v10366 = vunpack.c.h.b16 %v9676
      %v10367 = vunpack.c.l.b16 %v9677
      %v10368 = vunpack.c.h.b16 %v9677
      %v10369 = vunpack.c.l.b16 %v9678
      %v10370 = vunpack.c.h.b16 %v9678
      %v10371 = vunpack.c.l.b16 %v9679
      %v10372 = vunpack.c.h.b16 %v9679
      %v10373 = vunpack.c.l.b16 %v9680
      %v10374 = vunpack.c.h.b16 %v9680
      %v10375 = vunpack.c.l.b16 %v9681
      %v10376 = vunpack.c.h.b16 %v9681
      %v10377 = vunpack.c.l.b16 %v9682
      %v10378 = vunpack.c.h.b16 %v9682
      %v10379 = vunpack.c.l.b16 %v9683
      %v10380 = vunpack.c.h.b16 %v9683
      %v10381 = vunpack.c.l.b16 %v9684
      %v10382 = vunpack.c.h.b16 %v9684
      %v10383 = vunpack.c.l.b16 %v9685
      %v10384 = vunpack.c.h.b16 %v9685
      %v10385 = vunpack.c.l.b16 %v9686
      %v10386 = vunpack.c.h.b16 %v9686
      %v10387 = vunpack.c.l.b16 %v9687
      %v10388 = vunpack.c.h.b16 %v9687
      %v10389 = vunpack.c.l.b16 %v9688
      %v10390 = vunpack.c.h.b16 %v9688
      %v10391 = vunpack.c.l.b16 %v9689
      %v10392 = vunpack.c.h.b16 %v9689
      %v10393 = vunpack.c.l.b16 %v9690
      %v10394 = vunpack.c.h.b16 %v9690
      %v10395 = vunpack.c.l.b16 %v9691
      %v10396 = vunpack.c.h.b16 %v9691
      %v10397 = vunpack.c.l.b16 %v9692
      %v10398 = vunpack.c.h.b16 %v9692
      %v10399 = vunpack.c.l.b16 %v9693
      %v10400 = vunpack.c.h.b16 %v9693
      %v10401 = vunpack.c.l.b16 %v9694
      %v10402 = vunpack.c.h.b16 %v9694
      %v10403 = vunpack.c.l.b16 %v9695
      %v10404 = vunpack.c.h.b16 %v9695
      %v10405 = vunpack.c.l.b16 %v9696
      %v10406 = vunpack.c.h.b16 %v9696
      %v10407 = vunpack.c.l.b16 %v9697
      %v10408 = vunpack.c.h.b16 %v9697
      %v10409 = vunpack.c.l.b16 %v9698
      %v10410 = vunpack.c.h.b16 %v9698
      %v10411 = vunpack.c.l.b16 %v9699
      %v10412 = vunpack.c.h.b16 %v9699
      %v10413 = vunpack.c.l.b16 %v9700
      %v10414 = vunpack.c.h.b16 %v9700
      %v10415 = vunpack.c.l.b16 %v9701
      %v10416 = vunpack.c.h.b16 %v9701
      %v10417 = vunpack.c.l.b16 %v9702
      %v10418 = vunpack.c.h.b16 %v9702
      %v10419 = vunpack.c.l.b16 %v9703
      %v10420 = vunpack.c.h.b16 %v9703
      %v10421 = vunpack.c.l.b16 %v9704
      %v10422 = vunpack.c.h.b16 %v9704
      %v10423 = vunpack.c.l.b16 %v9705
      %v10424 = vunpack.c.h.b16 %v9705
      %v10425 = vunpack.c.l.b16 %v9706
      %v10426 = vunpack.c.h.b16 %v9706
      %v10427 = vunpack.c.l.b16 %v9707
      %v10428 = vunpack.c.h.b16 %v9707
      %v10429 = vunpack.c.l.b16 %v9708
      %v10430 = vunpack.c.h.b16 %v9708
      %v10431 = vunpack.c.l.b16 %v9709
      %v10432 = vunpack.c.h.b16 %v9709
      %v10433 = vunpack.c.l.b16 %v9710
      %v10434 = vunpack.c.h.b16 %v9710
      %v10435 = vunpack.c.l.b16 %v9711
      %v10436 = vunpack.c.h.b16 %v9711
      %v10437 = vunpack.c.l.b16 %v9712
      %v10438 = vunpack.c.h.b16 %v9712
      %v10439 = vunpack.c.l.b16 %v9713
      %v10440 = vunpack.c.h.b16 %v9713
      %v10441 = vunpack.c.l.b16 %v9714
      %v10442 = vunpack.c.h.b16 %v9714
      %v10443 = vunpack.c.l.b16 %v9715
      %v10444 = vunpack.c.h.b16 %v9715
      %v10445 = vunpack.c.l.b16 %v9716
      %v10446 = vunpack.c.h.b16 %v9716
      %v10447 = vunpack.c.l.b16 %v9717
      %v10448 = vunpack.c.h.b16 %v9717
      %v10449 = vunpack.c.l.b16 %v9718
      %v10450 = vunpack.c.h.b16 %v9718
      %v10451 = vunpack.c.l.b16 %v9719
      %v10452 = vunpack.c.h.b16 %v9719
      %v10453 = vunpack.c.l.b16 %v9720
      %v10454 = vunpack.c.h.b16 %v9720
      %v10455 = vunpack.c.l.b16 %v9721
      %v10456 = vunpack.c.h.b16 %v9721
      %v10457 = vunpack.c.l.b16 %v9722
      %v10458 = vunpack.c.h.b16 %v9722
      %v10459 = vunpack.c.l.b16 %v9723
      %v10460 = vunpack.c.h.b16 %v9723
      %v10461 = vunpack.c.l.b16 %v9724
      %v10462 = vunpack.c.h.b16 %v9724
      %v10463 = vunpack.c.l.b16 %v9725
      %v10464 = vunpack.c.h.b16 %v9725
      %v10465 = vunpack.c.l.b16 %v9726
      %v10466 = vunpack.c.h.b16 %v9726
      %v10467 = vunpack.c.l.b16 %v9727
      %v10468 = vunpack.c.h.b16 %v9727
      %v10469 = vunpack.c.l.b16 %v9728
      %v10470 = vunpack.c.h.b16 %v9728
      %v10471 = vunpack.c.l.b16 %v9729
      %v10472 = vunpack.c.h.b16 %v9729
      %v10473 = vunpack.c.l.b16 %v9730
      %v10474 = vunpack.c.h.b16 %v9730
      %v10475 = vunpack.c.l.b16 %v9731
      %v10476 = vunpack.c.h.b16 %v9731
      %v10477 = vunpack.c.l.b16 %v9732
      %v10478 = vunpack.c.h.b16 %v9732
      %v10479 = vunpack.c.l.b16 %v9733
      %v10480 = vunpack.c.h.b16 %v9733
      %v10481 = vunpack.c.l.b16 %v9734
      %v10482 = vunpack.c.h.b16 %v9734
      %v10483 = vunpack.c.l.b16 %v9735
      %v10484 = vunpack.c.h.b16 %v9735
      %v10485 = vunpack.c.l.b16 %v9736
      %v10486 = vunpack.c.h.b16 %v9736
      %v10487 = vunpack.c.l.b16 %v9737
      %v10488 = vunpack.c.h.b16 %v9737
      %v10489 = vunpack.c.l.b16 %v9738
      %v10490 = vunpack.c.h.b16 %v9738
      %v10491 = vunpack.c.l.b16 %v9739
      %v10492 = vunpack.c.h.b16 %v9739
      %v10493 = vunpack.c.l.b16 %v9740
      %v10494 = vunpack.c.h.b16 %v9740
      %v10495 = vunpack.c.l.b16 %v9741
      %v10496 = vunpack.c.h.b16 %v9741
      %v10497 = vunpack.c.l.b16 %v9742
      %v10498 = vunpack.c.h.b16 %v9742
      %v10499 = vunpack.c.l.b16 %v9743
      %v10500 = vunpack.c.h.b16 %v9743
      %v10501 = vunpack.c.l.b16 %v9744
      %v10502 = vunpack.c.h.b16 %v9744
      %v10503 = vunpack.c.l.b16 %v9745
      %v10504 = vunpack.c.h.b16 %v9745
      %v10505 = vunpack.c.l.b16 %v9746
      %v10506 = vunpack.c.h.b16 %v9746
      %v10507 = vunpack.c.l.b16 %v9747
      %v10508 = vunpack.c.h.b16 %v9747
      %v10509 = vunpack.c.l.b16 %v9748
      %v10510 = vunpack.c.h.b16 %v9748
      %v10511 = vunpack.c.l.b16 %v9749
      %v10512 = vunpack.c.h.b16 %v9749
      %v10513 = vunpack.c.l.b16 %v9750
      %v10514 = vunpack.c.h.b16 %v9750
      %v10515 = vunpack.c.l.b16 %v9751
      %v10516 = vunpack.c.h.b16 %v9751
      %v10517 = vunpack.c.l.b16 %v9752
      %v10518 = vunpack.c.h.b16 %v9752
      %v10519 = vunpack.c.l.b16 %v9753
      %v10520 = vunpack.c.h.b16 %v9753
      %v10521 = vunpack.c.l.b16 %v9754
      %v10522 = vunpack.c.h.b16 %v9754
      %v10523 = vunpack.c.l.b16 %v9755
      %v10524 = vunpack.c.h.b16 %v9755
      %v10525 = vunpack.c.l.b16 %v9756
      %v10526 = vunpack.c.h.b16 %v9756
      %v10527 = vunpack.c.l.b16 %v9757
      %v10528 = vunpack.c.h.b16 %v9757
      %v10529 = vunpack.c.l.b16 %v9758
      %v10530 = vunpack.c.h.b16 %v9758
      %v10531 = vunpack.c.l.b16 %v9759
      %v10532 = vunpack.c.h.b16 %v9759
      %v10533 = vunpack.c.l.b16 %v9760
      %v10534 = vunpack.c.h.b16 %v9760
      %v10535 = vunpack.c.l.b16 %v9761
      %v10536 = vunpack.c.h.b16 %v9761
      %v10537 = vunpack.c.l.b16 %v9762
      %v10538 = vunpack.c.h.b16 %v9762
      %v10539 = vunpack.c.l.b16 %v9763
      %v10540 = vunpack.c.h.b16 %v9763
      %v10541 = vunpack.c.l.b16 %v9764
      %v10542 = vunpack.c.h.b16 %v9764
      %v10543 = vunpack.c.l.b16 %v9765
      %v10544 = vunpack.c.h.b16 %v9765
      %v10545 = vunpack.c.l.b16 %v9766
      %v10546 = vunpack.c.h.b16 %v9766
      %v10547 = vpack.c.b16 %v10037, %v10035
      %v10548 = vpack.c.b16 %v10038, %v10036
      %v10549 = vpack.c.b16 %v10041, %v10039
      %v10550 = vpack.c.b16 %v10042, %v10040
      %v10551 = vpack.c.b16 %v10045, %v10043
      %v10552 = vpack.c.b16 %v10046, %v10044
      %v10553 = vpack.c.b16 %v10049, %v10047
      %v10554 = vpack.c.b16 %v10050, %v10048
      %v10555 = vpack.c.b16 %v10053, %v10051
      %v10556 = vpack.c.b16 %v10054, %v10052
      %v10557 = vpack.c.b16 %v10057, %v10055
      %v10558 = vpack.c.b16 %v10058, %v10056
      %v10559 = vpack.c.b16 %v10061, %v10059
      %v10560 = vpack.c.b16 %v10062, %v10060
      %v10561 = vpack.c.b16 %v10065, %v10063
      %v10562 = vpack.c.b16 %v10066, %v10064
      %v10563 = vpack.c.b16 %v10069, %v10067
      %v10564 = vpack.c.b16 %v10070, %v10068
      %v10565 = vpack.c.b16 %v10073, %v10071
      %v10566 = vpack.c.b16 %v10074, %v10072
      %v10567 = vpack.c.b16 %v10077, %v10075
      %v10568 = vpack.c.b16 %v10078, %v10076
      %v10569 = vpack.c.b16 %v10081, %v10079
      %v10570 = vpack.c.b16 %v10082, %v10080
      %v10571 = vpack.c.b16 %v10085, %v10083
      %v10572 = vpack.c.b16 %v10086, %v10084
      %v10573 = vpack.c.b16 %v10089, %v10087
      %v10574 = vpack.c.b16 %v10090, %v10088
      %v10575 = vpack.c.b16 %v10093, %v10091
      %v10576 = vpack.c.b16 %v10094, %v10092
      %v10577 = vpack.c.b16 %v10097, %v10095
      %v10578 = vpack.c.b16 %v10098, %v10096
      %v10579 = vpack.c.b16 %v10101, %v10099
      %v10580 = vpack.c.b16 %v10102, %v10100
      %v10581 = vpack.c.b16 %v10105, %v10103
      %v10582 = vpack.c.b16 %v10106, %v10104
      %v10583 = vpack.c.b16 %v10109, %v10107
      %v10584 = vpack.c.b16 %v10110, %v10108
      %v10585 = vpack.c.b16 %v10113, %v10111
      %v10586 = vpack.c.b16 %v10114, %v10112
      %v10587 = vpack.c.b16 %v10117, %v10115
      %v10588 = vpack.c.b16 %v10118, %v10116
      %v10589 = vpack.c.b16 %v10121, %v10119
      %v10590 = vpack.c.b16 %v10122, %v10120
      %v10591 = vpack.c.b16 %v10125, %v10123
      %v10592 = vpack.c.b16 %v10126, %v10124
      %v10593 = vpack.c.b16 %v10129, %v10127
      %v10594 = vpack.c.b16 %v10130, %v10128
      %v10595 = vpack.c.b16 %v10133, %v10131
      %v10596 = vpack.c.b16 %v10134, %v10132
      %v10597 = vpack.c.b16 %v10137, %v10135
      %v10598 = vpack.c.b16 %v10138, %v10136
      %v10599 = vpack.c.b16 %v10141, %v10139
      %v10600 = vpack.c.b16 %v10142, %v10140
      %v10601 = vpack.c.b16 %v10145, %v10143
      %v10602 = vpack.c.b16 %v10146, %v10144
      %v10603 = vpack.c.b16 %v10149, %v10147
      %v10604 = vpack.c.b16 %v10150, %v10148
      %v10605 = vpack.c.b16 %v10153, %v10151
      %v10606 = vpack.c.b16 %v10154, %v10152
      %v10607 = vpack.c.b16 %v10157, %v10155
      %v10608 = vpack.c.b16 %v10158, %v10156
      %v10609 = vpack.c.b16 %v10161, %v10159
      %v10610 = vpack.c.b16 %v10162, %v10160
      %v10611 = vpack.c.b16 %v10165, %v10163
      %v10612 = vpack.c.b16 %v10166, %v10164
      %v10613 = vpack.c.b16 %v10169, %v10167
      %v10614 = vpack.c.b16 %v10170, %v10168
      %v10615 = vpack.c.b16 %v10173, %v10171
      %v10616 = vpack.c.b16 %v10174, %v10172
      %v10617 = vpack.c.b16 %v10177, %v10175
      %v10618 = vpack.c.b16 %v10178, %v10176
      %v10619 = vpack.c.b16 %v10181, %v10179
      %v10620 = vpack.c.b16 %v10182, %v10180
      %v10621 = vpack.c.b16 %v10185, %v10183
      %v10622 = vpack.c.b16 %v10186, %v10184
      %v10623 = vpack.c.b16 %v10189, %v10187
      %v10624 = vpack.c.b16 %v10190, %v10188
      %v10625 = vpack.c.b16 %v10193, %v10191
      %v10626 = vpack.c.b16 %v10194, %v10192
      %v10627 = vpack.c.b16 %v10197, %v10195
      %v10628 = vpack.c.b16 %v10198, %v10196
      %v10629 = vpack.c.b16 %v10201, %v10199
      %v10630 = vpack.c.b16 %v10202, %v10200
      %v10631 = vpack.c.b16 %v10205, %v10203
      %v10632 = vpack.c.b16 %v10206, %v10204
      %v10633 = vpack.c.b16 %v10209, %v10207
      %v10634 = vpack.c.b16 %v10210, %v10208
      %v10635 = vpack.c.b16 %v10213, %v10211
      %v10636 = vpack.c.b16 %v10214, %v10212
      %v10637 = vpack.c.b16 %v10217, %v10215
      %v10638 = vpack.c.b16 %v10218, %v10216
      %v10639 = vpack.c.b16 %v10221, %v10219
      %v10640 = vpack.c.b16 %v10222, %v10220
      %v10641 = vpack.c.b16 %v10225, %v10223
      %v10642 = vpack.c.b16 %v10226, %v10224
      %v10643 = vpack.c.b16 %v10229, %v10227
      %v10644 = vpack.c.b16 %v10230, %v10228
      %v10645 = vpack.c.b16 %v10233, %v10231
      %v10646 = vpack.c.b16 %v10234, %v10232
      %v10647 = vpack.c.b16 %v10237, %v10235
      %v10648 = vpack.c.b16 %v10238, %v10236
      %v10649 = vpack.c.b16 %v10241, %v10239
      %v10650 = vpack.c.b16 %v10242, %v10240
      %v10651 = vpack.c.b16 %v10245, %v10243
      %v10652 = vpack.c.b16 %v10246, %v10244
      %v10653 = vpack.c.b16 %v10249, %v10247
      %v10654 = vpack.c.b16 %v10250, %v10248
      %v10655 = vpack.c.b16 %v10253, %v10251
      %v10656 = vpack.c.b16 %v10254, %v10252
      %v10657 = vpack.c.b16 %v10257, %v10255
      %v10658 = vpack.c.b16 %v10258, %v10256
      %v10659 = vpack.c.b16 %v10261, %v10259
      %v10660 = vpack.c.b16 %v10262, %v10260
      %v10661 = vpack.c.b16 %v10265, %v10263
      %v10662 = vpack.c.b16 %v10266, %v10264
      %v10663 = vpack.c.b16 %v10269, %v10267
      %v10664 = vpack.c.b16 %v10270, %v10268
      %v10665 = vpack.c.b16 %v10273, %v10271
      %v10666 = vpack.c.b16 %v10274, %v10272
      %v10667 = vpack.c.b16 %v10277, %v10275
      %v10668 = vpack.c.b16 %v10278, %v10276
      %v10669 = vpack.c.b16 %v10281, %v10279
      %v10670 = vpack.c.b16 %v10282, %v10280
      %v10671 = vpack.c.b16 %v10285, %v10283
      %v10672 = vpack.c.b16 %v10286, %v10284
      %v10673 = vpack.c.b16 %v10289, %v10287
      %v10674 = vpack.c.b16 %v10290, %v10288
      %v10675 = vpack.c.b16 %v10293, %v10291
      %v10676 = vpack.c.b16 %v10294, %v10292
      %v10677 = vpack.c.b16 %v10297, %v10295
      %v10678 = vpack.c.b16 %v10298, %v10296
      %v10679 = vpack.c.b16 %v10301, %v10299
      %v10680 = vpack.c.b16 %v10302, %v10300
      %v10681 = vpack.c.b16 %v10305, %v10303
      %v10682 = vpack.c.b16 %v10306, %v10304
      %v10683 = vpack.c.b16 %v10309, %v10307
      %v10684 = vpack.c.b16 %v10310, %v10308
      %v10685 = vpack.c.b16 %v10313, %v10311
      %v10686 = vpack.c.b16 %v10314, %v10312
      %v10687 = vpack.c.b16 %v10317, %v10315
      %v10688 = vpack.c.b16 %v10318, %v10316
      %v10689 = vpack.c.b16 %v10321, %v10319
      %v10690 = vpack.c.b16 %v10322, %v10320
      %v10691 = vpack.c.b16 %v10325, %v10323
      %v10692 = vpack.c.b16 %v10326, %v10324
      %v10693 = vpack.c.b16 %v10329, %v10327
      %v10694 = vpack.c.b16 %v10330, %v10328
      %v10695 = vpack.c.b16 %v10333, %v10331
      %v10696 = vpack.c.b16 %v10334, %v10332
      %v10697 = vpack.c.b16 %v10337, %v10335
      %v10698 = vpack.c.b16 %v10338, %v10336
      %v10699 = vpack.c.b16 %v10341, %v10339
      %v10700 = vpack.c.b16 %v10342, %v10340
      %v10701 = vpack.c.b16 %v10345, %v10343
      %v10702 = vpack.c.b16 %v10346, %v10344
      %v10703 = vpack.c.b16 %v10349, %v10347
      %v10704 = vpack.c.b16 %v10350, %v10348
      %v10705 = vpack.c.b16 %v10353, %v10351
      %v10706 = vpack.c.b16 %v10354, %v10352
      %v10707 = vpack.c.b16 %v10357, %v10355
      %v10708 = vpack.c.b16 %v10358, %v10356
      %v10709 = vpack.c.b16 %v10361, %v10359
      %v10710 = vpack.c.b16 %v10362, %v10360
      %v10711 = vpack.c.b16 %v10365, %v10363
      %v10712 = vpack.c.b16 %v10366, %v10364
      %v10713 = vpack.c.b16 %v10369, %v10367
      %v10714 = vpack.c.b16 %v10370, %v10368
      %v10715 = vpack.c.b16 %v10373, %v10371
      %v10716 = vpack.c.b16 %v10374, %v10372
      %v10717 = vpack.c.b16 %v10377, %v10375
      %v10718 = vpack.c.b16 %v10378, %v10376
      %v10719 = vpack.c.b16 %v10381, %v10379
      %v10720 = vpack.c.b16 %v10382, %v10380
      %v10721 = vpack.c.b16 %v10385, %v10383
      %v10722 = vpack.c.b16 %v10386, %v10384
      %v10723 = vpack.c.b16 %v10389, %v10387
      %v10724 = vpack.c.b16 %v10390, %v10388
      %v10725 = vpack.c.b16 %v10393, %v10391
      %v10726 = vpack.c.b16 %v10394, %v10392
      %v10727 = vpack.c.b16 %v10397, %v10395
      %v10728 = vpack.c.b16 %v10398, %v10396
      %v10729 = vpack.c.b16 %v10401, %v10399
      %v10730 = vpack.c.b16 %v10402, %v10400
      %v10731 = vpack.c.b16 %v10405, %v10403
      %v10732 = vpack.c.b16 %v10406, %v10404
      %v10733 = vpack.c.b16 %v10409, %v10407
      %v10734 = vpack.c.b16 %v10410, %v10408
      %v10735 = vpack.c.b16 %v10413, %v10411
      %v10736 = vpack.c.b16 %v10414, %v10412
      %v10737 = vpack.c.b16 %v10417, %v10415
      %v10738 = vpack.c.b16 %v10418, %v10416
      %v10739 = vpack.c.b16 %v10421, %v10419
      %v10740 = vpack.c.b16 %v10422, %v10420
      %v10741 = vpack.c.b16 %v10425, %v10423
      %v10742 = vpack.c.b16 %v10426, %v10424
      %v10743 = vpack.c.b16 %v10429, %v10427
      %v10744 = vpack.c.b16 %v10430, %v10428
      %v10745 = vpack.c.b16 %v10433, %v10431
      %v10746 = vpack.c.b16 %v10434, %v10432
      %v10747 = vpack.c.b16 %v10437, %v10435
      %v10748 = vpack.c.b16 %v10438, %v10436
      %v10749 = vpack.c.b16 %v10441, %v10439
      %v10750 = vpack.c.b16 %v10442, %v10440
      %v10751 = vpack.c.b16 %v10445, %v10443
      %v10752 = vpack.c.b16 %v10446, %v10444
      %v10753 = vpack.c.b16 %v10449, %v10447
      %v10754 = vpack.c.b16 %v10450, %v10448
      %v10755 = vpack.c.b16 %v10453, %v10451
      %v10756 = vpack.c.b16 %v10454, %v10452
      %v10757 = vpack.c.b16 %v10457, %v10455
      %v10758 = vpack.c.b16 %v10458, %v10456
      %v10759 = vpack.c.b16 %v10461, %v10459
      %v10760 = vpack.c.b16 %v10462, %v10460
      %v10761 = vpack.c.b16 %v10465, %v10463
      %v10762 = vpack.c.b16 %v10466, %v10464
      %v10763 = vpack.c.b16 %v10469, %v10467
      %v10764 = vpack.c.b16 %v10470, %v10468
      %v10765 = vpack.c.b16 %v10473, %v10471
      %v10766 = vpack.c.b16 %v10474, %v10472
      %v10767 = vpack.c.b16 %v10477, %v10475
      %v10768 = vpack.c.b16 %v10478, %v10476
      %v10769 = vpack.c.b16 %v10481, %v10479
      %v10770 = vpack.c.b16 %v10482, %v10480
      %v10771 = vpack.c.b16 %v10485, %v10483
      %v10772 = vpack.c.b16 %v10486, %v10484
      %v10773 = vpack.c.b16 %v10489, %v10487
      %v10774 = vpack.c.b16 %v10490, %v10488
      %v10775 = vpack.c.b16 %v10493, %v10491
      %v10776 = vpack.c.b16 %v10494, %v10492
      %v10777 = vpack.c.b16 %v10497, %v10495
      %v10778 = vpack.c.b16 %v10498, %v10496
      %v10779 = vpack.c.b16 %v10501, %v10499
      %v10780 = vpack.c.b16 %v10502, %v10500
      %v10781 = vpack.c.b16 %v10505, %v10503
      %v10782 = vpack.c.b16 %v10506, %v10504
      %v10783 = vpack.c.b16 %v10509, %v10507
      %v10784 = vpack.c.b16 %v10510, %v10508
      %v10785 = vpack.c.b16 %v10513, %v10511
      %v10786 = vpack.c.b16 %v10514, %v10512
      %v10787 = vpack.c.b16 %v10517, %v10515
      %v10788 = vpack.c.b16 %v10518, %v10516
      %v10789 = vpack.c.b16 %v10521, %v10519
      %v10790 = vpack.c.b16 %v10522, %v10520
      %v10791 = vpack.c.b16 %v10525, %v10523
      %v10792 = vpack.c.b16 %v10526, %v10524
      %v10793 = vpack.c.b16 %v10529, %v10527
      %v10794 = vpack.c.b16 %v10530, %v10528
      %v10795 = vpack.c.b16 %v10533, %v10531
      %v10796 = vpack.c.b16 %v10534, %v10532
      %v10797 = vpack.c.b16 %v10537, %v10535
      %v10798 = vpack.c.b16 %v10538, %v10536
      %v10799 = vpack.c.b16 %v10541, %v10539
      %v10800 = vpack.c.b16 %v10542, %v10540
      %v10801 = vpack.c.b16 %v10545, %v10543
      %v10802 = vpack.c.b16 %v10546, %v10544
      %11059 = vmatprep.subr.bf16.mxu0 %v10548
      %11060 = vmatpush1.bf16.msra.mxu0 %v10547
      %11061 = vmatprep.subr.bf16.mxu0 %v10550
      %11062 = vmatpush1.bf16.msra.mxu0 %v10549
      %11063 = vmatprep.subr.bf16.mxu0 %v10552
      %11064 = vmatpush1.bf16.msra.mxu0 %v10551
      %11065 = vmatprep.subr.bf16.mxu0 %v10554
      %11066 = vmatpush1.bf16.msra.mxu0 %v10553
      %11067 = vmatprep.subr.bf16.mxu0 %v10556
      %11068 = vmatpush1.bf16.msra.mxu0 %v10555
      %11069 = vmatprep.subr.bf16.mxu0 %v10558
      %11070 = vmatpush1.bf16.msra.mxu0 %v10557
      %11071 = vmatprep.subr.bf16.mxu0 %v10560
      %11072 = vmatpush1.bf16.msra.mxu0 %v10559
      %11073 = vmatprep.subr.bf16.mxu0 %v10562
      %11074 = vmatpush1.bf16.msra.mxu0 %v10561
      %11075 = vmatprep.subr.bf16.mxu0 %v10564
      %11076 = vmatpush1.bf16.msra.mxu0 %v10563
      %11077 = vmatprep.subr.bf16.mxu0 %v10566
      %11078 = vmatpush1.bf16.msra.mxu0 %v10565
      %11079 = vmatprep.subr.bf16.mxu0 %v10568
      %11080 = vmatpush1.bf16.msra.mxu0 %v10567
      %11081 = vmatprep.subr.bf16.mxu0 %v10570
      %11082 = vmatpush1.bf16.msra.mxu0 %v10569
      %11083 = vmatprep.subr.bf16.mxu0 %v10572
      %11084 = vmatpush1.bf16.msra.mxu0 %v10571
      %11085 = vmatprep.subr.bf16.mxu0 %v10574
      %11086 = vmatpush1.bf16.msra.mxu0 %v10573
      %11087 = vmatprep.subr.bf16.mxu0 %v10576
      %11088 = vmatpush1.bf16.msra.mxu0 %v10575
      %11089 = vmatprep.subr.bf16.mxu0 %v10578
      %11090 = vmatpush1.bf16.msra.mxu0 %v10577
      %11091 = vmatprep.mubr.bf16.mxu0 %v9496
      %11092 = vmatmul.mubr.bf16.gmra.mrb[0].mxu0 %v9495
      %v11093 = vpop.f32.mrb[0].mxu0
      %v11094 = vadd.f32 %v9772, %v11093
      %v11095 = vpop.f32.mrb[0].mxu0
      %v11096 = vadd.f32 %v9776, %v11095
      %v11097 = vpop.f32.mrb[0].mxu0
      %v11098 = vpop.f32.mrb[0].mxu0
      %11099 = vdwg.mxu0
      %11100 = vmatprep.subr.bf16.mxu0 %v10580
      %11101 = vmatpush1.bf16.msra.mxu0 %v10579
      %11102 = vmatprep.subr.bf16.mxu0 %v10582
      %11103 = vmatpush1.bf16.msra.mxu0 %v10581
      %11104 = vmatprep.subr.bf16.mxu0 %v10584
      %11105 = vmatpush1.bf16.msra.mxu0 %v10583
      %11106 = vmatprep.subr.bf16.mxu0 %v10586
      %11107 = vmatpush1.bf16.msra.mxu0 %v10585
      %11108 = vmatprep.subr.bf16.mxu0 %v10588
      %11109 = vmatpush1.bf16.msra.mxu0 %v10587
      %11110 = vmatprep.subr.bf16.mxu0 %v10590
      %11111 = vmatpush1.bf16.msra.mxu0 %v10589
      %11112 = vmatprep.subr.bf16.mxu0 %v10592
      %11113 = vmatpush1.bf16.msra.mxu0 %v10591
      %11114 = vmatprep.subr.bf16.mxu0 %v10594
      %11115 = vmatpush1.bf16.msra.mxu0 %v10593
      %11116 = vmatprep.subr.bf16.mxu0 %v10596
      %11117 = vmatpush1.bf16.msra.mxu0 %v10595
      %11118 = vmatprep.subr.bf16.mxu0 %v10598
      %11119 = vmatpush1.bf16.msra.mxu0 %v10597
      %11120 = vmatprep.subr.bf16.mxu0 %v10600
      %11121 = vmatpush1.bf16.msra.mxu0 %v10599
      %11122 = vmatprep.subr.bf16.mxu0 %v10602
      %11123 = vmatpush1.bf16.msra.mxu0 %v10601
      %11124 = vmatprep.subr.bf16.mxu0 %v10604
      %11125 = vmatpush1.bf16.msra.mxu0 %v10603
      %11126 = vmatprep.subr.bf16.mxu0 %v10606
      %11127 = vmatpush1.bf16.msra.mxu0 %v10605
      %11128 = vmatprep.subr.bf16.mxu0 %v10608
      %11129 = vmatpush1.bf16.msra.mxu0 %v10607
      %11130 = vmatprep.subr.bf16.mxu0 %v10610
      %11131 = vmatpush1.bf16.msra.mxu0 %v10609
      %11132 = vmatprep.mubr.bf16.mxu0 %v9498
      %11133 = vmatmul.mubr.bf16.gmra.mrb[0].mxu0 %v9497
      %v11134 = vpop.f32.mrb[0].mxu0
      %v11135 = vadd.f32 %v11094, %v11134
      %v11136 = vpop.f32.mrb[0].mxu0
      %v11137 = vadd.f32 %v11096, %v11136
      %v11138 = vpop.f32.mrb[0].mxu0
      %v11139 = vpop.f32.mrb[0].mxu0
      %11140 = vdwg.mxu0
      %11141 = vmatprep.subr.bf16.mxu0 %v10612
      %11142 = vmatpush1.bf16.msra.mxu0 %v10611
      %11143 = vmatprep.subr.bf16.mxu0 %v10614
      %11144 = vmatpush1.bf16.msra.mxu0 %v10613
      %11145 = vmatprep.subr.bf16.mxu0 %v10616
      %11146 = vmatpush1.bf16.msra.mxu0 %v10615
      %11147 = vmatprep.subr.bf16.mxu0 %v10618
      %11148 = vmatpush1.bf16.msra.mxu0 %v10617
      %11149 = vmatprep.subr.bf16.mxu0 %v10620
      %11150 = vmatpush1.bf16.msra.mxu0 %v10619
      %11151 = vmatprep.subr.bf16.mxu0 %v10622
      %11152 = vmatpush1.bf16.msra.mxu0 %v10621
      %11153 = vmatprep.subr.bf16.mxu0 %v10624
      %11154 = vmatpush1.bf16.msra.mxu0 %v10623
      %11155 = vmatprep.subr.bf16.mxu0 %v10626
      %11156 = vmatpush1.bf16.msra.mxu0 %v10625
      %11157 = vmatprep.subr.bf16.mxu0 %v10628
      %11158 = vmatpush1.bf16.msra.mxu0 %v10627
      %11159 = vmatprep.subr.bf16.mxu0 %v10630
      %11160 = vmatpush1.bf16.msra.mxu0 %v10629
      %11161 = vmatprep.subr.bf16.mxu0 %v10632
      %11162 = vmatpush1.bf16.msra.mxu0 %v10631
      %11163 = vmatprep.subr.bf16.mxu0 %v10634
      %11164 = vmatpush1.bf16.msra.mxu0 %v10633
      %11165 = vmatprep.subr.bf16.mxu0 %v10636
      %11166 = vmatpush1.bf16.msra.mxu0 %v10635
      %11167 = vmatprep.subr.bf16.mxu0 %v10638
      %11168 = vmatpush1.bf16.msra.mxu0 %v10637
      %11169 = vmatprep.subr.bf16.mxu0 %v10640
      %11170 = vmatpush1.bf16.msra.mxu0 %v10639
      %11171 = vmatprep.subr.bf16.mxu0 %v10642
      %11172 = vmatpush1.bf16.msra.mxu0 %v10641
      %11173 = vmatprep.mubr.bf16.mxu0 %v9500
      %11174 = vmatmul.mubr.bf16.gmra.mrb[0].mxu0 %v9499
      %v11175 = vpop.f32.mrb[0].mxu0
      %v11176 = vadd.f32 %v11135, %v11175
      %v11177 = vpop.f32.mrb[0].mxu0
      %v11178 = vadd.f32 %v11137, %v11177
      %v11179 = vpop.f32.mrb[0].mxu0
      %v11180 = vpop.f32.mrb[0].mxu0
      %11181 = vdwg.mxu0
      %11182 = vmatprep.subr.bf16.mxu0 %v10644
      %11183 = vmatpush1.bf16.msra.mxu0 %v10643
      %11184 = vmatprep.subr.bf16.mxu0 %v10646
      %11185 = vmatpush1.bf16.msra.mxu0 %v10645
      %11186 = vmatprep.subr.bf16.mxu0 %v10648
      %11187 = vmatpush1.bf16.msra.mxu0 %v10647
      %11188 = vmatprep.subr.bf16.mxu0 %v10650
      %11189 = vmatpush1.bf16.msra.mxu0 %v10649
      %11190 = vmatprep.subr.bf16.mxu0 %v10652
      %11191 = vmatpush1.bf16.msra.mxu0 %v10651
      %11192 = vmatprep.subr.bf16.mxu0 %v10654
      %11193 = vmatpush1.bf16.msra.mxu0 %v10653
      %11194 = vmatprep.subr.bf16.mxu0 %v10656
      %11195 = vmatpush1.bf16.msra.mxu0 %v10655
      %11196 = vmatprep.subr.bf16.mxu0 %v10658
      %11197 = vmatpush1.bf16.msra.mxu0 %v10657
      %11198 = vmatprep.subr.bf16.mxu0 %v10660
      %11199 = vmatpush1.bf16.msra.mxu0 %v10659
      %11200 = vmatprep.subr.bf16.mxu0 %v10662
      %11201 = vmatpush1.bf16.msra.mxu0 %v10661
      %11202 = vmatprep.subr.bf16.mxu0 %v10664
      %11203 = vmatpush1.bf16.msra.mxu0 %v10663
      %11204 = vmatprep.subr.bf16.mxu0 %v10666
      %11205 = vmatpush1.bf16.msra.mxu0 %v10665
      %11206 = vmatprep.subr.bf16.mxu0 %v10668
      %11207 = vmatpush1.bf16.msra.mxu0 %v10667
      %11208 = vmatprep.subr.bf16.mxu0 %v10670
      %11209 = vmatpush1.bf16.msra.mxu0 %v10669
      %11210 = vmatprep.subr.bf16.mxu0 %v10672
      %11211 = vmatpush1.bf16.msra.mxu0 %v10671
      %11212 = vmatprep.subr.bf16.mxu0 %v10674
      %11213 = vmatpush1.bf16.msra.mxu0 %v10673
      %11214 = vmatprep.mubr.bf16.mxu0 %v9502
      %11215 = vmatmul.mubr.bf16.gmra.mrb[0].mxu0 %v9501
      %v11216 = vpop.f32.mrb[0].mxu0
      %v11217 = vadd.f32 %v11176, %v11216
      %v11218 = vpop.f32.mrb[0].mxu0
      %v11219 = vadd.f32 %v11178, %v11218
      %v11220 = vpop.f32.mrb[0].mxu0
      %v11221 = vpop.f32.mrb[0].mxu0
      %11222 = vdwg.mxu0
      %11223 = vmatprep.subr.bf16.mxu0 %v10676
      %11224 = vmatpush1.bf16.msra.mxu0 %v10675
      %11225 = vmatprep.subr.bf16.mxu0 %v10678
      %11226 = vmatpush1.bf16.msra.mxu0 %v10677
      %11227 = vmatprep.subr.bf16.mxu0 %v10680
      %11228 = vmatpush1.bf16.msra.mxu0 %v10679
      %11229 = vmatprep.subr.bf16.mxu0 %v10682
      %11230 = vmatpush1.bf16.msra.mxu0 %v10681
      %11231 = vmatprep.subr.bf16.mxu0 %v10684
      %11232 = vmatpush1.bf16.msra.mxu0 %v10683
      %11233 = vmatprep.subr.bf16.mxu0 %v10686
      %11234 = vmatpush1.bf16.msra.mxu0 %v10685
      %11235 = vmatprep.subr.bf16.mxu0 %v10688
      %11236 = vmatpush1.bf16.msra.mxu0 %v10687
      %11237 = vmatprep.subr.bf16.mxu0 %v10690
      %11238 = vmatpush1.bf16.msra.mxu0 %v10689
      %11239 = vmatprep.subr.bf16.mxu0 %v10692
      %11240 = vmatpush1.bf16.msra.mxu0 %v10691
      %11241 = vmatprep.subr.bf16.mxu0 %v10694
      %11242 = vmatpush1.bf16.msra.mxu0 %v10693
      %11243 = vmatprep.subr.bf16.mxu0 %v10696
      %11244 = vmatpush1.bf16.msra.mxu0 %v10695
      %11245 = vmatprep.subr.bf16.mxu0 %v10698
      %11246 = vmatpush1.bf16.msra.mxu0 %v10697
      %11247 = vmatprep.subr.bf16.mxu0 %v10700
      %11248 = vmatpush1.bf16.msra.mxu0 %v10699
      %11249 = vmatprep.subr.bf16.mxu0 %v10702
      %11250 = vmatpush1.bf16.msra.mxu0 %v10701
      %11251 = vmatprep.subr.bf16.mxu0 %v10704
      %11252 = vmatpush1.bf16.msra.mxu0 %v10703
      %11253 = vmatprep.subr.bf16.mxu0 %v10706
      %11254 = vmatpush1.bf16.msra.mxu0 %v10705
      %11255 = vmatprep.mubr.bf16.mxu0 %v9504
      %11256 = vmatmul.mubr.bf16.gmra.mrb[0].mxu0 %v9503
      %v11257 = vpop.f32.mrb[0].mxu0
      %v11258 = vadd.f32 %v11217, %v11257
      %v11259 = vpop.f32.mrb[0].mxu0
      %v11260 = vadd.f32 %v11219, %v11259
      %v11261 = vpop.f32.mrb[0].mxu0
      %v11262 = vpop.f32.mrb[0].mxu0
      %11263 = vdwg.mxu0
      %11264 = vmatprep.subr.bf16.mxu0 %v10708
      %11265 = vmatpush1.bf16.msra.mxu0 %v10707
      %11266 = vmatprep.subr.bf16.mxu0 %v10710
      %11267 = vmatpush1.bf16.msra.mxu0 %v10709
      %11268 = vmatprep.subr.bf16.mxu0 %v10712
      %11269 = vmatpush1.bf16.msra.mxu0 %v10711
      %11270 = vmatprep.subr.bf16.mxu0 %v10714
      %11271 = vmatpush1.bf16.msra.mxu0 %v10713
      %11272 = vmatprep.subr.bf16.mxu0 %v10716
      %11273 = vmatpush1.bf16.msra.mxu0 %v10715
      %11274 = vmatprep.subr.bf16.mxu0 %v10718
      %11275 = vmatpush1.bf16.msra.mxu0 %v10717
      %11276 = vmatprep.subr.bf16.mxu0 %v10720
      %11277 = vmatpush1.bf16.msra.mxu0 %v10719
      %11278 = vmatprep.subr.bf16.mxu0 %v10722
      %11279 = vmatpush1.bf16.msra.mxu0 %v10721
      %11280 = vmatprep.subr.bf16.mxu0 %v10724
      %11281 = vmatpush1.bf16.msra.mxu0 %v10723
      %11282 = vmatprep.subr.bf16.mxu0 %v10726
      %11283 = vmatpush1.bf16.msra.mxu0 %v10725
      %11284 = vmatprep.subr.bf16.mxu0 %v10728
      %11285 = vmatpush1.bf16.msra.mxu0 %v10727
      %11286 = vmatprep.subr.bf16.mxu0 %v10730
      %11287 = vmatpush1.bf16.msra.mxu0 %v10729
      %11288 = vmatprep.subr.bf16.mxu0 %v10732
      %11289 = vmatpush1.bf16.msra.mxu0 %v10731
      %11290 = vmatprep.subr.bf16.mxu0 %v10734
      %11291 = vmatpush1.bf16.msra.mxu0 %v10733
      %11292 = vmatprep.subr.bf16.mxu0 %v10736
      %11293 = vmatpush1.bf16.msra.mxu0 %v10735
      %11294 = vmatprep.subr.bf16.mxu0 %v10738
      %11295 = vmatpush1.bf16.msra.mxu0 %v10737
      %11296 = vmatprep.mubr.bf16.mxu0 %v9506
      %11297 = vmatmul.mubr.bf16.gmra.mrb[0].mxu0 %v9505
      %v11298 = vpop.f32.mrb[0].mxu0
      %v11299 = vadd.f32 %v11258, %v11298
      %v11300 = vpop.f32.mrb[0].mxu0
      %v11301 = vadd.f32 %v11260, %v11300
      %v11302 = vpop.f32.mrb[0].mxu0
      %v11303 = vpop.f32.mrb[0].mxu0
      %11304 = vdwg.mxu0
      %11305 = vmatprep.subr.bf16.mxu0 %v10740
      %11306 = vmatpush1.bf16.msra.mxu0 %v10739
      %11307 = vmatprep.subr.bf16.mxu0 %v10742
      %11308 = vmatpush1.bf16.msra.mxu0 %v10741
      %11309 = vmatprep.subr.bf16.mxu0 %v10744
      %11310 = vmatpush1.bf16.msra.mxu0 %v10743
      %11311 = vmatprep.subr.bf16.mxu0 %v10746
      %11312 = vmatpush1.bf16.msra.mxu0 %v10745
      %11313 = vmatprep.subr.bf16.mxu0 %v10748
      %11314 = vmatpush1.bf16.msra.mxu0 %v10747
      %11315 = vmatprep.subr.bf16.mxu0 %v10750
      %11316 = vmatpush1.bf16.msra.mxu0 %v10749
      %11317 = vmatprep.subr.bf16.mxu0 %v10752
      %11318 = vmatpush1.bf16.msra.mxu0 %v10751
      %11319 = vmatprep.subr.bf16.mxu0 %v10754
      %11320 = vmatpush1.bf16.msra.mxu0 %v10753
      %11321 = vmatprep.subr.bf16.mxu0 %v10756
      %11322 = vmatpush1.bf16.msra.mxu0 %v10755
      %11323 = vmatprep.subr.bf16.mxu0 %v10758
      %11324 = vmatpush1.bf16.msra.mxu0 %v10757
      %11325 = vmatprep.subr.bf16.mxu0 %v10760
      %11326 = vmatpush1.bf16.msra.mxu0 %v10759
      %11327 = vmatprep.subr.bf16.mxu0 %v10762
      %11328 = vmatpush1.bf16.msra.mxu0 %v10761
      %11329 = vmatprep.subr.bf16.mxu0 %v10764
      %11330 = vmatpush1.bf16.msra.mxu0 %v10763
      %11331 = vmatprep.subr.bf16.mxu0 %v10766
      %11332 = vmatpush1.bf16.msra.mxu0 %v10765
      %11333 = vmatprep.subr.bf16.mxu0 %v10768
      %11334 = vmatpush1.bf16.msra.mxu0 %v10767
      %11335 = vmatprep.subr.bf16.mxu0 %v10770
      %11336 = vmatpush1.bf16.msra.mxu0 %v10769
      %11337 = vmatprep.mubr.bf16.mxu0 %v9508
      %11338 = vmatmul.mubr.bf16.gmra.mrb[0].mxu0 %v9507
      %v11339 = vpop.f32.mrb[0].mxu0
      %v11340 = vadd.f32 %v11299, %v11339
      %v11341 = vpop.f32.mrb[0].mxu0
      %v11342 = vadd.f32 %v11301, %v11341
      %v11343 = vpop.f32.mrb[0].mxu0
      %v11344 = vpop.f32.mrb[0].mxu0
      %11345 = vdwg.mxu0
      %11346 = vmatprep.subr.bf16.mxu0 %v10772
      %11347 = vmatpush1.bf16.msra.mxu0 %v10771
      %11348 = vmatprep.subr.bf16.mxu0 %v10774
      %11349 = vmatpush1.bf16.msra.mxu0 %v10773
      %11350 = vmatprep.subr.bf16.mxu0 %v10776
      %11351 = vmatpush1.bf16.msra.mxu0 %v10775
      %11352 = vmatprep.subr.bf16.mxu0 %v10778
      %11353 = vmatpush1.bf16.msra.mxu0 %v10777
      %11354 = vmatprep.subr.bf16.mxu0 %v10780
      %11355 = vmatpush1.bf16.msra.mxu0 %v10779
      %11356 = vmatprep.subr.bf16.mxu0 %v10782
      %11357 = vmatpush1.bf16.msra.mxu0 %v10781
      %11358 = vmatprep.subr.bf16.mxu0 %v10784
      %11359 = vmatpush1.bf16.msra.mxu0 %v10783
      %11360 = vmatprep.subr.bf16.mxu0 %v10786
      %11361 = vmatpush1.bf16.msra.mxu0 %v10785
      %11362 = vmatprep.subr.bf16.mxu0 %v10788
      %11363 = vmatpush1.bf16.msra.mxu0 %v10787
      %11364 = vmatprep.subr.bf16.mxu0 %v10790
      %11365 = vmatpush1.bf16.msra.mxu0 %v10789
      %11366 = vmatprep.subr.bf16.mxu0 %v10792
      %11367 = vmatpush1.bf16.msra.mxu0 %v10791
      %11368 = vmatprep.subr.bf16.mxu0 %v10794
      %11369 = vmatpush1.bf16.msra.mxu0 %v10793
      %11370 = vmatprep.subr.bf16.mxu0 %v10796
      %11371 = vmatpush1.bf16.msra.mxu0 %v10795
      %11372 = vmatprep.subr.bf16.mxu0 %v10798
      %11373 = vmatpush1.bf16.msra.mxu0 %v10797
      %11374 = vmatprep.subr.bf16.mxu0 %v10800
      %11375 = vmatpush1.bf16.msra.mxu0 %v10799
      %11376 = vmatprep.subr.bf16.mxu0 %v10802
      %11377 = vmatpush1.bf16.msra.mxu0 %v10801
      %11378 = vmatprep.mubr.bf16.mxu0 %v9510
      %11379 = vmatmul.mubr.bf16.gmra.mrb[0].mxu0 %v9509
      %v11380 = vpop.f32.mrb[0].mxu0
      %v11381 = vadd.f32 %v11340, %v11380
      %v11382 = vpop.f32.mrb[0].mxu0
      %v11383 = vadd.f32 %v11342, %v11382
      %v11384 = vpop.f32.mrb[0].mxu0
      %v11385 = vpop.f32.mrb[0].mxu0
      %11386 = vdwg.mxu0
      %vm11387 = vcmp.gt.f32.partialorder %v11381, 0.0
      %vm11388 = vcmp.gt.f32.partialorder %v11383, 0.0
      %v11389 = vmul.f32 %v11381, 0.2
      %v11390 = vmul.f32 %v11383, 0.2
      %v11391 = vsel %vm11387, %v11381, %v11389
      %v11392 = vsel %vm11388, %v11383, %v11390
      %v11393 = vpack.c.bf16 %v11391, %v11391
      %v11394 = vpack.c.bf16 %v11392, %v11392
      %v11395 = vld [vmem:[%s19] sm:$0xf]
      %v11396 = vld [vmem:[%s19 + $0x4] sm:$0xf]
      %v11397 = vld [vmem:[%s19 + $0x8] sm:$0xf]
      %v11398 = vld [vmem:[%s19 + $0xc] sm:$0xf]
      %v11399 = vld [vmem:[%s19 + $0x10] sm:$0xf]
      %v11400 = vld [vmem:[%s19 + $0x14] sm:$0xf]
      %v11401 = vld [vmem:[%s19 + $0x18] sm:$0xf]
      %v11402 = vld [vmem:[%s19 + $0x1c] sm:$0xf]
      %v11403 = vld [vmem:[%s19 + $0x20] sm:$0xf]
      %v11404 = vld [vmem:[%s19 + $0x24] sm:$0xf]
      %v11405 = vld [vmem:[%s19 + $0x28] sm:$0xf]
      %v11406 = vld [vmem:[%s19 + $0x2c] sm:$0xf]
      %v11407 = vld [vmem:[%s19 + $0x30] sm:$0xf]
      %v11408 = vld [vmem:[%s19 + $0x34] sm:$0xf]
      %v11409 = vld [vmem:[%s19 + $0x38] sm:$0xf]
      %v11410 = vld [vmem:[%s19 + $0x3c] sm:$0xf]
      %v11411 = vld [vmem:[%s19 + $0x40] sm:$0xf]
      %v11412 = vld [vmem:[%s19 + $0x44] sm:$0xf]
      %v11413 = vld [vmem:[%s19 + $0x48] sm:$0xf]
      %v11414 = vld [vmem:[%s19 + $0x4c] sm:$0xf]
      %v11415 = vld [vmem:[%s19 + $0x50] sm:$0xf]
      %v11416 = vld [vmem:[%s19 + $0x54] sm:$0xf]
      %v11417 = vld [vmem:[%s19 + $0x58] sm:$0xf]
      %v11418 = vld [vmem:[%s19 + $0x5c] sm:$0xf]
      %v11419 = vld [vmem:[%s19 + $0x60] sm:$0xf]
      %v11420 = vld [vmem:[%s19 + $0x64] sm:$0xf]
      %v11421 = vld [vmem:[%s19 + $0x68] sm:$0xf]
      %v11422 = vld [vmem:[%s19 + $0x6c] sm:$0xf]
      %v11423 = vld [vmem:[%s19 + $0x70] sm:$0xf]
      %v11424 = vld [vmem:[%s19 + $0x74] sm:$0xf]
      %v11425 = vld [vmem:[%s19 + $0x78] sm:$0xf]
      %v11426 = vld [vmem:[%s19 + $0x7c] sm:$0xf]
      %v11427 = vld [vmem:[%s20] sm:$0x1]
      %v11429 = vlaneseq
      %v11430 = vshrl.u32 %v11429, 7
      %v11431 = vsub.s32 0, %v11430
      %v11432 = vrot.slane %v11427, %v11431
      %v11466 = vunpack.c.l.b16 %v11395
      %v11467 = vunpack.c.l.b16 %v11396
      %v11468 = vunpack.c.l.b16 %v11397
      %v11469 = vunpack.c.l.b16 %v11398
      %v11470 = vunpack.c.l.b16 %v11399
      %v11471 = vunpack.c.l.b16 %v11400
      %v11472 = vunpack.c.l.b16 %v11401
      %v11473 = vunpack.c.l.b16 %v11402
      %v11474 = vunpack.c.l.b16 %v11403
      %v11475 = vunpack.c.l.b16 %v11404
      %v11476 = vunpack.c.l.b16 %v11405
      %v11477 = vunpack.c.l.b16 %v11406
      %v11478 = vunpack.c.l.b16 %v11407
      %v11479 = vunpack.c.l.b16 %v11408
      %v11480 = vunpack.c.l.b16 %v11409
      %v11481 = vunpack.c.l.b16 %v11410
      %v11482 = vunpack.c.l.b16 %v11411
      %v11483 = vunpack.c.l.b16 %v11412
      %v11484 = vunpack.c.l.b16 %v11413
      %v11485 = vunpack.c.l.b16 %v11414
      %v11486 = vunpack.c.l.b16 %v11415
      %v11487 = vunpack.c.l.b16 %v11416
      %v11488 = vunpack.c.l.b16 %v11417
      %v11489 = vunpack.c.l.b16 %v11418
      %v11490 = vunpack.c.l.b16 %v11419
      %v11491 = vunpack.c.l.b16 %v11420
      %v11492 = vunpack.c.l.b16 %v11421
      %v11493 = vunpack.c.l.b16 %v11422
      %v11494 = vunpack.c.l.b16 %v11423
      %v11495 = vunpack.c.l.b16 %v11424
      %v11496 = vunpack.c.l.b16 %v11425
      %v11497 = vunpack.c.l.b16 %v11426
      %v11498 = vpack.c.b16 %v11467, %v11466
      %v11499 = vpack.c.b16 %v11469, %v11468
      %v11500 = vpack.c.b16 %v11471, %v11470
      %v11501 = vpack.c.b16 %v11473, %v11472
      %v11502 = vpack.c.b16 %v11475, %v11474
      %v11503 = vpack.c.b16 %v11477, %v11476
      %v11504 = vpack.c.b16 %v11479, %v11478
      %v11505 = vpack.c.b16 %v11481, %v11480
      %v11506 = vpack.c.b16 %v11483, %v11482
      %v11507 = vpack.c.b16 %v11485, %v11484
      %v11508 = vpack.c.b16 %v11487, %v11486
      %v11509 = vpack.c.b16 %v11489, %v11488
      %v11510 = vpack.c.b16 %v11491, %v11490
      %v11511 = vpack.c.b16 %v11493, %v11492
      %v11512 = vpack.c.b16 %v11495, %v11494
      %v11513 = vpack.c.b16 %v11497, %v11496
      %11530 = vmatprep.subr.bf16.mxu0 0
      %11531 = vmatpush1.bf16.msra.mxu0 %v11498
      %11532 = vmatprep.subr.bf16.mxu0 0
      %11533 = vmatpush1.bf16.msra.mxu0 %v11499
      %11534 = vmatprep.subr.bf16.mxu0 0
      %11535 = vmatpush1.bf16.msra.mxu0 %v11500
      %11536 = vmatprep.subr.bf16.mxu0 0
      %11537 = vmatpush1.bf16.msra.mxu0 %v11501
      %11538 = vmatprep.subr.bf16.mxu0 0
      %11539 = vmatpush1.bf16.msra.mxu0 %v11502
      %11540 = vmatprep.subr.bf16.mxu0 0
      %11541 = vmatpush1.bf16.msra.mxu0 %v11503
      %11542 = vmatprep.subr.bf16.mxu0 0
      %11543 = vmatpush1.bf16.msra.mxu0 %v11504
      %11544 = vmatprep.subr.bf16.mxu0 0
      %11545 = vmatpush1.bf16.msra.mxu0 %v11505
      %11546 = vmatprep.subr.bf16.mxu0 0
      %11547 = vmatpush1.bf16.msra.mxu0 %v11506
      %11548 = vmatprep.subr.bf16.mxu0 0
      %11549 = vmatpush1.bf16.msra.mxu0 %v11507
      %11550 = vmatprep.subr.bf16.mxu0 0
      %11551 = vmatpush1.bf16.msra.mxu0 %v11508
      %11552 = vmatprep.subr.bf16.mxu0 0
      %11553 = vmatpush1.bf16.msra.mxu0 %v11509
      %11554 = vmatprep.subr.bf16.mxu0 0
      %11555 = vmatpush1.bf16.msra.mxu0 %v11510
      %11556 = vmatprep.subr.bf16.mxu0 0
      %11557 = vmatpush1.bf16.msra.mxu0 %v11511
      %11558 = vmatprep.subr.bf16.mxu0 0
      %11559 = vmatpush1.bf16.msra.mxu0 %v11512
      %11560 = vmatprep.subr.bf16.mxu0 0
      %11561 = vmatpush1.bf16.msra.mxu0 %v11513
      %11562 = vmatprep.mubr.bf16.mxu0 %v11394
      %11563 = vmatmul.mubr.bf16.gmra.mrb[0].mxu0 %v11393
      %v11564 = vpop.f32.mrb[0].mxu0
      %v11565 = vadd.f32 %v11432, %v11564
      %v11566 = vpop.f32.mrb[0].mxu0
      %v11567 = vpop.f32.mrb[0].mxu0
      %v11568 = vpop.f32.mrb[0].mxu0
      %11569 = vdwg.mxu0
      %11570 = vst [vmem:[%s656] sm:$0xff] %v11565
      %p11571 = scmp.lt.s32.totalorder %s32, 1
      %s11572 = scalar_select %p11571, %s32, 1
      %s11573 = smul.addr %s11572, 8
      %s11574 = scalar_lea.vmem %s21, %s11573
      // Predicated region
      $region105: #{_lambda_.1} parent=103 // pred_check
        %p11575 = pneg %p496
      $region106: #{_lambda_.1} parent=103 // pred_check_branch
        %11577 = sbr.rel (%p11575) target = $region108
      $region107: #{_lambda_.1} parent=103 // pred_region
        _
      $region108: #{_lambda_.1} parent=103 // pred_fallthru
        _
    $region104: #{_lambda_.1} parent=5 // pred_fallthru
      _
    %p11578 = scmp.le.s32.totalorder 2, %s27
    // Predicated region
    $region109: #{_lambda_.1} parent=5 // pred_check
      %p11579 = pneg %p11578
    $region110: #{_lambda_.1} parent=5 // pred_check_branch
      %11581 = sbr.rel (%p11579) target = $region112
    $region111: #{_lambda_.1} parent=5 // pred_region
      %s11582 = ssub.s32 %s27, 2
      // Predicated region
      $region113: #{_lambda_.1} parent=111 // pred_check
        %p11583 = pneg %p502
      $region114: #{_lambda_.1} parent=111 // pred_check_branch
        %11585 = sbr.rel (%p11583) target = $region116
      $region115: #{_lambda_.1} parent=111 // pred_region
        %p11586 = scmp.lt.s32.totalorder %s33, 1
        %s11587 = scalar_select %p11586, %s33, 1
        %s11588 = smul.addr %s11587, 8
        %s11589 = scalar_lea.vmem %s21, %s11588
      $region116: #{_lambda_.1} parent=111 // pred_fallthru
        _
    $region112: #{_lambda_.1} parent=5 // pred_fallthru
      _
  $region6: #{_lambda_.1} parent=0 // loop_footer
    %s31 = sadd.s32 1, %s27
  $region7: #{_lambda_.1} parent=0 // loop_footer_branch
    %26 = sbr.rel target = $region3
  $region8: #{_lambda_.1} parent=0 // loop_exit
    _

</llo_original>
